<compile_context>
chip_gen: v6e
topology: v6e:2x2x1
jax: 0.10.0
libtpu: 0.0.40
codegen_flags: <defaults>
</compile_context>

<pallas_src>
import functools

import jax
import jax.numpy as jnp
from jax.experimental import pallas as pl
from jax.experimental.pallas import tpu as pltpu


# ----------------------------------------------------------------------------
# Kernels
# ----------------------------------------------------------------------------
def _split_kernel(x_ref, w1_ref, b1_ref, w2_ref, a_ref, y2_ref):
    """a = relu(x @ w1_folded + b1) ; y2 = x @ w2   (x read once)."""
    x = x_ref[...]
    a = jnp.dot(x, w1_ref[...], preferred_element_type=jnp.float32) + b1_ref[...]
    a_ref[...] = jnp.maximum(a, 0.0).astype(a_ref.dtype)
    y2_ref[...] = jnp.dot(x, w2_ref[...],
                          preferred_element_type=jnp.float32).astype(y2_ref.dtype)


def _bottleneck_kernel(a_ref, w1_ref, b1_ref, w3_ref, b3_ref, ml_ref, mr_ref,
                       o_ref, pad_ref, *, H, W, c_, shortcut):
    """One whole image: out = a + relu(bn(conv3x3(relu(bn(conv1x1(a))))))."""
    HW = H * W
    a = a_ref[...]                                                   # (HW, c_)

    # 1x1 conv + folded BN + ReLU
    t = jnp.dot(a, w1_ref[...], preferred_element_type=jnp.float32) + b1_ref[...]
    t = jnp.maximum(t, 0.0)

    # zero-padded scratch so vertical out-of-image taps read zeros
    off0 = W + 8                                   # sublane-aligned interior start
    pad_ref[...] = jnp.zeros_like(pad_ref)
    pad_ref[pl.ds(off0, HW), :] = t

    # 3x3 conv = 9 shifted (sublane-sliced) matmuls; horizontal wrap handled by masks
    acc = jnp.zeros((HW, c_), jnp.float32)
    for dy in range(3):
        for dx in range(3):
            start = off0 + (dy - 1) * W + (dx - 1)
            slab = pad_ref[pl.ds(start, HW), :]                      # (HW, c_)
            if dx == 0:
                slab = slab * ml_ref[...]                            # kill w == 0 wrap
            elif dx == 2:
                slab = slab * mr_ref[...]                            # kill w == W-1 wrap
            tap = dy * 3 + dx
            acc = acc + jnp.dot(slab, w3_ref[pl.ds(tap * c_, c_), :],
                                preferred_element_type=jnp.float32)

    y = jnp.maximum(acc + b3_ref[...], 0.0)
    if shortcut:
        y = y + a
    o_ref[...] = y.astype(o_ref.dtype)


def _merge_kernel(m_ref, y2_ref, w3_ref, bnm_ref, w4_ref, b4_ref, o_ref, *, c_):
    """out = relu( cv4_folded( leaky( bn_mid( cat(cv3(m), y2) ) ) ) )."""
    m = m_ref[...]
    y1 = jnp.dot(m, w3_ref[...], preferred_element_type=jnp.float32)  # cv3 (plain)
    z1 = y1 * bnm_ref[0:1, :] + bnm_ref[1:2, :]
    z1 = jnp.maximum(z1, 0.1 * z1)                                    # LeakyReLU(0.1)
    y2 = y2_ref[...]
    z2 = y2 * bnm_ref[2:3, :] + bnm_ref[3:4, :]
    z2 = jnp.maximum(z2, 0.1 * z2)
    # channel-concat + cv4 as a split matmul (no concat materialised)
    acc = jnp.dot(z1, w4_ref[pl.ds(0, c_), :], preferred_element_type=jnp.float32)
    acc = acc + jnp.dot(z2, w4_ref[pl.ds(c_, c_), :],
                        preferred_element_type=jnp.float32)
    o_ref[...] = jnp.maximum(acc + b4_ref[...], 0.0).astype(o_ref.dtype)


# ----------------------------------------------------------------------------
# pallas_call wrappers
# ----------------------------------------------------------------------------
def _pick_row_tile(m, target=1024):
    # Big tiles amortize the ~0.35us per-grid-step overhead; ragged tail handled by
    # pl.cdiv grid (no divisibility assert). `target` is a multiple of 8 (sublanes).
    return m if m <= target else target


def _call_split(xm, w1m, b1, w2m, tm):
    M, c1 = xm.shape
    c_ = w1m.shape[1]
    flops = 4 * M * c1 * c_
    bytes_acc = 4 * (M * c1 + 2 * M * c_ + 2 * c1 * c_ + c_)
    return pl.pallas_call(
        _split_kernel,
        out_shape=(jax.ShapeDtypeStruct((M, c_), jnp.float32),
                   jax.ShapeDtypeStruct((M, c_), jnp.float32)),
        grid_spec=pltpu.PrefetchScalarGridSpec(
            num_scalar_prefetch=0,
            grid=(pl.cdiv(M, tm),),
            in_specs=[pl.BlockSpec((tm, c1), lambda i: (i, 0)),
                      pl.BlockSpec((c1, c_), lambda i: (0, 0)),
                      pl.BlockSpec((1, c_), lambda i: (0, 0)),
                      pl.BlockSpec((c1, c_), lambda i: (0, 0))],
            out_specs=[pl.BlockSpec((tm, c_), lambda i: (i, 0)),
                       pl.BlockSpec((tm, c_), lambda i: (i, 0))]),
        compiler_params=pltpu.CompilerParams(dimension_semantics=("parallel",)),
        cost_estimate=pl.CostEstimate(flops=int(flops), transcendentals=0,
                                      bytes_accessed=int(bytes_acc)),
    )(xm, w1m, b1, w2m)


def _call_bottleneck(a, w1m, b1, w3m, b3, ml, mr, N, H, W, shortcut):
    M, c_ = a.shape
    HW = H * W
    kern = functools.partial(_bottleneck_kernel, H=H, W=W, c_=c_, shortcut=shortcut)
    flops = 2 * M * c_ * c_ * 10 + 4 * M * c_
    bytes_acc = 4 * (2 * M * c_ + 10 * c_ * c_ + 2 * c_ + 2 * HW)
    return pl.pallas_call(
        kern,
        out_shape=jax.ShapeDtypeStruct((M, c_), jnp.float32),
        grid_spec=pltpu.PrefetchScalarGridSpec(
            num_scalar_prefetch=0,
            grid=(N,),
            in_specs=[pl.BlockSpec((HW, c_), lambda b: (b, 0)),
                      pl.BlockSpec((c_, c_), lambda b: (0, 0)),
                      pl.BlockSpec((1, c_), lambda b: (0, 0)),
                      pl.BlockSpec((9 * c_, c_), lambda b: (0, 0)),
                      pl.BlockSpec((1, c_), lambda b: (0, 0)),
                      pl.BlockSpec((HW, 1), lambda b: (0, 0)),
                      pl.BlockSpec((HW, 1), lambda b: (0, 0))],
            out_specs=pl.BlockSpec((HW, c_), lambda b: (b, 0)),
            scratch_shapes=[pltpu.VMEM((HW + 2 * W + 16, c_), jnp.float32)]),
        compiler_params=pltpu.CompilerParams(dimension_semantics=("parallel",)),
        cost_estimate=pl.CostEstimate(flops=int(flops), transcendentals=0,
                                      bytes_accessed=int(bytes_acc)),
    )(a, w1m, b1, w3m, b3, ml, mr)


def _call_merge(m_out, y2, w3c, bnm, w4m, b4, tm):
    M, c_ = m_out.shape
    c2 = w4m.shape[1]
    kern = functools.partial(_merge_kernel, c_=c_)
    flops = 2 * M * c_ * c_ + 2 * M * (2 * c_) * c2 + 8 * M * c_
    bytes_acc = 4 * (2 * M * c_ + M * c2 + c_ * c_ + 4 * c_ + 2 * c_ * c2 + c2)
    return pl.pallas_call(
        kern,
        out_shape=jax.ShapeDtypeStruct((M, c2), jnp.float32),
        grid_spec=pltpu.PrefetchScalarGridSpec(
            num_scalar_prefetch=0,
            grid=(pl.cdiv(M, tm),),
            in_specs=[pl.BlockSpec((tm, c_), lambda i: (i, 0)),
                      pl.BlockSpec((tm, c_), lambda i: (i, 0)),
                      pl.BlockSpec((c_, c_), lambda i: (0, 0)),
                      pl.BlockSpec((4, c_), lambda i: (0, 0)),
                      pl.BlockSpec((2 * c_, c2), lambda i: (0, 0)),
                      pl.BlockSpec((1, c2), lambda i: (0, 0))],
            out_specs=pl.BlockSpec((tm, c2), lambda i: (i, 0))),
        compiler_params=pltpu.CompilerParams(dimension_semantics=("parallel",)),
        cost_estimate=pl.CostEstimate(flops=int(flops), transcendentals=0,
                                      bytes_accessed=int(bytes_acc)),
    )(m_out, y2, w3c, bnm, w4m, b4)


# ----------------------------------------------------------------------------
# Forward pass (weight folding + kernel orchestration)
# ----------------------------------------------------------------------------
def _fold_bn(gamma, beta, mean, var, eps):
    s = gamma / jnp.sqrt(var + eps)
    return s, beta - mean * s


def bottleneck_csp_forward(x, p, *, n=1, shortcut=True, eps=1e-5, row_tile=1024):
    N, c1, H, W = x.shape
    c_ = p['cv1_w'].shape[0]
    c2 = p['cv4_w'].shape[0]
    M = N * H * W
    HW = H * W
    # TODO(synk): ragged (H*W % 8 != 0) or VMEM-overflowing images need H-tiling
    # with a 1-row halo in the bottleneck kernel; not needed for these shapes.
    assert HW % 8 == 0, "H*W must be a multiple of 8 (sublane tile)"

    tm = _pick_row_tile(M, row_tile)

    # NCHW -> channel-last pixel matrix (single layout pass in, single pass out).
    xm = jnp.transpose(x, (0, 2, 3, 1)).reshape(M, c1)

    # --- cv1 (fold BN into weight + bias) and cv2 (plain) -----------------------
    s1, b1 = _fold_bn(p['cv1_bn_g'], p['cv1_bn_b'], p['cv1_bn_m'], p['cv1_bn_v'], eps)
    w1m = p['cv1_w'].reshape(c_, c1).T * s1[None, :]
    b1 = b1.reshape(1, c_)
    w2m = p['cv2_w'].reshape(c_, c1).T

    a, y2 = _call_split(xm, w1m, b1, w2m, tm)

    # --- n x Bottleneck ---------------------------------------------------------
    # horizontal-boundary masks for the in-kernel 3x3 conv (shared by all images)
    w_idx = jnp.arange(HW, dtype=jnp.int32) % W
    ml = (w_idx != 0).astype(jnp.float32).reshape(HW, 1)
    mr = (w_idx != (W - 1)).astype(jnp.float32).reshape(HW, 1)

    for k in range(n):
        sb1, bb1 = _fold_bn(p[f'm{k}_cv1_bn_g'], p[f'm{k}_cv1_bn_b'],
                            p[f'm{k}_cv1_bn_m'], p[f'm{k}_cv1_bn_v'], eps)
        wb1 = p[f'm{k}_cv1_w'].reshape(c_, c_).T * sb1[None, :]
        bb1 = bb1.reshape(1, c_)

        sb2, bb2 = _fold_bn(p[f'm{k}_cv2_bn_g'], p[f'm{k}_cv2_bn_b'],
                            p[f'm{k}_cv2_bn_m'], p[f'm{k}_cv2_bn_v'.replace('m', 'm', 1)]
                            if False else p[f'm{k}_cv2_bn_v'], eps)
        # (kh, kw, cin, cout) rows grouped tap-major -> matches kernel tap slicing
        w3m = (jnp.transpose(p[f'm{k}_cv2_w'], (2, 3, 1, 0)).reshape(9 * c_, c_)
               * sb2[None, :])
        bb2 = bb2.reshape(1, c_)

        a = _call_bottleneck(a, wb1, bb1, w3m, bb2, ml, mr, N, H, W, shortcut)

    # --- cv3 + mid BN + LeakyReLU + cv4 ------------------------------------------
    w3c = p['cv3_w'].reshape(c_, c_).T
    sm, bm = _fold_bn(p['bn_g'], p['bn_b'], p['bn_m'], p['bn_v'], eps)
    bnm = jnp.stack([sm[:c_], bm[:c_], sm[c_:], bm[c_:]], axis=0)       # (4, c_)
    s4, b4 = _fold_bn(p['cv4_bn_g'], p['cv4_bn_b'], p['cv4_bn_m'], p['cv4_bn_v'], eps)
    w4m = p['cv4_w'].reshape(c2, 2 * c_).T * s4[None, :]
    b4 = b4.reshape(1, c2)

    out_m = _call_merge(a, y2, w3c, bnm, w4m, b4, tm)
    return jnp.transpose(out_m.reshape(N, H, W, c2), (0, 3, 1, 2))


# ----------------------------------------------------------------------------
# Pure-JAX reference (mirrors the PyTorch module, eval-mode BN)
# ----------------------------------------------------------------------------
def _ref_forward(x, p, n, shortcut, eps=1e-5):
    hp = jax.lax.Precision.HIGHEST

    def conv1x1(v, w):
        return jnp.einsum('nchw,oc->nohw', v, w[:, :, 0, 0], precision=hp)

    def conv3x3(v, w):
        return jax.lax.conv_general_dilated(
            v, w, (1, 1), ((1, 1), (1, 1)),
            dimension_numbers=('NCHW', 'OIHW', 'NCHW'), precision=hp)

    def bn(v, g, b, m, var):
        s = g / jnp.sqrt(var + eps)
        return v * s[None, :, None, None] + (b - m * s)[None, :, None, None]

    relu = lambda v: jnp.maximum(v, 0.0)
    leaky = lambda v: jnp.maximum(v, 0.1 * v)

    a = relu(bn(conv1x1(x, p['cv1_w']),
                p['cv1_bn_g'], p['cv1_bn_b'], p['cv1_bn_m'], p['cv1_bn_v']))
    for k in range(n):
        t = relu(bn(conv1x1(a, p[f'm{k}_cv1_w']),
                    p[f'm{k}_cv1_bn_g'], p[f'm{k}_cv1_bn_b'],
                    p[f'm{k}_cv1_bn_m'], p[f'm{k}_cv1_bn_v']))
        u = relu(bn(conv3x3(t, p[f'm{k}_cv2_w']),
                    p[f'm{k}_cv2_bn_g'], p[f'm{k}_cv2_bn_b'],
                    p[f'm{k}_cv2_bn_m'], p[f'm{k}_cv2_bn_v']))
        a = a + u if shortcut else u
    y1 = conv1x1(a, p['cv3_w'])
    y2 = conv1x1(x, p['cv2_w'])
    cat = jnp.concatenate([y1, y2], axis=1)
    z = leaky(bn(cat, p['bn_g'], p['bn_b'], p['bn_m'], p['bn_v']))
    return relu(bn(conv1x1(z, p['cv4_w']),
                   p['cv4_bn_g'], p['cv4_bn_b'], p['cv4_bn_m'], p['cv4_bn_v']))


# ----------------------------------------------------------------------------
# Parameter construction + self-test
# ----------------------------------------------------------------------------
def _make_params(key, c1, c2, n, e=0.5):
    c_ = int(c2 * e)
    keys = iter(jax.random.split(key, 64))

    def conv_w(cout, cin, k):
        scale = 1.0 / (cin * k * k) ** 0.5
        return jax.random.normal(next(keys), (cout, cin, k, k), jnp.float32) * scale

    def bn_p(c):
        g = 1.0 + 0.1 * jax.random.normal(next(keys), (c,), jnp.float32)
        b = 0.1 * jax.random.normal(next(keys), (c,), jnp.float32)
        m = 0.1 * jax.random.normal(next(keys), (c,), jnp.float32)
        v = 0.5 + jax.random.uniform(next(keys), (c,), jnp.float32)
        return g, b, m, v

    p = {}
    p['cv1_w'] = conv_w(c_, c1, 1)
    p['cv1_bn_g'], p['cv1_bn_b'], p['cv1_bn_m'], p['cv1_bn_v'] = bn_p(c_)
    p['cv2_w'] = conv_w(c_, c1, 1)
    p['cv3_w'] = conv_w(c_, c_, 1)
    p['cv4_w'] = conv_w(c2, 2 * c_, 1)
    p['cv4_bn_g'], p['cv4_bn_b'], p['cv4_bn_m'], p['cv4_bn_v'] = bn_p(c2)
    p['bn_g'], p['bn_b'], p['bn_m'], p['bn_v'] = bn_p(2 * c_)
    for k in range(n):
        p[f'm{k}_cv1_w'] = conv_w(c_, c_, 1)
        (p[f'm{k}_cv1_bn_g'], p[f'm{k}_cv1_bn_b'],
         p[f'm{k}_cv1_bn_m'], p[f'm{k}_cv1_bn_v']) = bn_p(c_)
        p[f'm{k}_cv2_w'] = conv_w(c_, c_, 3)
        (p[f'm{k}_cv2_bn_g'], p[f'm{k}_cv2_bn_b'],
         p[f'm{k}_cv2_bn_m'], p[f'm{k}_cv2_bn_v']) = bn_p(c_)
    return p


if __name__ == "__main__":
    N, c1, c2, H, W = 2, 16, 32, 16, 16
    n, shortcut = 1, True

    key = jax.random.PRNGKey(0)
    kx, kp = jax.random.split(key)
    x = jax.random.normal(kx, (N, c1, H, W), dtype=jnp.float32)
    params = _make_params(kp, c1, c2, n)

    fwd = jax.jit(functools.partial(bottleneck_csp_forward, n=n, shortcut=shortcut))
    out = jax.block_until_ready(fwd(x, params))

    ref = _ref_forward(x, params, n, shortcut)

    assert out.shape == (N, c2, H, W), out.shape
    max_err = float(jnp.max(jnp.abs(out - ref)))
    assert jnp.allclose(out, ref, atol=2e-3, rtol=2e-3), f"max abs err {max_err}"
    print("KERNEL_OK")
</pallas_src>

<mosaic_0001>
module attributes {stable_mosaic.version = 11 : i64} {
  func.func @_split_kernel(%arg0: i32, %arg1: memref<512x16xf32, #tpu.memory_space<vmem>>, %arg2: memref<16x16xf32, #tpu.memory_space<vmem>>, %arg3: memref<1x16xf32, #tpu.memory_space<vmem>>, %arg4: memref<16x16xf32, #tpu.memory_space<vmem>>, %arg5: memref<512x16xf32, #tpu.memory_space<vmem>>, %arg6: memref<512x16xf32, #tpu.memory_space<vmem>>) attributes {dimension_semantics = [#tpu.dimension_semantics<parallel>], iteration_bounds = array<i64: 1>, scalar_prefetch = 0 : i64, scratch_operands = 0 : i64, tpu.core_type = #tpu.core_type<tc>, window_params = [{transform_indices = @transform_0, window_bounds = array<i64: 512, 16>}, {pipeline_mode = #tpu.pipeline_mode<synchronous>, transform_indices = @transform_1, window_bounds = array<i64: 16, 16>}, {pipeline_mode = #tpu.pipeline_mode<synchronous>, transform_indices = @transform_2, window_bounds = array<i64: 1, 16>}, {pipeline_mode = #tpu.pipeline_mode<synchronous>, transform_indices = @transform_3, window_bounds = array<i64: 16, 16>}, {transform_indices = @transform_4, window_bounds = array<i64: 512, 16>}, {transform_indices = @transform_5, window_bounds = array<i64: 512, 16>}]} {
    %c0 = arith.constant 0 : index
    %c0_0 = arith.constant 0 : index
    %0 = vector.load %arg1[%c0, %c0_0] : memref<512x16xf32, #tpu.memory_space<vmem>>, vector<512x16xf32>
    %c0_1 = arith.constant 0 : index
    %c0_2 = arith.constant 0 : index
    %1 = vector.load %arg2[%c0_1, %c0_2] : memref<16x16xf32, #tpu.memory_space<vmem>>, vector<16x16xf32>
    %cst = arith.constant dense<0.000000e+00> : vector<512x16xf32>
    %2 = tpu.matmul %0, %1, %cst {dimension_numbers = #tpu.dot_dimension_numbers<[1], [0], [0], [1], [0, 0, 1, 1], [], []>} : vector<512x16xf32>, vector<16x16xf32>, vector<512x16xf32> -> vector<512x16xf32>
    %c0_3 = arith.constant 0 : index
    %c0_4 = arith.constant 0 : index
    %3 = vector.load %arg3[%c0_3, %c0_4] : memref<1x16xf32, #tpu.memory_space<vmem>>, vector<1x16xf32>
    %4 = vector.broadcast %3 : vector<1x16xf32> to vector<512x16xf32>
    %5 = arith.addf %2, %4 : vector<512x16xf32>
    %cst_5 = arith.constant 0.000000e+00 : f32
    %6 = vector.broadcast %cst_5 : f32 to vector<512x16xf32>
    %7 = arith.maximumf %5, %6 : vector<512x16xf32>
    %c0_6 = arith.constant 0 : index
    %c0_7 = arith.constant 0 : index
    %8 = vector.load %arg5[%c0_6, %c0_7] : memref<512x16xf32, #tpu.memory_space<vmem>>, vector<512x16xf32>
    tpu.vector_store %arg5[%c0_6, %c0_7], %7 {strides = array<i32>} : memref<512x16xf32, #tpu.memory_space<vmem>>, vector<512x16xf32>,
    %c0_8 = arith.constant 0 : index
    %c0_9 = arith.constant 0 : index
    %9 = vector.load %arg4[%c0_8, %c0_9] : memref<16x16xf32, #tpu.memory_space<vmem>>, vector<16x16xf32>
    %cst_10 = arith.constant dense<0.000000e+00> : vector<512x16xf32>
    %10 = tpu.matmul %0, %9, %cst_10 {dimension_numbers = #tpu.dot_dimension_numbers<[1], [0], [0], [1], [0, 0, 1, 1], [], []>} : vector<512x16xf32>, vector<16x16xf32>, vector<512x16xf32> -> vector<512x16xf32>
    %c0_11 = arith.constant 0 : index
    %c0_12 = arith.constant 0 : index
    %11 = vector.load %arg6[%c0_11, %c0_12] : memref<512x16xf32, #tpu.memory_space<vmem>>, vector<512x16xf32>
    tpu.vector_store %arg6[%c0_11, %c0_12], %10 {strides = array<i32>} : memref<512x16xf32, #tpu.memory_space<vmem>>, vector<512x16xf32>,
    return
  }
  func.func @transform_0(%arg0: i32) -> (i32, i32) {
    %c0_i32 = arith.constant 0 : i32
    %c0_i32_0 = arith.constant 0 : i32
    return %arg0, %c0_i32 : i32, i32
  }
  func.func @transform_1(%arg0: i32) -> (i32, i32) {
    %c0_i32 = arith.constant 0 : i32
    %c0_i32_0 = arith.constant 0 : i32
    %c0_i32_1 = arith.constant 0 : i32
    return %c0_i32, %c0_i32_0 : i32, i32
  }
  func.func @transform_2(%arg0: i32) -> (i32, i32) {
    %c0_i32 = arith.constant 0 : i32
    %c0_i32_0 = arith.constant 0 : i32
    %c0_i32_1 = arith.constant 0 : i32
    return %c0_i32, %c0_i32_0 : i32, i32
  }
  func.func @transform_3(%arg0: i32) -> (i32, i32) {
    %c0_i32 = arith.constant 0 : i32
    %c0_i32_0 = arith.constant 0 : i32
    %c0_i32_1 = arith.constant 0 : i32
    return %c0_i32, %c0_i32_0 : i32, i32
  }
  func.func @transform_4(%arg0: i32) -> (i32, i32) {
    %c0_i32 = arith.constant 0 : i32
    %c0_i32_0 = arith.constant 0 : i32
    return %arg0, %c0_i32 : i32, i32
  }
  func.func @transform_5(%arg0: i32) -> (i32, i32) {
    %c0_i32 = arith.constant 0 : i32
    %c0_i32_0 = arith.constant 0 : i32
    return %arg0, %c0_i32 : i32, i32
  }
}

module attributes {stable_mosaic.version = 11 : i64} {
  func.func @_bottleneck_kernel(%arg0: i32, %arg1: memref<256x16xf32, #tpu.memory_space<vmem>>, %arg2: memref<16x16xf32, #tpu.memory_space<vmem>>, %arg3: memref<1x16xf32, #tpu.memory_space<vmem>>, %arg4: memref<144x16xf32, #tpu.memory_space<vmem>>, %arg5: memref<1x16xf32, #tpu.memory_space<vmem>>, %arg6: memref<256x1xf32, #tpu.memory_space<vmem>>, %arg7: memref<256x1xf32, #tpu.memory_space<vmem>>, %arg8: memref<256x16xf32, #tpu.memory_space<vmem>>, %arg9: memref<304x16xf32, #tpu.memory_space<vmem>>) attributes {dimension_semantics = [#tpu.dimension_semantics<parallel>], iteration_bounds = array<i64: 2>, scalar_prefetch = 0 : i64, scratch_operands = 1 : i64, tpu.core_type = #tpu.core_type<tc>, window_params = [{transform_indices = @transform_0, window_bounds = array<i64: 256, 16>}, {pipeline_mode = #tpu.pipeline_mode<synchronous>, transform_indices = @transform_1, window_bounds = array<i64: 16, 16>}, {pipeline_mode = #tpu.pipeline_mode<synchronous>, transform_indices = @transform_2, window_bounds = array<i64: 1, 16>}, {pipeline_mode = #tpu.pipeline_mode<synchronous>, transform_indices = @transform_3, window_bounds = array<i64: 144, 16>}, {pipeline_mode = #tpu.pipeline_mode<synchronous>, transform_indices = @transform_4, window_bounds = array<i64: 1, 16>}, {pipeline_mode = #tpu.pipeline_mode<synchronous>, transform_indices = @transform_5, window_bounds = array<i64: 256, 1>}, {pipeline_mode = #tpu.pipeline_mode<synchronous>, transform_indices = @transform_6, window_bounds = array<i64: 256, 1>}, {transform_indices = @transform_7, window_bounds = array<i64: 256, 16>}]} {
    %c0 = arith.constant 0 : index
    %c0_0 = arith.constant 0 : index
    %0 = vector.load %arg1[%c0, %c0_0] : memref<256x16xf32, #tpu.memory_space<vmem>>, vector<256x16xf32>
    %c0_1 = arith.constant 0 : index
    %c0_2 = arith.constant 0 : index
    %1 = vector.load %arg2[%c0_1, %c0_2] : memref<16x16xf32, #tpu.memory_space<vmem>>, vector<16x16xf32>
    %cst = arith.constant dense<0.000000e+00> : vector<256x16xf32>
    %2 = tpu.matmul %0, %1, %cst {dimension_numbers = #tpu.dot_dimension_numbers<[1], [0], [0], [1], [0, 0, 1, 1], [], []>} : vector<256x16xf32>, vector<16x16xf32>, vector<256x16xf32> -> vector<256x16xf32>
    %c0_3 = arith.constant 0 : index
    %c0_4 = arith.constant 0 : index
    %3 = vector.load %arg3[%c0_3, %c0_4] : memref<1x16xf32, #tpu.memory_space<vmem>>, vector<1x16xf32>
    %4 = vector.broadcast %3 : vector<1x16xf32> to vector<256x16xf32>
    %5 = arith.addf %2, %4 : vector<256x16xf32>
    %cst_5 = arith.constant 0.000000e+00 : f32
    %6 = vector.broadcast %cst_5 : f32 to vector<256x16xf32>
    %7 = arith.maximumf %5, %6 : vector<256x16xf32>
    %cst_6 = arith.constant 0.000000e+00 : f32
    %8 = vector.broadcast %cst_6 : f32 to vector<304x16xf32>
    %c0_7 = arith.constant 0 : index
    %c0_8 = arith.constant 0 : index
    %9 = vector.load %arg9[%c0_7, %c0_8] : memref<304x16xf32, #tpu.memory_space<vmem>>, vector<304x16xf32>
    tpu.vector_store %arg9[%c0_7, %c0_8], %8 {strides = array<i32>} : memref<304x16xf32, #tpu.memory_space<vmem>>, vector<304x16xf32>,
    %c24 = arith.constant 24 : index
    %c0_9 = arith.constant 0 : index
    %10 = vector.load %arg9[%c24, %c0_9] : memref<304x16xf32, #tpu.memory_space<vmem>>, vector<256x16xf32>
    tpu.vector_store %arg9[%c24, %c0_9], %7 {strides = array<i32>} : memref<304x16xf32, #tpu.memory_space<vmem>>, vector<256x16xf32>,
    %cst_10 = arith.constant 0.000000e+00 : f32
    %11 = vector.broadcast %cst_10 : f32 to vector<256x16xf32>
    %c7 = arith.constant 7 : index
    %c0_11 = arith.constant 0 : index
    %12 = vector.load %arg9[%c7, %c0_11] : memref<304x16xf32, #tpu.memory_space<vmem>>, vector<256x16xf32>
    %c0_12 = arith.constant 0 : index
    %c0_13 = arith.constant 0 : index
    %13 = vector.load %arg6[%c0_12, %c0_13] : memref<256x1xf32, #tpu.memory_space<vmem>>, vector<256x1xf32>
    %14 = vector.broadcast %13 : vector<256x1xf32> to vector<256x16xf32>
    %15 = arith.mulf %12, %14 : vector<256x16xf32>
    %c0_14 = arith.constant 0 : index
    %c0_15 = arith.constant 0 : index
    %16 = vector.load %arg4[%c0_14, %c0_15] : memref<144x16xf32, #tpu.memory_space<vmem>>, vector<16x16xf32>
    %cst_16 = arith.constant dense<0.000000e+00> : vector<256x16xf32>
    %17 = tpu.matmul %15, %16, %cst_16 {dimension_numbers = #tpu.dot_dimension_numbers<[1], [0], [0], [1], [0, 0, 1, 1], [], []>} : vector<256x16xf32>, vector<16x16xf32>, vector<256x16xf32> -> vector<256x16xf32>
    %18 = arith.addf %11, %17 : vector<256x16xf32>
    %c8 = arith.constant 8 : index
    %c0_17 = arith.constant 0 : index
    %19 = vector.load %arg9[%c8, %c0_17] : memref<304x16xf32, #tpu.memory_space<vmem>>, vector<256x16xf32>
    %c16 = arith.constant 16 : index
    %c0_18 = arith.constant 0 : index
    %20 = vector.load %arg4[%c16, %c0_18] : memref<144x16xf32, #tpu.memory_space<vmem>>, vector<16x16xf32>
    %cst_19 = arith.constant dense<0.000000e+00> : vector<256x16xf32>
    %21 = tpu.matmul %19, %20, %cst_19 {dimension_numbers = #tpu.dot_dimension_numbers<[1], [0], [0], [1], [0, 0, 1, 1], [], []>} : vector<256x16xf32>, vector<16x16xf32>, vector<256x16xf32> -> vector<256x16xf32>
    %22 = arith.addf %18, %21 : vector<256x16xf32>
    %c9 = arith.constant 9 : index
    %c0_20 = arith.constant 0 : index
    %23 = vector.load %arg9[%c9, %c0_20] : memref<304x16xf32, #tpu.memory_space<vmem>>, vector<256x16xf32>
    %c0_21 = arith.constant 0 : index
    %c0_22 = arith.constant 0 : index
    %24 = vector.load %arg7[%c0_21, %c0_22] : memref<256x1xf32, #tpu.memory_space<vmem>>, vector<256x1xf32>
    %25 = vector.broadcast %24 : vector<256x1xf32> to vector<256x16xf32>
    %26 = arith.mulf %23, %25 : vector<256x16xf32>
    %c32 = arith.constant 32 : index
    %c0_23 = arith.constant 0 : index
    %27 = vector.load %arg4[%c32, %c0_23] : memref<144x16xf32, #tpu.memory_space<vmem>>, vector<16x16xf32>
    %cst_24 = arith.constant dense<0.000000e+00> : vector<256x16xf32>
    %28 = tpu.matmul %26, %27, %cst_24 {dimension_numbers = #tpu.dot_dimension_numbers<[1], [0], [0], [1], [0, 0, 1, 1], [], []>} : vector<256x16xf32>, vector<16x16xf32>, vector<256x16xf32> -> vector<256x16xf32>
    %29 = arith.addf %22, %28 : vector<256x16xf32>
    %c23 = arith.constant 23 : index
    %c0_25 = arith.constant 0 : index
    %30 = vector.load %arg9[%c23, %c0_25] : memref<304x16xf32, #tpu.memory_space<vmem>>, vector<256x16xf32>
    %c0_26 = arith.constant 0 : index
    %c0_27 = arith.constant 0 : index
    %31 = vector.load %arg6[%c0_26, %c0_27] : memref<256x1xf32, #tpu.memory_space<vmem>>, vector<256x1xf32>
    %32 = vector.broadcast %31 : vector<256x1xf32> to vector<256x16xf32>
    %33 = arith.mulf %30, %32 : vector<256x16xf32>
    %c48 = arith.constant 48 : index
    %c0_28 = arith.constant 0 : index
    %34 = vector.load %arg4[%c48, %c0_28] : memref<144x16xf32, #tpu.memory_space<vmem>>, vector<16x16xf32>
    %cst_29 = arith.constant dense<0.000000e+00> : vector<256x16xf32>
    %35 = tpu.matmul %33, %34, %cst_29 {dimension_numbers = #tpu.dot_dimension_numbers<[1], [0], [0], [1], [0, 0, 1, 1], [], []>} : vector<256x16xf32>, vector<16x16xf32>, vector<256x16xf32> -> vector<256x16xf32>
    %36 = arith.addf %29, %35 : vector<256x16xf32>
    %c24_30 = arith.constant 24 : index
    %c0_31 = arith.constant 0 : index
    %37 = vector.load %arg9[%c24_30, %c0_31] : memref<304x16xf32, #tpu.memory_space<vmem>>, vector<256x16xf32>
    %c64 = arith.constant 64 : index
    %c0_32 = arith.constant 0 : index
    %38 = vector.load %arg4[%c64, %c0_32] : memref<144x16xf32, #tpu.memory_space<vmem>>, vector<16x16xf32>
    %cst_33 = arith.constant dense<0.000000e+00> : vector<256x16xf32>
    %39 = tpu.matmul %37, %38, %cst_33 {dimension_numbers = #tpu.dot_dimension_numbers<[1], [0], [0], [1], [0, 0, 1, 1], [], []>} : vector<256x16xf32>, vector<16x16xf32>, vector<256x16xf32> -> vector<256x16xf32>
    %40 = arith.addf %36, %39 : vector<256x16xf32>
    %c25 = arith.constant 25 : index
    %c0_34 = arith.constant 0 : index
    %41 = vector.load %arg9[%c25, %c0_34] : memref<304x16xf32, #tpu.memory_space<vmem>>, vector<256x16xf32>
    %c0_35 = arith.constant 0 : index
    %c0_36 = arith.constant 0 : index
    %42 = vector.load %arg7[%c0_35, %c0_36] : memref<256x1xf32, #tpu.memory_space<vmem>>, vector<256x1xf32>
    %43 = vector.broadcast %42 : vector<256x1xf32> to vector<256x16xf32>
    %44 = arith.mulf %41, %43 : vector<256x16xf32>
    %c80 = arith.constant 80 : index
    %c0_37 = arith.constant 0 : index
    %45 = vector.load %arg4[%c80, %c0_37] : memref<144x16xf32, #tpu.memory_space<vmem>>, vector<16x16xf32>
    %cst_38 = arith.constant dense<0.000000e+00> : vector<256x16xf32>
    %46 = tpu.matmul %44, %45, %cst_38 {dimension_numbers = #tpu.dot_dimension_numbers<[1], [0], [0], [1], [0, 0, 1, 1], [], []>} : vector<256x16xf32>, vector<16x16xf32>, vector<256x16xf32> -> vector<256x16xf32>
    %47 = arith.addf %40, %46 : vector<256x16xf32>
    %c39 = arith.constant 39 : index
    %c0_39 = arith.constant 0 : index
    %48 = vector.load %arg9[%c39, %c0_39] : memref<304x16xf32, #tpu.memory_space<vmem>>, vector<256x16xf32>
    %c0_40 = arith.constant 0 : index
    %c0_41 = arith.constant 0 : index
    %49 = vector.load %arg6[%c0_40, %c0_41] : memref<256x1xf32, #tpu.memory_space<vmem>>, vector<256x1xf32>
    %50 = vector.broadcast %49 : vector<256x1xf32> to vector<256x16xf32>
    %51 = arith.mulf %48, %50 : vector<256x16xf32>
    %c96 = arith.constant 96 : index
    %c0_42 = arith.constant 0 : index
    %52 = vector.load %arg4[%c96, %c0_42] : memref<144x16xf32, #tpu.memory_space<vmem>>, vector<16x16xf32>
    %cst_43 = arith.constant dense<0.000000e+00> : vector<256x16xf32>
    %53 = tpu.matmul %51, %52, %cst_43 {dimension_numbers = #tpu.dot_dimension_numbers<[1], [0], [0], [1], [0, 0, 1, 1], [], []>} : vector<256x16xf32>, vector<16x16xf32>, vector<256x16xf32> -> vector<256x16xf32>
    %54 = arith.addf %47, %53 : vector<256x16xf32>
    %c40 = arith.constant 40 : index
    %c0_44 = arith.constant 0 : index
    %55 = vector.load %arg9[%c40, %c0_44] : memref<304x16xf32, #tpu.memory_space<vmem>>, vector<256x16xf32>
    %c112 = arith.constant 112 : index
    %c0_45 = arith.constant 0 : index
    %56 = vector.load %arg4[%c112, %c0_45] : memref<144x16xf32, #tpu.memory_space<vmem>>, vector<16x16xf32>
    %cst_46 = arith.constant dense<0.000000e+00> : vector<256x16xf32>
    %57 = tpu.matmul %55, %56, %cst_46 {dimension_numbers = #tpu.dot_dimension_numbers<[1], [0], [0], [1], [0, 0, 1, 1], [], []>} : vector<256x16xf32>, vector<16x16xf32>, vector<256x16xf32> -> vector<256x16xf32>
    %58 = arith.addf %54, %57 : vector<256x16xf32>
    %c41 = arith.constant 41 : index
    %c0_47 = arith.constant 0 : index
    %59 = vector.load %arg9[%c41, %c0_47] : memref<304x16xf32, #tpu.memory_space<vmem>>, vector<256x16xf32>
    %c0_48 = arith.constant 0 : index
    %c0_49 = arith.constant 0 : index
    %60 = vector.load %arg7[%c0_48, %c0_49] : memref<256x1xf32, #tpu.memory_space<vmem>>, vector<256x1xf32>
    %61 = vector.broadcast %60 : vector<256x1xf32> to vector<256x16xf32>
    %62 = arith.mulf %59, %61 : vector<256x16xf32>
    %c128 = arith.constant 128 : index
    %c0_50 = arith.constant 0 : index
    %63 = vector.load %arg4[%c128, %c0_50] : memref<144x16xf32, #tpu.memory_space<vmem>>, vector<16x16xf32>
    %cst_51 = arith.constant dense<0.000000e+00> : vector<256x16xf32>
    %64 = tpu.matmul %62, %63, %cst_51 {dimension_numbers = #tpu.dot_dimension_numbers<[1], [0], [0], [1], [0, 0, 1, 1], [], []>} : vector<256x16xf32>, vector<16x16xf32>, vector<256x16xf32> -> vector<256x16xf32>
    %65 = arith.addf %58, %64 : vector<256x16xf32>
    %c0_52 = arith.constant 0 : index
    %c0_53 = arith.constant 0 : index
    %66 = vector.load %arg5[%c0_52, %c0_53] : memref<1x16xf32, #tpu.memory_space<vmem>>, vector<1x16xf32>
    %67 = vector.broadcast %66 : vector<1x16xf32> to vector<256x16xf32>
    %68 = arith.addf %65, %67 : vector<256x16xf32>
    %cst_54 = arith.constant 0.000000e+00 : f32
    %69 = vector.broadcast %cst_54 : f32 to vector<256x16xf32>
    %70 = arith.maximumf %68, %69 : vector<256x16xf32>
    %71 = arith.addf %70, %0 : vector<256x16xf32>
    %c0_55 = arith.constant 0 : index
    %c0_56 = arith.constant 0 : index
    %72 = vector.load %arg8[%c0_55, %c0_56] : memref<256x16xf32, #tpu.memory_space<vmem>>, vector<256x16xf32>
    tpu.vector_store %arg8[%c0_55, %c0_56], %71 {strides = array<i32>} : memref<256x16xf32, #tpu.memory_space<vmem>>, vector<256x16xf32>,
    return
  }
  func.func @transform_0(%arg0: i32) -> (i32, i32) {
    %c0_i32 = arith.constant 0 : i32
    %c0_i32_0 = arith.constant 0 : i32
    return %arg0, %c0_i32 : i32, i32
  }
  func.func @transform_1(%arg0: i32) -> (i32, i32) {
    %c0_i32 = arith.constant 0 : i32
    %c0_i32_0 = arith.constant 0 : i32
    %c0_i32_1 = arith.constant 0 : i32
    return %c0_i32, %c0_i32_0 : i32, i32
  }
  func.func @transform_2(%arg0: i32) -> (i32, i32) {
    %c0_i32 = arith.constant 0 : i32
    %c0_i32_0 = arith.constant 0 : i32
    %c0_i32_1 = arith.constant 0 : i32
    return %c0_i32, %c0_i32_0 : i32, i32
  }
  func.func @transform_3(%arg0: i32) -> (i32, i32) {
    %c0_i32 = arith.constant 0 : i32
    %c0_i32_0 = arith.constant 0 : i32
    %c0_i32_1 = arith.constant 0 : i32
    return %c0_i32, %c0_i32_0 : i32, i32
  }
  func.func @transform_4(%arg0: i32) -> (i32, i32) {
    %c0_i32 = arith.constant 0 : i32
    %c0_i32_0 = arith.constant 0 : i32
    %c0_i32_1 = arith.constant 0 : i32
    return %c0_i32, %c0_i32_0 : i32, i32
  }
  func.func @transform_5(%arg0: i32) -> (i32, i32) {
    %c0_i32 = arith.constant 0 : i32
    %c0_i32_0 = arith.constant 0 : i32
    %c0_i32_1 = arith.constant 0 : i32
    return %c0_i32, %c0_i32_0 : i32, i32
  }
  func.func @transform_6(%arg0: i32) -> (i32, i32) {
    %c0_i32 = arith.constant 0 : i32
    %c0_i32_0 = arith.constant 0 : i32
    %c0_i32_1 = arith.constant 0 : i32
    return %c0_i32, %c0_i32_0 : i32, i32
  }
  func.func @transform_7(%arg0: i32) -> (i32, i32) {
    %c0_i32 = arith.constant 0 : i32
    %c0_i32_0 = arith.constant 0 : i32
    return %arg0, %c0_i32 : i32, i32
  }
}

module attributes {stable_mosaic.version = 11 : i64} {
  func.func @_merge_kernel(%arg0: i32, %arg1: memref<512x16xf32, #tpu.memory_space<vmem>>, %arg2: memref<512x16xf32, #tpu.memory_space<vmem>>, %arg3: memref<16x16xf32, #tpu.memory_space<vmem>>, %arg4: memref<4x16xf32, #tpu.memory_space<vmem>>, %arg5: memref<32x32xf32, #tpu.memory_space<vmem>>, %arg6: memref<1x32xf32, #tpu.memory_space<vmem>>, %arg7: memref<512x32xf32, #tpu.memory_space<vmem>>) attributes {dimension_semantics = [#tpu.dimension_semantics<parallel>], iteration_bounds = array<i64: 1>, scalar_prefetch = 0 : i64, scratch_operands = 0 : i64, tpu.core_type = #tpu.core_type<tc>, window_params = [{transform_indices = @transform_0, window_bounds = array<i64: 512, 16>}, {transform_indices = @transform_1, window_bounds = array<i64: 512, 16>}, {pipeline_mode = #tpu.pipeline_mode<synchronous>, transform_indices = @transform_2, window_bounds = array<i64: 16, 16>}, {pipeline_mode = #tpu.pipeline_mode<synchronous>, transform_indices = @transform_3, window_bounds = array<i64: 4, 16>}, {pipeline_mode = #tpu.pipeline_mode<synchronous>, transform_indices = @transform_4, window_bounds = array<i64: 32, 32>}, {pipeline_mode = #tpu.pipeline_mode<synchronous>, transform_indices = @transform_5, window_bounds = array<i64: 1, 32>}, {transform_indices = @transform_6, window_bounds = array<i64: 512, 32>}]} {
    %c0 = arith.constant 0 : index
    %c0_0 = arith.constant 0 : index
    %0 = vector.load %arg1[%c0, %c0_0] : memref<512x16xf32, #tpu.memory_space<vmem>>, vector<512x16xf32>
    %c0_1 = arith.constant 0 : index
    %c0_2 = arith.constant 0 : index
    %1 = vector.load %arg3[%c0_1, %c0_2] : memref<16x16xf32, #tpu.memory_space<vmem>>, vector<16x16xf32>
    %cst = arith.constant dense<0.000000e+00> : vector<512x16xf32>
    %2 = tpu.matmul %0, %1, %cst {dimension_numbers = #tpu.dot_dimension_numbers<[1], [0], [0], [1], [0, 0, 1, 1], [], []>} : vector<512x16xf32>, vector<16x16xf32>, vector<512x16xf32> -> vector<512x16xf32>
    %c0_3 = arith.constant 0 : index
    %c0_4 = arith.constant 0 : index
    %3 = vector.load %arg4[%c0_3, %c0_4] : memref<4x16xf32, #tpu.memory_space<vmem>>, vector<1x16xf32>
    %4 = vector.broadcast %3 : vector<1x16xf32> to vector<512x16xf32>
    %5 = arith.mulf %2, %4 : vector<512x16xf32>
    %c1 = arith.constant 1 : index
    %c0_5 = arith.constant 0 : index
    %6 = vector.load %arg4[%c1, %c0_5] : memref<4x16xf32, #tpu.memory_space<vmem>>, vector<1x16xf32>
    %7 = vector.broadcast %6 : vector<1x16xf32> to vector<512x16xf32>
    %8 = arith.addf %5, %7 : vector<512x16xf32>
    %cst_6 = arith.constant 1.000000e-01 : f32
    %9 = vector.broadcast %cst_6 : f32 to vector<512x16xf32>
    %10 = arith.mulf %9, %8 : vector<512x16xf32>
    %11 = arith.maximumf %8, %10 : vector<512x16xf32>
    %c0_7 = arith.constant 0 : index
    %c0_8 = arith.constant 0 : index
    %12 = vector.load %arg2[%c0_7, %c0_8] : memref<512x16xf32, #tpu.memory_space<vmem>>, vector<512x16xf32>
    %c2 = arith.constant 2 : index
    %c0_9 = arith.constant 0 : index
    %13 = vector.load %arg4[%c2, %c0_9] : memref<4x16xf32, #tpu.memory_space<vmem>>, vector<1x16xf32>
    %14 = vector.broadcast %13 : vector<1x16xf32> to vector<512x16xf32>
    %15 = arith.mulf %12, %14 : vector<512x16xf32>
    %c3 = arith.constant 3 : index
    %c0_10 = arith.constant 0 : index
    %16 = vector.load %arg4[%c3, %c0_10] : memref<4x16xf32, #tpu.memory_space<vmem>>, vector<1x16xf32>
    %17 = vector.broadcast %16 : vector<1x16xf32> to vector<512x16xf32>
    %18 = arith.addf %15, %17 : vector<512x16xf32>
    %cst_11 = arith.constant 1.000000e-01 : f32
    %19 = vector.broadcast %cst_11 : f32 to vector<512x16xf32>
    %20 = arith.mulf %19, %18 : vector<512x16xf32>
    %21 = arith.maximumf %18, %20 : vector<512x16xf32>
    %c0_12 = arith.constant 0 : index
    %c0_13 = arith.constant 0 : index
    %22 = vector.load %arg5[%c0_12, %c0_13] : memref<32x32xf32, #tpu.memory_space<vmem>>, vector<16x32xf32>
    %cst_14 = arith.constant dense<0.000000e+00> : vector<512x32xf32>
    %23 = tpu.matmul %11, %22, %cst_14 {dimension_numbers = #tpu.dot_dimension_numbers<[1], [0], [0], [1], [0, 0, 1, 1], [], []>} : vector<512x16xf32>, vector<16x32xf32>, vector<512x32xf32> -> vector<512x32xf32>
    %c16 = arith.constant 16 : index
    %c0_15 = arith.constant 0 : index
    %24 = vector.load %arg5[%c16, %c0_15] : memref<32x32xf32, #tpu.memory_space<vmem>>, vector<16x32xf32>
    %cst_16 = arith.constant dense<0.000000e+00> : vector<512x32xf32>
    %25 = tpu.matmul %21, %24, %cst_16 {dimension_numbers = #tpu.dot_dimension_numbers<[1], [0], [0], [1], [0, 0, 1, 1], [], []>} : vector<512x16xf32>, vector<16x32xf32>, vector<512x32xf32> -> vector<512x32xf32>
    %26 = arith.addf %23, %25 : vector<512x32xf32>
    %c0_17 = arith.constant 0 : index
    %c0_18 = arith.constant 0 : index
    %27 = vector.load %arg6[%c0_17, %c0_18] : memref<1x32xf32, #tpu.memory_space<vmem>>, vector<1x32xf32>
    %28 = vector.broadcast %27 : vector<1x32xf32> to vector<512x32xf32>
    %29 = arith.addf %26, %28 : vector<512x32xf32>
    %cst_19 = arith.constant 0.000000e+00 : f32
    %30 = vector.broadcast %cst_19 : f32 to vector<512x32xf32>
    %31 = arith.maximumf %29, %30 : vector<512x32xf32>
    %c0_20 = arith.constant 0 : index
    %c0_21 = arith.constant 0 : index
    %32 = vector.load %arg7[%c0_20, %c0_21] : memref<512x32xf32, #tpu.memory_space<vmem>>, vector<512x32xf32>
    tpu.vector_store %arg7[%c0_20, %c0_21], %31 {strides = array<i32>} : memref<512x32xf32, #tpu.memory_space<vmem>>, vector<512x32xf32>,
    return
  }
  func.func @transform_0(%arg0: i32) -> (i32, i32) {
    %c0_i32 = arith.constant 0 : i32
    %c0_i32_0 = arith.constant 0 : i32
    return %arg0, %c0_i32 : i32, i32
  }
  func.func @transform_1(%arg0: i32) -> (i32, i32) {
    %c0_i32 = arith.constant 0 : i32
    %c0_i32_0 = arith.constant 0 : i32
    return %arg0, %c0_i32 : i32, i32
  }
  func.func @transform_2(%arg0: i32) -> (i32, i32) {
    %c0_i32 = arith.constant 0 : i32
    %c0_i32_0 = arith.constant 0 : i32
    %c0_i32_1 = arith.constant 0 : i32
    return %c0_i32, %c0_i32_0 : i32, i32
  }
  func.func @transform_3(%arg0: i32) -> (i32, i32) {
    %c0_i32 = arith.constant 0 : i32
    %c0_i32_0 = arith.constant 0 : i32
    %c0_i32_1 = arith.constant 0 : i32
    return %c0_i32, %c0_i32_0 : i32, i32
  }
  func.func @transform_4(%arg0: i32) -> (i32, i32) {
    %c0_i32 = arith.constant 0 : i32
    %c0_i32_0 = arith.constant 0 : i32
    %c0_i32_1 = arith.constant 0 : i32
    return %c0_i32, %c0_i32_0 : i32, i32
  }
  func.func @transform_5(%arg0: i32) -> (i32, i32) {
    %c0_i32 = arith.constant 0 : i32
    %c0_i32_0 = arith.constant 0 : i32
    %c0_i32_1 = arith.constant 0 : i32
    return %c0_i32, %c0_i32_0 : i32, i32
  }
  func.func @transform_6(%arg0: i32) -> (i32, i32) {
    %c0_i32 = arith.constant 0 : i32
    %c0_i32_0 = arith.constant 0 : i32
    return %arg0, %c0_i32 : i32, i32
  }
}

</mosaic_0001>

<llo_original>
// kernel: bottleneck_csp_forward.3
$region0: #{bottleneck_csp_forward.3}
  #allocation0 [shape = 'u32[]', space=smem, size = 0x4, offset = 0x4, fixed_abs, tag = 'smem constant byte address 0x4 - core index']
  #allocation1 [shape = 'u32[144,128]{1,0:T(1,128)}', space=vmem, size = 0x12000, scoped, tag = 'internal scratch']
  %s0 = inlined_call_operand.vmem [shape: f32[512,16], index: 0, kind: input, shape index: {}]
  %s1 = inlined_call_operand.vmem [shape: f32[16,16], index: 1, kind: input, shape index: {}]
  %s2 = inlined_call_operand.vmem [shape: f32[1,16], index: 2, kind: input, shape index: {}]
  %s3 = inlined_call_operand.vmem [shape: f32[16,16], index: 3, kind: input, shape index: {}]
  %s4 = inlined_call_operand.vmem [shape: f32[512,16], index: 4, kind: output, shape index: {0}]
  %s5 = inlined_call_operand.vmem [shape: f32[512,16], index: 5, kind: output, shape index: {1}]
  %6 = xla_tuple %s4, %s5
  %s7 = sld [smem:[#allocation0]]
  $region34: #{bottleneck_csp_forward.3} parent=0
    _
  %s9 = ssub.s32 1, %s7
  %s10 = scalar_select 0, %s9, %s7
  // Predicated region
  $region2: #{bottleneck_csp_forward.3} parent=0 // pred_check
    _
  $region3: #{bottleneck_csp_forward.3} parent=0 // pred_check_branch
    %12 = sbr.rel (0) target = $region5
  $region4: #{bottleneck_csp_forward.3} parent=0 // pred_region
    _
  $region5: #{bottleneck_csp_forward.3} parent=0 // pred_fallthru
    _
  // Predicated region
  $region6: #{bottleneck_csp_forward.3} parent=0 // pred_check
    _
  $region7: #{bottleneck_csp_forward.3} parent=0 // pred_check_branch
    %14 = sbr.rel (0) target = $region9
  $region8: #{bottleneck_csp_forward.3} parent=0 // pred_region
    _
  $region9: #{bottleneck_csp_forward.3} parent=0 // pred_fallthru
    _
  // Predicated region
  $region10: #{bottleneck_csp_forward.3} parent=0 // pred_check
    _
  $region11: #{bottleneck_csp_forward.3} parent=0 // pred_check_branch
    %16 = sbr.rel (0) target = $region13
  $region12: #{bottleneck_csp_forward.3} parent=0 // pred_region
    _
  $region13: #{bottleneck_csp_forward.3} parent=0 // pred_fallthru
    _
  // Predicated region
  $region14: #{bottleneck_csp_forward.3} parent=0 // pred_check
    _
  $region15: #{bottleneck_csp_forward.3} parent=0 // pred_check_branch
    %18 = sbr.rel (0) target = $region17
  $region16: #{bottleneck_csp_forward.3} parent=0 // pred_region
    _
  $region17: #{bottleneck_csp_forward.3} parent=0 // pred_fallthru
    _
  %v19 = vld [vmem:[%s0] sm:$0xff]
  %v20 = vld [vmem:[%s0 + $0x8] sm:$0xff]
  %v21 = vld [vmem:[%s0 + $0x10] sm:$0xff]
  %v22 = vld [vmem:[%s0 + $0x18] sm:$0xff]
  %v23 = vld [vmem:[%s0 + $0x20] sm:$0xff]
  %v24 = vld [vmem:[%s0 + $0x28] sm:$0xff]
  %v25 = vld [vmem:[%s0 + $0x30] sm:$0xff]
  %v26 = vld [vmem:[%s0 + $0x38] sm:$0xff]
  %v27 = vld [vmem:[%s0 + $0x40] sm:$0xff]
  %v28 = vld [vmem:[%s0 + $0x48] sm:$0xff]
  %v29 = vld [vmem:[%s0 + $0x50] sm:$0xff]
  %v30 = vld [vmem:[%s0 + $0x58] sm:$0xff]
  %v31 = vld [vmem:[%s0 + $0x60] sm:$0xff]
  %v32 = vld [vmem:[%s0 + $0x68] sm:$0xff]
  %v33 = vld [vmem:[%s0 + $0x70] sm:$0xff]
  %v34 = vld [vmem:[%s0 + $0x78] sm:$0xff]
  %v35 = vld [vmem:[%s0 + $0x80] sm:$0xff]
  %v36 = vld [vmem:[%s0 + $0x88] sm:$0xff]
  %v37 = vld [vmem:[%s0 + $0x90] sm:$0xff]
  %v38 = vld [vmem:[%s0 + $0x98] sm:$0xff]
  %v39 = vld [vmem:[%s0 + $0xa0] sm:$0xff]
  %v40 = vld [vmem:[%s0 + $0xa8] sm:$0xff]
  %v41 = vld [vmem:[%s0 + $0xb0] sm:$0xff]
  %v42 = vld [vmem:[%s0 + $0xb8] sm:$0xff]
  %v43 = vld [vmem:[%s0 + $0xc0] sm:$0xff]
  %v44 = vld [vmem:[%s0 + $0xc8] sm:$0xff]
  %v45 = vld [vmem:[%s0 + $0xd0] sm:$0xff]
  %v46 = vld [vmem:[%s0 + $0xd8] sm:$0xff]
  %v47 = vld [vmem:[%s0 + $0xe0] sm:$0xff]
  %v48 = vld [vmem:[%s0 + $0xe8] sm:$0xff]
  %v49 = vld [vmem:[%s0 + $0xf0] sm:$0xff]
  %v50 = vld [vmem:[%s0 + $0xf8] sm:$0xff]
  %v51 = vld [vmem:[%s0 + $0x100] sm:$0xff]
  %v52 = vld [vmem:[%s0 + $0x108] sm:$0xff]
  %v53 = vld [vmem:[%s0 + $0x110] sm:$0xff]
  %v54 = vld [vmem:[%s0 + $0x118] sm:$0xff]
  %v55 = vld [vmem:[%s0 + $0x120] sm:$0xff]
  %v56 = vld [vmem:[%s0 + $0x128] sm:$0xff]
  %v57 = vld [vmem:[%s0 + $0x130] sm:$0xff]
  %v58 = vld [vmem:[%s0 + $0x138] sm:$0xff]
  %v59 = vld [vmem:[%s0 + $0x140] sm:$0xff]
  %v60 = vld [vmem:[%s0 + $0x148] sm:$0xff]
  %v61 = vld [vmem:[%s0 + $0x150] sm:$0xff]
  %v62 = vld [vmem:[%s0 + $0x158] sm:$0xff]
  %v63 = vld [vmem:[%s0 + $0x160] sm:$0xff]
  %v64 = vld [vmem:[%s0 + $0x168] sm:$0xff]
  %v65 = vld [vmem:[%s0 + $0x170] sm:$0xff]
  %v66 = vld [vmem:[%s0 + $0x178] sm:$0xff]
  %v67 = vld [vmem:[%s0 + $0x180] sm:$0xff]
  %v68 = vld [vmem:[%s0 + $0x188] sm:$0xff]
  %v69 = vld [vmem:[%s0 + $0x190] sm:$0xff]
  %v70 = vld [vmem:[%s0 + $0x198] sm:$0xff]
  %v71 = vld [vmem:[%s0 + $0x1a0] sm:$0xff]
  %v72 = vld [vmem:[%s0 + $0x1a8] sm:$0xff]
  %v73 = vld [vmem:[%s0 + $0x1b0] sm:$0xff]
  %v74 = vld [vmem:[%s0 + $0x1b8] sm:$0xff]
  %v75 = vld [vmem:[%s0 + $0x1c0] sm:$0xff]
  %v76 = vld [vmem:[%s0 + $0x1c8] sm:$0xff]
  %v77 = vld [vmem:[%s0 + $0x1d0] sm:$0xff]
  %v78 = vld [vmem:[%s0 + $0x1d8] sm:$0xff]
  %v79 = vld [vmem:[%s0 + $0x1e0] sm:$0xff]
  %v80 = vld [vmem:[%s0 + $0x1e8] sm:$0xff]
  %v81 = vld [vmem:[%s0 + $0x1f0] sm:$0xff]
  %v82 = vld [vmem:[%s0 + $0x1f8] sm:$0xff]
  %v83 = vld [vmem:[%s1] sm:$0xff]
  %v84 = vld [vmem:[%s1 + $0x8] sm:$0xff]
  %v85 = vld [vmem:[%s2] sm:$0x1]
  %v87 = vlaneseq
  %v88 = vshrl.u32 %v87, 7
  %v89 = vsub.s32 0, %v88
  %v90 = vrot.slane %v85, %v89
  %vm92 = vcmask 130048
  %v94 = vsel %vm92, %v19, 0
  %v97 = vsel %vm92, %v20, 0
  %v100 = vsel %vm92, %v21, 0
  %v103 = vsel %vm92, %v22, 0
  %v106 = vsel %vm92, %v23, 0
  %v109 = vsel %vm92, %v24, 0
  %v112 = vsel %vm92, %v25, 0
  %v115 = vsel %vm92, %v26, 0
  %v118 = vsel %vm92, %v27, 0
  %v121 = vsel %vm92, %v28, 0
  %v124 = vsel %vm92, %v29, 0
  %v127 = vsel %vm92, %v30, 0
  %v130 = vsel %vm92, %v31, 0
  %v133 = vsel %vm92, %v32, 0
  %v136 = vsel %vm92, %v33, 0
  %v139 = vsel %vm92, %v34, 0
  %v142 = vsel %vm92, %v35, 0
  %v145 = vsel %vm92, %v36, 0
  %v148 = vsel %vm92, %v37, 0
  %v151 = vsel %vm92, %v38, 0
  %v154 = vsel %vm92, %v39, 0
  %v157 = vsel %vm92, %v40, 0
  %v160 = vsel %vm92, %v41, 0
  %v163 = vsel %vm92, %v42, 0
  %v166 = vsel %vm92, %v43, 0
  %v169 = vsel %vm92, %v44, 0
  %v172 = vsel %vm92, %v45, 0
  %v175 = vsel %vm92, %v46, 0
  %v178 = vsel %vm92, %v47, 0
  %v181 = vsel %vm92, %v48, 0
  %v184 = vsel %vm92, %v49, 0
  %v187 = vsel %vm92, %v50, 0
  %v190 = vsel %vm92, %v51, 0
  %v193 = vsel %vm92, %v52, 0
  %v196 = vsel %vm92, %v53, 0
  %v199 = vsel %vm92, %v54, 0
  %v202 = vsel %vm92, %v55, 0
  %v205 = vsel %vm92, %v56, 0
  %v208 = vsel %vm92, %v57, 0
  %v211 = vsel %vm92, %v58, 0
  %v214 = vsel %vm92, %v59, 0
  %v217 = vsel %vm92, %v60, 0
  %v220 = vsel %vm92, %v61, 0
  %v223 = vsel %vm92, %v62, 0
  %v226 = vsel %vm92, %v63, 0
  %v229 = vsel %vm92, %v64, 0
  %v232 = vsel %vm92, %v65, 0
  %v235 = vsel %vm92, %v66, 0
  %v238 = vsel %vm92, %v67, 0
  %v241 = vsel %vm92, %v68, 0
  %v244 = vsel %vm92, %v69, 0
  %v247 = vsel %vm92, %v70, 0
  %v250 = vsel %vm92, %v71, 0
  %v253 = vsel %vm92, %v72, 0
  %v256 = vsel %vm92, %v73, 0
  %v259 = vsel %vm92, %v74, 0
  %v262 = vsel %vm92, %v75, 0
  %v265 = vsel %vm92, %v76, 0
  %v268 = vsel %vm92, %v77, 0
  %v271 = vsel %vm92, %v78, 0
  %v274 = vsel %vm92, %v79, 0
  %v277 = vsel %vm92, %v80, 0
  %v280 = vsel %vm92, %v81, 0
  %v283 = vsel %vm92, %v82, 0
  %285 = vmatprep.subr.mxu0 0.0
  %286 = vmatpush1.msra.mxu0 0.0
  %287 = vmatprep.subr.mxu0 0.0
  %288 = vmatpush1.msra.mxu0 0.0
  %289 = vmatprep.subr.mxu0 0.0
  %290 = vmatpush1.msra.mxu0 0.0
  %291 = vmatprep.subr.mxu0 0.0
  %292 = vmatpush1.msra.mxu0 0.0
  %293 = vmatprep.subr.mxu0 0.0
  %294 = vmatpush1.msra.mxu0 0.0
  %295 = vmatprep.subr.mxu0 0.0
  %296 = vmatpush1.msra.mxu0 0.0
  %297 = vmatprep.subr.mxu0 0.0
  %298 = vmatpush1.msra.mxu0 0.0
  %299 = vmatprep.subr.mxu0 0.0
  %300 = vmatpush1.msra.mxu0 0.0
  %301 = vmatprep.subr.mxu0 0.0
  %302 = vmatpush1.msra.mxu0 0.0
  %303 = vmatprep.subr.mxu0 0.0
  %304 = vmatpush1.msra.mxu0 0.0
  %305 = vmatprep.subr.mxu0 0.0
  %306 = vmatpush1.msra.mxu0 0.0
  %307 = vmatprep.subr.mxu0 0.0
  %308 = vmatpush1.msra.mxu0 0.0
  %309 = vmatprep.subr.mxu0 0.0
  %310 = vmatpush1.msra.mxu0 0.0
  %311 = vmatprep.subr.mxu0 0.0
  %312 = vmatpush1.msra.mxu0 0.0
  %313 = vmatprep.subr.mxu0 0.0
  %314 = vmatpush1.msra.mxu0 %v84
  %315 = vmatprep.subr.mxu0 0.0
  %316 = vmatpush1.msra.mxu0 %v83
  %317 = vmatprep.subr.mxu0 0.0
  %318 = vmatpush2.msra.mxu0 0.0
  %319 = vmatprep.subr.mxu0 0.0
  %320 = vmatpush2.msra.mxu0 0.0
  %321 = vmatprep.subr.mxu0 0.0
  %322 = vmatpush2.msra.mxu0 0.0
  %323 = vmatprep.subr.mxu0 0.0
  %324 = vmatpush2.msra.mxu0 0.0
  %325 = vmatprep.subr.mxu0 0.0
  %326 = vmatpush2.msra.mxu0 0.0
  %327 = vmatprep.subr.mxu0 0.0
  %328 = vmatpush2.msra.mxu0 0.0
  %329 = vmatprep.subr.mxu0 0.0
  %330 = vmatpush2.msra.mxu0 0.0
  %331 = vmatprep.subr.mxu0 0.0
  %332 = vmatpush2.msra.mxu0 0.0
  %333 = vmatprep.subr.mxu0 0.0
  %334 = vmatpush2.msra.mxu0 0.0
  %335 = vmatprep.subr.mxu0 0.0
  %336 = vmatpush2.msra.mxu0 0.0
  %337 = vmatprep.subr.mxu0 0.0
  %338 = vmatpush2.msra.mxu0 0.0
  %339 = vmatprep.subr.mxu0 0.0
  %340 = vmatpush2.msra.mxu0 0.0
  %341 = vmatprep.subr.mxu0 0.0
  %342 = vmatpush2.msra.mxu0 0.0
  %343 = vmatprep.subr.mxu0 0.0
  %344 = vmatpush2.msra.mxu0 0.0
  %345 = vmatprep.subr.mxu0 0.0
  %346 = vmatpush2.msra.mxu0 0.0
  %347 = vmatprep.subr.mxu0 0.0
  %348 = vmatpush2.msra.mxu0 0.0
  %349 = vmatprep.mubr.f32.mxu0 0.0
  %350 = vmatmul.mubr.f32.gmra.mxu0 %v94
  %v351 = vpop.f32.mrf.mxu0
  %v352 = vadd.f32 %v90, %v351
  %v353 = vpop.f32.mrf.mxu0
  %354 = vmatprep.mubr.f32.mxu0 0.0
  %355 = vmatmul.mubr.f32.gmra.mxu0 %v97
  %v356 = vpop.f32.mrf.mxu0
  %v357 = vadd.f32 %v90, %v356
  %v358 = vpop.f32.mrf.mxu0
  %359 = vmatprep.mubr.f32.mxu0 0.0
  %360 = vmatmul.mubr.f32.gmra.mxu0 %v100
  %v361 = vpop.f32.mrf.mxu0
  %v362 = vadd.f32 %v90, %v361
  %v363 = vpop.f32.mrf.mxu0
  %364 = vmatprep.mubr.f32.mxu0 0.0
  %365 = vmatmul.mubr.f32.gmra.mxu0 %v103
  %v366 = vpop.f32.mrf.mxu0
  %v367 = vadd.f32 %v90, %v366
  %v368 = vpop.f32.mrf.mxu0
  %369 = vmatprep.mubr.f32.mxu0 0.0
  %370 = vmatmul.mubr.f32.gmra.mxu0 %v106
  %v371 = vpop.f32.mrf.mxu0
  %v372 = vadd.f32 %v90, %v371
  %v373 = vpop.f32.mrf.mxu0
  %374 = vmatprep.mubr.f32.mxu0 0.0
  %375 = vmatmul.mubr.f32.gmra.mxu0 %v109
  %v376 = vpop.f32.mrf.mxu0
  %v377 = vadd.f32 %v90, %v376
  %v378 = vpop.f32.mrf.mxu0
  %379 = vmatprep.mubr.f32.mxu0 0.0
  %380 = vmatmul.mubr.f32.gmra.mxu0 %v112
  %v381 = vpop.f32.mrf.mxu0
  %v382 = vadd.f32 %v90, %v381
  %v383 = vpop.f32.mrf.mxu0
  %384 = vmatprep.mubr.f32.mxu0 0.0
  %385 = vmatmul.mubr.f32.gmra.mxu0 %v115
  %v386 = vpop.f32.mrf.mxu0
  %v387 = vadd.f32 %v90, %v386
  %v388 = vpop.f32.mrf.mxu0
  %389 = vmatprep.mubr.f32.mxu0 0.0
  %390 = vmatmul.mubr.f32.gmra.mxu0 %v118
  %v391 = vpop.f32.mrf.mxu0
  %v392 = vadd.f32 %v90, %v391
  %v393 = vpop.f32.mrf.mxu0
  %394 = vmatprep.mubr.f32.mxu0 0.0
  %395 = vmatmul.mubr.f32.gmra.mxu0 %v121
  %v396 = vpop.f32.mrf.mxu0
  %v397 = vadd.f32 %v90, %v396
  %v398 = vpop.f32.mrf.mxu0
  %399 = vmatprep.mubr.f32.mxu0 0.0
  %400 = vmatmul.mubr.f32.gmra.mxu0 %v124
  %v401 = vpop.f32.mrf.mxu0
  %v402 = vadd.f32 %v90, %v401
  %v403 = vpop.f32.mrf.mxu0
  %404 = vmatprep.mubr.f32.mxu0 0.0
  %405 = vmatmul.mubr.f32.gmra.mxu0 %v127
  %v406 = vpop.f32.mrf.mxu0
  %v407 = vadd.f32 %v90, %v406
  %v408 = vpop.f32.mrf.mxu0
  %409 = vmatprep.mubr.f32.mxu0 0.0
  %410 = vmatmul.mubr.f32.gmra.mxu0 %v130
  %v411 = vpop.f32.mrf.mxu0
  %v412 = vadd.f32 %v90, %v411
  %v413 = vpop.f32.mrf.mxu0
  %414 = vmatprep.mubr.f32.mxu0 0.0
  %415 = vmatmul.mubr.f32.gmra.mxu0 %v133
  %v416 = vpop.f32.mrf.mxu0
  %v417 = vadd.f32 %v90, %v416
  %v418 = vpop.f32.mrf.mxu0
  %419 = vmatprep.mubr.f32.mxu0 0.0
  %420 = vmatmul.mubr.f32.gmra.mxu0 %v136
  %v421 = vpop.f32.mrf.mxu0
  %v422 = vadd.f32 %v90, %v421
  %v423 = vpop.f32.mrf.mxu0
  %424 = vmatprep.mubr.f32.mxu0 0.0
  %425 = vmatmul.mubr.f32.gmra.mxu0 %v139
  %v426 = vpop.f32.mrf.mxu0
  %v427 = vadd.f32 %v90, %v426
  %v428 = vpop.f32.mrf.mxu0
  %429 = vmatprep.mubr.f32.mxu0 0.0
  %430 = vmatmul.mubr.f32.gmra.mxu0 %v142
  %v431 = vpop.f32.mrf.mxu0
  %v432 = vadd.f32 %v90, %v431
  %v433 = vpop.f32.mrf.mxu0
  %434 = vmatprep.mubr.f32.mxu0 0.0
  %435 = vmatmul.mubr.f32.gmra.mxu0 %v145
  %v436 = vpop.f32.mrf.mxu0
  %v437 = vadd.f32 %v90, %v436
  %v438 = vpop.f32.mrf.mxu0
  %439 = vmatprep.mubr.f32.mxu0 0.0
  %440 = vmatmul.mubr.f32.gmra.mxu0 %v148
  %v441 = vpop.f32.mrf.mxu0
  %v442 = vadd.f32 %v90, %v441
  %v443 = vpop.f32.mrf.mxu0
  %444 = vmatprep.mubr.f32.mxu0 0.0
  %445 = vmatmul.mubr.f32.gmra.mxu0 %v151
  %v446 = vpop.f32.mrf.mxu0
  %v447 = vadd.f32 %v90, %v446
  %v448 = vpop.f32.mrf.mxu0
  %449 = vmatprep.mubr.f32.mxu0 0.0
  %450 = vmatmul.mubr.f32.gmra.mxu0 %v154
  %v451 = vpop.f32.mrf.mxu0
  %v452 = vadd.f32 %v90, %v451
  %v453 = vpop.f32.mrf.mxu0
  %454 = vmatprep.mubr.f32.mxu0 0.0
  %455 = vmatmul.mubr.f32.gmra.mxu0 %v157
  %v456 = vpop.f32.mrf.mxu0
  %v457 = vadd.f32 %v90, %v456
  %v458 = vpop.f32.mrf.mxu0
  %459 = vmatprep.mubr.f32.mxu0 0.0
  %460 = vmatmul.mubr.f32.gmra.mxu0 %v160
  %v461 = vpop.f32.mrf.mxu0
  %v462 = vadd.f32 %v90, %v461
  %v463 = vpop.f32.mrf.mxu0
  %464 = vmatprep.mubr.f32.mxu0 0.0
  %465 = vmatmul.mubr.f32.gmra.mxu0 %v163
  %v466 = vpop.f32.mrf.mxu0
  %v467 = vadd.f32 %v90, %v466
  %v468 = vpop.f32.mrf.mxu0
  %469 = vmatprep.mubr.f32.mxu0 0.0
  %470 = vmatmul.mubr.f32.gmra.mxu0 %v166
  %v471 = vpop.f32.mrf.mxu0
  %v472 = vadd.f32 %v90, %v471
  %v473 = vpop.f32.mrf.mxu0
  %474 = vmatprep.mubr.f32.mxu0 0.0
  %475 = vmatmul.mubr.f32.gmra.mxu0 %v169
  %v476 = vpop.f32.mrf.mxu0
  %v477 = vadd.f32 %v90, %v476
  %v478 = vpop.f32.mrf.mxu0
  %479 = vmatprep.mubr.f32.mxu0 0.0
  %480 = vmatmul.mubr.f32.gmra.mxu0 %v172
  %v481 = vpop.f32.mrf.mxu0
  %v482 = vadd.f32 %v90, %v481
  %v483 = vpop.f32.mrf.mxu0
  %484 = vmatprep.mubr.f32.mxu0 0.0
  %485 = vmatmul.mubr.f32.gmra.mxu0 %v175
  %v486 = vpop.f32.mrf.mxu0
  %v487 = vadd.f32 %v90, %v486
  %v488 = vpop.f32.mrf.mxu0
  %489 = vmatprep.mubr.f32.mxu0 0.0
  %490 = vmatmul.mubr.f32.gmra.mxu0 %v178
  %v491 = vpop.f32.mrf.mxu0
  %v492 = vadd.f32 %v90, %v491
  %v493 = vpop.f32.mrf.mxu0
  %494 = vmatprep.mubr.f32.mxu0 0.0
  %495 = vmatmul.mubr.f32.gmra.mxu0 %v181
  %v496 = vpop.f32.mrf.mxu0
  %v497 = vadd.f32 %v90, %v496
  %v498 = vpop.f32.mrf.mxu0
  %499 = vmatprep.mubr.f32.mxu0 0.0
  %500 = vmatmul.mubr.f32.gmra.mxu0 %v184
  %v501 = vpop.f32.mrf.mxu0
  %v502 = vadd.f32 %v90, %v501
  %v503 = vpop.f32.mrf.mxu0
  %504 = vmatprep.mubr.f32.mxu0 0.0
  %505 = vmatmul.mubr.f32.gmra.mxu0 %v187
  %v506 = vpop.f32.mrf.mxu0
  %v507 = vadd.f32 %v90, %v506
  %v508 = vpop.f32.mrf.mxu0
  %509 = vmatprep.mubr.f32.mxu0 0.0
  %510 = vmatmul.mubr.f32.gmra.mxu0 %v190
  %v511 = vpop.f32.mrf.mxu0
  %v512 = vadd.f32 %v90, %v511
  %v513 = vpop.f32.mrf.mxu0
  %514 = vmatprep.mubr.f32.mxu0 0.0
  %515 = vmatmul.mubr.f32.gmra.mxu0 %v193
  %v516 = vpop.f32.mrf.mxu0
  %v517 = vadd.f32 %v90, %v516
  %v518 = vpop.f32.mrf.mxu0
  %519 = vmatprep.mubr.f32.mxu0 0.0
  %520 = vmatmul.mubr.f32.gmra.mxu0 %v196
  %v521 = vpop.f32.mrf.mxu0
  %v522 = vadd.f32 %v90, %v521
  %v523 = vpop.f32.mrf.mxu0
  %524 = vmatprep.mubr.f32.mxu0 0.0
  %525 = vmatmul.mubr.f32.gmra.mxu0 %v199
  %v526 = vpop.f32.mrf.mxu0
  %v527 = vadd.f32 %v90, %v526
  %v528 = vpop.f32.mrf.mxu0
  %529 = vmatprep.mubr.f32.mxu0 0.0
  %530 = vmatmul.mubr.f32.gmra.mxu0 %v202
  %v531 = vpop.f32.mrf.mxu0
  %v532 = vadd.f32 %v90, %v531
  %v533 = vpop.f32.mrf.mxu0
  %534 = vmatprep.mubr.f32.mxu0 0.0
  %535 = vmatmul.mubr.f32.gmra.mxu0 %v205
  %v536 = vpop.f32.mrf.mxu0
  %v537 = vadd.f32 %v90, %v536
  %v538 = vpop.f32.mrf.mxu0
  %539 = vmatprep.mubr.f32.mxu0 0.0
  %540 = vmatmul.mubr.f32.gmra.mxu0 %v208
  %v541 = vpop.f32.mrf.mxu0
  %v542 = vadd.f32 %v90, %v541
  %v543 = vpop.f32.mrf.mxu0
  %544 = vmatprep.mubr.f32.mxu0 0.0
  %545 = vmatmul.mubr.f32.gmra.mxu0 %v211
  %v546 = vpop.f32.mrf.mxu0
  %v547 = vadd.f32 %v90, %v546
  %v548 = vpop.f32.mrf.mxu0
  %549 = vmatprep.mubr.f32.mxu0 0.0
  %550 = vmatmul.mubr.f32.gmra.mxu0 %v214
  %v551 = vpop.f32.mrf.mxu0
  %v552 = vadd.f32 %v90, %v551
  %v553 = vpop.f32.mrf.mxu0
  %554 = vmatprep.mubr.f32.mxu0 0.0
  %555 = vmatmul.mubr.f32.gmra.mxu0 %v217
  %v556 = vpop.f32.mrf.mxu0
  %v557 = vadd.f32 %v90, %v556
  %v558 = vpop.f32.mrf.mxu0
  %559 = vmatprep.mubr.f32.mxu0 0.0
  %560 = vmatmul.mubr.f32.gmra.mxu0 %v220
  %v561 = vpop.f32.mrf.mxu0
  %v562 = vadd.f32 %v90, %v561
  %v563 = vpop.f32.mrf.mxu0
  %564 = vmatprep.mubr.f32.mxu0 0.0
  %565 = vmatmul.mubr.f32.gmra.mxu0 %v223
  %v566 = vpop.f32.mrf.mxu0
  %v567 = vadd.f32 %v90, %v566
  %v568 = vpop.f32.mrf.mxu0
  %569 = vmatprep.mubr.f32.mxu0 0.0
  %570 = vmatmul.mubr.f32.gmra.mxu0 %v226
  %v571 = vpop.f32.mrf.mxu0
  %v572 = vadd.f32 %v90, %v571
  %v573 = vpop.f32.mrf.mxu0
  %574 = vmatprep.mubr.f32.mxu0 0.0
  %575 = vmatmul.mubr.f32.gmra.mxu0 %v229
  %v576 = vpop.f32.mrf.mxu0
  %v577 = vadd.f32 %v90, %v576
  %v578 = vpop.f32.mrf.mxu0
  %579 = vmatprep.mubr.f32.mxu0 0.0
  %580 = vmatmul.mubr.f32.gmra.mxu0 %v232
  %v581 = vpop.f32.mrf.mxu0
  %v582 = vadd.f32 %v90, %v581
  %v583 = vpop.f32.mrf.mxu0
  %584 = vmatprep.mubr.f32.mxu0 0.0
  %585 = vmatmul.mubr.f32.gmra.mxu0 %v235
  %v586 = vpop.f32.mrf.mxu0
  %v587 = vadd.f32 %v90, %v586
  %v588 = vpop.f32.mrf.mxu0
  %589 = vmatprep.mubr.f32.mxu0 0.0
  %590 = vmatmul.mubr.f32.gmra.mxu0 %v238
  %v591 = vpop.f32.mrf.mxu0
  %v592 = vadd.f32 %v90, %v591
  %v593 = vpop.f32.mrf.mxu0
  %594 = vmatprep.mubr.f32.mxu0 0.0
  %595 = vmatmul.mubr.f32.gmra.mxu0 %v241
  %v596 = vpop.f32.mrf.mxu0
  %v597 = vadd.f32 %v90, %v596
  %v598 = vpop.f32.mrf.mxu0
  %599 = vmatprep.mubr.f32.mxu0 0.0
  %600 = vmatmul.mubr.f32.gmra.mxu0 %v244
  %v601 = vpop.f32.mrf.mxu0
  %v602 = vadd.f32 %v90, %v601
  %v603 = vpop.f32.mrf.mxu0
  %604 = vmatprep.mubr.f32.mxu0 0.0
  %605 = vmatmul.mubr.f32.gmra.mxu0 %v247
  %v606 = vpop.f32.mrf.mxu0
  %v607 = vadd.f32 %v90, %v606
  %v608 = vpop.f32.mrf.mxu0
  %609 = vmatprep.mubr.f32.mxu0 0.0
  %610 = vmatmul.mubr.f32.gmra.mxu0 %v250
  %v611 = vpop.f32.mrf.mxu0
  %v612 = vadd.f32 %v90, %v611
  %v613 = vpop.f32.mrf.mxu0
  %614 = vmatprep.mubr.f32.mxu0 0.0
  %615 = vmatmul.mubr.f32.gmra.mxu0 %v253
  %v616 = vpop.f32.mrf.mxu0
  %v617 = vadd.f32 %v90, %v616
  %v618 = vpop.f32.mrf.mxu0
  %619 = vmatprep.mubr.f32.mxu0 0.0
  %620 = vmatmul.mubr.f32.gmra.mxu0 %v256
  %v621 = vpop.f32.mrf.mxu0
  %v622 = vadd.f32 %v90, %v621
  %v623 = vpop.f32.mrf.mxu0
  %624 = vmatprep.mubr.f32.mxu0 0.0
  %625 = vmatmul.mubr.f32.gmra.mxu0 %v259
  %v626 = vpop.f32.mrf.mxu0
  %v627 = vadd.f32 %v90, %v626
  %v628 = vpop.f32.mrf.mxu0
  %629 = vmatprep.mubr.f32.mxu0 0.0
  %630 = vmatmul.mubr.f32.gmra.mxu0 %v262
  %v631 = vpop.f32.mrf.mxu0
  %v632 = vadd.f32 %v90, %v631
  %v633 = vpop.f32.mrf.mxu0
  %634 = vmatprep.mubr.f32.mxu0 0.0
  %635 = vmatmul.mubr.f32.gmra.mxu0 %v265
  %v636 = vpop.f32.mrf.mxu0
  %v637 = vadd.f32 %v90, %v636
  %v638 = vpop.f32.mrf.mxu0
  %639 = vmatprep.mubr.f32.mxu0 0.0
  %640 = vmatmul.mubr.f32.gmra.mxu0 %v268
  %v641 = vpop.f32.mrf.mxu0
  %v642 = vadd.f32 %v90, %v641
  %v643 = vpop.f32.mrf.mxu0
  %644 = vmatprep.mubr.f32.mxu0 0.0
  %645 = vmatmul.mubr.f32.gmra.mxu0 %v271
  %v646 = vpop.f32.mrf.mxu0
  %v647 = vadd.f32 %v90, %v646
  %v648 = vpop.f32.mrf.mxu0
  %649 = vmatprep.mubr.f32.mxu0 0.0
  %650 = vmatmul.mubr.f32.gmra.mxu0 %v274
  %v651 = vpop.f32.mrf.mxu0
  %v652 = vadd.f32 %v90, %v651
  %v653 = vpop.f32.mrf.mxu0
  %654 = vmatprep.mubr.f32.mxu0 0.0
  %655 = vmatmul.mubr.f32.gmra.mxu0 %v277
  %v656 = vpop.f32.mrf.mxu0
  %v657 = vadd.f32 %v90, %v656
  %v658 = vpop.f32.mrf.mxu0
  %659 = vmatprep.mubr.f32.mxu0 0.0
  %660 = vmatmul.mubr.f32.gmra.mxu0 %v280
  %v661 = vpop.f32.mrf.mxu0
  %v662 = vadd.f32 %v90, %v661
  %v663 = vpop.f32.mrf.mxu0
  %664 = vmatprep.mubr.f32.mxu0 0.0
  %665 = vmatmul.mubr.f32.gmra.mxu0 %v283
  %v666 = vpop.f32.mrf.mxu0
  %v667 = vadd.f32 %v90, %v666
  %v668 = vpop.f32.mrf.mxu0
  %669 = vdwg.mxu0
  %v670 = vmax.f32 %v352, 0.0
  %v671 = vmax.f32 %v357, 0.0
  %v672 = vmax.f32 %v362, 0.0
  %v673 = vmax.f32 %v367, 0.0
  %v674 = vmax.f32 %v372, 0.0
  %v675 = vmax.f32 %v377, 0.0
  %v676 = vmax.f32 %v382, 0.0
  %v677 = vmax.f32 %v387, 0.0
  %v678 = vmax.f32 %v392, 0.0
  %v679 = vmax.f32 %v397, 0.0
  %v680 = vmax.f32 %v402, 0.0
  %v681 = vmax.f32 %v407, 0.0
  %v682 = vmax.f32 %v412, 0.0
  %v683 = vmax.f32 %v417, 0.0
  %v684 = vmax.f32 %v422, 0.0
  %v685 = vmax.f32 %v427, 0.0
  %v686 = vmax.f32 %v432, 0.0
  %v687 = vmax.f32 %v437, 0.0
  %v688 = vmax.f32 %v442, 0.0
  %v689 = vmax.f32 %v447, 0.0
  %v690 = vmax.f32 %v452, 0.0
  %v691 = vmax.f32 %v457, 0.0
  %v692 = vmax.f32 %v462, 0.0
  %v693 = vmax.f32 %v467, 0.0
  %v694 = vmax.f32 %v472, 0.0
  %v695 = vmax.f32 %v477, 0.0
  %v696 = vmax.f32 %v482, 0.0
  %v697 = vmax.f32 %v487, 0.0
  %v698 = vmax.f32 %v492, 0.0
  %v699 = vmax.f32 %v497, 0.0
  %v700 = vmax.f32 %v502, 0.0
  %v701 = vmax.f32 %v507, 0.0
  %v702 = vmax.f32 %v512, 0.0
  %v703 = vmax.f32 %v517, 0.0
  %v704 = vmax.f32 %v522, 0.0
  %v705 = vmax.f32 %v527, 0.0
  %v706 = vmax.f32 %v532, 0.0
  %v707 = vmax.f32 %v537, 0.0
  %v708 = vmax.f32 %v542, 0.0
  %v709 = vmax.f32 %v547, 0.0
  %v710 = vmax.f32 %v552, 0.0
  %v711 = vmax.f32 %v557, 0.0
  %v712 = vmax.f32 %v562, 0.0
  %v713 = vmax.f32 %v567, 0.0
  %v714 = vmax.f32 %v572, 0.0
  %v715 = vmax.f32 %v577, 0.0
  %v716 = vmax.f32 %v582, 0.0
  %v717 = vmax.f32 %v587, 0.0
  %v718 = vmax.f32 %v592, 0.0
  %v719 = vmax.f32 %v597, 0.0
  %v720 = vmax.f32 %v602, 0.0
  %v721 = vmax.f32 %v607, 0.0
  %v722 = vmax.f32 %v612, 0.0
  %v723 = vmax.f32 %v617, 0.0
  %v724 = vmax.f32 %v622, 0.0
  %v725 = vmax.f32 %v627, 0.0
  %v726 = vmax.f32 %v632, 0.0
  %v727 = vmax.f32 %v637, 0.0
  %v728 = vmax.f32 %v642, 0.0
  %v729 = vmax.f32 %v647, 0.0
  %v730 = vmax.f32 %v652, 0.0
  %v731 = vmax.f32 %v657, 0.0
  %v732 = vmax.f32 %v662, 0.0
  %v733 = vmax.f32 %v667, 0.0
  %734 = vst.msk [vmem:[%s4] sm:$0xff] %vm92, %v670
  %735 = vst.msk [vmem:[%s4 + $0x8] sm:$0xff] %vm92, %v671
  %736 = vst.msk [vmem:[%s4 + $0x10] sm:$0xff] %vm92, %v672
  %737 = vst.msk [vmem:[%s4 + $0x18] sm:$0xff] %vm92, %v673
  %738 = vst.msk [vmem:[%s4 + $0x20] sm:$0xff] %vm92, %v674
  %739 = vst.msk [vmem:[%s4 + $0x28] sm:$0xff] %vm92, %v675
  %740 = vst.msk [vmem:[%s4 + $0x30] sm:$0xff] %vm92, %v676
  %741 = vst.msk [vmem:[%s4 + $0x38] sm:$0xff] %vm92, %v677
  %742 = vst.msk [vmem:[%s4 + $0x40] sm:$0xff] %vm92, %v678
  %743 = vst.msk [vmem:[%s4 + $0x48] sm:$0xff] %vm92, %v679
  %744 = vst.msk [vmem:[%s4 + $0x50] sm:$0xff] %vm92, %v680
  %745 = vst.msk [vmem:[%s4 + $0x58] sm:$0xff] %vm92, %v681
  %746 = vst.msk [vmem:[%s4 + $0x60] sm:$0xff] %vm92, %v682
  %747 = vst.msk [vmem:[%s4 + $0x68] sm:$0xff] %vm92, %v683
  %748 = vst.msk [vmem:[%s4 + $0x70] sm:$0xff] %vm92, %v684
  %749 = vst.msk [vmem:[%s4 + $0x78] sm:$0xff] %vm92, %v685
  %750 = vst.msk [vmem:[%s4 + $0x80] sm:$0xff] %vm92, %v686
  %751 = vst.msk [vmem:[%s4 + $0x88] sm:$0xff] %vm92, %v687
  %752 = vst.msk [vmem:[%s4 + $0x90] sm:$0xff] %vm92, %v688
  %753 = vst.msk [vmem:[%s4 + $0x98] sm:$0xff] %vm92, %v689
  %754 = vst.msk [vmem:[%s4 + $0xa0] sm:$0xff] %vm92, %v690
  %755 = vst.msk [vmem:[%s4 + $0xa8] sm:$0xff] %vm92, %v691
  %756 = vst.msk [vmem:[%s4 + $0xb0] sm:$0xff] %vm92, %v692
  %757 = vst.msk [vmem:[%s4 + $0xb8] sm:$0xff] %vm92, %v693
  %758 = vst.msk [vmem:[%s4 + $0xc0] sm:$0xff] %vm92, %v694
  %759 = vst.msk [vmem:[%s4 + $0xc8] sm:$0xff] %vm92, %v695
  %760 = vst.msk [vmem:[%s4 + $0xd0] sm:$0xff] %vm92, %v696
  %761 = vst.msk [vmem:[%s4 + $0xd8] sm:$0xff] %vm92, %v697
  %762 = vst.msk [vmem:[%s4 + $0xe0] sm:$0xff] %vm92, %v698
  %763 = vst.msk [vmem:[%s4 + $0xe8] sm:$0xff] %vm92, %v699
  %764 = vst.msk [vmem:[%s4 + $0xf0] sm:$0xff] %vm92, %v700
  %765 = vst.msk [vmem:[%s4 + $0xf8] sm:$0xff] %vm92, %v701
  %766 = vst.msk [vmem:[%s4 + $0x100] sm:$0xff] %vm92, %v702
  %767 = vst.msk [vmem:[%s4 + $0x108] sm:$0xff] %vm92, %v703
  %768 = vst.msk [vmem:[%s4 + $0x110] sm:$0xff] %vm92, %v704
  %769 = vst.msk [vmem:[%s4 + $0x118] sm:$0xff] %vm92, %v705
  %770 = vst.msk [vmem:[%s4 + $0x120] sm:$0xff] %vm92, %v706
  %771 = vst.msk [vmem:[%s4 + $0x128] sm:$0xff] %vm92, %v707
  %772 = vst.msk [vmem:[%s4 + $0x130] sm:$0xff] %vm92, %v708
  %773 = vst.msk [vmem:[%s4 + $0x138] sm:$0xff] %vm92, %v709
  %774 = vst.msk [vmem:[%s4 + $0x140] sm:$0xff] %vm92, %v710
  %775 = vst.msk [vmem:[%s4 + $0x148] sm:$0xff] %vm92, %v711
  %776 = vst.msk [vmem:[%s4 + $0x150] sm:$0xff] %vm92, %v712
  %777 = vst.msk [vmem:[%s4 + $0x158] sm:$0xff] %vm92, %v713
  %778 = vst.msk [vmem:[%s4 + $0x160] sm:$0xff] %vm92, %v714
  %779 = vst.msk [vmem:[%s4 + $0x168] sm:$0xff] %vm92, %v715
  %780 = vst.msk [vmem:[%s4 + $0x170] sm:$0xff] %vm92, %v716
  %781 = vst.msk [vmem:[%s4 + $0x178] sm:$0xff] %vm92, %v717
  %782 = vst.msk [vmem:[%s4 + $0x180] sm:$0xff] %vm92, %v718
  %783 = vst.msk [vmem:[%s4 + $0x188] sm:$0xff] %vm92, %v719
  %784 = vst.msk [vmem:[%s4 + $0x190] sm:$0xff] %vm92, %v720
  %785 = vst.msk [vmem:[%s4 + $0x198] sm:$0xff] %vm92, %v721
  %786 = vst.msk [vmem:[%s4 + $0x1a0] sm:$0xff] %vm92, %v722
  %787 = vst.msk [vmem:[%s4 + $0x1a8] sm:$0xff] %vm92, %v723
  %788 = vst.msk [vmem:[%s4 + $0x1b0] sm:$0xff] %vm92, %v724
  %789 = vst.msk [vmem:[%s4 + $0x1b8] sm:$0xff] %vm92, %v725
  %790 = vst.msk [vmem:[%s4 + $0x1c0] sm:$0xff] %vm92, %v726
  %791 = vst.msk [vmem:[%s4 + $0x1c8] sm:$0xff] %vm92, %v727
  %792 = vst.msk [vmem:[%s4 + $0x1d0] sm:$0xff] %vm92, %v728
  %793 = vst.msk [vmem:[%s4 + $0x1d8] sm:$0xff] %vm92, %v729
  %794 = vst.msk [vmem:[%s4 + $0x1e0] sm:$0xff] %vm92, %v730
  %795 = vst.msk [vmem:[%s4 + $0x1e8] sm:$0xff] %vm92, %v731
  %796 = vst.msk [vmem:[%s4 + $0x1f0] sm:$0xff] %vm92, %v732
  %797 = vst.msk [vmem:[%s4 + $0x1f8] sm:$0xff] %vm92, %v733
  %v798 = vld [vmem:[%s3] sm:$0xff]
  %v799 = vld [vmem:[%s3 + $0x8] sm:$0xff]
  %800 = vmatprep.subr.mxu0 0.0
  %801 = vmatpush1.msra.mxu0 0.0
  %802 = vmatprep.subr.mxu0 0.0
  %803 = vmatpush1.msra.mxu0 0.0
  %804 = vmatprep.subr.mxu0 0.0
  %805 = vmatpush1.msra.mxu0 0.0
  %806 = vmatprep.subr.mxu0 0.0
  %807 = vmatpush1.msra.mxu0 0.0
  %808 = vmatprep.subr.mxu0 0.0
  %809 = vmatpush1.msra.mxu0 0.0
  %810 = vmatprep.subr.mxu0 0.0
  %811 = vmatpush1.msra.mxu0 0.0
  %812 = vmatprep.subr.mxu0 0.0
  %813 = vmatpush1.msra.mxu0 0.0
  %814 = vmatprep.subr.mxu0 0.0
  %815 = vmatpush1.msra.mxu0 0.0
  %816 = vmatprep.subr.mxu0 0.0
  %817 = vmatpush1.msra.mxu0 0.0
  %818 = vmatprep.subr.mxu0 0.0
  %819 = vmatpush1.msra.mxu0 0.0
  %820 = vmatprep.subr.mxu0 0.0
  %821 = vmatpush1.msra.mxu0 0.0
  %822 = vmatprep.subr.mxu0 0.0
  %823 = vmatpush1.msra.mxu0 0.0
  %824 = vmatprep.subr.mxu0 0.0
  %825 = vmatpush1.msra.mxu0 0.0
  %826 = vmatprep.subr.mxu0 0.0
  %827 = vmatpush1.msra.mxu0 0.0
  %828 = vmatprep.subr.mxu0 0.0
  %829 = vmatpush1.msra.mxu0 %v799
  %830 = vmatprep.subr.mxu0 0.0
  %831 = vmatpush1.msra.mxu0 %v798
  %832 = vmatprep.subr.mxu0 0.0
  %833 = vmatpush2.msra.mxu0 0.0
  %834 = vmatprep.subr.mxu0 0.0
  %835 = vmatpush2.msra.mxu0 0.0
  %836 = vmatprep.subr.mxu0 0.0
  %837 = vmatpush2.msra.mxu0 0.0
  %838 = vmatprep.subr.mxu0 0.0
  %839 = vmatpush2.msra.mxu0 0.0
  %840 = vmatprep.subr.mxu0 0.0
  %841 = vmatpush2.msra.mxu0 0.0
  %842 = vmatprep.subr.mxu0 0.0
  %843 = vmatpush2.msra.mxu0 0.0
  %844 = vmatprep.subr.mxu0 0.0
  %845 = vmatpush2.msra.mxu0 0.0
  %846 = vmatprep.subr.mxu0 0.0
  %847 = vmatpush2.msra.mxu0 0.0
  %848 = vmatprep.subr.mxu0 0.0
  %849 = vmatpush2.msra.mxu0 0.0
  %850 = vmatprep.subr.mxu0 0.0
  %851 = vmatpush2.msra.mxu0 0.0
  %852 = vmatprep.subr.mxu0 0.0
  %853 = vmatpush2.msra.mxu0 0.0
  %854 = vmatprep.subr.mxu0 0.0
  %855 = vmatpush2.msra.mxu0 0.0
  %856 = vmatprep.subr.mxu0 0.0
  %857 = vmatpush2.msra.mxu0 0.0
  %858 = vmatprep.subr.mxu0 0.0
  %859 = vmatpush2.msra.mxu0 0.0
  %860 = vmatprep.subr.mxu0 0.0
  %861 = vmatpush2.msra.mxu0 0.0
  %862 = vmatprep.subr.mxu0 0.0
  %863 = vmatpush2.msra.mxu0 0.0
  %864 = vmatprep.mubr.f32.mxu0 0.0
  %865 = vmatmul.mubr.f32.gmra.mxu0 %v94
  %v866 = vpop.f32.mrf.mxu0
  %v867 = vadd.f32 0.0, %v866
  %v868 = vpop.f32.mrf.mxu0
  %869 = vmatprep.mubr.f32.mxu0 0.0
  %870 = vmatmul.mubr.f32.gmra.mxu0 %v97
  %v871 = vpop.f32.mrf.mxu0
  %v872 = vadd.f32 0.0, %v871
  %v873 = vpop.f32.mrf.mxu0
  %874 = vmatprep.mubr.f32.mxu0 0.0
  %875 = vmatmul.mubr.f32.gmra.mxu0 %v100
  %v876 = vpop.f32.mrf.mxu0
  %v877 = vadd.f32 0.0, %v876
  %v878 = vpop.f32.mrf.mxu0
  %879 = vmatprep.mubr.f32.mxu0 0.0
  %880 = vmatmul.mubr.f32.gmra.mxu0 %v103
  %v881 = vpop.f32.mrf.mxu0
  %v882 = vadd.f32 0.0, %v881
  %v883 = vpop.f32.mrf.mxu0
  %884 = vmatprep.mubr.f32.mxu0 0.0
  %885 = vmatmul.mubr.f32.gmra.mxu0 %v106
  %v886 = vpop.f32.mrf.mxu0
  %v887 = vadd.f32 0.0, %v886
  %v888 = vpop.f32.mrf.mxu0
  %889 = vmatprep.mubr.f32.mxu0 0.0
  %890 = vmatmul.mubr.f32.gmra.mxu0 %v109
  %v891 = vpop.f32.mrf.mxu0
  %v892 = vadd.f32 0.0, %v891
  %v893 = vpop.f32.mrf.mxu0
  %894 = vmatprep.mubr.f32.mxu0 0.0
  %895 = vmatmul.mubr.f32.gmra.mxu0 %v112
  %v896 = vpop.f32.mrf.mxu0
  %v897 = vadd.f32 0.0, %v896
  %v898 = vpop.f32.mrf.mxu0
  %899 = vmatprep.mubr.f32.mxu0 0.0
  %900 = vmatmul.mubr.f32.gmra.mxu0 %v115
  %v901 = vpop.f32.mrf.mxu0
  %v902 = vadd.f32 0.0, %v901
  %v903 = vpop.f32.mrf.mxu0
  %904 = vmatprep.mubr.f32.mxu0 0.0
  %905 = vmatmul.mubr.f32.gmra.mxu0 %v118
  %v906 = vpop.f32.mrf.mxu0
  %v907 = vadd.f32 0.0, %v906
  %v908 = vpop.f32.mrf.mxu0
  %909 = vmatprep.mubr.f32.mxu0 0.0
  %910 = vmatmul.mubr.f32.gmra.mxu0 %v121
  %v911 = vpop.f32.mrf.mxu0
  %v912 = vadd.f32 0.0, %v911
  %v913 = vpop.f32.mrf.mxu0
  %914 = vmatprep.mubr.f32.mxu0 0.0
  %915 = vmatmul.mubr.f32.gmra.mxu0 %v124
  %v916 = vpop.f32.mrf.mxu0
  %v917 = vadd.f32 0.0, %v916
  %v918 = vpop.f32.mrf.mxu0
  %919 = vmatprep.mubr.f32.mxu0 0.0
  %920 = vmatmul.mubr.f32.gmra.mxu0 %v127
  %v921 = vpop.f32.mrf.mxu0
  %v922 = vadd.f32 0.0, %v921
  %v923 = vpop.f32.mrf.mxu0
  %924 = vmatprep.mubr.f32.mxu0 0.0
  %925 = vmatmul.mubr.f32.gmra.mxu0 %v130
  %v926 = vpop.f32.mrf.mxu0
  %v927 = vadd.f32 0.0, %v926
  %v928 = vpop.f32.mrf.mxu0
  %929 = vmatprep.mubr.f32.mxu0 0.0
  %930 = vmatmul.mubr.f32.gmra.mxu0 %v133
  %v931 = vpop.f32.mrf.mxu0
  %v932 = vadd.f32 0.0, %v931
  %v933 = vpop.f32.mrf.mxu0
  %934 = vmatprep.mubr.f32.mxu0 0.0
  %935 = vmatmul.mubr.f32.gmra.mxu0 %v136
  %v936 = vpop.f32.mrf.mxu0
  %v937 = vadd.f32 0.0, %v936
  %v938 = vpop.f32.mrf.mxu0
  %939 = vmatprep.mubr.f32.mxu0 0.0
  %940 = vmatmul.mubr.f32.gmra.mxu0 %v139
  %v941 = vpop.f32.mrf.mxu0
  %v942 = vadd.f32 0.0, %v941
  %v943 = vpop.f32.mrf.mxu0
  %944 = vmatprep.mubr.f32.mxu0 0.0
  %945 = vmatmul.mubr.f32.gmra.mxu0 %v142
  %v946 = vpop.f32.mrf.mxu0
  %v947 = vadd.f32 0.0, %v946
  %v948 = vpop.f32.mrf.mxu0
  %949 = vmatprep.mubr.f32.mxu0 0.0
  %950 = vmatmul.mubr.f32.gmra.mxu0 %v145
  %v951 = vpop.f32.mrf.mxu0
  %v952 = vadd.f32 0.0, %v951
  %v953 = vpop.f32.mrf.mxu0
  %954 = vmatprep.mubr.f32.mxu0 0.0
  %955 = vmatmul.mubr.f32.gmra.mxu0 %v148
  %v956 = vpop.f32.mrf.mxu0
  %v957 = vadd.f32 0.0, %v956
  %v958 = vpop.f32.mrf.mxu0
  %959 = vmatprep.mubr.f32.mxu0 0.0
  %960 = vmatmul.mubr.f32.gmra.mxu0 %v151
  %v961 = vpop.f32.mrf.mxu0
  %v962 = vadd.f32 0.0, %v961
  %v963 = vpop.f32.mrf.mxu0
  %964 = vmatprep.mubr.f32.mxu0 0.0
  %965 = vmatmul.mubr.f32.gmra.mxu0 %v154
  %v966 = vpop.f32.mrf.mxu0
  %v967 = vadd.f32 0.0, %v966
  %v968 = vpop.f32.mrf.mxu0
  %969 = vmatprep.mubr.f32.mxu0 0.0
  %970 = vmatmul.mubr.f32.gmra.mxu0 %v157
  %v971 = vpop.f32.mrf.mxu0
  %v972 = vadd.f32 0.0, %v971
  %v973 = vpop.f32.mrf.mxu0
  %974 = vmatprep.mubr.f32.mxu0 0.0
  %975 = vmatmul.mubr.f32.gmra.mxu0 %v160
  %v976 = vpop.f32.mrf.mxu0
  %v977 = vadd.f32 0.0, %v976
  %v978 = vpop.f32.mrf.mxu0
  %979 = vmatprep.mubr.f32.mxu0 0.0
  %980 = vmatmul.mubr.f32.gmra.mxu0 %v163
  %v981 = vpop.f32.mrf.mxu0
  %v982 = vadd.f32 0.0, %v981
  %v983 = vpop.f32.mrf.mxu0
  %984 = vmatprep.mubr.f32.mxu0 0.0
  %985 = vmatmul.mubr.f32.gmra.mxu0 %v166
  %v986 = vpop.f32.mrf.mxu0
  %v987 = vadd.f32 0.0, %v986
  %v988 = vpop.f32.mrf.mxu0
  %989 = vmatprep.mubr.f32.mxu0 0.0
  %990 = vmatmul.mubr.f32.gmra.mxu0 %v169
  %v991 = vpop.f32.mrf.mxu0
  %v992 = vadd.f32 0.0, %v991
  %v993 = vpop.f32.mrf.mxu0
  %994 = vmatprep.mubr.f32.mxu0 0.0
  %995 = vmatmul.mubr.f32.gmra.mxu0 %v172
  %v996 = vpop.f32.mrf.mxu0
  %v997 = vadd.f32 0.0, %v996
  %v998 = vpop.f32.mrf.mxu0
  %999 = vmatprep.mubr.f32.mxu0 0.0
  %1000 = vmatmul.mubr.f32.gmra.mxu0 %v175
  %v1001 = vpop.f32.mrf.mxu0
  %v1002 = vadd.f32 0.0, %v1001
  %v1003 = vpop.f32.mrf.mxu0
  %1004 = vmatprep.mubr.f32.mxu0 0.0
  %1005 = vmatmul.mubr.f32.gmra.mxu0 %v178
  %v1006 = vpop.f32.mrf.mxu0
  %v1007 = vadd.f32 0.0, %v1006
  %v1008 = vpop.f32.mrf.mxu0
  %1009 = vmatprep.mubr.f32.mxu0 0.0
  %1010 = vmatmul.mubr.f32.gmra.mxu0 %v181
  %v1011 = vpop.f32.mrf.mxu0
  %v1012 = vadd.f32 0.0, %v1011
  %v1013 = vpop.f32.mrf.mxu0
  %1014 = vmatprep.mubr.f32.mxu0 0.0
  %1015 = vmatmul.mubr.f32.gmra.mxu0 %v184
  %v1016 = vpop.f32.mrf.mxu0
  %v1017 = vadd.f32 0.0, %v1016
  %v1018 = vpop.f32.mrf.mxu0
  %1019 = vmatprep.mubr.f32.mxu0 0.0
  %1020 = vmatmul.mubr.f32.gmra.mxu0 %v187
  %v1021 = vpop.f32.mrf.mxu0
  %v1022 = vadd.f32 0.0, %v1021
  %v1023 = vpop.f32.mrf.mxu0
  %1024 = vmatprep.mubr.f32.mxu0 0.0
  %1025 = vmatmul.mubr.f32.gmra.mxu0 %v190
  %v1026 = vpop.f32.mrf.mxu0
  %v1027 = vadd.f32 0.0, %v1026
  %v1028 = vpop.f32.mrf.mxu0
  %1029 = vmatprep.mubr.f32.mxu0 0.0
  %1030 = vmatmul.mubr.f32.gmra.mxu0 %v193
  %v1031 = vpop.f32.mrf.mxu0
  %v1032 = vadd.f32 0.0, %v1031
  %v1033 = vpop.f32.mrf.mxu0
  %1034 = vmatprep.mubr.f32.mxu0 0.0
  %1035 = vmatmul.mubr.f32.gmra.mxu0 %v196
  %v1036 = vpop.f32.mrf.mxu0
  %v1037 = vadd.f32 0.0, %v1036
  %v1038 = vpop.f32.mrf.mxu0
  %1039 = vmatprep.mubr.f32.mxu0 0.0
  %1040 = vmatmul.mubr.f32.gmra.mxu0 %v199
  %v1041 = vpop.f32.mrf.mxu0
  %v1042 = vadd.f32 0.0, %v1041
  %v1043 = vpop.f32.mrf.mxu0
  %1044 = vmatprep.mubr.f32.mxu0 0.0
  %1045 = vmatmul.mubr.f32.gmra.mxu0 %v202
  %v1046 = vpop.f32.mrf.mxu0
  %v1047 = vadd.f32 0.0, %v1046
  %v1048 = vpop.f32.mrf.mxu0
  %1049 = vmatprep.mubr.f32.mxu0 0.0
  %1050 = vmatmul.mubr.f32.gmra.mxu0 %v205
  %v1051 = vpop.f32.mrf.mxu0
  %v1052 = vadd.f32 0.0, %v1051
  %v1053 = vpop.f32.mrf.mxu0
  %1054 = vmatprep.mubr.f32.mxu0 0.0
  %1055 = vmatmul.mubr.f32.gmra.mxu0 %v208
  %v1056 = vpop.f32.mrf.mxu0
  %v1057 = vadd.f32 0.0, %v1056
  %v1058 = vpop.f32.mrf.mxu0
  %1059 = vmatprep.mubr.f32.mxu0 0.0
  %1060 = vmatmul.mubr.f32.gmra.mxu0 %v211
  %v1061 = vpop.f32.mrf.mxu0
  %v1062 = vadd.f32 0.0, %v1061
  %v1063 = vpop.f32.mrf.mxu0
  %1064 = vmatprep.mubr.f32.mxu0 0.0
  %1065 = vmatmul.mubr.f32.gmra.mxu0 %v214
  %v1066 = vpop.f32.mrf.mxu0
  %v1067 = vadd.f32 0.0, %v1066
  %v1068 = vpop.f32.mrf.mxu0
  %1069 = vmatprep.mubr.f32.mxu0 0.0
  %1070 = vmatmul.mubr.f32.gmra.mxu0 %v217
  %v1071 = vpop.f32.mrf.mxu0
  %v1072 = vadd.f32 0.0, %v1071
  %v1073 = vpop.f32.mrf.mxu0
  %1074 = vmatprep.mubr.f32.mxu0 0.0
  %1075 = vmatmul.mubr.f32.gmra.mxu0 %v220
  %v1076 = vpop.f32.mrf.mxu0
  %v1077 = vadd.f32 0.0, %v1076
  %v1078 = vpop.f32.mrf.mxu0
  %1079 = vmatprep.mubr.f32.mxu0 0.0
  %1080 = vmatmul.mubr.f32.gmra.mxu0 %v223
  %v1081 = vpop.f32.mrf.mxu0
  %v1082 = vadd.f32 0.0, %v1081
  %v1083 = vpop.f32.mrf.mxu0
  %1084 = vmatprep.mubr.f32.mxu0 0.0
  %1085 = vmatmul.mubr.f32.gmra.mxu0 %v226
  %v1086 = vpop.f32.mrf.mxu0
  %v1087 = vadd.f32 0.0, %v1086
  %v1088 = vpop.f32.mrf.mxu0
  %1089 = vmatprep.mubr.f32.mxu0 0.0
  %1090 = vmatmul.mubr.f32.gmra.mxu0 %v229
  %v1091 = vpop.f32.mrf.mxu0
  %v1092 = vadd.f32 0.0, %v1091
  %v1093 = vpop.f32.mrf.mxu0
  %1094 = vmatprep.mubr.f32.mxu0 0.0
  %1095 = vmatmul.mubr.f32.gmra.mxu0 %v232
  %v1096 = vpop.f32.mrf.mxu0
  %v1097 = vadd.f32 0.0, %v1096
  %v1098 = vpop.f32.mrf.mxu0
  %1099 = vmatprep.mubr.f32.mxu0 0.0
  %1100 = vmatmul.mubr.f32.gmra.mxu0 %v235
  %v1101 = vpop.f32.mrf.mxu0
  %v1102 = vadd.f32 0.0, %v1101
  %v1103 = vpop.f32.mrf.mxu0
  %1104 = vmatprep.mubr.f32.mxu0 0.0
  %1105 = vmatmul.mubr.f32.gmra.mxu0 %v238
  %v1106 = vpop.f32.mrf.mxu0
  %v1107 = vadd.f32 0.0, %v1106
  %v1108 = vpop.f32.mrf.mxu0
  %1109 = vmatprep.mubr.f32.mxu0 0.0
  %1110 = vmatmul.mubr.f32.gmra.mxu0 %v241
  %v1111 = vpop.f32.mrf.mxu0
  %v1112 = vadd.f32 0.0, %v1111
  %v1113 = vpop.f32.mrf.mxu0
  %1114 = vmatprep.mubr.f32.mxu0 0.0
  %1115 = vmatmul.mubr.f32.gmra.mxu0 %v244
  %v1116 = vpop.f32.mrf.mxu0
  %v1117 = vadd.f32 0.0, %v1116
  %v1118 = vpop.f32.mrf.mxu0
  %1119 = vmatprep.mubr.f32.mxu0 0.0
  %1120 = vmatmul.mubr.f32.gmra.mxu0 %v247
  %v1121 = vpop.f32.mrf.mxu0
  %v1122 = vadd.f32 0.0, %v1121
  %v1123 = vpop.f32.mrf.mxu0
  %1124 = vmatprep.mubr.f32.mxu0 0.0
  %1125 = vmatmul.mubr.f32.gmra.mxu0 %v250
  %v1126 = vpop.f32.mrf.mxu0
  %v1127 = vadd.f32 0.0, %v1126
  %v1128 = vpop.f32.mrf.mxu0
  %1129 = vmatprep.mubr.f32.mxu0 0.0
  %1130 = vmatmul.mubr.f32.gmra.mxu0 %v253
  %v1131 = vpop.f32.mrf.mxu0
  %v1132 = vadd.f32 0.0, %v1131
  %v1133 = vpop.f32.mrf.mxu0
  %1134 = vmatprep.mubr.f32.mxu0 0.0
  %1135 = vmatmul.mubr.f32.gmra.mxu0 %v256
  %v1136 = vpop.f32.mrf.mxu0
  %v1137 = vadd.f32 0.0, %v1136
  %v1138 = vpop.f32.mrf.mxu0
  %1139 = vmatprep.mubr.f32.mxu0 0.0
  %1140 = vmatmul.mubr.f32.gmra.mxu0 %v259
  %v1141 = vpop.f32.mrf.mxu0
  %v1142 = vadd.f32 0.0, %v1141
  %v1143 = vpop.f32.mrf.mxu0
  %1144 = vmatprep.mubr.f32.mxu0 0.0
  %1145 = vmatmul.mubr.f32.gmra.mxu0 %v262
  %v1146 = vpop.f32.mrf.mxu0
  %v1147 = vadd.f32 0.0, %v1146
  %v1148 = vpop.f32.mrf.mxu0
  %1149 = vmatprep.mubr.f32.mxu0 0.0
  %1150 = vmatmul.mubr.f32.gmra.mxu0 %v265
  %v1151 = vpop.f32.mrf.mxu0
  %v1152 = vadd.f32 0.0, %v1151
  %v1153 = vpop.f32.mrf.mxu0
  %1154 = vmatprep.mubr.f32.mxu0 0.0
  %1155 = vmatmul.mubr.f32.gmra.mxu0 %v268
  %v1156 = vpop.f32.mrf.mxu0
  %v1157 = vadd.f32 0.0, %v1156
  %v1158 = vpop.f32.mrf.mxu0
  %1159 = vmatprep.mubr.f32.mxu0 0.0
  %1160 = vmatmul.mubr.f32.gmra.mxu0 %v271
  %v1161 = vpop.f32.mrf.mxu0
  %v1162 = vadd.f32 0.0, %v1161
  %v1163 = vpop.f32.mrf.mxu0
  %1164 = vmatprep.mubr.f32.mxu0 0.0
  %1165 = vmatmul.mubr.f32.gmra.mxu0 %v274
  %v1166 = vpop.f32.mrf.mxu0
  %v1167 = vadd.f32 0.0, %v1166
  %v1168 = vpop.f32.mrf.mxu0
  %1169 = vmatprep.mubr.f32.mxu0 0.0
  %1170 = vmatmul.mubr.f32.gmra.mxu0 %v277
  %v1171 = vpop.f32.mrf.mxu0
  %v1172 = vadd.f32 0.0, %v1171
  %v1173 = vpop.f32.mrf.mxu0
  %1174 = vmatprep.mubr.f32.mxu0 0.0
  %1175 = vmatmul.mubr.f32.gmra.mxu0 %v280
  %v1176 = vpop.f32.mrf.mxu0
  %v1177 = vadd.f32 0.0, %v1176
  %v1178 = vpop.f32.mrf.mxu0
  %1179 = vmatprep.mubr.f32.mxu0 0.0
  %1180 = vmatmul.mubr.f32.gmra.mxu0 %v283
  %v1181 = vpop.f32.mrf.mxu0
  %v1182 = vadd.f32 0.0, %v1181
  %v1183 = vpop.f32.mrf.mxu0
  %1184 = vdwg.mxu0
  %1185 = vst.msk [vmem:[%s5] sm:$0xff] %vm92, %v867
  %1186 = vst.msk [vmem:[%s5 + $0x8] sm:$0xff] %vm92, %v872
  %1187 = vst.msk [vmem:[%s5 + $0x10] sm:$0xff] %vm92, %v877
  %1188 = vst.msk [vmem:[%s5 + $0x18] sm:$0xff] %vm92, %v882
  %1189 = vst.msk [vmem:[%s5 + $0x20] sm:$0xff] %vm92, %v887
  %1190 = vst.msk [vmem:[%s5 + $0x28] sm:$0xff] %vm92, %v892
  %1191 = vst.msk [vmem:[%s5 + $0x30] sm:$0xff] %vm92, %v897
  %1192 = vst.msk [vmem:[%s5 + $0x38] sm:$0xff] %vm92, %v902
  %1193 = vst.msk [vmem:[%s5 + $0x40] sm:$0xff] %vm92, %v907
  %1194 = vst.msk [vmem:[%s5 + $0x48] sm:$0xff] %vm92, %v912
  %1195 = vst.msk [vmem:[%s5 + $0x50] sm:$0xff] %vm92, %v917
  %1196 = vst.msk [vmem:[%s5 + $0x58] sm:$0xff] %vm92, %v922
  %1197 = vst.msk [vmem:[%s5 + $0x60] sm:$0xff] %vm92, %v927
  %1198 = vst.msk [vmem:[%s5 + $0x68] sm:$0xff] %vm92, %v932
  %1199 = vst.msk [vmem:[%s5 + $0x70] sm:$0xff] %vm92, %v937
  %1200 = vst.msk [vmem:[%s5 + $0x78] sm:$0xff] %vm92, %v942
  %1201 = vst.msk [vmem:[%s5 + $0x80] sm:$0xff] %vm92, %v947
  %1202 = vst.msk [vmem:[%s5 + $0x88] sm:$0xff] %vm92, %v952
  %1203 = vst.msk [vmem:[%s5 + $0x90] sm:$0xff] %vm92, %v957
  %1204 = vst.msk [vmem:[%s5 + $0x98] sm:$0xff] %vm92, %v962
  %1205 = vst.msk [vmem:[%s5 + $0xa0] sm:$0xff] %vm92, %v967
  %1206 = vst.msk [vmem:[%s5 + $0xa8] sm:$0xff] %vm92, %v972
  %1207 = vst.msk [vmem:[%s5 + $0xb0] sm:$0xff] %vm92, %v977
  %1208 = vst.msk [vmem:[%s5 + $0xb8] sm:$0xff] %vm92, %v982
  %1209 = vst.msk [vmem:[%s5 + $0xc0] sm:$0xff] %vm92, %v987
  %1210 = vst.msk [vmem:[%s5 + $0xc8] sm:$0xff] %vm92, %v992
  %1211 = vst.msk [vmem:[%s5 + $0xd0] sm:$0xff] %vm92, %v997
  %1212 = vst.msk [vmem:[%s5 + $0xd8] sm:$0xff] %vm92, %v1002
  %1213 = vst.msk [vmem:[%s5 + $0xe0] sm:$0xff] %vm92, %v1007
  %1214 = vst.msk [vmem:[%s5 + $0xe8] sm:$0xff] %vm92, %v1012
  %1215 = vst.msk [vmem:[%s5 + $0xf0] sm:$0xff] %vm92, %v1017
  %1216 = vst.msk [vmem:[%s5 + $0xf8] sm:$0xff] %vm92, %v1022
  %1217 = vst.msk [vmem:[%s5 + $0x100] sm:$0xff] %vm92, %v1027
  %1218 = vst.msk [vmem:[%s5 + $0x108] sm:$0xff] %vm92, %v1032
  %1219 = vst.msk [vmem:[%s5 + $0x110] sm:$0xff] %vm92, %v1037
  %1220 = vst.msk [vmem:[%s5 + $0x118] sm:$0xff] %vm92, %v1042
  %1221 = vst.msk [vmem:[%s5 + $0x120] sm:$0xff] %vm92, %v1047
  %1222 = vst.msk [vmem:[%s5 + $0x128] sm:$0xff] %vm92, %v1052
  %1223 = vst.msk [vmem:[%s5 + $0x130] sm:$0xff] %vm92, %v1057
  %1224 = vst.msk [vmem:[%s5 + $0x138] sm:$0xff] %vm92, %v1062
  %1225 = vst.msk [vmem:[%s5 + $0x140] sm:$0xff] %vm92, %v1067
  %1226 = vst.msk [vmem:[%s5 + $0x148] sm:$0xff] %vm92, %v1072
  %1227 = vst.msk [vmem:[%s5 + $0x150] sm:$0xff] %vm92, %v1077
  %1228 = vst.msk [vmem:[%s5 + $0x158] sm:$0xff] %vm92, %v1082
  %1229 = vst.msk [vmem:[%s5 + $0x160] sm:$0xff] %vm92, %v1087
  %1230 = vst.msk [vmem:[%s5 + $0x168] sm:$0xff] %vm92, %v1092
  %1231 = vst.msk [vmem:[%s5 + $0x170] sm:$0xff] %vm92, %v1097
  %1232 = vst.msk [vmem:[%s5 + $0x178] sm:$0xff] %vm92, %v1102
  %1233 = vst.msk [vmem:[%s5 + $0x180] sm:$0xff] %vm92, %v1107
  %1234 = vst.msk [vmem:[%s5 + $0x188] sm:$0xff] %vm92, %v1112
  %1235 = vst.msk [vmem:[%s5 + $0x190] sm:$0xff] %vm92, %v1117
  %1236 = vst.msk [vmem:[%s5 + $0x198] sm:$0xff] %vm92, %v1122
  %1237 = vst.msk [vmem:[%s5 + $0x1a0] sm:$0xff] %vm92, %v1127
  %1238 = vst.msk [vmem:[%s5 + $0x1a8] sm:$0xff] %vm92, %v1132
  %1239 = vst.msk [vmem:[%s5 + $0x1b0] sm:$0xff] %vm92, %v1137
  %1240 = vst.msk [vmem:[%s5 + $0x1b8] sm:$0xff] %vm92, %v1142
  %1241 = vst.msk [vmem:[%s5 + $0x1c0] sm:$0xff] %vm92, %v1147
  %1242 = vst.msk [vmem:[%s5 + $0x1c8] sm:$0xff] %vm92, %v1152
  %1243 = vst.msk [vmem:[%s5 + $0x1d0] sm:$0xff] %vm92, %v1157
  %1244 = vst.msk [vmem:[%s5 + $0x1d8] sm:$0xff] %vm92, %v1162
  %1245 = vst.msk [vmem:[%s5 + $0x1e0] sm:$0xff] %vm92, %v1167
  %1246 = vst.msk [vmem:[%s5 + $0x1e8] sm:$0xff] %vm92, %v1172
  %1247 = vst.msk [vmem:[%s5 + $0x1f0] sm:$0xff] %vm92, %v1177
  %1248 = vst.msk [vmem:[%s5 + $0x1f8] sm:$0xff] %vm92, %v1182
  // Predicated region
  $region18: #{bottleneck_csp_forward.3} parent=0 // pred_check
    _
  $region19: #{bottleneck_csp_forward.3} parent=0 // pred_check_branch
    %1250 = sbr.rel (0) target = $region21
  $region20: #{bottleneck_csp_forward.3} parent=0 // pred_region
    _
  $region21: #{bottleneck_csp_forward.3} parent=0 // pred_fallthru
    _
  // Predicated region
  $region22: #{bottleneck_csp_forward.3} parent=0 // pred_check
    _
  $region23: #{bottleneck_csp_forward.3} parent=0 // pred_check_branch
    %1252 = sbr.rel (0) target = $region25
  $region24: #{bottleneck_csp_forward.3} parent=0 // pred_region
    _
  $region25: #{bottleneck_csp_forward.3} parent=0 // pred_fallthru
    _
  // Predicated region
  $region26: #{bottleneck_csp_forward.3} parent=0 // pred_check
    _
  $region27: #{bottleneck_csp_forward.3} parent=0 // pred_check_branch
    %1254 = sbr.rel (0) target = $region29
  $region28: #{bottleneck_csp_forward.3} parent=0 // pred_region
    _
  $region29: #{bottleneck_csp_forward.3} parent=0 // pred_fallthru
    _
  // Predicated region
  $region30: #{bottleneck_csp_forward.3} parent=0 // pred_check
    _
  $region31: #{bottleneck_csp_forward.3} parent=0 // pred_check_branch
    %1256 = sbr.rel (0) target = $region33
  $region32: #{bottleneck_csp_forward.3} parent=0 // pred_region
    _
  $region33: #{bottleneck_csp_forward.3} parent=0 // pred_fallthru
    _

// kernel: bottleneck_csp_forward.5
$region0: #{bottleneck_csp_forward.5}
  #allocation0 [shape = 'u32[]', space=smem, size = 0x4, offset = 0x4, fixed_abs, tag = 'smem constant byte address 0x4 - core index']
  #allocation1 [shape = 'u32[144,128]{1,0:T(1,128)}', space=vmem, size = 0x12000, scoped, tag = 'internal scratch']
  %s0 = inlined_call_operand.vmem [shape: f32[512,16], index: 0, kind: input, shape index: {}]
  %s1 = inlined_call_operand.vmem [shape: f32[512,16], index: 1, kind: input, shape index: {}]
  %s2 = inlined_call_operand.vmem [shape: f32[16,16], index: 2, kind: input, shape index: {}]
  %s3 = inlined_call_operand.vmem [shape: f32[4,16], index: 3, kind: input, shape index: {}]
  %s4 = inlined_call_operand.vmem [shape: f32[32,32], index: 4, kind: input, shape index: {}]
  %s5 = inlined_call_operand.vmem [shape: f32[1,32], index: 5, kind: input, shape index: {}]
  %s6 = inlined_call_operand.hbm [shape: f32[512,32], index: 6, kind: output, shape index: {}]
  %s7 = sld [smem:[#allocation0]]
  $region34: #{bottleneck_csp_forward.5} parent=0
    _
  %s9 = ssub.s32 1, %s7
  %s10 = scalar_select 0, %s9, %s7
  $region1: #{bottleneck_csp_forward.5} parent=0
    #allocation2 [shape = 'u8[262144]{0}', space=vmem, size = 0x40000, scoped, tag = 'output window, operand 0, single buffered']
    #allocation3 [shape = 's32[1]{0}', space=sflag, size = 0x4, scoped, tag = 'scoped memory for bottleneck_csp_forward.5']
    %11 = vsyncpa [#allocation3], 0
    // Predicated region
    $region2: #{bottleneck_csp_forward.5} parent=1 // pred_check
      _
    $region3: #{bottleneck_csp_forward.5} parent=1 // pred_check_branch
      %13 = sbr.rel (0) target = $region5
    $region4: #{bottleneck_csp_forward.5} parent=1 // pred_region
      _
    $region5: #{bottleneck_csp_forward.5} parent=1 // pred_fallthru
      _
    // Predicated region
    $region6: #{bottleneck_csp_forward.5} parent=1 // pred_check
      _
    $region7: #{bottleneck_csp_forward.5} parent=1 // pred_check_branch
      %15 = sbr.rel (0) target = $region9
    $region8: #{bottleneck_csp_forward.5} parent=1 // pred_region
      _
    $region9: #{bottleneck_csp_forward.5} parent=1 // pred_fallthru
      _
    // Predicated region
    $region10: #{bottleneck_csp_forward.5} parent=1 // pred_check
      _
    $region11: #{bottleneck_csp_forward.5} parent=1 // pred_check_branch
      %17 = sbr.rel (0) target = $region13
    $region12: #{bottleneck_csp_forward.5} parent=1 // pred_region
      _
    $region13: #{bottleneck_csp_forward.5} parent=1 // pred_fallthru
      _
    // Predicated region
    $region14: #{bottleneck_csp_forward.5} parent=1 // pred_check
      _
    $region15: #{bottleneck_csp_forward.5} parent=1 // pred_check_branch
      %19 = sbr.rel (0) target = $region17
    $region16: #{bottleneck_csp_forward.5} parent=1 // pred_region
      _
    $region17: #{bottleneck_csp_forward.5} parent=1 // pred_fallthru
      _
    // Predicated region
    $region18: #{bottleneck_csp_forward.5} parent=1 // pred_check
      _
    $region19: #{bottleneck_csp_forward.5} parent=1 // pred_check_branch
      %21 = sbr.rel (0) target = $region21
    $region20: #{bottleneck_csp_forward.5} parent=1 // pred_region
      _
    $region21: #{bottleneck_csp_forward.5} parent=1 // pred_fallthru
      _
    // Predicated region
    $region22: #{bottleneck_csp_forward.5} parent=1 // pred_check
      _
    $region23: #{bottleneck_csp_forward.5} parent=1 // pred_check_branch
      %23 = sbr.rel (0) target = $region25
    $region24: #{bottleneck_csp_forward.5} parent=1 // pred_region
      _
    $region25: #{bottleneck_csp_forward.5} parent=1 // pred_fallthru
      _
    %v24 = vld [vmem:[%s0] sm:$0xff]
    %v25 = vld [vmem:[%s0 + $0x8] sm:$0xff]
    %v26 = vld [vmem:[%s0 + $0x10] sm:$0xff]
    %v27 = vld [vmem:[%s0 + $0x18] sm:$0xff]
    %v28 = vld [vmem:[%s0 + $0x20] sm:$0xff]
    %v29 = vld [vmem:[%s0 + $0x28] sm:$0xff]
    %v30 = vld [vmem:[%s0 + $0x30] sm:$0xff]
    %v31 = vld [vmem:[%s0 + $0x38] sm:$0xff]
    %v32 = vld [vmem:[%s0 + $0x40] sm:$0xff]
    %v33 = vld [vmem:[%s0 + $0x48] sm:$0xff]
    %v34 = vld [vmem:[%s0 + $0x50] sm:$0xff]
    %v35 = vld [vmem:[%s0 + $0x58] sm:$0xff]
    %v36 = vld [vmem:[%s0 + $0x60] sm:$0xff]
    %v37 = vld [vmem:[%s0 + $0x68] sm:$0xff]
    %v38 = vld [vmem:[%s0 + $0x70] sm:$0xff]
    %v39 = vld [vmem:[%s0 + $0x78] sm:$0xff]
    %v40 = vld [vmem:[%s0 + $0x80] sm:$0xff]
    %v41 = vld [vmem:[%s0 + $0x88] sm:$0xff]
    %v42 = vld [vmem:[%s0 + $0x90] sm:$0xff]
    %v43 = vld [vmem:[%s0 + $0x98] sm:$0xff]
    %v44 = vld [vmem:[%s0 + $0xa0] sm:$0xff]
    %v45 = vld [vmem:[%s0 + $0xa8] sm:$0xff]
    %v46 = vld [vmem:[%s0 + $0xb0] sm:$0xff]
    %v47 = vld [vmem:[%s0 + $0xb8] sm:$0xff]
    %v48 = vld [vmem:[%s0 + $0xc0] sm:$0xff]
    %v49 = vld [vmem:[%s0 + $0xc8] sm:$0xff]
    %v50 = vld [vmem:[%s0 + $0xd0] sm:$0xff]
    %v51 = vld [vmem:[%s0 + $0xd8] sm:$0xff]
    %v52 = vld [vmem:[%s0 + $0xe0] sm:$0xff]
    %v53 = vld [vmem:[%s0 + $0xe8] sm:$0xff]
    %v54 = vld [vmem:[%s0 + $0xf0] sm:$0xff]
    %v55 = vld [vmem:[%s0 + $0xf8] sm:$0xff]
    %v56 = vld [vmem:[%s0 + $0x100] sm:$0xff]
    %v57 = vld [vmem:[%s0 + $0x108] sm:$0xff]
    %v58 = vld [vmem:[%s0 + $0x110] sm:$0xff]
    %v59 = vld [vmem:[%s0 + $0x118] sm:$0xff]
    %v60 = vld [vmem:[%s0 + $0x120] sm:$0xff]
    %v61 = vld [vmem:[%s0 + $0x128] sm:$0xff]
    %v62 = vld [vmem:[%s0 + $0x130] sm:$0xff]
    %v63 = vld [vmem:[%s0 + $0x138] sm:$0xff]
    %v64 = vld [vmem:[%s0 + $0x140] sm:$0xff]
    %v65 = vld [vmem:[%s0 + $0x148] sm:$0xff]
    %v66 = vld [vmem:[%s0 + $0x150] sm:$0xff]
    %v67 = vld [vmem:[%s0 + $0x158] sm:$0xff]
    %v68 = vld [vmem:[%s0 + $0x160] sm:$0xff]
    %v69 = vld [vmem:[%s0 + $0x168] sm:$0xff]
    %v70 = vld [vmem:[%s0 + $0x170] sm:$0xff]
    %v71 = vld [vmem:[%s0 + $0x178] sm:$0xff]
    %v72 = vld [vmem:[%s0 + $0x180] sm:$0xff]
    %v73 = vld [vmem:[%s0 + $0x188] sm:$0xff]
    %v74 = vld [vmem:[%s0 + $0x190] sm:$0xff]
    %v75 = vld [vmem:[%s0 + $0x198] sm:$0xff]
    %v76 = vld [vmem:[%s0 + $0x1a0] sm:$0xff]
    %v77 = vld [vmem:[%s0 + $0x1a8] sm:$0xff]
    %v78 = vld [vmem:[%s0 + $0x1b0] sm:$0xff]
    %v79 = vld [vmem:[%s0 + $0x1b8] sm:$0xff]
    %v80 = vld [vmem:[%s0 + $0x1c0] sm:$0xff]
    %v81 = vld [vmem:[%s0 + $0x1c8] sm:$0xff]
    %v82 = vld [vmem:[%s0 + $0x1d0] sm:$0xff]
    %v83 = vld [vmem:[%s0 + $0x1d8] sm:$0xff]
    %v84 = vld [vmem:[%s0 + $0x1e0] sm:$0xff]
    %v85 = vld [vmem:[%s0 + $0x1e8] sm:$0xff]
    %v86 = vld [vmem:[%s0 + $0x1f0] sm:$0xff]
    %v87 = vld [vmem:[%s0 + $0x1f8] sm:$0xff]
    %v88 = vld [vmem:[%s2] sm:$0xff]
    %v89 = vld [vmem:[%s2 + $0x8] sm:$0xff]
    %vm90 = vcmask 130048
    %v92 = vsel %vm90, %v24, 0
    %v95 = vsel %vm90, %v25, 0
    %v98 = vsel %vm90, %v26, 0
    %v101 = vsel %vm90, %v27, 0
    %v104 = vsel %vm90, %v28, 0
    %v107 = vsel %vm90, %v29, 0
    %v110 = vsel %vm90, %v30, 0
    %v113 = vsel %vm90, %v31, 0
    %v116 = vsel %vm90, %v32, 0
    %v119 = vsel %vm90, %v33, 0
    %v122 = vsel %vm90, %v34, 0
    %v125 = vsel %vm90, %v35, 0
    %v128 = vsel %vm90, %v36, 0
    %v131 = vsel %vm90, %v37, 0
    %v134 = vsel %vm90, %v38, 0
    %v137 = vsel %vm90, %v39, 0
    %v140 = vsel %vm90, %v40, 0
    %v143 = vsel %vm90, %v41, 0
    %v146 = vsel %vm90, %v42, 0
    %v149 = vsel %vm90, %v43, 0
    %v152 = vsel %vm90, %v44, 0
    %v155 = vsel %vm90, %v45, 0
    %v158 = vsel %vm90, %v46, 0
    %v161 = vsel %vm90, %v47, 0
    %v164 = vsel %vm90, %v48, 0
    %v167 = vsel %vm90, %v49, 0
    %v170 = vsel %vm90, %v50, 0
    %v173 = vsel %vm90, %v51, 0
    %v176 = vsel %vm90, %v52, 0
    %v179 = vsel %vm90, %v53, 0
    %v182 = vsel %vm90, %v54, 0
    %v185 = vsel %vm90, %v55, 0
    %v188 = vsel %vm90, %v56, 0
    %v191 = vsel %vm90, %v57, 0
    %v194 = vsel %vm90, %v58, 0
    %v197 = vsel %vm90, %v59, 0
    %v200 = vsel %vm90, %v60, 0
    %v203 = vsel %vm90, %v61, 0
    %v206 = vsel %vm90, %v62, 0
    %v209 = vsel %vm90, %v63, 0
    %v212 = vsel %vm90, %v64, 0
    %v215 = vsel %vm90, %v65, 0
    %v218 = vsel %vm90, %v66, 0
    %v221 = vsel %vm90, %v67, 0
    %v224 = vsel %vm90, %v68, 0
    %v227 = vsel %vm90, %v69, 0
    %v230 = vsel %vm90, %v70, 0
    %v233 = vsel %vm90, %v71, 0
    %v236 = vsel %vm90, %v72, 0
    %v239 = vsel %vm90, %v73, 0
    %v242 = vsel %vm90, %v74, 0
    %v245 = vsel %vm90, %v75, 0
    %v248 = vsel %vm90, %v76, 0
    %v251 = vsel %vm90, %v77, 0
    %v254 = vsel %vm90, %v78, 0
    %v257 = vsel %vm90, %v79, 0
    %v260 = vsel %vm90, %v80, 0
    %v263 = vsel %vm90, %v81, 0
    %v266 = vsel %vm90, %v82, 0
    %v269 = vsel %vm90, %v83, 0
    %v272 = vsel %vm90, %v84, 0
    %v275 = vsel %vm90, %v85, 0
    %v278 = vsel %vm90, %v86, 0
    %v281 = vsel %vm90, %v87, 0
    %283 = vmatprep.subr.mxu0 0.0
    %284 = vmatpush1.msra.mxu0 0.0
    %285 = vmatprep.subr.mxu0 0.0
    %286 = vmatpush1.msra.mxu0 0.0
    %287 = vmatprep.subr.mxu0 0.0
    %288 = vmatpush1.msra.mxu0 0.0
    %289 = vmatprep.subr.mxu0 0.0
    %290 = vmatpush1.msra.mxu0 0.0
    %291 = vmatprep.subr.mxu0 0.0
    %292 = vmatpush1.msra.mxu0 0.0
    %293 = vmatprep.subr.mxu0 0.0
    %294 = vmatpush1.msra.mxu0 0.0
    %295 = vmatprep.subr.mxu0 0.0
    %296 = vmatpush1.msra.mxu0 0.0
    %297 = vmatprep.subr.mxu0 0.0
    %298 = vmatpush1.msra.mxu0 0.0
    %299 = vmatprep.subr.mxu0 0.0
    %300 = vmatpush1.msra.mxu0 0.0
    %301 = vmatprep.subr.mxu0 0.0
    %302 = vmatpush1.msra.mxu0 0.0
    %303 = vmatprep.subr.mxu0 0.0
    %304 = vmatpush1.msra.mxu0 0.0
    %305 = vmatprep.subr.mxu0 0.0
    %306 = vmatpush1.msra.mxu0 0.0
    %307 = vmatprep.subr.mxu0 0.0
    %308 = vmatpush1.msra.mxu0 0.0
    %309 = vmatprep.subr.mxu0 0.0
    %310 = vmatpush1.msra.mxu0 0.0
    %311 = vmatprep.subr.mxu0 0.0
    %312 = vmatpush1.msra.mxu0 %v89
    %313 = vmatprep.subr.mxu0 0.0
    %314 = vmatpush1.msra.mxu0 %v88
    %315 = vmatprep.subr.mxu0 0.0
    %316 = vmatpush2.msra.mxu0 0.0
    %317 = vmatprep.subr.mxu0 0.0
    %318 = vmatpush2.msra.mxu0 0.0
    %319 = vmatprep.subr.mxu0 0.0
    %320 = vmatpush2.msra.mxu0 0.0
    %321 = vmatprep.subr.mxu0 0.0
    %322 = vmatpush2.msra.mxu0 0.0
    %323 = vmatprep.subr.mxu0 0.0
    %324 = vmatpush2.msra.mxu0 0.0
    %325 = vmatprep.subr.mxu0 0.0
    %326 = vmatpush2.msra.mxu0 0.0
    %327 = vmatprep.subr.mxu0 0.0
    %328 = vmatpush2.msra.mxu0 0.0
    %329 = vmatprep.subr.mxu0 0.0
    %330 = vmatpush2.msra.mxu0 0.0
    %331 = vmatprep.subr.mxu0 0.0
    %332 = vmatpush2.msra.mxu0 0.0
    %333 = vmatprep.subr.mxu0 0.0
    %334 = vmatpush2.msra.mxu0 0.0
    %335 = vmatprep.subr.mxu0 0.0
    %336 = vmatpush2.msra.mxu0 0.0
    %337 = vmatprep.subr.mxu0 0.0
    %338 = vmatpush2.msra.mxu0 0.0
    %339 = vmatprep.subr.mxu0 0.0
    %340 = vmatpush2.msra.mxu0 0.0
    %341 = vmatprep.subr.mxu0 0.0
    %342 = vmatpush2.msra.mxu0 0.0
    %343 = vmatprep.subr.mxu0 0.0
    %344 = vmatpush2.msra.mxu0 0.0
    %345 = vmatprep.subr.mxu0 0.0
    %346 = vmatpush2.msra.mxu0 0.0
    %347 = vmatprep.mubr.f32.mxu0 0.0
    %348 = vmatmul.mubr.f32.gmra.mxu0 %v92
    %v349 = vpop.f32.mrf.mxu0
    %v350 = vadd.f32 0.0, %v349
    %v351 = vpop.f32.mrf.mxu0
    %352 = vmatprep.mubr.f32.mxu0 0.0
    %353 = vmatmul.mubr.f32.gmra.mxu0 %v95
    %v354 = vpop.f32.mrf.mxu0
    %v355 = vadd.f32 0.0, %v354
    %v356 = vpop.f32.mrf.mxu0
    %357 = vmatprep.mubr.f32.mxu0 0.0
    %358 = vmatmul.mubr.f32.gmra.mxu0 %v98
    %v359 = vpop.f32.mrf.mxu0
    %v360 = vadd.f32 0.0, %v359
    %v361 = vpop.f32.mrf.mxu0
    %362 = vmatprep.mubr.f32.mxu0 0.0
    %363 = vmatmul.mubr.f32.gmra.mxu0 %v101
    %v364 = vpop.f32.mrf.mxu0
    %v365 = vadd.f32 0.0, %v364
    %v366 = vpop.f32.mrf.mxu0
    %367 = vmatprep.mubr.f32.mxu0 0.0
    %368 = vmatmul.mubr.f32.gmra.mxu0 %v104
    %v369 = vpop.f32.mrf.mxu0
    %v370 = vadd.f32 0.0, %v369
    %v371 = vpop.f32.mrf.mxu0
    %372 = vmatprep.mubr.f32.mxu0 0.0
    %373 = vmatmul.mubr.f32.gmra.mxu0 %v107
    %v374 = vpop.f32.mrf.mxu0
    %v375 = vadd.f32 0.0, %v374
    %v376 = vpop.f32.mrf.mxu0
    %377 = vmatprep.mubr.f32.mxu0 0.0
    %378 = vmatmul.mubr.f32.gmra.mxu0 %v110
    %v379 = vpop.f32.mrf.mxu0
    %v380 = vadd.f32 0.0, %v379
    %v381 = vpop.f32.mrf.mxu0
    %382 = vmatprep.mubr.f32.mxu0 0.0
    %383 = vmatmul.mubr.f32.gmra.mxu0 %v113
    %v384 = vpop.f32.mrf.mxu0
    %v385 = vadd.f32 0.0, %v384
    %v386 = vpop.f32.mrf.mxu0
    %387 = vmatprep.mubr.f32.mxu0 0.0
    %388 = vmatmul.mubr.f32.gmra.mxu0 %v116
    %v389 = vpop.f32.mrf.mxu0
    %v390 = vadd.f32 0.0, %v389
    %v391 = vpop.f32.mrf.mxu0
    %392 = vmatprep.mubr.f32.mxu0 0.0
    %393 = vmatmul.mubr.f32.gmra.mxu0 %v119
    %v394 = vpop.f32.mrf.mxu0
    %v395 = vadd.f32 0.0, %v394
    %v396 = vpop.f32.mrf.mxu0
    %397 = vmatprep.mubr.f32.mxu0 0.0
    %398 = vmatmul.mubr.f32.gmra.mxu0 %v122
    %v399 = vpop.f32.mrf.mxu0
    %v400 = vadd.f32 0.0, %v399
    %v401 = vpop.f32.mrf.mxu0
    %402 = vmatprep.mubr.f32.mxu0 0.0
    %403 = vmatmul.mubr.f32.gmra.mxu0 %v125
    %v404 = vpop.f32.mrf.mxu0
    %v405 = vadd.f32 0.0, %v404
    %v406 = vpop.f32.mrf.mxu0
    %407 = vmatprep.mubr.f32.mxu0 0.0
    %408 = vmatmul.mubr.f32.gmra.mxu0 %v128
    %v409 = vpop.f32.mrf.mxu0
    %v410 = vadd.f32 0.0, %v409
    %v411 = vpop.f32.mrf.mxu0
    %412 = vmatprep.mubr.f32.mxu0 0.0
    %413 = vmatmul.mubr.f32.gmra.mxu0 %v131
    %v414 = vpop.f32.mrf.mxu0
    %v415 = vadd.f32 0.0, %v414
    %v416 = vpop.f32.mrf.mxu0
    %417 = vmatprep.mubr.f32.mxu0 0.0
    %418 = vmatmul.mubr.f32.gmra.mxu0 %v134
    %v419 = vpop.f32.mrf.mxu0
    %v420 = vadd.f32 0.0, %v419
    %v421 = vpop.f32.mrf.mxu0
    %422 = vmatprep.mubr.f32.mxu0 0.0
    %423 = vmatmul.mubr.f32.gmra.mxu0 %v137
    %v424 = vpop.f32.mrf.mxu0
    %v425 = vadd.f32 0.0, %v424
    %v426 = vpop.f32.mrf.mxu0
    %427 = vmatprep.mubr.f32.mxu0 0.0
    %428 = vmatmul.mubr.f32.gmra.mxu0 %v140
    %v429 = vpop.f32.mrf.mxu0
    %v430 = vadd.f32 0.0, %v429
    %v431 = vpop.f32.mrf.mxu0
    %432 = vmatprep.mubr.f32.mxu0 0.0
    %433 = vmatmul.mubr.f32.gmra.mxu0 %v143
    %v434 = vpop.f32.mrf.mxu0
    %v435 = vadd.f32 0.0, %v434
    %v436 = vpop.f32.mrf.mxu0
    %437 = vmatprep.mubr.f32.mxu0 0.0
    %438 = vmatmul.mubr.f32.gmra.mxu0 %v146
    %v439 = vpop.f32.mrf.mxu0
    %v440 = vadd.f32 0.0, %v439
    %v441 = vpop.f32.mrf.mxu0
    %442 = vmatprep.mubr.f32.mxu0 0.0
    %443 = vmatmul.mubr.f32.gmra.mxu0 %v149
    %v444 = vpop.f32.mrf.mxu0
    %v445 = vadd.f32 0.0, %v444
    %v446 = vpop.f32.mrf.mxu0
    %447 = vmatprep.mubr.f32.mxu0 0.0
    %448 = vmatmul.mubr.f32.gmra.mxu0 %v152
    %v449 = vpop.f32.mrf.mxu0
    %v450 = vadd.f32 0.0, %v449
    %v451 = vpop.f32.mrf.mxu0
    %452 = vmatprep.mubr.f32.mxu0 0.0
    %453 = vmatmul.mubr.f32.gmra.mxu0 %v155
    %v454 = vpop.f32.mrf.mxu0
    %v455 = vadd.f32 0.0, %v454
    %v456 = vpop.f32.mrf.mxu0
    %457 = vmatprep.mubr.f32.mxu0 0.0
    %458 = vmatmul.mubr.f32.gmra.mxu0 %v158
    %v459 = vpop.f32.mrf.mxu0
    %v460 = vadd.f32 0.0, %v459
    %v461 = vpop.f32.mrf.mxu0
    %462 = vmatprep.mubr.f32.mxu0 0.0
    %463 = vmatmul.mubr.f32.gmra.mxu0 %v161
    %v464 = vpop.f32.mrf.mxu0
    %v465 = vadd.f32 0.0, %v464
    %v466 = vpop.f32.mrf.mxu0
    %467 = vmatprep.mubr.f32.mxu0 0.0
    %468 = vmatmul.mubr.f32.gmra.mxu0 %v164
    %v469 = vpop.f32.mrf.mxu0
    %v470 = vadd.f32 0.0, %v469
    %v471 = vpop.f32.mrf.mxu0
    %472 = vmatprep.mubr.f32.mxu0 0.0
    %473 = vmatmul.mubr.f32.gmra.mxu0 %v167
    %v474 = vpop.f32.mrf.mxu0
    %v475 = vadd.f32 0.0, %v474
    %v476 = vpop.f32.mrf.mxu0
    %477 = vmatprep.mubr.f32.mxu0 0.0
    %478 = vmatmul.mubr.f32.gmra.mxu0 %v170
    %v479 = vpop.f32.mrf.mxu0
    %v480 = vadd.f32 0.0, %v479
    %v481 = vpop.f32.mrf.mxu0
    %482 = vmatprep.mubr.f32.mxu0 0.0
    %483 = vmatmul.mubr.f32.gmra.mxu0 %v173
    %v484 = vpop.f32.mrf.mxu0
    %v485 = vadd.f32 0.0, %v484
    %v486 = vpop.f32.mrf.mxu0
    %487 = vmatprep.mubr.f32.mxu0 0.0
    %488 = vmatmul.mubr.f32.gmra.mxu0 %v176
    %v489 = vpop.f32.mrf.mxu0
    %v490 = vadd.f32 0.0, %v489
    %v491 = vpop.f32.mrf.mxu0
    %492 = vmatprep.mubr.f32.mxu0 0.0
    %493 = vmatmul.mubr.f32.gmra.mxu0 %v179
    %v494 = vpop.f32.mrf.mxu0
    %v495 = vadd.f32 0.0, %v494
    %v496 = vpop.f32.mrf.mxu0
    %497 = vmatprep.mubr.f32.mxu0 0.0
    %498 = vmatmul.mubr.f32.gmra.mxu0 %v182
    %v499 = vpop.f32.mrf.mxu0
    %v500 = vadd.f32 0.0, %v499
    %v501 = vpop.f32.mrf.mxu0
    %502 = vmatprep.mubr.f32.mxu0 0.0
    %503 = vmatmul.mubr.f32.gmra.mxu0 %v185
    %v504 = vpop.f32.mrf.mxu0
    %v505 = vadd.f32 0.0, %v504
    %v506 = vpop.f32.mrf.mxu0
    %507 = vmatprep.mubr.f32.mxu0 0.0
    %508 = vmatmul.mubr.f32.gmra.mxu0 %v188
    %v509 = vpop.f32.mrf.mxu0
    %v510 = vadd.f32 0.0, %v509
    %v511 = vpop.f32.mrf.mxu0
    %512 = vmatprep.mubr.f32.mxu0 0.0
    %513 = vmatmul.mubr.f32.gmra.mxu0 %v191
    %v514 = vpop.f32.mrf.mxu0
    %v515 = vadd.f32 0.0, %v514
    %v516 = vpop.f32.mrf.mxu0
    %517 = vmatprep.mubr.f32.mxu0 0.0
    %518 = vmatmul.mubr.f32.gmra.mxu0 %v194
    %v519 = vpop.f32.mrf.mxu0
    %v520 = vadd.f32 0.0, %v519
    %v521 = vpop.f32.mrf.mxu0
    %522 = vmatprep.mubr.f32.mxu0 0.0
    %523 = vmatmul.mubr.f32.gmra.mxu0 %v197
    %v524 = vpop.f32.mrf.mxu0
    %v525 = vadd.f32 0.0, %v524
    %v526 = vpop.f32.mrf.mxu0
    %527 = vmatprep.mubr.f32.mxu0 0.0
    %528 = vmatmul.mubr.f32.gmra.mxu0 %v200
    %v529 = vpop.f32.mrf.mxu0
    %v530 = vadd.f32 0.0, %v529
    %v531 = vpop.f32.mrf.mxu0
    %532 = vmatprep.mubr.f32.mxu0 0.0
    %533 = vmatmul.mubr.f32.gmra.mxu0 %v203
    %v534 = vpop.f32.mrf.mxu0
    %v535 = vadd.f32 0.0, %v534
    %v536 = vpop.f32.mrf.mxu0
    %537 = vmatprep.mubr.f32.mxu0 0.0
    %538 = vmatmul.mubr.f32.gmra.mxu0 %v206
    %v539 = vpop.f32.mrf.mxu0
    %v540 = vadd.f32 0.0, %v539
    %v541 = vpop.f32.mrf.mxu0
    %542 = vmatprep.mubr.f32.mxu0 0.0
    %543 = vmatmul.mubr.f32.gmra.mxu0 %v209
    %v544 = vpop.f32.mrf.mxu0
    %v545 = vadd.f32 0.0, %v544
    %v546 = vpop.f32.mrf.mxu0
    %547 = vmatprep.mubr.f32.mxu0 0.0
    %548 = vmatmul.mubr.f32.gmra.mxu0 %v212
    %v549 = vpop.f32.mrf.mxu0
    %v550 = vadd.f32 0.0, %v549
    %v551 = vpop.f32.mrf.mxu0
    %552 = vmatprep.mubr.f32.mxu0 0.0
    %553 = vmatmul.mubr.f32.gmra.mxu0 %v215
    %v554 = vpop.f32.mrf.mxu0
    %v555 = vadd.f32 0.0, %v554
    %v556 = vpop.f32.mrf.mxu0
    %557 = vmatprep.mubr.f32.mxu0 0.0
    %558 = vmatmul.mubr.f32.gmra.mxu0 %v218
    %v559 = vpop.f32.mrf.mxu0
    %v560 = vadd.f32 0.0, %v559
    %v561 = vpop.f32.mrf.mxu0
    %562 = vmatprep.mubr.f32.mxu0 0.0
    %563 = vmatmul.mubr.f32.gmra.mxu0 %v221
    %v564 = vpop.f32.mrf.mxu0
    %v565 = vadd.f32 0.0, %v564
    %v566 = vpop.f32.mrf.mxu0
    %567 = vmatprep.mubr.f32.mxu0 0.0
    %568 = vmatmul.mubr.f32.gmra.mxu0 %v224
    %v569 = vpop.f32.mrf.mxu0
    %v570 = vadd.f32 0.0, %v569
    %v571 = vpop.f32.mrf.mxu0
    %572 = vmatprep.mubr.f32.mxu0 0.0
    %573 = vmatmul.mubr.f32.gmra.mxu0 %v227
    %v574 = vpop.f32.mrf.mxu0
    %v575 = vadd.f32 0.0, %v574
    %v576 = vpop.f32.mrf.mxu0
    %577 = vmatprep.mubr.f32.mxu0 0.0
    %578 = vmatmul.mubr.f32.gmra.mxu0 %v230
    %v579 = vpop.f32.mrf.mxu0
    %v580 = vadd.f32 0.0, %v579
    %v581 = vpop.f32.mrf.mxu0
    %582 = vmatprep.mubr.f32.mxu0 0.0
    %583 = vmatmul.mubr.f32.gmra.mxu0 %v233
    %v584 = vpop.f32.mrf.mxu0
    %v585 = vadd.f32 0.0, %v584
    %v586 = vpop.f32.mrf.mxu0
    %587 = vmatprep.mubr.f32.mxu0 0.0
    %588 = vmatmul.mubr.f32.gmra.mxu0 %v236
    %v589 = vpop.f32.mrf.mxu0
    %v590 = vadd.f32 0.0, %v589
    %v591 = vpop.f32.mrf.mxu0
    %592 = vmatprep.mubr.f32.mxu0 0.0
    %593 = vmatmul.mubr.f32.gmra.mxu0 %v239
    %v594 = vpop.f32.mrf.mxu0
    %v595 = vadd.f32 0.0, %v594
    %v596 = vpop.f32.mrf.mxu0
    %597 = vmatprep.mubr.f32.mxu0 0.0
    %598 = vmatmul.mubr.f32.gmra.mxu0 %v242
    %v599 = vpop.f32.mrf.mxu0
    %v600 = vadd.f32 0.0, %v599
    %v601 = vpop.f32.mrf.mxu0
    %602 = vmatprep.mubr.f32.mxu0 0.0
    %603 = vmatmul.mubr.f32.gmra.mxu0 %v245
    %v604 = vpop.f32.mrf.mxu0
    %v605 = vadd.f32 0.0, %v604
    %v606 = vpop.f32.mrf.mxu0
    %607 = vmatprep.mubr.f32.mxu0 0.0
    %608 = vmatmul.mubr.f32.gmra.mxu0 %v248
    %v609 = vpop.f32.mrf.mxu0
    %v610 = vadd.f32 0.0, %v609
    %v611 = vpop.f32.mrf.mxu0
    %612 = vmatprep.mubr.f32.mxu0 0.0
    %613 = vmatmul.mubr.f32.gmra.mxu0 %v251
    %v614 = vpop.f32.mrf.mxu0
    %v615 = vadd.f32 0.0, %v614
    %v616 = vpop.f32.mrf.mxu0
    %617 = vmatprep.mubr.f32.mxu0 0.0
    %618 = vmatmul.mubr.f32.gmra.mxu0 %v254
    %v619 = vpop.f32.mrf.mxu0
    %v620 = vadd.f32 0.0, %v619
    %v621 = vpop.f32.mrf.mxu0
    %622 = vmatprep.mubr.f32.mxu0 0.0
    %623 = vmatmul.mubr.f32.gmra.mxu0 %v257
    %v624 = vpop.f32.mrf.mxu0
    %v625 = vadd.f32 0.0, %v624
    %v626 = vpop.f32.mrf.mxu0
    %627 = vmatprep.mubr.f32.mxu0 0.0
    %628 = vmatmul.mubr.f32.gmra.mxu0 %v260
    %v629 = vpop.f32.mrf.mxu0
    %v630 = vadd.f32 0.0, %v629
    %v631 = vpop.f32.mrf.mxu0
    %632 = vmatprep.mubr.f32.mxu0 0.0
    %633 = vmatmul.mubr.f32.gmra.mxu0 %v263
    %v634 = vpop.f32.mrf.mxu0
    %v635 = vadd.f32 0.0, %v634
    %v636 = vpop.f32.mrf.mxu0
    %637 = vmatprep.mubr.f32.mxu0 0.0
    %638 = vmatmul.mubr.f32.gmra.mxu0 %v266
    %v639 = vpop.f32.mrf.mxu0
    %v640 = vadd.f32 0.0, %v639
    %v641 = vpop.f32.mrf.mxu0
    %642 = vmatprep.mubr.f32.mxu0 0.0
    %643 = vmatmul.mubr.f32.gmra.mxu0 %v269
    %v644 = vpop.f32.mrf.mxu0
    %v645 = vadd.f32 0.0, %v644
    %v646 = vpop.f32.mrf.mxu0
    %647 = vmatprep.mubr.f32.mxu0 0.0
    %648 = vmatmul.mubr.f32.gmra.mxu0 %v272
    %v649 = vpop.f32.mrf.mxu0
    %v650 = vadd.f32 0.0, %v649
    %v651 = vpop.f32.mrf.mxu0
    %652 = vmatprep.mubr.f32.mxu0 0.0
    %653 = vmatmul.mubr.f32.gmra.mxu0 %v275
    %v654 = vpop.f32.mrf.mxu0
    %v655 = vadd.f32 0.0, %v654
    %v656 = vpop.f32.mrf.mxu0
    %657 = vmatprep.mubr.f32.mxu0 0.0
    %658 = vmatmul.mubr.f32.gmra.mxu0 %v278
    %v659 = vpop.f32.mrf.mxu0
    %v660 = vadd.f32 0.0, %v659
    %v661 = vpop.f32.mrf.mxu0
    %662 = vmatprep.mubr.f32.mxu0 0.0
    %663 = vmatmul.mubr.f32.gmra.mxu0 %v281
    %v664 = vpop.f32.mrf.mxu0
    %v665 = vadd.f32 0.0, %v664
    %v666 = vpop.f32.mrf.mxu0
    %667 = vdwg.mxu0
    %v668 = vld [vmem:[%s3] sm:$0x1]
    %v669 = vlaneseq
    %v670 = vshrl.u32 %v669, 7
    %v671 = vsub.s32 0, %v670
    %v672 = vrot.slane %v668, %v671
    %v673 = vmul.f32 %v350, %v672
    %v674 = vmul.f32 %v355, %v672
    %v675 = vmul.f32 %v360, %v672
    %v676 = vmul.f32 %v365, %v672
    %v677 = vmul.f32 %v370, %v672
    %v678 = vmul.f32 %v375, %v672
    %v679 = vmul.f32 %v380, %v672
    %v680 = vmul.f32 %v385, %v672
    %v681 = vmul.f32 %v390, %v672
    %v682 = vmul.f32 %v395, %v672
    %v683 = vmul.f32 %v400, %v672
    %v684 = vmul.f32 %v405, %v672
    %v685 = vmul.f32 %v410, %v672
    %v686 = vmul.f32 %v415, %v672
    %v687 = vmul.f32 %v420, %v672
    %v688 = vmul.f32 %v425, %v672
    %v689 = vmul.f32 %v430, %v672
    %v690 = vmul.f32 %v435, %v672
    %v691 = vmul.f32 %v440, %v672
    %v692 = vmul.f32 %v445, %v672
    %v693 = vmul.f32 %v450, %v672
    %v694 = vmul.f32 %v455, %v672
    %v695 = vmul.f32 %v460, %v672
    %v696 = vmul.f32 %v465, %v672
    %v697 = vmul.f32 %v470, %v672
    %v698 = vmul.f32 %v475, %v672
    %v699 = vmul.f32 %v480, %v672
    %v700 = vmul.f32 %v485, %v672
    %v701 = vmul.f32 %v490, %v672
    %v702 = vmul.f32 %v495, %v672
    %v703 = vmul.f32 %v500, %v672
    %v704 = vmul.f32 %v505, %v672
    %v705 = vmul.f32 %v510, %v672
    %v706 = vmul.f32 %v515, %v672
    %v707 = vmul.f32 %v520, %v672
    %v708 = vmul.f32 %v525, %v672
    %v709 = vmul.f32 %v530, %v672
    %v710 = vmul.f32 %v535, %v672
    %v711 = vmul.f32 %v540, %v672
    %v712 = vmul.f32 %v545, %v672
    %v713 = vmul.f32 %v550, %v672
    %v714 = vmul.f32 %v555, %v672
    %v715 = vmul.f32 %v560, %v672
    %v716 = vmul.f32 %v565, %v672
    %v717 = vmul.f32 %v570, %v672
    %v718 = vmul.f32 %v575, %v672
    %v719 = vmul.f32 %v580, %v672
    %v720 = vmul.f32 %v585, %v672
    %v721 = vmul.f32 %v590, %v672
    %v722 = vmul.f32 %v595, %v672
    %v723 = vmul.f32 %v600, %v672
    %v724 = vmul.f32 %v605, %v672
    %v725 = vmul.f32 %v610, %v672
    %v726 = vmul.f32 %v615, %v672
    %v727 = vmul.f32 %v620, %v672
    %v728 = vmul.f32 %v625, %v672
    %v729 = vmul.f32 %v630, %v672
    %v730 = vmul.f32 %v635, %v672
    %v731 = vmul.f32 %v640, %v672
    %v732 = vmul.f32 %v645, %v672
    %v733 = vmul.f32 %v650, %v672
    %v734 = vmul.f32 %v655, %v672
    %v735 = vmul.f32 %v660, %v672
    %v736 = vmul.f32 %v665, %v672
    %v737 = vld [vmem:[%s3 + $0x1] sm:$0x1]
    %v738 = vlaneseq
    %v739 = vshrl.u32 %v738, 7
    %v740 = vsub.s32 0, %v739
    %v741 = vrot.slane %v737, %v740
    %v742 = vadd.f32 %v673, %v741
    %v743 = vadd.f32 %v674, %v741
    %v744 = vadd.f32 %v675, %v741
    %v745 = vadd.f32 %v676, %v741
    %v746 = vadd.f32 %v677, %v741
    %v747 = vadd.f32 %v678, %v741
    %v748 = vadd.f32 %v679, %v741
    %v749 = vadd.f32 %v680, %v741
    %v750 = vadd.f32 %v681, %v741
    %v751 = vadd.f32 %v682, %v741
    %v752 = vadd.f32 %v683, %v741
    %v753 = vadd.f32 %v684, %v741
    %v754 = vadd.f32 %v685, %v741
    %v755 = vadd.f32 %v686, %v741
    %v756 = vadd.f32 %v687, %v741
    %v757 = vadd.f32 %v688, %v741
    %v758 = vadd.f32 %v689, %v741
    %v759 = vadd.f32 %v690, %v741
    %v760 = vadd.f32 %v691, %v741
    %v761 = vadd.f32 %v692, %v741
    %v762 = vadd.f32 %v693, %v741
    %v763 = vadd.f32 %v694, %v741
    %v764 = vadd.f32 %v695, %v741
    %v765 = vadd.f32 %v696, %v741
    %v766 = vadd.f32 %v697, %v741
    %v767 = vadd.f32 %v698, %v741
    %v768 = vadd.f32 %v699, %v741
    %v769 = vadd.f32 %v700, %v741
    %v770 = vadd.f32 %v701, %v741
    %v771 = vadd.f32 %v702, %v741
    %v772 = vadd.f32 %v703, %v741
    %v773 = vadd.f32 %v704, %v741
    %v774 = vadd.f32 %v705, %v741
    %v775 = vadd.f32 %v706, %v741
    %v776 = vadd.f32 %v707, %v741
    %v777 = vadd.f32 %v708, %v741
    %v778 = vadd.f32 %v709, %v741
    %v779 = vadd.f32 %v710, %v741
    %v780 = vadd.f32 %v711, %v741
    %v781 = vadd.f32 %v712, %v741
    %v782 = vadd.f32 %v713, %v741
    %v783 = vadd.f32 %v714, %v741
    %v784 = vadd.f32 %v715, %v741
    %v785 = vadd.f32 %v716, %v741
    %v786 = vadd.f32 %v717, %v741
    %v787 = vadd.f32 %v718, %v741
    %v788 = vadd.f32 %v719, %v741
    %v789 = vadd.f32 %v720, %v741
    %v790 = vadd.f32 %v721, %v741
    %v791 = vadd.f32 %v722, %v741
    %v792 = vadd.f32 %v723, %v741
    %v793 = vadd.f32 %v724, %v741
    %v794 = vadd.f32 %v725, %v741
    %v795 = vadd.f32 %v726, %v741
    %v796 = vadd.f32 %v727, %v741
    %v797 = vadd.f32 %v728, %v741
    %v798 = vadd.f32 %v729, %v741
    %v799 = vadd.f32 %v730, %v741
    %v800 = vadd.f32 %v731, %v741
    %v801 = vadd.f32 %v732, %v741
    %v802 = vadd.f32 %v733, %v741
    %v803 = vadd.f32 %v734, %v741
    %v804 = vadd.f32 %v735, %v741
    %v805 = vadd.f32 %v736, %v741
    %v806 = vmul.f32 %v742, 0.1
    %v807 = vmul.f32 %v743, 0.1
    %v808 = vmul.f32 %v744, 0.1
    %v809 = vmul.f32 %v745, 0.1
    %v810 = vmul.f32 %v746, 0.1
    %v811 = vmul.f32 %v747, 0.1
    %v812 = vmul.f32 %v748, 0.1
    %v813 = vmul.f32 %v749, 0.1
    %v814 = vmul.f32 %v750, 0.1
    %v815 = vmul.f32 %v751, 0.1
    %v816 = vmul.f32 %v752, 0.1
    %v817 = vmul.f32 %v753, 0.1
    %v818 = vmul.f32 %v754, 0.1
    %v819 = vmul.f32 %v755, 0.1
    %v820 = vmul.f32 %v756, 0.1
    %v821 = vmul.f32 %v757, 0.1
    %v822 = vmul.f32 %v758, 0.1
    %v823 = vmul.f32 %v759, 0.1
    %v824 = vmul.f32 %v760, 0.1
    %v825 = vmul.f32 %v761, 0.1
    %v826 = vmul.f32 %v762, 0.1
    %v827 = vmul.f32 %v763, 0.1
    %v828 = vmul.f32 %v764, 0.1
    %v829 = vmul.f32 %v765, 0.1
    %v830 = vmul.f32 %v766, 0.1
    %v831 = vmul.f32 %v767, 0.1
    %v832 = vmul.f32 %v768, 0.1
    %v833 = vmul.f32 %v769, 0.1
    %v834 = vmul.f32 %v770, 0.1
    %v835 = vmul.f32 %v771, 0.1
    %v836 = vmul.f32 %v772, 0.1
    %v837 = vmul.f32 %v773, 0.1
    %v838 = vmul.f32 %v774, 0.1
    %v839 = vmul.f32 %v775, 0.1
    %v840 = vmul.f32 %v776, 0.1
    %v841 = vmul.f32 %v777, 0.1
    %v842 = vmul.f32 %v778, 0.1
    %v843 = vmul.f32 %v779, 0.1
    %v844 = vmul.f32 %v780, 0.1
    %v845 = vmul.f32 %v781, 0.1
    %v846 = vmul.f32 %v782, 0.1
    %v847 = vmul.f32 %v783, 0.1
    %v848 = vmul.f32 %v784, 0.1
    %v849 = vmul.f32 %v785, 0.1
    %v850 = vmul.f32 %v786, 0.1
    %v851 = vmul.f32 %v787, 0.1
    %v852 = vmul.f32 %v788, 0.1
    %v853 = vmul.f32 %v789, 0.1
    %v854 = vmul.f32 %v790, 0.1
    %v855 = vmul.f32 %v791, 0.1
    %v856 = vmul.f32 %v792, 0.1
    %v857 = vmul.f32 %v793, 0.1
    %v858 = vmul.f32 %v794, 0.1
    %v859 = vmul.f32 %v795, 0.1
    %v860 = vmul.f32 %v796, 0.1
    %v861 = vmul.f32 %v797, 0.1
    %v862 = vmul.f32 %v798, 0.1
    %v863 = vmul.f32 %v799, 0.1
    %v864 = vmul.f32 %v800, 0.1
    %v865 = vmul.f32 %v801, 0.1
    %v866 = vmul.f32 %v802, 0.1
    %v867 = vmul.f32 %v803, 0.1
    %v868 = vmul.f32 %v804, 0.1
    %v869 = vmul.f32 %v805, 0.1
    %v870 = vmax.f32 %v742, %v806
    %v871 = vmax.f32 %v743, %v807
    %v872 = vmax.f32 %v744, %v808
    %v873 = vmax.f32 %v745, %v809
    %v874 = vmax.f32 %v746, %v810
    %v875 = vmax.f32 %v747, %v811
    %v876 = vmax.f32 %v748, %v812
    %v877 = vmax.f32 %v749, %v813
    %v878 = vmax.f32 %v750, %v814
    %v879 = vmax.f32 %v751, %v815
    %v880 = vmax.f32 %v752, %v816
    %v881 = vmax.f32 %v753, %v817
    %v882 = vmax.f32 %v754, %v818
    %v883 = vmax.f32 %v755, %v819
    %v884 = vmax.f32 %v756, %v820
    %v885 = vmax.f32 %v757, %v821
    %v886 = vmax.f32 %v758, %v822
    %v887 = vmax.f32 %v759, %v823
    %v888 = vmax.f32 %v760, %v824
    %v889 = vmax.f32 %v761, %v825
    %v890 = vmax.f32 %v762, %v826
    %v891 = vmax.f32 %v763, %v827
    %v892 = vmax.f32 %v764, %v828
    %v893 = vmax.f32 %v765, %v829
    %v894 = vmax.f32 %v766, %v830
    %v895 = vmax.f32 %v767, %v831
    %v896 = vmax.f32 %v768, %v832
    %v897 = vmax.f32 %v769, %v833
    %v898 = vmax.f32 %v770, %v834
    %v899 = vmax.f32 %v771, %v835
    %v900 = vmax.f32 %v772, %v836
    %v901 = vmax.f32 %v773, %v837
    %v902 = vmax.f32 %v774, %v838
    %v903 = vmax.f32 %v775, %v839
    %v904 = vmax.f32 %v776, %v840
    %v905 = vmax.f32 %v777, %v841
    %v906 = vmax.f32 %v778, %v842
    %v907 = vmax.f32 %v779, %v843
    %v908 = vmax.f32 %v780, %v844
    %v909 = vmax.f32 %v781, %v845
    %v910 = vmax.f32 %v782, %v846
    %v911 = vmax.f32 %v783, %v847
    %v912 = vmax.f32 %v784, %v848
    %v913 = vmax.f32 %v785, %v849
    %v914 = vmax.f32 %v786, %v850
    %v915 = vmax.f32 %v787, %v851
    %v916 = vmax.f32 %v788, %v852
    %v917 = vmax.f32 %v789, %v853
    %v918 = vmax.f32 %v790, %v854
    %v919 = vmax.f32 %v791, %v855
    %v920 = vmax.f32 %v792, %v856
    %v921 = vmax.f32 %v793, %v857
    %v922 = vmax.f32 %v794, %v858
    %v923 = vmax.f32 %v795, %v859
    %v924 = vmax.f32 %v796, %v860
    %v925 = vmax.f32 %v797, %v861
    %v926 = vmax.f32 %v798, %v862
    %v927 = vmax.f32 %v799, %v863
    %v928 = vmax.f32 %v800, %v864
    %v929 = vmax.f32 %v801, %v865
    %v930 = vmax.f32 %v802, %v866
    %v931 = vmax.f32 %v803, %v867
    %v932 = vmax.f32 %v804, %v868
    %v933 = vmax.f32 %v805, %v869
    %v934 = vld [vmem:[%s1] sm:$0xff]
    %v935 = vld [vmem:[%s1 + $0x8] sm:$0xff]
    %v936 = vld [vmem:[%s1 + $0x10] sm:$0xff]
    %v937 = vld [vmem:[%s1 + $0x18] sm:$0xff]
    %v938 = vld [vmem:[%s1 + $0x20] sm:$0xff]
    %v939 = vld [vmem:[%s1 + $0x28] sm:$0xff]
    %v940 = vld [vmem:[%s1 + $0x30] sm:$0xff]
    %v941 = vld [vmem:[%s1 + $0x38] sm:$0xff]
    %v942 = vld [vmem:[%s1 + $0x40] sm:$0xff]
    %v943 = vld [vmem:[%s1 + $0x48] sm:$0xff]
    %v944 = vld [vmem:[%s1 + $0x50] sm:$0xff]
    %v945 = vld [vmem:[%s1 + $0x58] sm:$0xff]
    %v946 = vld [vmem:[%s1 + $0x60] sm:$0xff]
    %v947 = vld [vmem:[%s1 + $0x68] sm:$0xff]
    %v948 = vld [vmem:[%s1 + $0x70] sm:$0xff]
    %v949 = vld [vmem:[%s1 + $0x78] sm:$0xff]
    %v950 = vld [vmem:[%s1 + $0x80] sm:$0xff]
    %v951 = vld [vmem:[%s1 + $0x88] sm:$0xff]
    %v952 = vld [vmem:[%s1 + $0x90] sm:$0xff]
    %v953 = vld [vmem:[%s1 + $0x98] sm:$0xff]
    %v954 = vld [vmem:[%s1 + $0xa0] sm:$0xff]
    %v955 = vld [vmem:[%s1 + $0xa8] sm:$0xff]
    %v956 = vld [vmem:[%s1 + $0xb0] sm:$0xff]
    %v957 = vld [vmem:[%s1 + $0xb8] sm:$0xff]
    %v958 = vld [vmem:[%s1 + $0xc0] sm:$0xff]
    %v959 = vld [vmem:[%s1 + $0xc8] sm:$0xff]
    %v960 = vld [vmem:[%s1 + $0xd0] sm:$0xff]
    %v961 = vld [vmem:[%s1 + $0xd8] sm:$0xff]
    %v962 = vld [vmem:[%s1 + $0xe0] sm:$0xff]
    %v963 = vld [vmem:[%s1 + $0xe8] sm:$0xff]
    %v964 = vld [vmem:[%s1 + $0xf0] sm:$0xff]
    %v965 = vld [vmem:[%s1 + $0xf8] sm:$0xff]
    %v966 = vld [vmem:[%s1 + $0x100] sm:$0xff]
    %v967 = vld [vmem:[%s1 + $0x108] sm:$0xff]
    %v968 = vld [vmem:[%s1 + $0x110] sm:$0xff]
    %v969 = vld [vmem:[%s1 + $0x118] sm:$0xff]
    %v970 = vld [vmem:[%s1 + $0x120] sm:$0xff]
    %v971 = vld [vmem:[%s1 + $0x128] sm:$0xff]
    %v972 = vld [vmem:[%s1 + $0x130] sm:$0xff]
    %v973 = vld [vmem:[%s1 + $0x138] sm:$0xff]
    %v974 = vld [vmem:[%s1 + $0x140] sm:$0xff]
    %v975 = vld [vmem:[%s1 + $0x148] sm:$0xff]
    %v976 = vld [vmem:[%s1 + $0x150] sm:$0xff]
    %v977 = vld [vmem:[%s1 + $0x158] sm:$0xff]
    %v978 = vld [vmem:[%s1 + $0x160] sm:$0xff]
    %v979 = vld [vmem:[%s1 + $0x168] sm:$0xff]
    %v980 = vld [vmem:[%s1 + $0x170] sm:$0xff]
    %v981 = vld [vmem:[%s1 + $0x178] sm:$0xff]
    %v982 = vld [vmem:[%s1 + $0x180] sm:$0xff]
    %v983 = vld [vmem:[%s1 + $0x188] sm:$0xff]
    %v984 = vld [vmem:[%s1 + $0x190] sm:$0xff]
    %v985 = vld [vmem:[%s1 + $0x198] sm:$0xff]
    %v986 = vld [vmem:[%s1 + $0x1a0] sm:$0xff]
    %v987 = vld [vmem:[%s1 + $0x1a8] sm:$0xff]
    %v988 = vld [vmem:[%s1 + $0x1b0] sm:$0xff]
    %v989 = vld [vmem:[%s1 + $0x1b8] sm:$0xff]
    %v990 = vld [vmem:[%s1 + $0x1c0] sm:$0xff]
    %v991 = vld [vmem:[%s1 + $0x1c8] sm:$0xff]
    %v992 = vld [vmem:[%s1 + $0x1d0] sm:$0xff]
    %v993 = vld [vmem:[%s1 + $0x1d8] sm:$0xff]
    %v994 = vld [vmem:[%s1 + $0x1e0] sm:$0xff]
    %v995 = vld [vmem:[%s1 + $0x1e8] sm:$0xff]
    %v996 = vld [vmem:[%s1 + $0x1f0] sm:$0xff]
    %v997 = vld [vmem:[%s1 + $0x1f8] sm:$0xff]
    %v998 = vld [vmem:[%s3 + $0x2] sm:$0x1]
    %v999 = vlaneseq
    %v1000 = vshrl.u32 %v999, 7
    %v1001 = vsub.s32 0, %v1000
    %v1002 = vrot.slane %v998, %v1001
    %v1003 = vmul.f32 %v934, %v1002
    %v1004 = vmul.f32 %v935, %v1002
    %v1005 = vmul.f32 %v936, %v1002
    %v1006 = vmul.f32 %v937, %v1002
    %v1007 = vmul.f32 %v938, %v1002
    %v1008 = vmul.f32 %v939, %v1002
    %v1009 = vmul.f32 %v940, %v1002
    %v1010 = vmul.f32 %v941, %v1002
    %v1011 = vmul.f32 %v942, %v1002
    %v1012 = vmul.f32 %v943, %v1002
    %v1013 = vmul.f32 %v944, %v1002
    %v1014 = vmul.f32 %v945, %v1002
    %v1015 = vmul.f32 %v946, %v1002
    %v1016 = vmul.f32 %v947, %v1002
    %v1017 = vmul.f32 %v948, %v1002
    %v1018 = vmul.f32 %v949, %v1002
    %v1019 = vmul.f32 %v950, %v1002
    %v1020 = vmul.f32 %v951, %v1002
    %v1021 = vmul.f32 %v952, %v1002
    %v1022 = vmul.f32 %v953, %v1002
    %v1023 = vmul.f32 %v954, %v1002
    %v1024 = vmul.f32 %v955, %v1002
    %v1025 = vmul.f32 %v956, %v1002
    %v1026 = vmul.f32 %v957, %v1002
    %v1027 = vmul.f32 %v958, %v1002
    %v1028 = vmul.f32 %v959, %v1002
    %v1029 = vmul.f32 %v960, %v1002
    %v1030 = vmul.f32 %v961, %v1002
    %v1031 = vmul.f32 %v962, %v1002
    %v1032 = vmul.f32 %v963, %v1002
    %v1033 = vmul.f32 %v964, %v1002
    %v1034 = vmul.f32 %v965, %v1002
    %v1035 = vmul.f32 %v966, %v1002
    %v1036 = vmul.f32 %v967, %v1002
    %v1037 = vmul.f32 %v968, %v1002
    %v1038 = vmul.f32 %v969, %v1002
    %v1039 = vmul.f32 %v970, %v1002
    %v1040 = vmul.f32 %v971, %v1002
    %v1041 = vmul.f32 %v972, %v1002
    %v1042 = vmul.f32 %v973, %v1002
    %v1043 = vmul.f32 %v974, %v1002
    %v1044 = vmul.f32 %v975, %v1002
    %v1045 = vmul.f32 %v976, %v1002
    %v1046 = vmul.f32 %v977, %v1002
    %v1047 = vmul.f32 %v978, %v1002
    %v1048 = vmul.f32 %v979, %v1002
    %v1049 = vmul.f32 %v980, %v1002
    %v1050 = vmul.f32 %v981, %v1002
    %v1051 = vmul.f32 %v982, %v1002
    %v1052 = vmul.f32 %v983, %v1002
    %v1053 = vmul.f32 %v984, %v1002
    %v1054 = vmul.f32 %v985, %v1002
    %v1055 = vmul.f32 %v986, %v1002
    %v1056 = vmul.f32 %v987, %v1002
    %v1057 = vmul.f32 %v988, %v1002
    %v1058 = vmul.f32 %v989, %v1002
    %v1059 = vmul.f32 %v990, %v1002
    %v1060 = vmul.f32 %v991, %v1002
    %v1061 = vmul.f32 %v992, %v1002
    %v1062 = vmul.f32 %v993, %v1002
    %v1063 = vmul.f32 %v994, %v1002
    %v1064 = vmul.f32 %v995, %v1002
    %v1065 = vmul.f32 %v996, %v1002
    %v1066 = vmul.f32 %v997, %v1002
    %v1067 = vld [vmem:[%s3 + $0x3] sm:$0x1]
    %v1068 = vlaneseq
    %v1069 = vshrl.u32 %v1068, 7
    %v1070 = vsub.s32 0, %v1069
    %v1071 = vrot.slane %v1067, %v1070
    %v1072 = vadd.f32 %v1003, %v1071
    %v1073 = vadd.f32 %v1004, %v1071
    %v1074 = vadd.f32 %v1005, %v1071
    %v1075 = vadd.f32 %v1006, %v1071
    %v1076 = vadd.f32 %v1007, %v1071
    %v1077 = vadd.f32 %v1008, %v1071
    %v1078 = vadd.f32 %v1009, %v1071
    %v1079 = vadd.f32 %v1010, %v1071
    %v1080 = vadd.f32 %v1011, %v1071
    %v1081 = vadd.f32 %v1012, %v1071
    %v1082 = vadd.f32 %v1013, %v1071
    %v1083 = vadd.f32 %v1014, %v1071
    %v1084 = vadd.f32 %v1015, %v1071
    %v1085 = vadd.f32 %v1016, %v1071
    %v1086 = vadd.f32 %v1017, %v1071
    %v1087 = vadd.f32 %v1018, %v1071
    %v1088 = vadd.f32 %v1019, %v1071
    %v1089 = vadd.f32 %v1020, %v1071
    %v1090 = vadd.f32 %v1021, %v1071
    %v1091 = vadd.f32 %v1022, %v1071
    %v1092 = vadd.f32 %v1023, %v1071
    %v1093 = vadd.f32 %v1024, %v1071
    %v1094 = vadd.f32 %v1025, %v1071
    %v1095 = vadd.f32 %v1026, %v1071
    %v1096 = vadd.f32 %v1027, %v1071
    %v1097 = vadd.f32 %v1028, %v1071
    %v1098 = vadd.f32 %v1029, %v1071
    %v1099 = vadd.f32 %v1030, %v1071
    %v1100 = vadd.f32 %v1031, %v1071
    %v1101 = vadd.f32 %v1032, %v1071
    %v1102 = vadd.f32 %v1033, %v1071
    %v1103 = vadd.f32 %v1034, %v1071
    %v1104 = vadd.f32 %v1035, %v1071
    %v1105 = vadd.f32 %v1036, %v1071
    %v1106 = vadd.f32 %v1037, %v1071
    %v1107 = vadd.f32 %v1038, %v1071
    %v1108 = vadd.f32 %v1039, %v1071
    %v1109 = vadd.f32 %v1040, %v1071
    %v1110 = vadd.f32 %v1041, %v1071
    %v1111 = vadd.f32 %v1042, %v1071
    %v1112 = vadd.f32 %v1043, %v1071
    %v1113 = vadd.f32 %v1044, %v1071
    %v1114 = vadd.f32 %v1045, %v1071
    %v1115 = vadd.f32 %v1046, %v1071
    %v1116 = vadd.f32 %v1047, %v1071
    %v1117 = vadd.f32 %v1048, %v1071
    %v1118 = vadd.f32 %v1049, %v1071
    %v1119 = vadd.f32 %v1050, %v1071
    %v1120 = vadd.f32 %v1051, %v1071
    %v1121 = vadd.f32 %v1052, %v1071
    %v1122 = vadd.f32 %v1053, %v1071
    %v1123 = vadd.f32 %v1054, %v1071
    %v1124 = vadd.f32 %v1055, %v1071
    %v1125 = vadd.f32 %v1056, %v1071
    %v1126 = vadd.f32 %v1057, %v1071
    %v1127 = vadd.f32 %v1058, %v1071
    %v1128 = vadd.f32 %v1059, %v1071
    %v1129 = vadd.f32 %v1060, %v1071
    %v1130 = vadd.f32 %v1061, %v1071
    %v1131 = vadd.f32 %v1062, %v1071
    %v1132 = vadd.f32 %v1063, %v1071
    %v1133 = vadd.f32 %v1064, %v1071
    %v1134 = vadd.f32 %v1065, %v1071
    %v1135 = vadd.f32 %v1066, %v1071
    %v1136 = vmul.f32 %v1072, 0.1
    %v1137 = vmul.f32 %v1073, 0.1
    %v1138 = vmul.f32 %v1074, 0.1
    %v1139 = vmul.f32 %v1075, 0.1
    %v1140 = vmul.f32 %v1076, 0.1
    %v1141 = vmul.f32 %v1077, 0.1
    %v1142 = vmul.f32 %v1078, 0.1
    %v1143 = vmul.f32 %v1079, 0.1
    %v1144 = vmul.f32 %v1080, 0.1
    %v1145 = vmul.f32 %v1081, 0.1
    %v1146 = vmul.f32 %v1082, 0.1
    %v1147 = vmul.f32 %v1083, 0.1
    %v1148 = vmul.f32 %v1084, 0.1
    %v1149 = vmul.f32 %v1085, 0.1
    %v1150 = vmul.f32 %v1086, 0.1
    %v1151 = vmul.f32 %v1087, 0.1
    %v1152 = vmul.f32 %v1088, 0.1
    %v1153 = vmul.f32 %v1089, 0.1
    %v1154 = vmul.f32 %v1090, 0.1
    %v1155 = vmul.f32 %v1091, 0.1
    %v1156 = vmul.f32 %v1092, 0.1
    %v1157 = vmul.f32 %v1093, 0.1
    %v1158 = vmul.f32 %v1094, 0.1
    %v1159 = vmul.f32 %v1095, 0.1
    %v1160 = vmul.f32 %v1096, 0.1
    %v1161 = vmul.f32 %v1097, 0.1
    %v1162 = vmul.f32 %v1098, 0.1
    %v1163 = vmul.f32 %v1099, 0.1
    %v1164 = vmul.f32 %v1100, 0.1
    %v1165 = vmul.f32 %v1101, 0.1
    %v1166 = vmul.f32 %v1102, 0.1
    %v1167 = vmul.f32 %v1103, 0.1
    %v1168 = vmul.f32 %v1104, 0.1
    %v1169 = vmul.f32 %v1105, 0.1
    %v1170 = vmul.f32 %v1106, 0.1
    %v1171 = vmul.f32 %v1107, 0.1
    %v1172 = vmul.f32 %v1108, 0.1
    %v1173 = vmul.f32 %v1109, 0.1
    %v1174 = vmul.f32 %v1110, 0.1
    %v1175 = vmul.f32 %v1111, 0.1
    %v1176 = vmul.f32 %v1112, 0.1
    %v1177 = vmul.f32 %v1113, 0.1
    %v1178 = vmul.f32 %v1114, 0.1
    %v1179 = vmul.f32 %v1115, 0.1
    %v1180 = vmul.f32 %v1116, 0.1
    %v1181 = vmul.f32 %v1117, 0.1
    %v1182 = vmul.f32 %v1118, 0.1
    %v1183 = vmul.f32 %v1119, 0.1
    %v1184 = vmul.f32 %v1120, 0.1
    %v1185 = vmul.f32 %v1121, 0.1
    %v1186 = vmul.f32 %v1122, 0.1
    %v1187 = vmul.f32 %v1123, 0.1
    %v1188 = vmul.f32 %v1124, 0.1
    %v1189 = vmul.f32 %v1125, 0.1
    %v1190 = vmul.f32 %v1126, 0.1
    %v1191 = vmul.f32 %v1127, 0.1
    %v1192 = vmul.f32 %v1128, 0.1
    %v1193 = vmul.f32 %v1129, 0.1
    %v1194 = vmul.f32 %v1130, 0.1
    %v1195 = vmul.f32 %v1131, 0.1
    %v1196 = vmul.f32 %v1132, 0.1
    %v1197 = vmul.f32 %v1133, 0.1
    %v1198 = vmul.f32 %v1134, 0.1
    %v1199 = vmul.f32 %v1135, 0.1
    %v1200 = vmax.f32 %v1072, %v1136
    %v1201 = vmax.f32 %v1073, %v1137
    %v1202 = vmax.f32 %v1074, %v1138
    %v1203 = vmax.f32 %v1075, %v1139
    %v1204 = vmax.f32 %v1076, %v1140
    %v1205 = vmax.f32 %v1077, %v1141
    %v1206 = vmax.f32 %v1078, %v1142
    %v1207 = vmax.f32 %v1079, %v1143
    %v1208 = vmax.f32 %v1080, %v1144
    %v1209 = vmax.f32 %v1081, %v1145
    %v1210 = vmax.f32 %v1082, %v1146
    %v1211 = vmax.f32 %v1083, %v1147
    %v1212 = vmax.f32 %v1084, %v1148
    %v1213 = vmax.f32 %v1085, %v1149
    %v1214 = vmax.f32 %v1086, %v1150
    %v1215 = vmax.f32 %v1087, %v1151
    %v1216 = vmax.f32 %v1088, %v1152
    %v1217 = vmax.f32 %v1089, %v1153
    %v1218 = vmax.f32 %v1090, %v1154
    %v1219 = vmax.f32 %v1091, %v1155
    %v1220 = vmax.f32 %v1092, %v1156
    %v1221 = vmax.f32 %v1093, %v1157
    %v1222 = vmax.f32 %v1094, %v1158
    %v1223 = vmax.f32 %v1095, %v1159
    %v1224 = vmax.f32 %v1096, %v1160
    %v1225 = vmax.f32 %v1097, %v1161
    %v1226 = vmax.f32 %v1098, %v1162
    %v1227 = vmax.f32 %v1099, %v1163
    %v1228 = vmax.f32 %v1100, %v1164
    %v1229 = vmax.f32 %v1101, %v1165
    %v1230 = vmax.f32 %v1102, %v1166
    %v1231 = vmax.f32 %v1103, %v1167
    %v1232 = vmax.f32 %v1104, %v1168
    %v1233 = vmax.f32 %v1105, %v1169
    %v1234 = vmax.f32 %v1106, %v1170
    %v1235 = vmax.f32 %v1107, %v1171
    %v1236 = vmax.f32 %v1108, %v1172
    %v1237 = vmax.f32 %v1109, %v1173
    %v1238 = vmax.f32 %v1110, %v1174
    %v1239 = vmax.f32 %v1111, %v1175
    %v1240 = vmax.f32 %v1112, %v1176
    %v1241 = vmax.f32 %v1113, %v1177
    %v1242 = vmax.f32 %v1114, %v1178
    %v1243 = vmax.f32 %v1115, %v1179
    %v1244 = vmax.f32 %v1116, %v1180
    %v1245 = vmax.f32 %v1117, %v1181
    %v1246 = vmax.f32 %v1118, %v1182
    %v1247 = vmax.f32 %v1119, %v1183
    %v1248 = vmax.f32 %v1120, %v1184
    %v1249 = vmax.f32 %v1121, %v1185
    %v1250 = vmax.f32 %v1122, %v1186
    %v1251 = vmax.f32 %v1123, %v1187
    %v1252 = vmax.f32 %v1124, %v1188
    %v1253 = vmax.f32 %v1125, %v1189
    %v1254 = vmax.f32 %v1126, %v1190
    %v1255 = vmax.f32 %v1127, %v1191
    %v1256 = vmax.f32 %v1128, %v1192
    %v1257 = vmax.f32 %v1129, %v1193
    %v1258 = vmax.f32 %v1130, %v1194
    %v1259 = vmax.f32 %v1131, %v1195
    %v1260 = vmax.f32 %v1132, %v1196
    %v1261 = vmax.f32 %v1133, %v1197
    %v1262 = vmax.f32 %v1134, %v1198
    %v1263 = vmax.f32 %v1135, %v1199
    %v1264 = vld [vmem:[%s4] sm:$0xff]
    %v1265 = vld [vmem:[%s4 + $0x8] sm:$0xff]
    %v1266 = vld [vmem:[%s4 + $0x10] sm:$0xff]
    %v1267 = vld [vmem:[%s4 + $0x18] sm:$0xff]
    %v1269 = vsel %vm90, %v1200, 0
    %v1272 = vsel %vm90, %v1201, 0
    %v1275 = vsel %vm90, %v1202, 0
    %v1278 = vsel %vm90, %v1203, 0
    %v1281 = vsel %vm90, %v1204, 0
    %v1284 = vsel %vm90, %v1205, 0
    %v1287 = vsel %vm90, %v1206, 0
    %v1290 = vsel %vm90, %v1207, 0
    %v1293 = vsel %vm90, %v1208, 0
    %v1296 = vsel %vm90, %v1209, 0
    %v1299 = vsel %vm90, %v1210, 0
    %v1302 = vsel %vm90, %v1211, 0
    %v1305 = vsel %vm90, %v1212, 0
    %v1308 = vsel %vm90, %v1213, 0
    %v1311 = vsel %vm90, %v1214, 0
    %v1314 = vsel %vm90, %v1215, 0
    %v1317 = vsel %vm90, %v1216, 0
    %v1320 = vsel %vm90, %v1217, 0
    %v1323 = vsel %vm90, %v1218, 0
    %v1326 = vsel %vm90, %v1219, 0
    %v1329 = vsel %vm90, %v1220, 0
    %v1332 = vsel %vm90, %v1221, 0
    %v1335 = vsel %vm90, %v1222, 0
    %v1338 = vsel %vm90, %v1223, 0
    %v1341 = vsel %vm90, %v1224, 0
    %v1344 = vsel %vm90, %v1225, 0
    %v1347 = vsel %vm90, %v1226, 0
    %v1350 = vsel %vm90, %v1227, 0
    %v1353 = vsel %vm90, %v1228, 0
    %v1356 = vsel %vm90, %v1229, 0
    %v1359 = vsel %vm90, %v1230, 0
    %v1362 = vsel %vm90, %v1231, 0
    %v1365 = vsel %vm90, %v1232, 0
    %v1368 = vsel %vm90, %v1233, 0
    %v1371 = vsel %vm90, %v1234, 0
    %v1374 = vsel %vm90, %v1235, 0
    %v1377 = vsel %vm90, %v1236, 0
    %v1380 = vsel %vm90, %v1237, 0
    %v1383 = vsel %vm90, %v1238, 0
    %v1386 = vsel %vm90, %v1239, 0
    %v1389 = vsel %vm90, %v1240, 0
    %v1392 = vsel %vm90, %v1241, 0
    %v1395 = vsel %vm90, %v1242, 0
    %v1398 = vsel %vm90, %v1243, 0
    %v1401 = vsel %vm90, %v1244, 0
    %v1404 = vsel %vm90, %v1245, 0
    %v1407 = vsel %vm90, %v1246, 0
    %v1410 = vsel %vm90, %v1247, 0
    %v1413 = vsel %vm90, %v1248, 0
    %v1416 = vsel %vm90, %v1249, 0
    %v1419 = vsel %vm90, %v1250, 0
    %v1422 = vsel %vm90, %v1251, 0
    %v1425 = vsel %vm90, %v1252, 0
    %v1428 = vsel %vm90, %v1253, 0
    %v1431 = vsel %vm90, %v1254, 0
    %v1434 = vsel %vm90, %v1255, 0
    %v1437 = vsel %vm90, %v1256, 0
    %v1440 = vsel %vm90, %v1257, 0
    %v1443 = vsel %vm90, %v1258, 0
    %v1446 = vsel %vm90, %v1259, 0
    %v1449 = vsel %vm90, %v1260, 0
    %v1452 = vsel %vm90, %v1261, 0
    %v1455 = vsel %vm90, %v1262, 0
    %v1458 = vsel %vm90, %v1263, 0
    %1460 = vmatprep.subr.mxu0 0.0
    %1461 = vmatpush1.msra.mxu0 0.0
    %1462 = vmatprep.subr.mxu0 0.0
    %1463 = vmatpush1.msra.mxu0 0.0
    %1464 = vmatprep.subr.mxu0 0.0
    %1465 = vmatpush1.msra.mxu0 0.0
    %1466 = vmatprep.subr.mxu0 0.0
    %1467 = vmatpush1.msra.mxu0 0.0
    %1468 = vmatprep.subr.mxu0 0.0
    %1469 = vmatpush1.msra.mxu0 0.0
    %1470 = vmatprep.subr.mxu0 0.0
    %1471 = vmatpush1.msra.mxu0 0.0
    %1472 = vmatprep.subr.mxu0 0.0
    %1473 = vmatpush1.msra.mxu0 0.0
    %1474 = vmatprep.subr.mxu0 0.0
    %1475 = vmatpush1.msra.mxu0 0.0
    %1476 = vmatprep.subr.mxu0 0.0
    %1477 = vmatpush1.msra.mxu0 0.0
    %1478 = vmatprep.subr.mxu0 0.0
    %1479 = vmatpush1.msra.mxu0 0.0
    %1480 = vmatprep.subr.mxu0 0.0
    %1481 = vmatpush1.msra.mxu0 0.0
    %1482 = vmatprep.subr.mxu0 0.0
    %1483 = vmatpush1.msra.mxu0 0.0
    %1484 = vmatprep.subr.mxu0 0.0
    %1485 = vmatpush1.msra.mxu0 0.0
    %1486 = vmatprep.subr.mxu0 0.0
    %1487 = vmatpush1.msra.mxu0 0.0
    %1488 = vmatprep.subr.mxu0 0.0
    %1489 = vmatpush1.msra.mxu0 %v1267
    %1490 = vmatprep.subr.mxu0 0.0
    %1491 = vmatpush1.msra.mxu0 %v1266
    %1492 = vmatprep.subr.mxu0 0.0
    %1493 = vmatpush2.msra.mxu0 0.0
    %1494 = vmatprep.subr.mxu0 0.0
    %1495 = vmatpush2.msra.mxu0 0.0
    %1496 = vmatprep.subr.mxu0 0.0
    %1497 = vmatpush2.msra.mxu0 0.0
    %1498 = vmatprep.subr.mxu0 0.0
    %1499 = vmatpush2.msra.mxu0 0.0
    %1500 = vmatprep.subr.mxu0 0.0
    %1501 = vmatpush2.msra.mxu0 0.0
    %1502 = vmatprep.subr.mxu0 0.0
    %1503 = vmatpush2.msra.mxu0 0.0
    %1504 = vmatprep.subr.mxu0 0.0
    %1505 = vmatpush2.msra.mxu0 0.0
    %1506 = vmatprep.subr.mxu0 0.0
    %1507 = vmatpush2.msra.mxu0 0.0
    %1508 = vmatprep.subr.mxu0 0.0
    %1509 = vmatpush2.msra.mxu0 0.0
    %1510 = vmatprep.subr.mxu0 0.0
    %1511 = vmatpush2.msra.mxu0 0.0
    %1512 = vmatprep.subr.mxu0 0.0
    %1513 = vmatpush2.msra.mxu0 0.0
    %1514 = vmatprep.subr.mxu0 0.0
    %1515 = vmatpush2.msra.mxu0 0.0
    %1516 = vmatprep.subr.mxu0 0.0
    %1517 = vmatpush2.msra.mxu0 0.0
    %1518 = vmatprep.subr.mxu0 0.0
    %1519 = vmatpush2.msra.mxu0 0.0
    %1520 = vmatprep.subr.mxu0 0.0
    %1521 = vmatpush2.msra.mxu0 0.0
    %1522 = vmatprep.subr.mxu0 0.0
    %1523 = vmatpush2.msra.mxu0 0.0
    %1524 = vmatprep.mubr.f32.mxu0 0.0
    %1525 = vmatmul.mubr.f32.gmra.mxu0 %v1269
    %v1526 = vpop.f32.mrf.mxu0
    %v1527 = vadd.f32 0.0, %v1526
    %v1528 = vpop.f32.mrf.mxu0
    %1529 = vmatprep.mubr.f32.mxu0 0.0
    %1530 = vmatmul.mubr.f32.gmra.mxu0 %v1272
    %v1531 = vpop.f32.mrf.mxu0
    %v1532 = vadd.f32 0.0, %v1531
    %v1533 = vpop.f32.mrf.mxu0
    %1534 = vmatprep.mubr.f32.mxu0 0.0
    %1535 = vmatmul.mubr.f32.gmra.mxu0 %v1275
    %v1536 = vpop.f32.mrf.mxu0
    %v1537 = vadd.f32 0.0, %v1536
    %v1538 = vpop.f32.mrf.mxu0
    %1539 = vmatprep.mubr.f32.mxu0 0.0
    %1540 = vmatmul.mubr.f32.gmra.mxu0 %v1278
    %v1541 = vpop.f32.mrf.mxu0
    %v1542 = vadd.f32 0.0, %v1541
    %v1543 = vpop.f32.mrf.mxu0
    %1544 = vmatprep.mubr.f32.mxu0 0.0
    %1545 = vmatmul.mubr.f32.gmra.mxu0 %v1281
    %v1546 = vpop.f32.mrf.mxu0
    %v1547 = vadd.f32 0.0, %v1546
    %v1548 = vpop.f32.mrf.mxu0
    %1549 = vmatprep.mubr.f32.mxu0 0.0
    %1550 = vmatmul.mubr.f32.gmra.mxu0 %v1284
    %v1551 = vpop.f32.mrf.mxu0
    %v1552 = vadd.f32 0.0, %v1551
    %v1553 = vpop.f32.mrf.mxu0
    %1554 = vmatprep.mubr.f32.mxu0 0.0
    %1555 = vmatmul.mubr.f32.gmra.mxu0 %v1287
    %v1556 = vpop.f32.mrf.mxu0
    %v1557 = vadd.f32 0.0, %v1556
    %v1558 = vpop.f32.mrf.mxu0
    %1559 = vmatprep.mubr.f32.mxu0 0.0
    %1560 = vmatmul.mubr.f32.gmra.mxu0 %v1290
    %v1561 = vpop.f32.mrf.mxu0
    %v1562 = vadd.f32 0.0, %v1561
    %v1563 = vpop.f32.mrf.mxu0
    %1564 = vmatprep.mubr.f32.mxu0 0.0
    %1565 = vmatmul.mubr.f32.gmra.mxu0 %v1293
    %v1566 = vpop.f32.mrf.mxu0
    %v1567 = vadd.f32 0.0, %v1566
    %v1568 = vpop.f32.mrf.mxu0
    %1569 = vmatprep.mubr.f32.mxu0 0.0
    %1570 = vmatmul.mubr.f32.gmra.mxu0 %v1296
    %v1571 = vpop.f32.mrf.mxu0
    %v1572 = vadd.f32 0.0, %v1571
    %v1573 = vpop.f32.mrf.mxu0
    %1574 = vmatprep.mubr.f32.mxu0 0.0
    %1575 = vmatmul.mubr.f32.gmra.mxu0 %v1299
    %v1576 = vpop.f32.mrf.mxu0
    %v1577 = vadd.f32 0.0, %v1576
    %v1578 = vpop.f32.mrf.mxu0
    %1579 = vmatprep.mubr.f32.mxu0 0.0
    %1580 = vmatmul.mubr.f32.gmra.mxu0 %v1302
    %v1581 = vpop.f32.mrf.mxu0
    %v1582 = vadd.f32 0.0, %v1581
    %v1583 = vpop.f32.mrf.mxu0
    %1584 = vmatprep.mubr.f32.mxu0 0.0
    %1585 = vmatmul.mubr.f32.gmra.mxu0 %v1305
    %v1586 = vpop.f32.mrf.mxu0
    %v1587 = vadd.f32 0.0, %v1586
    %v1588 = vpop.f32.mrf.mxu0
    %1589 = vmatprep.mubr.f32.mxu0 0.0
    %1590 = vmatmul.mubr.f32.gmra.mxu0 %v1308
    %v1591 = vpop.f32.mrf.mxu0
    %v1592 = vadd.f32 0.0, %v1591
    %v1593 = vpop.f32.mrf.mxu0
    %1594 = vmatprep.mubr.f32.mxu0 0.0
    %1595 = vmatmul.mubr.f32.gmra.mxu0 %v1311
    %v1596 = vpop.f32.mrf.mxu0
    %v1597 = vadd.f32 0.0, %v1596
    %v1598 = vpop.f32.mrf.mxu0
    %1599 = vmatprep.mubr.f32.mxu0 0.0
    %1600 = vmatmul.mubr.f32.gmra.mxu0 %v1314
    %v1601 = vpop.f32.mrf.mxu0
    %v1602 = vadd.f32 0.0, %v1601
    %v1603 = vpop.f32.mrf.mxu0
    %1604 = vmatprep.mubr.f32.mxu0 0.0
    %1605 = vmatmul.mubr.f32.gmra.mxu0 %v1317
    %v1606 = vpop.f32.mrf.mxu0
    %v1607 = vadd.f32 0.0, %v1606
    %v1608 = vpop.f32.mrf.mxu0
    %1609 = vmatprep.mubr.f32.mxu0 0.0
    %1610 = vmatmul.mubr.f32.gmra.mxu0 %v1320
    %v1611 = vpop.f32.mrf.mxu0
    %v1612 = vadd.f32 0.0, %v1611
    %v1613 = vpop.f32.mrf.mxu0
    %1614 = vmatprep.mubr.f32.mxu0 0.0
    %1615 = vmatmul.mubr.f32.gmra.mxu0 %v1323
    %v1616 = vpop.f32.mrf.mxu0
    %v1617 = vadd.f32 0.0, %v1616
    %v1618 = vpop.f32.mrf.mxu0
    %1619 = vmatprep.mubr.f32.mxu0 0.0
    %1620 = vmatmul.mubr.f32.gmra.mxu0 %v1326
    %v1621 = vpop.f32.mrf.mxu0
    %v1622 = vadd.f32 0.0, %v1621
    %v1623 = vpop.f32.mrf.mxu0
    %1624 = vmatprep.mubr.f32.mxu0 0.0
    %1625 = vmatmul.mubr.f32.gmra.mxu0 %v1329
    %v1626 = vpop.f32.mrf.mxu0
    %v1627 = vadd.f32 0.0, %v1626
    %v1628 = vpop.f32.mrf.mxu0
    %1629 = vmatprep.mubr.f32.mxu0 0.0
    %1630 = vmatmul.mubr.f32.gmra.mxu0 %v1332
    %v1631 = vpop.f32.mrf.mxu0
    %v1632 = vadd.f32 0.0, %v1631
    %v1633 = vpop.f32.mrf.mxu0
    %1634 = vmatprep.mubr.f32.mxu0 0.0
    %1635 = vmatmul.mubr.f32.gmra.mxu0 %v1335
    %v1636 = vpop.f32.mrf.mxu0
    %v1637 = vadd.f32 0.0, %v1636
    %v1638 = vpop.f32.mrf.mxu0
    %1639 = vmatprep.mubr.f32.mxu0 0.0
    %1640 = vmatmul.mubr.f32.gmra.mxu0 %v1338
    %v1641 = vpop.f32.mrf.mxu0
    %v1642 = vadd.f32 0.0, %v1641
    %v1643 = vpop.f32.mrf.mxu0
    %1644 = vmatprep.mubr.f32.mxu0 0.0
    %1645 = vmatmul.mubr.f32.gmra.mxu0 %v1341
    %v1646 = vpop.f32.mrf.mxu0
    %v1647 = vadd.f32 0.0, %v1646
    %v1648 = vpop.f32.mrf.mxu0
    %1649 = vmatprep.mubr.f32.mxu0 0.0
    %1650 = vmatmul.mubr.f32.gmra.mxu0 %v1344
    %v1651 = vpop.f32.mrf.mxu0
    %v1652 = vadd.f32 0.0, %v1651
    %v1653 = vpop.f32.mrf.mxu0
    %1654 = vmatprep.mubr.f32.mxu0 0.0
    %1655 = vmatmul.mubr.f32.gmra.mxu0 %v1347
    %v1656 = vpop.f32.mrf.mxu0
    %v1657 = vadd.f32 0.0, %v1656
    %v1658 = vpop.f32.mrf.mxu0
    %1659 = vmatprep.mubr.f32.mxu0 0.0
    %1660 = vmatmul.mubr.f32.gmra.mxu0 %v1350
    %v1661 = vpop.f32.mrf.mxu0
    %v1662 = vadd.f32 0.0, %v1661
    %v1663 = vpop.f32.mrf.mxu0
    %1664 = vmatprep.mubr.f32.mxu0 0.0
    %1665 = vmatmul.mubr.f32.gmra.mxu0 %v1353
    %v1666 = vpop.f32.mrf.mxu0
    %v1667 = vadd.f32 0.0, %v1666
    %v1668 = vpop.f32.mrf.mxu0
    %1669 = vmatprep.mubr.f32.mxu0 0.0
    %1670 = vmatmul.mubr.f32.gmra.mxu0 %v1356
    %v1671 = vpop.f32.mrf.mxu0
    %v1672 = vadd.f32 0.0, %v1671
    %v1673 = vpop.f32.mrf.mxu0
    %1674 = vmatprep.mubr.f32.mxu0 0.0
    %1675 = vmatmul.mubr.f32.gmra.mxu0 %v1359
    %v1676 = vpop.f32.mrf.mxu0
    %v1677 = vadd.f32 0.0, %v1676
    %v1678 = vpop.f32.mrf.mxu0
    %1679 = vmatprep.mubr.f32.mxu0 0.0
    %1680 = vmatmul.mubr.f32.gmra.mxu0 %v1362
    %v1681 = vpop.f32.mrf.mxu0
    %v1682 = vadd.f32 0.0, %v1681
    %v1683 = vpop.f32.mrf.mxu0
    %1684 = vmatprep.mubr.f32.mxu0 0.0
    %1685 = vmatmul.mubr.f32.gmra.mxu0 %v1365
    %v1686 = vpop.f32.mrf.mxu0
    %v1687 = vadd.f32 0.0, %v1686
    %v1688 = vpop.f32.mrf.mxu0
    %1689 = vmatprep.mubr.f32.mxu0 0.0
    %1690 = vmatmul.mubr.f32.gmra.mxu0 %v1368
    %v1691 = vpop.f32.mrf.mxu0
    %v1692 = vadd.f32 0.0, %v1691
    %v1693 = vpop.f32.mrf.mxu0
    %1694 = vmatprep.mubr.f32.mxu0 0.0
    %1695 = vmatmul.mubr.f32.gmra.mxu0 %v1371
    %v1696 = vpop.f32.mrf.mxu0
    %v1697 = vadd.f32 0.0, %v1696
    %v1698 = vpop.f32.mrf.mxu0
    %1699 = vmatprep.mubr.f32.mxu0 0.0
    %1700 = vmatmul.mubr.f32.gmra.mxu0 %v1374
    %v1701 = vpop.f32.mrf.mxu0
    %v1702 = vadd.f32 0.0, %v1701
    %v1703 = vpop.f32.mrf.mxu0
    %1704 = vmatprep.mubr.f32.mxu0 0.0
    %1705 = vmatmul.mubr.f32.gmra.mxu0 %v1377
    %v1706 = vpop.f32.mrf.mxu0
    %v1707 = vadd.f32 0.0, %v1706
    %v1708 = vpop.f32.mrf.mxu0
    %1709 = vmatprep.mubr.f32.mxu0 0.0
    %1710 = vmatmul.mubr.f32.gmra.mxu0 %v1380
    %v1711 = vpop.f32.mrf.mxu0
    %v1712 = vadd.f32 0.0, %v1711
    %v1713 = vpop.f32.mrf.mxu0
    %1714 = vmatprep.mubr.f32.mxu0 0.0
    %1715 = vmatmul.mubr.f32.gmra.mxu0 %v1383
    %v1716 = vpop.f32.mrf.mxu0
    %v1717 = vadd.f32 0.0, %v1716
    %v1718 = vpop.f32.mrf.mxu0
    %1719 = vmatprep.mubr.f32.mxu0 0.0
    %1720 = vmatmul.mubr.f32.gmra.mxu0 %v1386
    %v1721 = vpop.f32.mrf.mxu0
    %v1722 = vadd.f32 0.0, %v1721
    %v1723 = vpop.f32.mrf.mxu0
    %1724 = vmatprep.mubr.f32.mxu0 0.0
    %1725 = vmatmul.mubr.f32.gmra.mxu0 %v1389
    %v1726 = vpop.f32.mrf.mxu0
    %v1727 = vadd.f32 0.0, %v1726
    %v1728 = vpop.f32.mrf.mxu0
    %1729 = vmatprep.mubr.f32.mxu0 0.0
    %1730 = vmatmul.mubr.f32.gmra.mxu0 %v1392
    %v1731 = vpop.f32.mrf.mxu0
    %v1732 = vadd.f32 0.0, %v1731
    %v1733 = vpop.f32.mrf.mxu0
    %1734 = vmatprep.mubr.f32.mxu0 0.0
    %1735 = vmatmul.mubr.f32.gmra.mxu0 %v1395
    %v1736 = vpop.f32.mrf.mxu0
    %v1737 = vadd.f32 0.0, %v1736
    %v1738 = vpop.f32.mrf.mxu0
    %1739 = vmatprep.mubr.f32.mxu0 0.0
    %1740 = vmatmul.mubr.f32.gmra.mxu0 %v1398
    %v1741 = vpop.f32.mrf.mxu0
    %v1742 = vadd.f32 0.0, %v1741
    %v1743 = vpop.f32.mrf.mxu0
    %1744 = vmatprep.mubr.f32.mxu0 0.0
    %1745 = vmatmul.mubr.f32.gmra.mxu0 %v1401
    %v1746 = vpop.f32.mrf.mxu0
    %v1747 = vadd.f32 0.0, %v1746
    %v1748 = vpop.f32.mrf.mxu0
    %1749 = vmatprep.mubr.f32.mxu0 0.0
    %1750 = vmatmul.mubr.f32.gmra.mxu0 %v1404
    %v1751 = vpop.f32.mrf.mxu0
    %v1752 = vadd.f32 0.0, %v1751
    %v1753 = vpop.f32.mrf.mxu0
    %1754 = vmatprep.mubr.f32.mxu0 0.0
    %1755 = vmatmul.mubr.f32.gmra.mxu0 %v1407
    %v1756 = vpop.f32.mrf.mxu0
    %v1757 = vadd.f32 0.0, %v1756
    %v1758 = vpop.f32.mrf.mxu0
    %1759 = vmatprep.mubr.f32.mxu0 0.0
    %1760 = vmatmul.mubr.f32.gmra.mxu0 %v1410
    %v1761 = vpop.f32.mrf.mxu0
    %v1762 = vadd.f32 0.0, %v1761
    %v1763 = vpop.f32.mrf.mxu0
    %1764 = vmatprep.mubr.f32.mxu0 0.0
    %1765 = vmatmul.mubr.f32.gmra.mxu0 %v1413
    %v1766 = vpop.f32.mrf.mxu0
    %v1767 = vadd.f32 0.0, %v1766
    %v1768 = vpop.f32.mrf.mxu0
    %1769 = vmatprep.mubr.f32.mxu0 0.0
    %1770 = vmatmul.mubr.f32.gmra.mxu0 %v1416
    %v1771 = vpop.f32.mrf.mxu0
    %v1772 = vadd.f32 0.0, %v1771
    %v1773 = vpop.f32.mrf.mxu0
    %1774 = vmatprep.mubr.f32.mxu0 0.0
    %1775 = vmatmul.mubr.f32.gmra.mxu0 %v1419
    %v1776 = vpop.f32.mrf.mxu0
    %v1777 = vadd.f32 0.0, %v1776
    %v1778 = vpop.f32.mrf.mxu0
    %1779 = vmatprep.mubr.f32.mxu0 0.0
    %1780 = vmatmul.mubr.f32.gmra.mxu0 %v1422
    %v1781 = vpop.f32.mrf.mxu0
    %v1782 = vadd.f32 0.0, %v1781
    %v1783 = vpop.f32.mrf.mxu0
    %1784 = vmatprep.mubr.f32.mxu0 0.0
    %1785 = vmatmul.mubr.f32.gmra.mxu0 %v1425
    %v1786 = vpop.f32.mrf.mxu0
    %v1787 = vadd.f32 0.0, %v1786
    %v1788 = vpop.f32.mrf.mxu0
    %1789 = vmatprep.mubr.f32.mxu0 0.0
    %1790 = vmatmul.mubr.f32.gmra.mxu0 %v1428
    %v1791 = vpop.f32.mrf.mxu0
    %v1792 = vadd.f32 0.0, %v1791
    %v1793 = vpop.f32.mrf.mxu0
    %1794 = vmatprep.mubr.f32.mxu0 0.0
    %1795 = vmatmul.mubr.f32.gmra.mxu0 %v1431
    %v1796 = vpop.f32.mrf.mxu0
    %v1797 = vadd.f32 0.0, %v1796
    %v1798 = vpop.f32.mrf.mxu0
    %1799 = vmatprep.mubr.f32.mxu0 0.0
    %1800 = vmatmul.mubr.f32.gmra.mxu0 %v1434
    %v1801 = vpop.f32.mrf.mxu0
    %v1802 = vadd.f32 0.0, %v1801
    %v1803 = vpop.f32.mrf.mxu0
    %1804 = vmatprep.mubr.f32.mxu0 0.0
    %1805 = vmatmul.mubr.f32.gmra.mxu0 %v1437
    %v1806 = vpop.f32.mrf.mxu0
    %v1807 = vadd.f32 0.0, %v1806
    %v1808 = vpop.f32.mrf.mxu0
    %1809 = vmatprep.mubr.f32.mxu0 0.0
    %1810 = vmatmul.mubr.f32.gmra.mxu0 %v1440
    %v1811 = vpop.f32.mrf.mxu0
    %v1812 = vadd.f32 0.0, %v1811
    %v1813 = vpop.f32.mrf.mxu0
    %1814 = vmatprep.mubr.f32.mxu0 0.0
    %1815 = vmatmul.mubr.f32.gmra.mxu0 %v1443
    %v1816 = vpop.f32.mrf.mxu0
    %v1817 = vadd.f32 0.0, %v1816
    %v1818 = vpop.f32.mrf.mxu0
    %1819 = vmatprep.mubr.f32.mxu0 0.0
    %1820 = vmatmul.mubr.f32.gmra.mxu0 %v1446
    %v1821 = vpop.f32.mrf.mxu0
    %v1822 = vadd.f32 0.0, %v1821
    %v1823 = vpop.f32.mrf.mxu0
    %1824 = vmatprep.mubr.f32.mxu0 0.0
    %1825 = vmatmul.mubr.f32.gmra.mxu0 %v1449
    %v1826 = vpop.f32.mrf.mxu0
    %v1827 = vadd.f32 0.0, %v1826
    %v1828 = vpop.f32.mrf.mxu0
    %1829 = vmatprep.mubr.f32.mxu0 0.0
    %1830 = vmatmul.mubr.f32.gmra.mxu0 %v1452
    %v1831 = vpop.f32.mrf.mxu0
    %v1832 = vadd.f32 0.0, %v1831
    %v1833 = vpop.f32.mrf.mxu0
    %1834 = vmatprep.mubr.f32.mxu0 0.0
    %1835 = vmatmul.mubr.f32.gmra.mxu0 %v1455
    %v1836 = vpop.f32.mrf.mxu0
    %v1837 = vadd.f32 0.0, %v1836
    %v1838 = vpop.f32.mrf.mxu0
    %1839 = vmatprep.mubr.f32.mxu0 0.0
    %1840 = vmatmul.mubr.f32.gmra.mxu0 %v1458
    %v1841 = vpop.f32.mrf.mxu0
    %v1842 = vadd.f32 0.0, %v1841
    %v1843 = vpop.f32.mrf.mxu0
    %1844 = vdwg.mxu0
    %v1846 = vsel %vm90, %v870, 0
    %v1849 = vsel %vm90, %v871, 0
    %v1852 = vsel %vm90, %v872, 0
    %v1855 = vsel %vm90, %v873, 0
    %v1858 = vsel %vm90, %v874, 0
    %v1861 = vsel %vm90, %v875, 0
    %v1864 = vsel %vm90, %v876, 0
    %v1867 = vsel %vm90, %v877, 0
    %v1870 = vsel %vm90, %v878, 0
    %v1873 = vsel %vm90, %v879, 0
    %v1876 = vsel %vm90, %v880, 0
    %v1879 = vsel %vm90, %v881, 0
    %v1882 = vsel %vm90, %v882, 0
    %v1885 = vsel %vm90, %v883, 0
    %v1888 = vsel %vm90, %v884, 0
    %v1891 = vsel %vm90, %v885, 0
    %v1894 = vsel %vm90, %v886, 0
    %v1897 = vsel %vm90, %v887, 0
    %v1900 = vsel %vm90, %v888, 0
    %v1903 = vsel %vm90, %v889, 0
    %v1906 = vsel %vm90, %v890, 0
    %v1909 = vsel %vm90, %v891, 0
    %v1912 = vsel %vm90, %v892, 0
    %v1915 = vsel %vm90, %v893, 0
    %v1918 = vsel %vm90, %v894, 0
    %v1921 = vsel %vm90, %v895, 0
    %v1924 = vsel %vm90, %v896, 0
    %v1927 = vsel %vm90, %v897, 0
    %v1930 = vsel %vm90, %v898, 0
    %v1933 = vsel %vm90, %v899, 0
    %v1936 = vsel %vm90, %v900, 0
    %v1939 = vsel %vm90, %v901, 0
    %v1942 = vsel %vm90, %v902, 0
    %v1945 = vsel %vm90, %v903, 0
    %v1948 = vsel %vm90, %v904, 0
    %v1951 = vsel %vm90, %v905, 0
    %v1954 = vsel %vm90, %v906, 0
    %v1957 = vsel %vm90, %v907, 0
    %v1960 = vsel %vm90, %v908, 0
    %v1963 = vsel %vm90, %v909, 0
    %v1966 = vsel %vm90, %v910, 0
    %v1969 = vsel %vm90, %v911, 0
    %v1972 = vsel %vm90, %v912, 0
    %v1975 = vsel %vm90, %v913, 0
    %v1978 = vsel %vm90, %v914, 0
    %v1981 = vsel %vm90, %v915, 0
    %v1984 = vsel %vm90, %v916, 0
    %v1987 = vsel %vm90, %v917, 0
    %v1990 = vsel %vm90, %v918, 0
    %v1993 = vsel %vm90, %v919, 0
    %v1996 = vsel %vm90, %v920, 0
    %v1999 = vsel %vm90, %v921, 0
    %v2002 = vsel %vm90, %v922, 0
    %v2005 = vsel %vm90, %v923, 0
    %v2008 = vsel %vm90, %v924, 0
    %v2011 = vsel %vm90, %v925, 0
    %v2014 = vsel %vm90, %v926, 0
    %v2017 = vsel %vm90, %v927, 0
    %v2020 = vsel %vm90, %v928, 0
    %v2023 = vsel %vm90, %v929, 0
    %v2026 = vsel %vm90, %v930, 0
    %v2029 = vsel %vm90, %v931, 0
    %v2032 = vsel %vm90, %v932, 0
    %v2035 = vsel %vm90, %v933, 0
    %2037 = vmatprep.subr.mxu0 0.0
    %2038 = vmatpush1.msra.mxu0 0.0
    %2039 = vmatprep.subr.mxu0 0.0
    %2040 = vmatpush1.msra.mxu0 0.0
    %2041 = vmatprep.subr.mxu0 0.0
    %2042 = vmatpush1.msra.mxu0 0.0
    %2043 = vmatprep.subr.mxu0 0.0
    %2044 = vmatpush1.msra.mxu0 0.0
    %2045 = vmatprep.subr.mxu0 0.0
    %2046 = vmatpush1.msra.mxu0 0.0
    %2047 = vmatprep.subr.mxu0 0.0
    %2048 = vmatpush1.msra.mxu0 0.0
    %2049 = vmatprep.subr.mxu0 0.0
    %2050 = vmatpush1.msra.mxu0 0.0
    %2051 = vmatprep.subr.mxu0 0.0
    %2052 = vmatpush1.msra.mxu0 0.0
    %2053 = vmatprep.subr.mxu0 0.0
    %2054 = vmatpush1.msra.mxu0 0.0
    %2055 = vmatprep.subr.mxu0 0.0
    %2056 = vmatpush1.msra.mxu0 0.0
    %2057 = vmatprep.subr.mxu0 0.0
    %2058 = vmatpush1.msra.mxu0 0.0
    %2059 = vmatprep.subr.mxu0 0.0
    %2060 = vmatpush1.msra.mxu0 0.0
    %2061 = vmatprep.subr.mxu0 0.0
    %2062 = vmatpush1.msra.mxu0 0.0
    %2063 = vmatprep.subr.mxu0 0.0
    %2064 = vmatpush1.msra.mxu0 0.0
    %2065 = vmatprep.subr.mxu0 0.0
    %2066 = vmatpush1.msra.mxu0 %v1265
    %2067 = vmatprep.subr.mxu0 0.0
    %2068 = vmatpush1.msra.mxu0 %v1264
    %2069 = vmatprep.subr.mxu0 0.0
    %2070 = vmatpush2.msra.mxu0 0.0
    %2071 = vmatprep.subr.mxu0 0.0
    %2072 = vmatpush2.msra.mxu0 0.0
    %2073 = vmatprep.subr.mxu0 0.0
    %2074 = vmatpush2.msra.mxu0 0.0
    %2075 = vmatprep.subr.mxu0 0.0
    %2076 = vmatpush2.msra.mxu0 0.0
    %2077 = vmatprep.subr.mxu0 0.0
    %2078 = vmatpush2.msra.mxu0 0.0
    %2079 = vmatprep.subr.mxu0 0.0
    %2080 = vmatpush2.msra.mxu0 0.0
    %2081 = vmatprep.subr.mxu0 0.0
    %2082 = vmatpush2.msra.mxu0 0.0
    %2083 = vmatprep.subr.mxu0 0.0
    %2084 = vmatpush2.msra.mxu0 0.0
    %2085 = vmatprep.subr.mxu0 0.0
    %2086 = vmatpush2.msra.mxu0 0.0
    %2087 = vmatprep.subr.mxu0 0.0
    %2088 = vmatpush2.msra.mxu0 0.0
    %2089 = vmatprep.subr.mxu0 0.0
    %2090 = vmatpush2.msra.mxu0 0.0
    %2091 = vmatprep.subr.mxu0 0.0
    %2092 = vmatpush2.msra.mxu0 0.0
    %2093 = vmatprep.subr.mxu0 0.0
    %2094 = vmatpush2.msra.mxu0 0.0
    %2095 = vmatprep.subr.mxu0 0.0
    %2096 = vmatpush2.msra.mxu0 0.0
    %2097 = vmatprep.subr.mxu0 0.0
    %2098 = vmatpush2.msra.mxu0 0.0
    %2099 = vmatprep.subr.mxu0 0.0
    %2100 = vmatpush2.msra.mxu0 0.0
    %2101 = vmatprep.mubr.f32.mxu0 0.0
    %2102 = vmatmul.mubr.f32.gmra.mxu0 %v1846
    %v2103 = vpop.f32.mrf.mxu0
    %v2104 = vadd.f32 %v1527, %v2103
    %v2105 = vpop.f32.mrf.mxu0
    %2106 = vmatprep.mubr.f32.mxu0 0.0
    %2107 = vmatmul.mubr.f32.gmra.mxu0 %v1849
    %v2108 = vpop.f32.mrf.mxu0
    %v2109 = vadd.f32 %v1532, %v2108
    %v2110 = vpop.f32.mrf.mxu0
    %2111 = vmatprep.mubr.f32.mxu0 0.0
    %2112 = vmatmul.mubr.f32.gmra.mxu0 %v1852
    %v2113 = vpop.f32.mrf.mxu0
    %v2114 = vadd.f32 %v1537, %v2113
    %v2115 = vpop.f32.mrf.mxu0
    %2116 = vmatprep.mubr.f32.mxu0 0.0
    %2117 = vmatmul.mubr.f32.gmra.mxu0 %v1855
    %v2118 = vpop.f32.mrf.mxu0
    %v2119 = vadd.f32 %v1542, %v2118
    %v2120 = vpop.f32.mrf.mxu0
    %2121 = vmatprep.mubr.f32.mxu0 0.0
    %2122 = vmatmul.mubr.f32.gmra.mxu0 %v1858
    %v2123 = vpop.f32.mrf.mxu0
    %v2124 = vadd.f32 %v1547, %v2123
    %v2125 = vpop.f32.mrf.mxu0
    %2126 = vmatprep.mubr.f32.mxu0 0.0
    %2127 = vmatmul.mubr.f32.gmra.mxu0 %v1861
    %v2128 = vpop.f32.mrf.mxu0
    %v2129 = vadd.f32 %v1552, %v2128
    %v2130 = vpop.f32.mrf.mxu0
    %2131 = vmatprep.mubr.f32.mxu0 0.0
    %2132 = vmatmul.mubr.f32.gmra.mxu0 %v1864
    %v2133 = vpop.f32.mrf.mxu0
    %v2134 = vadd.f32 %v1557, %v2133
    %v2135 = vpop.f32.mrf.mxu0
    %2136 = vmatprep.mubr.f32.mxu0 0.0
    %2137 = vmatmul.mubr.f32.gmra.mxu0 %v1867
    %v2138 = vpop.f32.mrf.mxu0
    %v2139 = vadd.f32 %v1562, %v2138
    %v2140 = vpop.f32.mrf.mxu0
    %2141 = vmatprep.mubr.f32.mxu0 0.0
    %2142 = vmatmul.mubr.f32.gmra.mxu0 %v1870
    %v2143 = vpop.f32.mrf.mxu0
    %v2144 = vadd.f32 %v1567, %v2143
    %v2145 = vpop.f32.mrf.mxu0
    %2146 = vmatprep.mubr.f32.mxu0 0.0
    %2147 = vmatmul.mubr.f32.gmra.mxu0 %v1873
    %v2148 = vpop.f32.mrf.mxu0
    %v2149 = vadd.f32 %v1572, %v2148
    %v2150 = vpop.f32.mrf.mxu0
    %2151 = vmatprep.mubr.f32.mxu0 0.0
    %2152 = vmatmul.mubr.f32.gmra.mxu0 %v1876
    %v2153 = vpop.f32.mrf.mxu0
    %v2154 = vadd.f32 %v1577, %v2153
    %v2155 = vpop.f32.mrf.mxu0
    %2156 = vmatprep.mubr.f32.mxu0 0.0
    %2157 = vmatmul.mubr.f32.gmra.mxu0 %v1879
    %v2158 = vpop.f32.mrf.mxu0
    %v2159 = vadd.f32 %v1582, %v2158
    %v2160 = vpop.f32.mrf.mxu0
    %2161 = vmatprep.mubr.f32.mxu0 0.0
    %2162 = vmatmul.mubr.f32.gmra.mxu0 %v1882
    %v2163 = vpop.f32.mrf.mxu0
    %v2164 = vadd.f32 %v1587, %v2163
    %v2165 = vpop.f32.mrf.mxu0
    %2166 = vmatprep.mubr.f32.mxu0 0.0
    %2167 = vmatmul.mubr.f32.gmra.mxu0 %v1885
    %v2168 = vpop.f32.mrf.mxu0
    %v2169 = vadd.f32 %v1592, %v2168
    %v2170 = vpop.f32.mrf.mxu0
    %2171 = vmatprep.mubr.f32.mxu0 0.0
    %2172 = vmatmul.mubr.f32.gmra.mxu0 %v1888
    %v2173 = vpop.f32.mrf.mxu0
    %v2174 = vadd.f32 %v1597, %v2173
    %v2175 = vpop.f32.mrf.mxu0
    %2176 = vmatprep.mubr.f32.mxu0 0.0
    %2177 = vmatmul.mubr.f32.gmra.mxu0 %v1891
    %v2178 = vpop.f32.mrf.mxu0
    %v2179 = vadd.f32 %v1602, %v2178
    %v2180 = vpop.f32.mrf.mxu0
    %2181 = vmatprep.mubr.f32.mxu0 0.0
    %2182 = vmatmul.mubr.f32.gmra.mxu0 %v1894
    %v2183 = vpop.f32.mrf.mxu0
    %v2184 = vadd.f32 %v1607, %v2183
    %v2185 = vpop.f32.mrf.mxu0
    %2186 = vmatprep.mubr.f32.mxu0 0.0
    %2187 = vmatmul.mubr.f32.gmra.mxu0 %v1897
    %v2188 = vpop.f32.mrf.mxu0
    %v2189 = vadd.f32 %v1612, %v2188
    %v2190 = vpop.f32.mrf.mxu0
    %2191 = vmatprep.mubr.f32.mxu0 0.0
    %2192 = vmatmul.mubr.f32.gmra.mxu0 %v1900
    %v2193 = vpop.f32.mrf.mxu0
    %v2194 = vadd.f32 %v1617, %v2193
    %v2195 = vpop.f32.mrf.mxu0
    %2196 = vmatprep.mubr.f32.mxu0 0.0
    %2197 = vmatmul.mubr.f32.gmra.mxu0 %v1903
    %v2198 = vpop.f32.mrf.mxu0
    %v2199 = vadd.f32 %v1622, %v2198
    %v2200 = vpop.f32.mrf.mxu0
    %2201 = vmatprep.mubr.f32.mxu0 0.0
    %2202 = vmatmul.mubr.f32.gmra.mxu0 %v1906
    %v2203 = vpop.f32.mrf.mxu0
    %v2204 = vadd.f32 %v1627, %v2203
    %v2205 = vpop.f32.mrf.mxu0
    %2206 = vmatprep.mubr.f32.mxu0 0.0
    %2207 = vmatmul.mubr.f32.gmra.mxu0 %v1909
    %v2208 = vpop.f32.mrf.mxu0
    %v2209 = vadd.f32 %v1632, %v2208
    %v2210 = vpop.f32.mrf.mxu0
    %2211 = vmatprep.mubr.f32.mxu0 0.0
    %2212 = vmatmul.mubr.f32.gmra.mxu0 %v1912
    %v2213 = vpop.f32.mrf.mxu0
    %v2214 = vadd.f32 %v1637, %v2213
    %v2215 = vpop.f32.mrf.mxu0
    %2216 = vmatprep.mubr.f32.mxu0 0.0
    %2217 = vmatmul.mubr.f32.gmra.mxu0 %v1915
    %v2218 = vpop.f32.mrf.mxu0
    %v2219 = vadd.f32 %v1642, %v2218
    %v2220 = vpop.f32.mrf.mxu0
    %2221 = vmatprep.mubr.f32.mxu0 0.0
    %2222 = vmatmul.mubr.f32.gmra.mxu0 %v1918
    %v2223 = vpop.f32.mrf.mxu0
    %v2224 = vadd.f32 %v1647, %v2223
    %v2225 = vpop.f32.mrf.mxu0
    %2226 = vmatprep.mubr.f32.mxu0 0.0
    %2227 = vmatmul.mubr.f32.gmra.mxu0 %v1921
    %v2228 = vpop.f32.mrf.mxu0
    %v2229 = vadd.f32 %v1652, %v2228
    %v2230 = vpop.f32.mrf.mxu0
    %2231 = vmatprep.mubr.f32.mxu0 0.0
    %2232 = vmatmul.mubr.f32.gmra.mxu0 %v1924
    %v2233 = vpop.f32.mrf.mxu0
    %v2234 = vadd.f32 %v1657, %v2233
    %v2235 = vpop.f32.mrf.mxu0
    %2236 = vmatprep.mubr.f32.mxu0 0.0
    %2237 = vmatmul.mubr.f32.gmra.mxu0 %v1927
    %v2238 = vpop.f32.mrf.mxu0
    %v2239 = vadd.f32 %v1662, %v2238
    %v2240 = vpop.f32.mrf.mxu0
    %2241 = vmatprep.mubr.f32.mxu0 0.0
    %2242 = vmatmul.mubr.f32.gmra.mxu0 %v1930
    %v2243 = vpop.f32.mrf.mxu0
    %v2244 = vadd.f32 %v1667, %v2243
    %v2245 = vpop.f32.mrf.mxu0
    %2246 = vmatprep.mubr.f32.mxu0 0.0
    %2247 = vmatmul.mubr.f32.gmra.mxu0 %v1933
    %v2248 = vpop.f32.mrf.mxu0
    %v2249 = vadd.f32 %v1672, %v2248
    %v2250 = vpop.f32.mrf.mxu0
    %2251 = vmatprep.mubr.f32.mxu0 0.0
    %2252 = vmatmul.mubr.f32.gmra.mxu0 %v1936
    %v2253 = vpop.f32.mrf.mxu0
    %v2254 = vadd.f32 %v1677, %v2253
    %v2255 = vpop.f32.mrf.mxu0
    %2256 = vmatprep.mubr.f32.mxu0 0.0
    %2257 = vmatmul.mubr.f32.gmra.mxu0 %v1939
    %v2258 = vpop.f32.mrf.mxu0
    %v2259 = vadd.f32 %v1682, %v2258
    %v2260 = vpop.f32.mrf.mxu0
    %2261 = vmatprep.mubr.f32.mxu0 0.0
    %2262 = vmatmul.mubr.f32.gmra.mxu0 %v1942
    %v2263 = vpop.f32.mrf.mxu0
    %v2264 = vadd.f32 %v1687, %v2263
    %v2265 = vpop.f32.mrf.mxu0
    %2266 = vmatprep.mubr.f32.mxu0 0.0
    %2267 = vmatmul.mubr.f32.gmra.mxu0 %v1945
    %v2268 = vpop.f32.mrf.mxu0
    %v2269 = vadd.f32 %v1692, %v2268
    %v2270 = vpop.f32.mrf.mxu0
    %2271 = vmatprep.mubr.f32.mxu0 0.0
    %2272 = vmatmul.mubr.f32.gmra.mxu0 %v1948
    %v2273 = vpop.f32.mrf.mxu0
    %v2274 = vadd.f32 %v1697, %v2273
    %v2275 = vpop.f32.mrf.mxu0
    %2276 = vmatprep.mubr.f32.mxu0 0.0
    %2277 = vmatmul.mubr.f32.gmra.mxu0 %v1951
    %v2278 = vpop.f32.mrf.mxu0
    %v2279 = vadd.f32 %v1702, %v2278
    %v2280 = vpop.f32.mrf.mxu0
    %2281 = vmatprep.mubr.f32.mxu0 0.0
    %2282 = vmatmul.mubr.f32.gmra.mxu0 %v1954
    %v2283 = vpop.f32.mrf.mxu0
    %v2284 = vadd.f32 %v1707, %v2283
    %v2285 = vpop.f32.mrf.mxu0
    %2286 = vmatprep.mubr.f32.mxu0 0.0
    %2287 = vmatmul.mubr.f32.gmra.mxu0 %v1957
    %v2288 = vpop.f32.mrf.mxu0
    %v2289 = vadd.f32 %v1712, %v2288
    %v2290 = vpop.f32.mrf.mxu0
    %2291 = vmatprep.mubr.f32.mxu0 0.0
    %2292 = vmatmul.mubr.f32.gmra.mxu0 %v1960
    %v2293 = vpop.f32.mrf.mxu0
    %v2294 = vadd.f32 %v1717, %v2293
    %v2295 = vpop.f32.mrf.mxu0
    %2296 = vmatprep.mubr.f32.mxu0 0.0
    %2297 = vmatmul.mubr.f32.gmra.mxu0 %v1963
    %v2298 = vpop.f32.mrf.mxu0
    %v2299 = vadd.f32 %v1722, %v2298
    %v2300 = vpop.f32.mrf.mxu0
    %2301 = vmatprep.mubr.f32.mxu0 0.0
    %2302 = vmatmul.mubr.f32.gmra.mxu0 %v1966
    %v2303 = vpop.f32.mrf.mxu0
    %v2304 = vadd.f32 %v1727, %v2303
    %v2305 = vpop.f32.mrf.mxu0
    %2306 = vmatprep.mubr.f32.mxu0 0.0
    %2307 = vmatmul.mubr.f32.gmra.mxu0 %v1969
    %v2308 = vpop.f32.mrf.mxu0
    %v2309 = vadd.f32 %v1732, %v2308
    %v2310 = vpop.f32.mrf.mxu0
    %2311 = vmatprep.mubr.f32.mxu0 0.0
    %2312 = vmatmul.mubr.f32.gmra.mxu0 %v1972
    %v2313 = vpop.f32.mrf.mxu0
    %v2314 = vadd.f32 %v1737, %v2313
    %v2315 = vpop.f32.mrf.mxu0
    %2316 = vmatprep.mubr.f32.mxu0 0.0
    %2317 = vmatmul.mubr.f32.gmra.mxu0 %v1975
    %v2318 = vpop.f32.mrf.mxu0
    %v2319 = vadd.f32 %v1742, %v2318
    %v2320 = vpop.f32.mrf.mxu0
    %2321 = vmatprep.mubr.f32.mxu0 0.0
    %2322 = vmatmul.mubr.f32.gmra.mxu0 %v1978
    %v2323 = vpop.f32.mrf.mxu0
    %v2324 = vadd.f32 %v1747, %v2323
    %v2325 = vpop.f32.mrf.mxu0
    %2326 = vmatprep.mubr.f32.mxu0 0.0
    %2327 = vmatmul.mubr.f32.gmra.mxu0 %v1981
    %v2328 = vpop.f32.mrf.mxu0
    %v2329 = vadd.f32 %v1752, %v2328
    %v2330 = vpop.f32.mrf.mxu0
    %2331 = vmatprep.mubr.f32.mxu0 0.0
    %2332 = vmatmul.mubr.f32.gmra.mxu0 %v1984
    %v2333 = vpop.f32.mrf.mxu0
    %v2334 = vadd.f32 %v1757, %v2333
    %v2335 = vpop.f32.mrf.mxu0
    %2336 = vmatprep.mubr.f32.mxu0 0.0
    %2337 = vmatmul.mubr.f32.gmra.mxu0 %v1987
    %v2338 = vpop.f32.mrf.mxu0
    %v2339 = vadd.f32 %v1762, %v2338
    %v2340 = vpop.f32.mrf.mxu0
    %2341 = vmatprep.mubr.f32.mxu0 0.0
    %2342 = vmatmul.mubr.f32.gmra.mxu0 %v1990
    %v2343 = vpop.f32.mrf.mxu0
    %v2344 = vadd.f32 %v1767, %v2343
    %v2345 = vpop.f32.mrf.mxu0
    %2346 = vmatprep.mubr.f32.mxu0 0.0
    %2347 = vmatmul.mubr.f32.gmra.mxu0 %v1993
    %v2348 = vpop.f32.mrf.mxu0
    %v2349 = vadd.f32 %v1772, %v2348
    %v2350 = vpop.f32.mrf.mxu0
    %2351 = vmatprep.mubr.f32.mxu0 0.0
    %2352 = vmatmul.mubr.f32.gmra.mxu0 %v1996
    %v2353 = vpop.f32.mrf.mxu0
    %v2354 = vadd.f32 %v1777, %v2353
    %v2355 = vpop.f32.mrf.mxu0
    %2356 = vmatprep.mubr.f32.mxu0 0.0
    %2357 = vmatmul.mubr.f32.gmra.mxu0 %v1999
    %v2358 = vpop.f32.mrf.mxu0
    %v2359 = vadd.f32 %v1782, %v2358
    %v2360 = vpop.f32.mrf.mxu0
    %2361 = vmatprep.mubr.f32.mxu0 0.0
    %2362 = vmatmul.mubr.f32.gmra.mxu0 %v2002
    %v2363 = vpop.f32.mrf.mxu0
    %v2364 = vadd.f32 %v1787, %v2363
    %v2365 = vpop.f32.mrf.mxu0
    %2366 = vmatprep.mubr.f32.mxu0 0.0
    %2367 = vmatmul.mubr.f32.gmra.mxu0 %v2005
    %v2368 = vpop.f32.mrf.mxu0
    %v2369 = vadd.f32 %v1792, %v2368
    %v2370 = vpop.f32.mrf.mxu0
    %2371 = vmatprep.mubr.f32.mxu0 0.0
    %2372 = vmatmul.mubr.f32.gmra.mxu0 %v2008
    %v2373 = vpop.f32.mrf.mxu0
    %v2374 = vadd.f32 %v1797, %v2373
    %v2375 = vpop.f32.mrf.mxu0
    %2376 = vmatprep.mubr.f32.mxu0 0.0
    %2377 = vmatmul.mubr.f32.gmra.mxu0 %v2011
    %v2378 = vpop.f32.mrf.mxu0
    %v2379 = vadd.f32 %v1802, %v2378
    %v2380 = vpop.f32.mrf.mxu0
    %2381 = vmatprep.mubr.f32.mxu0 0.0
    %2382 = vmatmul.mubr.f32.gmra.mxu0 %v2014
    %v2383 = vpop.f32.mrf.mxu0
    %v2384 = vadd.f32 %v1807, %v2383
    %v2385 = vpop.f32.mrf.mxu0
    %2386 = vmatprep.mubr.f32.mxu0 0.0
    %2387 = vmatmul.mubr.f32.gmra.mxu0 %v2017
    %v2388 = vpop.f32.mrf.mxu0
    %v2389 = vadd.f32 %v1812, %v2388
    %v2390 = vpop.f32.mrf.mxu0
    %2391 = vmatprep.mubr.f32.mxu0 0.0
    %2392 = vmatmul.mubr.f32.gmra.mxu0 %v2020
    %v2393 = vpop.f32.mrf.mxu0
    %v2394 = vadd.f32 %v1817, %v2393
    %v2395 = vpop.f32.mrf.mxu0
    %2396 = vmatprep.mubr.f32.mxu0 0.0
    %2397 = vmatmul.mubr.f32.gmra.mxu0 %v2023
    %v2398 = vpop.f32.mrf.mxu0
    %v2399 = vadd.f32 %v1822, %v2398
    %v2400 = vpop.f32.mrf.mxu0
    %2401 = vmatprep.mubr.f32.mxu0 0.0
    %2402 = vmatmul.mubr.f32.gmra.mxu0 %v2026
    %v2403 = vpop.f32.mrf.mxu0
    %v2404 = vadd.f32 %v1827, %v2403
    %v2405 = vpop.f32.mrf.mxu0
    %2406 = vmatprep.mubr.f32.mxu0 0.0
    %2407 = vmatmul.mubr.f32.gmra.mxu0 %v2029
    %v2408 = vpop.f32.mrf.mxu0
    %v2409 = vadd.f32 %v1832, %v2408
    %v2410 = vpop.f32.mrf.mxu0
    %2411 = vmatprep.mubr.f32.mxu0 0.0
    %2412 = vmatmul.mubr.f32.gmra.mxu0 %v2032
    %v2413 = vpop.f32.mrf.mxu0
    %v2414 = vadd.f32 %v1837, %v2413
    %v2415 = vpop.f32.mrf.mxu0
    %2416 = vmatprep.mubr.f32.mxu0 0.0
    %2417 = vmatmul.mubr.f32.gmra.mxu0 %v2035
    %v2418 = vpop.f32.mrf.mxu0
    %v2419 = vadd.f32 %v1842, %v2418
    %v2420 = vpop.f32.mrf.mxu0
    %2421 = vdwg.mxu0
    %v2422 = vld [vmem:[%s5] sm:$0x1]
    %v2424 = vlaneseq
    %v2425 = vshrl.u32 %v2424, 7
    %v2426 = vsub.s32 0, %v2425
    %v2427 = vrot.slane %v2422, %v2426
    %v2429 = vadd.f32 %v2104, %v2427
    %v2430 = vadd.f32 %v2109, %v2427
    %v2431 = vadd.f32 %v2114, %v2427
    %v2432 = vadd.f32 %v2119, %v2427
    %v2433 = vadd.f32 %v2124, %v2427
    %v2434 = vadd.f32 %v2129, %v2427
    %v2435 = vadd.f32 %v2134, %v2427
    %v2436 = vadd.f32 %v2139, %v2427
    %v2437 = vadd.f32 %v2144, %v2427
    %v2438 = vadd.f32 %v2149, %v2427
    %v2439 = vadd.f32 %v2154, %v2427
    %v2440 = vadd.f32 %v2159, %v2427
    %v2441 = vadd.f32 %v2164, %v2427
    %v2442 = vadd.f32 %v2169, %v2427
    %v2443 = vadd.f32 %v2174, %v2427
    %v2444 = vadd.f32 %v2179, %v2427
    %v2445 = vadd.f32 %v2184, %v2427
    %v2446 = vadd.f32 %v2189, %v2427
    %v2447 = vadd.f32 %v2194, %v2427
    %v2448 = vadd.f32 %v2199, %v2427
    %v2449 = vadd.f32 %v2204, %v2427
    %v2450 = vadd.f32 %v2209, %v2427
    %v2451 = vadd.f32 %v2214, %v2427
    %v2452 = vadd.f32 %v2219, %v2427
    %v2453 = vadd.f32 %v2224, %v2427
    %v2454 = vadd.f32 %v2229, %v2427
    %v2455 = vadd.f32 %v2234, %v2427
    %v2456 = vadd.f32 %v2239, %v2427
    %v2457 = vadd.f32 %v2244, %v2427
    %v2458 = vadd.f32 %v2249, %v2427
    %v2459 = vadd.f32 %v2254, %v2427
    %v2460 = vadd.f32 %v2259, %v2427
    %v2461 = vadd.f32 %v2264, %v2427
    %v2462 = vadd.f32 %v2269, %v2427
    %v2463 = vadd.f32 %v2274, %v2427
    %v2464 = vadd.f32 %v2279, %v2427
    %v2465 = vadd.f32 %v2284, %v2427
    %v2466 = vadd.f32 %v2289, %v2427
    %v2467 = vadd.f32 %v2294, %v2427
    %v2468 = vadd.f32 %v2299, %v2427
    %v2469 = vadd.f32 %v2304, %v2427
    %v2470 = vadd.f32 %v2309, %v2427
    %v2471 = vadd.f32 %v2314, %v2427
    %v2472 = vadd.f32 %v2319, %v2427
    %v2473 = vadd.f32 %v2324, %v2427
    %v2474 = vadd.f32 %v2329, %v2427
    %v2475 = vadd.f32 %v2334, %v2427
    %v2476 = vadd.f32 %v2339, %v2427
    %v2477 = vadd.f32 %v2344, %v2427
    %v2478 = vadd.f32 %v2349, %v2427
    %v2479 = vadd.f32 %v2354, %v2427
    %v2480 = vadd.f32 %v2359, %v2427
    %v2481 = vadd.f32 %v2364, %v2427
    %v2482 = vadd.f32 %v2369, %v2427
    %v2483 = vadd.f32 %v2374, %v2427
    %v2484 = vadd.f32 %v2379, %v2427
    %v2485 = vadd.f32 %v2384, %v2427
    %v2486 = vadd.f32 %v2389, %v2427
    %v2487 = vadd.f32 %v2394, %v2427
    %v2488 = vadd.f32 %v2399, %v2427
    %v2489 = vadd.f32 %v2404, %v2427
    %v2490 = vadd.f32 %v2409, %v2427
    %v2491 = vadd.f32 %v2414, %v2427
    %v2492 = vadd.f32 %v2419, %v2427
    %v2493 = vmax.f32 %v2429, 0.0
    %v2494 = vmax.f32 %v2430, 0.0
    %v2495 = vmax.f32 %v2431, 0.0
    %v2496 = vmax.f32 %v2432, 0.0
    %v2497 = vmax.f32 %v2433, 0.0
    %v2498 = vmax.f32 %v2434, 0.0
    %v2499 = vmax.f32 %v2435, 0.0
    %v2500 = vmax.f32 %v2436, 0.0
    %v2501 = vmax.f32 %v2437, 0.0
    %v2502 = vmax.f32 %v2438, 0.0
    %v2503 = vmax.f32 %v2439, 0.0
    %v2504 = vmax.f32 %v2440, 0.0
    %v2505 = vmax.f32 %v2441, 0.0
    %v2506 = vmax.f32 %v2442, 0.0
    %v2507 = vmax.f32 %v2443, 0.0
    %v2508 = vmax.f32 %v2444, 0.0
    %v2509 = vmax.f32 %v2445, 0.0
    %v2510 = vmax.f32 %v2446, 0.0
    %v2511 = vmax.f32 %v2447, 0.0
    %v2512 = vmax.f32 %v2448, 0.0
    %v2513 = vmax.f32 %v2449, 0.0
    %v2514 = vmax.f32 %v2450, 0.0
    %v2515 = vmax.f32 %v2451, 0.0
    %v2516 = vmax.f32 %v2452, 0.0
    %v2517 = vmax.f32 %v2453, 0.0
    %v2518 = vmax.f32 %v2454, 0.0
    %v2519 = vmax.f32 %v2455, 0.0
    %v2520 = vmax.f32 %v2456, 0.0
    %v2521 = vmax.f32 %v2457, 0.0
    %v2522 = vmax.f32 %v2458, 0.0
    %v2523 = vmax.f32 %v2459, 0.0
    %v2524 = vmax.f32 %v2460, 0.0
    %v2525 = vmax.f32 %v2461, 0.0
    %v2526 = vmax.f32 %v2462, 0.0
    %v2527 = vmax.f32 %v2463, 0.0
    %v2528 = vmax.f32 %v2464, 0.0
    %v2529 = vmax.f32 %v2465, 0.0
    %v2530 = vmax.f32 %v2466, 0.0
    %v2531 = vmax.f32 %v2467, 0.0
    %v2532 = vmax.f32 %v2468, 0.0
    %v2533 = vmax.f32 %v2469, 0.0
    %v2534 = vmax.f32 %v2470, 0.0
    %v2535 = vmax.f32 %v2471, 0.0
    %v2536 = vmax.f32 %v2472, 0.0
    %v2537 = vmax.f32 %v2473, 0.0
    %v2538 = vmax.f32 %v2474, 0.0
    %v2539 = vmax.f32 %v2475, 0.0
    %v2540 = vmax.f32 %v2476, 0.0
    %v2541 = vmax.f32 %v2477, 0.0
    %v2542 = vmax.f32 %v2478, 0.0
    %v2543 = vmax.f32 %v2479, 0.0
    %v2544 = vmax.f32 %v2480, 0.0
    %v2545 = vmax.f32 %v2481, 0.0
    %v2546 = vmax.f32 %v2482, 0.0
    %v2547 = vmax.f32 %v2483, 0.0
    %v2548 = vmax.f32 %v2484, 0.0
    %v2549 = vmax.f32 %v2485, 0.0
    %v2550 = vmax.f32 %v2486, 0.0
    %v2551 = vmax.f32 %v2487, 0.0
    %v2552 = vmax.f32 %v2488, 0.0
    %v2553 = vmax.f32 %v2489, 0.0
    %v2554 = vmax.f32 %v2490, 0.0
    %v2555 = vmax.f32 %v2491, 0.0
    %v2556 = vmax.f32 %v2492, 0.0
    %vm2557 = vcmask 261120
    %2558 = vst.msk [vmem:[#allocation2] sm:$0xff] %vm2557, %v2493
    %2559 = vst.msk [vmem:[#allocation2 + $0x8] sm:$0xff] %vm2557, %v2494
    %2560 = vst.msk [vmem:[#allocation2 + $0x10] sm:$0xff] %vm2557, %v2495
    %2561 = vst.msk [vmem:[#allocation2 + $0x18] sm:$0xff] %vm2557, %v2496
    %2562 = vst.msk [vmem:[#allocation2 + $0x20] sm:$0xff] %vm2557, %v2497
    %2563 = vst.msk [vmem:[#allocation2 + $0x28] sm:$0xff] %vm2557, %v2498
    %2564 = vst.msk [vmem:[#allocation2 + $0x30] sm:$0xff] %vm2557, %v2499
    %2565 = vst.msk [vmem:[#allocation2 + $0x38] sm:$0xff] %vm2557, %v2500
    %2566 = vst.msk [vmem:[#allocation2 + $0x40] sm:$0xff] %vm2557, %v2501
    %2567 = vst.msk [vmem:[#allocation2 + $0x48] sm:$0xff] %vm2557, %v2502
    %2568 = vst.msk [vmem:[#allocation2 + $0x50] sm:$0xff] %vm2557, %v2503
    %2569 = vst.msk [vmem:[#allocation2 + $0x58] sm:$0xff] %vm2557, %v2504
    %2570 = vst.msk [vmem:[#allocation2 + $0x60] sm:$0xff] %vm2557, %v2505
    %2571 = vst.msk [vmem:[#allocation2 + $0x68] sm:$0xff] %vm2557, %v2506
    %2572 = vst.msk [vmem:[#allocation2 + $0x70] sm:$0xff] %vm2557, %v2507
    %2573 = vst.msk [vmem:[#allocation2 + $0x78] sm:$0xff] %vm2557, %v2508
    %2574 = vst.msk [vmem:[#allocation2 + $0x80] sm:$0xff] %vm2557, %v2509
    %2575 = vst.msk [vmem:[#allocation2 + $0x88] sm:$0xff] %vm2557, %v2510
    %2576 = vst.msk [vmem:[#allocation2 + $0x90] sm:$0xff] %vm2557, %v2511
    %2577 = vst.msk [vmem:[#allocation2 + $0x98] sm:$0xff] %vm2557, %v2512
    %2578 = vst.msk [vmem:[#allocation2 + $0xa0] sm:$0xff] %vm2557, %v2513
    %2579 = vst.msk [vmem:[#allocation2 + $0xa8] sm:$0xff] %vm2557, %v2514
    %2580 = vst.msk [vmem:[#allocation2 + $0xb0] sm:$0xff] %vm2557, %v2515
    %2581 = vst.msk [vmem:[#allocation2 + $0xb8] sm:$0xff] %vm2557, %v2516
    %2582 = vst.msk [vmem:[#allocation2 + $0xc0] sm:$0xff] %vm2557, %v2517
    %2583 = vst.msk [vmem:[#allocation2 + $0xc8] sm:$0xff] %vm2557, %v2518
    %2584 = vst.msk [vmem:[#allocation2 + $0xd0] sm:$0xff] %vm2557, %v2519
    %2585 = vst.msk [vmem:[#allocation2 + $0xd8] sm:$0xff] %vm2557, %v2520
    %2586 = vst.msk [vmem:[#allocation2 + $0xe0] sm:$0xff] %vm2557, %v2521
    %2587 = vst.msk [vmem:[#allocation2 + $0xe8] sm:$0xff] %vm2557, %v2522
    %2588 = vst.msk [vmem:[#allocation2 + $0xf0] sm:$0xff] %vm2557, %v2523
    %2589 = vst.msk [vmem:[#allocation2 + $0xf8] sm:$0xff] %vm2557, %v2524
    %2590 = vst.msk [vmem:[#allocation2 + $0x100] sm:$0xff] %vm2557, %v2525
    %2591 = vst.msk [vmem:[#allocation2 + $0x108] sm:$0xff] %vm2557, %v2526
    %2592 = vst.msk [vmem:[#allocation2 + $0x110] sm:$0xff] %vm2557, %v2527
    %2593 = vst.msk [vmem:[#allocation2 + $0x118] sm:$0xff] %vm2557, %v2528
    %2594 = vst.msk [vmem:[#allocation2 + $0x120] sm:$0xff] %vm2557, %v2529
    %2595 = vst.msk [vmem:[#allocation2 + $0x128] sm:$0xff] %vm2557, %v2530
    %2596 = vst.msk [vmem:[#allocation2 + $0x130] sm:$0xff] %vm2557, %v2531
    %2597 = vst.msk [vmem:[#allocation2 + $0x138] sm:$0xff] %vm2557, %v2532
    %2598 = vst.msk [vmem:[#allocation2 + $0x140] sm:$0xff] %vm2557, %v2533
    %2599 = vst.msk [vmem:[#allocation2 + $0x148] sm:$0xff] %vm2557, %v2534
    %2600 = vst.msk [vmem:[#allocation2 + $0x150] sm:$0xff] %vm2557, %v2535
    %2601 = vst.msk [vmem:[#allocation2 + $0x158] sm:$0xff] %vm2557, %v2536
    %2602 = vst.msk [vmem:[#allocation2 + $0x160] sm:$0xff] %vm2557, %v2537
    %2603 = vst.msk [vmem:[#allocation2 + $0x168] sm:$0xff] %vm2557, %v2538
    %2604 = vst.msk [vmem:[#allocation2 + $0x170] sm:$0xff] %vm2557, %v2539
    %2605 = vst.msk [vmem:[#allocation2 + $0x178] sm:$0xff] %vm2557, %v2540
    %2606 = vst.msk [vmem:[#allocation2 + $0x180] sm:$0xff] %vm2557, %v2541
    %2607 = vst.msk [vmem:[#allocation2 + $0x188] sm:$0xff] %vm2557, %v2542
    %2608 = vst.msk [vmem:[#allocation2 + $0x190] sm:$0xff] %vm2557, %v2543
    %2609 = vst.msk [vmem:[#allocation2 + $0x198] sm:$0xff] %vm2557, %v2544
    %2610 = vst.msk [vmem:[#allocation2 + $0x1a0] sm:$0xff] %vm2557, %v2545
    %2611 = vst.msk [vmem:[#allocation2 + $0x1a8] sm:$0xff] %vm2557, %v2546
    %2612 = vst.msk [vmem:[#allocation2 + $0x1b0] sm:$0xff] %vm2557, %v2547
    %2613 = vst.msk [vmem:[#allocation2 + $0x1b8] sm:$0xff] %vm2557, %v2548
    %2614 = vst.msk [vmem:[#allocation2 + $0x1c0] sm:$0xff] %vm2557, %v2549
    %2615 = vst.msk [vmem:[#allocation2 + $0x1c8] sm:$0xff] %vm2557, %v2550
    %2616 = vst.msk [vmem:[#allocation2 + $0x1d0] sm:$0xff] %vm2557, %v2551
    %2617 = vst.msk [vmem:[#allocation2 + $0x1d8] sm:$0xff] %vm2557, %v2552
    %2618 = vst.msk [vmem:[#allocation2 + $0x1e0] sm:$0xff] %vm2557, %v2553
    %2619 = vst.msk [vmem:[#allocation2 + $0x1e8] sm:$0xff] %vm2557, %v2554
    %2620 = vst.msk [vmem:[#allocation2 + $0x1f0] sm:$0xff] %vm2557, %v2555
    %2621 = vst.msk [vmem:[#allocation2 + $0x1f8] sm:$0xff] %vm2557, %v2556
    // Predicated region
    $region26: #{bottleneck_csp_forward.5} parent=1 // pred_check
      _
    $region27: #{bottleneck_csp_forward.5} parent=1 // pred_check_branch
      %2623 = sbr.rel (0) target = $region29
    $region28: #{bottleneck_csp_forward.5} parent=1 // pred_region
      %s2625 = ssub.s32 8192, 8192
      %2626 = vsyncadd [#allocation3], %s2625
      %s2627 = sshll.u32 [#allocation2], 4
      %s2628 = int_to_ptr.vmem [resolvable:$true] %s2627
      %2633 = dma.vmem_to_hbm [thread:$0]  %s2628, 8192, %s6, [#allocation3], 128, 128, 8
    $region29: #{bottleneck_csp_forward.5} parent=1 // pred_fallthru
      _
    // Predicated region
    $region30: #{bottleneck_csp_forward.5} parent=1 // pred_check
      _
    $region31: #{bottleneck_csp_forward.5} parent=1 // pred_check_branch
      %2635 = sbr.rel (0) target = $region33
    $region32: #{bottleneck_csp_forward.5} parent=1 // pred_region
      %2636 = dma.done [#allocation3], 8192
    $region33: #{bottleneck_csp_forward.5} parent=1 // pred_fallthru
      _
    %2637 = vsyncpa [#allocation3], 1

// kernel: bottleneck_csp_forward.4
$region0: #{bottleneck_csp_forward.4}
  #allocation0 [shape = 'u32[]', space=smem, size = 0x4, offset = 0x4, fixed_abs, tag = 'smem constant byte address 0x4 - core index']
  #allocation1 [shape = 'u32[144,128]{1,0:T(1,128)}', space=vmem, size = 0x12000, scoped, tag = 'internal scratch']
  #allocation2 [shape = 'f32[304,16]{1,0:T(8,128)}', space=vmem, size = 0x26000, scoped, tag = 'scratch operand']
  %s0 = inlined_call_operand.vmem [shape: f32[512,16], index: 0, kind: input, shape index: {}]
  %s1 = inlined_call_operand.vmem [shape: f32[16,16], index: 1, kind: input, shape index: {}]
  %s2 = inlined_call_operand.vmem [shape: f32[1,16], index: 2, kind: input, shape index: {}]
  %s3 = inlined_call_operand.vmem [shape: f32[144,16], index: 3, kind: input, shape index: {}]
  %s4 = inlined_call_operand.vmem [shape: f32[1,16], index: 4, kind: input, shape index: {}]
  %s5 = inlined_call_operand.vmem [shape: f32[256,1], index: 5, kind: input, shape index: {}]
  %s6 = inlined_call_operand.vmem [shape: f32[256,1], index: 6, kind: input, shape index: {}]
  %s7 = inlined_call_operand.vmem [shape: f32[512,16], index: 7, kind: output, shape index: {}]
  %s8 = sld [smem:[#allocation0]]
  $region61: #{bottleneck_csp_forward.4} parent=0
    _
  %s10 = ssub.s32 1, %s8
  %s11 = scalar_select 0, %s10, %s8
  loop: start=0, step=1, limit=4
  $region2: #{bottleneck_csp_forward.4} parent=0 // loop_pre_header
    _
  $region3: #{bottleneck_csp_forward.4} parent=0 // loop_header
    %s13 = sphi 0, %s17
    %p14 = scmp.ge.s32.totalorder %s13, 4
    %s23 = sphi 0, %s25
    %s26 = sphi 0, %s23
    %s27 = sphi 0, %s26
    %s43 = sphi 0, %s27
    %s47 = sphi 0, %s47
    %s49 = sphi 0, %s47
    %s50 = sphi 0, %s49
    %s64 = sphi 0, %s50
    %s68 = sphi 0, %s68
    %s70 = sphi 0, %s68
    %s71 = sphi 0, %s70
    %s85 = sphi 0, %s71
    %s89 = sphi 0, %s89
    %s91 = sphi 0, %s89
    %s92 = sphi 0, %s91
    %s106 = sphi 0, %s92
    %s110 = sphi 0, %s110
    %s112 = sphi 0, %s110
    %s113 = sphi 0, %s112
    %s127 = sphi 0, %s113
    %s131 = sphi 0, %s131
    %s133 = sphi 0, %s131
    %s134 = sphi 0, %s133
    %s148 = sphi 0, %s134
    %s152 = sphi 0, %s152
    %s154 = sphi 0, %s152
    %s155 = sphi 0, %s154
    %s169 = sphi 0, %s155
    %s175 = sphi 0, %s177
    %s178 = sphi 0, %s175
    %s179 = sphi 0, %s178
    %s195 = sphi 0, %s179
  $region4: #{bottleneck_csp_forward.4} parent=0 // loop_header_branch
    %16 = sbr.rel (%p14) target = $region8
  $region5: #{bottleneck_csp_forward.4} parent=0 // loop_body
    %s18 = ssub.s32 %s13, 1
    %s19 = ssub.s32 %s13, 2
    %s20 = sadd.s32 %s13, 1
    %s21 = ssub.s32 %s13, %s20
    %p22 = scmp.eq.s32.totalorder %s21, 0
    %s24 = sadd.s32 %s23, 1
    %s25 = scalar_select %p22, %s23, %s24
    %p28 = pneg %p22
    %p29 = scmp.eq.s32.totalorder %s13, 1
    %p30 = por %p28, %p29
    %p31 = scmp.ne.s32.totalorder %s23, %s26
    %p32 = scmp.eq.s32.totalorder %s13, 0
    %p33 = por %p31, %p32
    %p34 = scmp.ne.s32.totalorder %s23, %s26
    %p35 = scmp.eq.s32.totalorder %s18, 1
    %p36 = por %p34, %p35
    %p37 = scmp.ne.s32.totalorder %s26, %s27
    %p38 = scmp.eq.s32.totalorder %s18, 0
    %p39 = por %p37, %p38
    %p40 = scmp.ne.s32.totalorder %s26, %s27
    %p41 = scmp.eq.s32.totalorder %s19, 1
    %p42 = por %p40, %p41
    %p44 = scmp.ne.s32.totalorder %s27, %s43
    %p45 = scmp.eq.s32.totalorder %s19, 0
    %p46 = por %p44, %p45
    %s48 = sadd.s32 %s47, 1
    %p51 = scmp.eq.s32.totalorder %s13, 1
    %p52 = scmp.ne.s32.totalorder %s47, %s49
    %p53 = scmp.eq.s32.totalorder %s13, 0
    %p54 = por %p52, %p53
    %p55 = scmp.ne.s32.totalorder %s47, %s49
    %p56 = scmp.eq.s32.totalorder %s18, 1
    %p57 = por %p55, %p56
    %p58 = scmp.ne.s32.totalorder %s49, %s50
    %p59 = scmp.eq.s32.totalorder %s18, 0
    %p60 = por %p58, %p59
    %p61 = scmp.ne.s32.totalorder %s49, %s50
    %p62 = scmp.eq.s32.totalorder %s19, 1
    %p63 = por %p61, %p62
    %p65 = scmp.ne.s32.totalorder %s50, %s64
    %p66 = scmp.eq.s32.totalorder %s19, 0
    %p67 = por %p65, %p66
    %s69 = sadd.s32 %s68, 1
    %p72 = scmp.eq.s32.totalorder %s13, 1
    %p73 = scmp.ne.s32.totalorder %s68, %s70
    %p74 = scmp.eq.s32.totalorder %s13, 0
    %p75 = por %p73, %p74
    %p76 = scmp.ne.s32.totalorder %s68, %s70
    %p77 = scmp.eq.s32.totalorder %s18, 1
    %p78 = por %p76, %p77
    %p79 = scmp.ne.s32.totalorder %s70, %s71
    %p80 = scmp.eq.s32.totalorder %s18, 0
    %p81 = por %p79, %p80
    %p82 = scmp.ne.s32.totalorder %s70, %s71
    %p83 = scmp.eq.s32.totalorder %s19, 1
    %p84 = por %p82, %p83
    %p86 = scmp.ne.s32.totalorder %s71, %s85
    %p87 = scmp.eq.s32.totalorder %s19, 0
    %p88 = por %p86, %p87
    %s90 = sadd.s32 %s89, 1
    %p93 = scmp.eq.s32.totalorder %s13, 1
    %p94 = scmp.ne.s32.totalorder %s89, %s91
    %p95 = scmp.eq.s32.totalorder %s13, 0
    %p96 = por %p94, %p95
    %p97 = scmp.ne.s32.totalorder %s89, %s91
    %p98 = scmp.eq.s32.totalorder %s18, 1
    %p99 = por %p97, %p98
    %p100 = scmp.ne.s32.totalorder %s91, %s92
    %p101 = scmp.eq.s32.totalorder %s18, 0
    %p102 = por %p100, %p101
    %p103 = scmp.ne.s32.totalorder %s91, %s92
    %p104 = scmp.eq.s32.totalorder %s19, 1
    %p105 = por %p103, %p104
    %p107 = scmp.ne.s32.totalorder %s92, %s106
    %p108 = scmp.eq.s32.totalorder %s19, 0
    %p109 = por %p107, %p108
    %s111 = sadd.s32 %s110, 1
    %p114 = scmp.eq.s32.totalorder %s13, 1
    %p115 = scmp.ne.s32.totalorder %s110, %s112
    %p116 = scmp.eq.s32.totalorder %s13, 0
    %p117 = por %p115, %p116
    %p118 = scmp.ne.s32.totalorder %s110, %s112
    %p119 = scmp.eq.s32.totalorder %s18, 1
    %p120 = por %p118, %p119
    %p121 = scmp.ne.s32.totalorder %s112, %s113
    %p122 = scmp.eq.s32.totalorder %s18, 0
    %p123 = por %p121, %p122
    %p124 = scmp.ne.s32.totalorder %s112, %s113
    %p125 = scmp.eq.s32.totalorder %s19, 1
    %p126 = por %p124, %p125
    %p128 = scmp.ne.s32.totalorder %s113, %s127
    %p129 = scmp.eq.s32.totalorder %s19, 0
    %p130 = por %p128, %p129
    %s132 = sadd.s32 %s131, 1
    %p135 = scmp.eq.s32.totalorder %s13, 1
    %p136 = scmp.ne.s32.totalorder %s131, %s133
    %p137 = scmp.eq.s32.totalorder %s13, 0
    %p138 = por %p136, %p137
    %p139 = scmp.ne.s32.totalorder %s131, %s133
    %p140 = scmp.eq.s32.totalorder %s18, 1
    %p141 = por %p139, %p140
    %p142 = scmp.ne.s32.totalorder %s133, %s134
    %p143 = scmp.eq.s32.totalorder %s18, 0
    %p144 = por %p142, %p143
    %p145 = scmp.ne.s32.totalorder %s133, %s134
    %p146 = scmp.eq.s32.totalorder %s19, 1
    %p147 = por %p145, %p146
    %p149 = scmp.ne.s32.totalorder %s134, %s148
    %p150 = scmp.eq.s32.totalorder %s19, 0
    %p151 = por %p149, %p150
    %s153 = sadd.s32 %s152, 1
    %p156 = scmp.eq.s32.totalorder %s13, 1
    %p157 = scmp.ne.s32.totalorder %s152, %s154
    %p158 = scmp.eq.s32.totalorder %s13, 0
    %p159 = por %p157, %p158
    %p160 = scmp.ne.s32.totalorder %s152, %s154
    %p161 = scmp.eq.s32.totalorder %s18, 1
    %p162 = por %p160, %p161
    %p163 = scmp.ne.s32.totalorder %s154, %s155
    %p164 = scmp.eq.s32.totalorder %s18, 0
    %p165 = por %p163, %p164
    %p166 = scmp.ne.s32.totalorder %s154, %s155
    %p167 = scmp.eq.s32.totalorder %s19, 1
    %p168 = por %p166, %p167
    %p170 = scmp.ne.s32.totalorder %s155, %s169
    %p171 = scmp.eq.s32.totalorder %s19, 0
    %p172 = por %p170, %p171
    %s173 = ssub.s32 %s13, %s20
    %p174 = scmp.eq.s32.totalorder %s173, 0
    %s176 = sadd.s32 %s175, 1
    %s177 = scalar_select %p174, %s175, %s176
    %p180 = pneg %p174
    %p181 = scmp.eq.s32.totalorder %s13, 1
    %p182 = por %p180, %p181
    %p183 = scmp.ne.s32.totalorder %s175, %s178
    %p184 = scmp.eq.s32.totalorder %s13, 0
    %p185 = por %p183, %p184
    %p186 = scmp.ne.s32.totalorder %s175, %s178
    %p187 = scmp.eq.s32.totalorder %s18, 1
    %p188 = por %p186, %p187
    %p189 = scmp.ne.s32.totalorder %s178, %s179
    %p190 = scmp.eq.s32.totalorder %s18, 0
    %p191 = por %p189, %p190
    %p192 = scmp.ne.s32.totalorder %s178, %s179
    %p193 = scmp.eq.s32.totalorder %s19, 1
    %p194 = por %p192, %p193
    %p196 = scmp.ne.s32.totalorder %s179, %s195
    %p197 = scmp.eq.s32.totalorder %s19, 0
    %p198 = por %p196, %p197
    %p199 = scmp.le.s32.totalorder 1, %s13
    %p200 = scmp.lt.s32.totalorder %s13, 3
    %p201 = pnand %p199, %p200
    %p202 = pneg %p201
    // Predicated region
    $region9: #{bottleneck_csp_forward.4} parent=5 // pred_check
      _
    $region10: #{bottleneck_csp_forward.4} parent=5 // pred_check_branch
      %204 = sbr.rel (%p201) target = $region12
    $region11: #{bottleneck_csp_forward.4} parent=5 // pred_region
      %s205 = ssub.s32 %s13, 1
      // Predicated region
      $region13: #{bottleneck_csp_forward.4} parent=11 // pred_check
        %p206 = pneg %p60
      $region14: #{bottleneck_csp_forward.4} parent=11 // pred_check_branch
        %208 = sbr.rel (%p206) target = $region16
      $region15: #{bottleneck_csp_forward.4} parent=11 // pred_region
        _
      $region16: #{bottleneck_csp_forward.4} parent=11 // pred_fallthru
        _
      // Predicated region
      $region17: #{bottleneck_csp_forward.4} parent=11 // pred_check
        %p209 = pneg %p81
      $region18: #{bottleneck_csp_forward.4} parent=11 // pred_check_branch
        %211 = sbr.rel (%p209) target = $region20
      $region19: #{bottleneck_csp_forward.4} parent=11 // pred_region
        _
      $region20: #{bottleneck_csp_forward.4} parent=11 // pred_fallthru
        _
      // Predicated region
      $region21: #{bottleneck_csp_forward.4} parent=11 // pred_check
        %p212 = pneg %p102
      $region22: #{bottleneck_csp_forward.4} parent=11 // pred_check_branch
        %214 = sbr.rel (%p212) target = $region24
      $region23: #{bottleneck_csp_forward.4} parent=11 // pred_region
        _
      $region24: #{bottleneck_csp_forward.4} parent=11 // pred_fallthru
        _
      // Predicated region
      $region25: #{bottleneck_csp_forward.4} parent=11 // pred_check
        %p215 = pneg %p123
      $region26: #{bottleneck_csp_forward.4} parent=11 // pred_check_branch
        %217 = sbr.rel (%p215) target = $region28
      $region27: #{bottleneck_csp_forward.4} parent=11 // pred_region
        _
      $region28: #{bottleneck_csp_forward.4} parent=11 // pred_fallthru
        _
      // Predicated region
      $region29: #{bottleneck_csp_forward.4} parent=11 // pred_check
        %p218 = pneg %p144
      $region30: #{bottleneck_csp_forward.4} parent=11 // pred_check_branch
        %220 = sbr.rel (%p218) target = $region32
      $region31: #{bottleneck_csp_forward.4} parent=11 // pred_region
        _
      $region32: #{bottleneck_csp_forward.4} parent=11 // pred_fallthru
        _
      // Predicated region
      $region33: #{bottleneck_csp_forward.4} parent=11 // pred_check
        %p221 = pneg %p165
      $region34: #{bottleneck_csp_forward.4} parent=11 // pred_check_branch
        %223 = sbr.rel (%p221) target = $region36
      $region35: #{bottleneck_csp_forward.4} parent=11 // pred_region
        _
      $region36: #{bottleneck_csp_forward.4} parent=11 // pred_fallthru
        _
    $region12: #{bottleneck_csp_forward.4} parent=5 // pred_fallthru
      _
    %p224 = scmp.lt.s32.totalorder %s13, 2
    // Predicated region
    $region37: #{bottleneck_csp_forward.4} parent=5 // pred_check
      %p225 = pneg %p224
    $region38: #{bottleneck_csp_forward.4} parent=5 // pred_check_branch
      %227 = sbr.rel (%p225) target = $region40
    $region39: #{bottleneck_csp_forward.4} parent=5 // pred_region
      // Predicated region
      $region41: #{bottleneck_csp_forward.4} parent=39 // pred_check
        %p228 = pneg %p33
      $region42: #{bottleneck_csp_forward.4} parent=39 // pred_check_branch
        %230 = sbr.rel (%p228) target = $region44
      $region43: #{bottleneck_csp_forward.4} parent=39 // pred_region
        %s231 = smul.u32 32, %s13
        %p232 = scmp.lt.s32.totalorder %s231, 63
        %s233 = scalar_select %p232, %s231, 63
        %s234 = smul.addr %s233, 8
        %s235 = scalar_lea.vmem %s0, %s234
        %s236 = smul.u32 32, %s13
      $region44: #{bottleneck_csp_forward.4} parent=39 // pred_fallthru
        _
    $region40: #{bottleneck_csp_forward.4} parent=5 // pred_fallthru
      _
    %p237 = scmp.le.s32.totalorder 1, %s13
    %p238 = scmp.lt.s32.totalorder %s13, 3
    %p239 = pnand %p237, %p238
    %p240 = pneg %p239
    // Predicated region
    $region45: #{bottleneck_csp_forward.4} parent=5 // pred_check
      _
    $region46: #{bottleneck_csp_forward.4} parent=5 // pred_check_branch
      %242 = sbr.rel (%p239) target = $region48
    $region47: #{bottleneck_csp_forward.4} parent=5 // pred_region
      %s243 = ssub.s32 %s13, 1
      %s244 = smul.u32 32, %s18
      %p245 = scmp.lt.s32.totalorder %s244, 63
      %s246 = scalar_select %p245, %s244, 63
      %s247 = smul.addr %s246, 8
      %s248 = scalar_lea.vmem %s0, %s247
      %p249 = pneg %p39
      %p250 = pneg %p36
      %p251 = pneg %p60
      %p252 = pneg %p57
      %p253 = pneg %p81
      %p254 = pneg %p78
      %p255 = pneg %p102
      %p256 = pneg %p99
      %p257 = pneg %p123
      %p258 = pneg %p120
      %p259 = pneg %p144
      %p260 = pneg %p141
      %p261 = pneg %p165
      %p262 = pneg %p162
      %p263 = pneg %p191
      %p264 = pneg %p188
      %s265 = smul.u32 32, %s18
      %p266 = scmp.lt.s32.totalorder %s265, 63
      %s267 = scalar_select %p266, %s265, 63
      %s268 = smul.addr %s267, 8
      %s269 = scalar_lea.vmem %s7, %s268
      %s270 = smul.u32 32, %s18
      %p271 = scmp.lt.s32.totalorder %s270, 63
      %s272 = scalar_select %p271, %s270, 63
      %s273 = smul.addr %s272, 8
      %s274 = scalar_lea.vmem %s0, %s273
      %s275 = smul.u32 32, %s18
      %s276 = smul.u32 32, %s18
      %p277 = scmp.lt.s32.totalorder %s276, 63
      %s278 = scalar_select %p277, %s276, 63
      %s279 = smul.addr %s278, 8
      %s280 = scalar_lea.vmem %s7, %s279
      %s281 = smul.u32 32, %s18
      %v282 = vld [vmem:[%s274] sm:$0xff]
      %v283 = vld [vmem:[%s274 + $0x8] sm:$0xff]
      %v284 = vld [vmem:[%s274 + $0x10] sm:$0xff]
      %v285 = vld [vmem:[%s274 + $0x18] sm:$0xff]
      %v286 = vld [vmem:[%s274 + $0x20] sm:$0xff]
      %v287 = vld [vmem:[%s274 + $0x28] sm:$0xff]
      %v288 = vld [vmem:[%s274 + $0x30] sm:$0xff]
      %v289 = vld [vmem:[%s274 + $0x38] sm:$0xff]
      %v290 = vld [vmem:[%s274 + $0x40] sm:$0xff]
      %v291 = vld [vmem:[%s274 + $0x48] sm:$0xff]
      %v292 = vld [vmem:[%s274 + $0x50] sm:$0xff]
      %v293 = vld [vmem:[%s274 + $0x58] sm:$0xff]
      %v294 = vld [vmem:[%s274 + $0x60] sm:$0xff]
      %v295 = vld [vmem:[%s274 + $0x68] sm:$0xff]
      %v296 = vld [vmem:[%s274 + $0x70] sm:$0xff]
      %v297 = vld [vmem:[%s274 + $0x78] sm:$0xff]
      %v298 = vld [vmem:[%s274 + $0x80] sm:$0xff]
      %v299 = vld [vmem:[%s274 + $0x88] sm:$0xff]
      %v300 = vld [vmem:[%s274 + $0x90] sm:$0xff]
      %v301 = vld [vmem:[%s274 + $0x98] sm:$0xff]
      %v302 = vld [vmem:[%s274 + $0xa0] sm:$0xff]
      %v303 = vld [vmem:[%s274 + $0xa8] sm:$0xff]
      %v304 = vld [vmem:[%s274 + $0xb0] sm:$0xff]
      %v305 = vld [vmem:[%s274 + $0xb8] sm:$0xff]
      %v306 = vld [vmem:[%s274 + $0xc0] sm:$0xff]
      %v307 = vld [vmem:[%s274 + $0xc8] sm:$0xff]
      %v308 = vld [vmem:[%s274 + $0xd0] sm:$0xff]
      %v309 = vld [vmem:[%s274 + $0xd8] sm:$0xff]
      %v310 = vld [vmem:[%s274 + $0xe0] sm:$0xff]
      %v311 = vld [vmem:[%s274 + $0xe8] sm:$0xff]
      %v312 = vld [vmem:[%s274 + $0xf0] sm:$0xff]
      %v313 = vld [vmem:[%s274 + $0xf8] sm:$0xff]
      %v314 = vld [vmem:[%s1] sm:$0xff]
      %v315 = vld [vmem:[%s1 + $0x8] sm:$0xff]
      %v316 = vld [vmem:[%s2] sm:$0x1]
      %v318 = vlaneseq
      %v319 = vshrl.u32 %v318, 7
      %v320 = vsub.s32 0, %v319
      %v321 = vrot.slane %v316, %v320
      %vm323 = vcmask 130048
      %v325 = vsel %vm323, %v282, 0
      %v328 = vsel %vm323, %v283, 0
      %v331 = vsel %vm323, %v284, 0
      %v334 = vsel %vm323, %v285, 0
      %v337 = vsel %vm323, %v286, 0
      %v340 = vsel %vm323, %v287, 0
      %v343 = vsel %vm323, %v288, 0
      %v346 = vsel %vm323, %v289, 0
      %v349 = vsel %vm323, %v290, 0
      %v352 = vsel %vm323, %v291, 0
      %v355 = vsel %vm323, %v292, 0
      %v358 = vsel %vm323, %v293, 0
      %v361 = vsel %vm323, %v294, 0
      %v364 = vsel %vm323, %v295, 0
      %v367 = vsel %vm323, %v296, 0
      %v370 = vsel %vm323, %v297, 0
      %v373 = vsel %vm323, %v298, 0
      %v376 = vsel %vm323, %v299, 0
      %v379 = vsel %vm323, %v300, 0
      %v382 = vsel %vm323, %v301, 0
      %v385 = vsel %vm323, %v302, 0
      %v388 = vsel %vm323, %v303, 0
      %v391 = vsel %vm323, %v304, 0
      %v394 = vsel %vm323, %v305, 0
      %v397 = vsel %vm323, %v306, 0
      %v400 = vsel %vm323, %v307, 0
      %v403 = vsel %vm323, %v308, 0
      %v406 = vsel %vm323, %v309, 0
      %v409 = vsel %vm323, %v310, 0
      %v412 = vsel %vm323, %v311, 0
      %v415 = vsel %vm323, %v312, 0
      %v418 = vsel %vm323, %v313, 0
      %420 = vmatprep.subr.mxu0 0.0
      %421 = vmatpush1.msra.mxu0 0.0
      %422 = vmatprep.subr.mxu0 0.0
      %423 = vmatpush1.msra.mxu0 0.0
      %424 = vmatprep.subr.mxu0 0.0
      %425 = vmatpush1.msra.mxu0 0.0
      %426 = vmatprep.subr.mxu0 0.0
      %427 = vmatpush1.msra.mxu0 0.0
      %428 = vmatprep.subr.mxu0 0.0
      %429 = vmatpush1.msra.mxu0 0.0
      %430 = vmatprep.subr.mxu0 0.0
      %431 = vmatpush1.msra.mxu0 0.0
      %432 = vmatprep.subr.mxu0 0.0
      %433 = vmatpush1.msra.mxu0 0.0
      %434 = vmatprep.subr.mxu0 0.0
      %435 = vmatpush1.msra.mxu0 0.0
      %436 = vmatprep.subr.mxu0 0.0
      %437 = vmatpush1.msra.mxu0 0.0
      %438 = vmatprep.subr.mxu0 0.0
      %439 = vmatpush1.msra.mxu0 0.0
      %440 = vmatprep.subr.mxu0 0.0
      %441 = vmatpush1.msra.mxu0 0.0
      %442 = vmatprep.subr.mxu0 0.0
      %443 = vmatpush1.msra.mxu0 0.0
      %444 = vmatprep.subr.mxu0 0.0
      %445 = vmatpush1.msra.mxu0 0.0
      %446 = vmatprep.subr.mxu0 0.0
      %447 = vmatpush1.msra.mxu0 0.0
      %448 = vmatprep.subr.mxu0 0.0
      %449 = vmatpush1.msra.mxu0 %v315
      %450 = vmatprep.subr.mxu0 0.0
      %451 = vmatpush1.msra.mxu0 %v314
      %452 = vmatprep.subr.mxu0 0.0
      %453 = vmatpush2.msra.mxu0 0.0
      %454 = vmatprep.subr.mxu0 0.0
      %455 = vmatpush2.msra.mxu0 0.0
      %456 = vmatprep.subr.mxu0 0.0
      %457 = vmatpush2.msra.mxu0 0.0
      %458 = vmatprep.subr.mxu0 0.0
      %459 = vmatpush2.msra.mxu0 0.0
      %460 = vmatprep.subr.mxu0 0.0
      %461 = vmatpush2.msra.mxu0 0.0
      %462 = vmatprep.subr.mxu0 0.0
      %463 = vmatpush2.msra.mxu0 0.0
      %464 = vmatprep.subr.mxu0 0.0
      %465 = vmatpush2.msra.mxu0 0.0
      %466 = vmatprep.subr.mxu0 0.0
      %467 = vmatpush2.msra.mxu0 0.0
      %468 = vmatprep.subr.mxu0 0.0
      %469 = vmatpush2.msra.mxu0 0.0
      %470 = vmatprep.subr.mxu0 0.0
      %471 = vmatpush2.msra.mxu0 0.0
      %472 = vmatprep.subr.mxu0 0.0
      %473 = vmatpush2.msra.mxu0 0.0
      %474 = vmatprep.subr.mxu0 0.0
      %475 = vmatpush2.msra.mxu0 0.0
      %476 = vmatprep.subr.mxu0 0.0
      %477 = vmatpush2.msra.mxu0 0.0
      %478 = vmatprep.subr.mxu0 0.0
      %479 = vmatpush2.msra.mxu0 0.0
      %480 = vmatprep.subr.mxu0 0.0
      %481 = vmatpush2.msra.mxu0 0.0
      %482 = vmatprep.subr.mxu0 0.0
      %483 = vmatpush2.msra.mxu0 0.0
      %484 = vmatprep.mubr.f32.mxu0 0.0
      %485 = vmatmul.mubr.f32.gmra.mxu0 %v325
      %v486 = vpop.f32.mrf.mxu0
      %v487 = vadd.f32 %v321, %v486
      %v488 = vpop.f32.mrf.mxu0
      %489 = vmatprep.mubr.f32.mxu0 0.0
      %490 = vmatmul.mubr.f32.gmra.mxu0 %v328
      %v491 = vpop.f32.mrf.mxu0
      %v492 = vadd.f32 %v321, %v491
      %v493 = vpop.f32.mrf.mxu0
      %494 = vmatprep.mubr.f32.mxu0 0.0
      %495 = vmatmul.mubr.f32.gmra.mxu0 %v331
      %v496 = vpop.f32.mrf.mxu0
      %v497 = vadd.f32 %v321, %v496
      %v498 = vpop.f32.mrf.mxu0
      %499 = vmatprep.mubr.f32.mxu0 0.0
      %500 = vmatmul.mubr.f32.gmra.mxu0 %v334
      %v501 = vpop.f32.mrf.mxu0
      %v502 = vadd.f32 %v321, %v501
      %v503 = vpop.f32.mrf.mxu0
      %504 = vmatprep.mubr.f32.mxu0 0.0
      %505 = vmatmul.mubr.f32.gmra.mxu0 %v337
      %v506 = vpop.f32.mrf.mxu0
      %v507 = vadd.f32 %v321, %v506
      %v508 = vpop.f32.mrf.mxu0
      %509 = vmatprep.mubr.f32.mxu0 0.0
      %510 = vmatmul.mubr.f32.gmra.mxu0 %v340
      %v511 = vpop.f32.mrf.mxu0
      %v512 = vadd.f32 %v321, %v511
      %v513 = vpop.f32.mrf.mxu0
      %514 = vmatprep.mubr.f32.mxu0 0.0
      %515 = vmatmul.mubr.f32.gmra.mxu0 %v343
      %v516 = vpop.f32.mrf.mxu0
      %v517 = vadd.f32 %v321, %v516
      %v518 = vpop.f32.mrf.mxu0
      %519 = vmatprep.mubr.f32.mxu0 0.0
      %520 = vmatmul.mubr.f32.gmra.mxu0 %v346
      %v521 = vpop.f32.mrf.mxu0
      %v522 = vadd.f32 %v321, %v521
      %v523 = vpop.f32.mrf.mxu0
      %524 = vmatprep.mubr.f32.mxu0 0.0
      %525 = vmatmul.mubr.f32.gmra.mxu0 %v349
      %v526 = vpop.f32.mrf.mxu0
      %v527 = vadd.f32 %v321, %v526
      %v528 = vpop.f32.mrf.mxu0
      %529 = vmatprep.mubr.f32.mxu0 0.0
      %530 = vmatmul.mubr.f32.gmra.mxu0 %v352
      %v531 = vpop.f32.mrf.mxu0
      %v532 = vadd.f32 %v321, %v531
      %v533 = vpop.f32.mrf.mxu0
      %534 = vmatprep.mubr.f32.mxu0 0.0
      %535 = vmatmul.mubr.f32.gmra.mxu0 %v355
      %v536 = vpop.f32.mrf.mxu0
      %v537 = vadd.f32 %v321, %v536
      %v538 = vpop.f32.mrf.mxu0
      %539 = vmatprep.mubr.f32.mxu0 0.0
      %540 = vmatmul.mubr.f32.gmra.mxu0 %v358
      %v541 = vpop.f32.mrf.mxu0
      %v542 = vadd.f32 %v321, %v541
      %v543 = vpop.f32.mrf.mxu0
      %544 = vmatprep.mubr.f32.mxu0 0.0
      %545 = vmatmul.mubr.f32.gmra.mxu0 %v361
      %v546 = vpop.f32.mrf.mxu0
      %v547 = vadd.f32 %v321, %v546
      %v548 = vpop.f32.mrf.mxu0
      %549 = vmatprep.mubr.f32.mxu0 0.0
      %550 = vmatmul.mubr.f32.gmra.mxu0 %v364
      %v551 = vpop.f32.mrf.mxu0
      %v552 = vadd.f32 %v321, %v551
      %v553 = vpop.f32.mrf.mxu0
      %554 = vmatprep.mubr.f32.mxu0 0.0
      %555 = vmatmul.mubr.f32.gmra.mxu0 %v367
      %v556 = vpop.f32.mrf.mxu0
      %v557 = vadd.f32 %v321, %v556
      %v558 = vpop.f32.mrf.mxu0
      %559 = vmatprep.mubr.f32.mxu0 0.0
      %560 = vmatmul.mubr.f32.gmra.mxu0 %v370
      %v561 = vpop.f32.mrf.mxu0
      %v562 = vadd.f32 %v321, %v561
      %v563 = vpop.f32.mrf.mxu0
      %564 = vmatprep.mubr.f32.mxu0 0.0
      %565 = vmatmul.mubr.f32.gmra.mxu0 %v373
      %v566 = vpop.f32.mrf.mxu0
      %v567 = vadd.f32 %v321, %v566
      %v568 = vpop.f32.mrf.mxu0
      %569 = vmatprep.mubr.f32.mxu0 0.0
      %570 = vmatmul.mubr.f32.gmra.mxu0 %v376
      %v571 = vpop.f32.mrf.mxu0
      %v572 = vadd.f32 %v321, %v571
      %v573 = vpop.f32.mrf.mxu0
      %574 = vmatprep.mubr.f32.mxu0 0.0
      %575 = vmatmul.mubr.f32.gmra.mxu0 %v379
      %v576 = vpop.f32.mrf.mxu0
      %v577 = vadd.f32 %v321, %v576
      %v578 = vpop.f32.mrf.mxu0
      %579 = vmatprep.mubr.f32.mxu0 0.0
      %580 = vmatmul.mubr.f32.gmra.mxu0 %v382
      %v581 = vpop.f32.mrf.mxu0
      %v582 = vadd.f32 %v321, %v581
      %v583 = vpop.f32.mrf.mxu0
      %584 = vmatprep.mubr.f32.mxu0 0.0
      %585 = vmatmul.mubr.f32.gmra.mxu0 %v385
      %v586 = vpop.f32.mrf.mxu0
      %v587 = vadd.f32 %v321, %v586
      %v588 = vpop.f32.mrf.mxu0
      %589 = vmatprep.mubr.f32.mxu0 0.0
      %590 = vmatmul.mubr.f32.gmra.mxu0 %v388
      %v591 = vpop.f32.mrf.mxu0
      %v592 = vadd.f32 %v321, %v591
      %v593 = vpop.f32.mrf.mxu0
      %594 = vmatprep.mubr.f32.mxu0 0.0
      %595 = vmatmul.mubr.f32.gmra.mxu0 %v391
      %v596 = vpop.f32.mrf.mxu0
      %v597 = vadd.f32 %v321, %v596
      %v598 = vpop.f32.mrf.mxu0
      %599 = vmatprep.mubr.f32.mxu0 0.0
      %600 = vmatmul.mubr.f32.gmra.mxu0 %v394
      %v601 = vpop.f32.mrf.mxu0
      %v602 = vadd.f32 %v321, %v601
      %v603 = vpop.f32.mrf.mxu0
      %604 = vmatprep.mubr.f32.mxu0 0.0
      %605 = vmatmul.mubr.f32.gmra.mxu0 %v397
      %v606 = vpop.f32.mrf.mxu0
      %v607 = vadd.f32 %v321, %v606
      %v608 = vpop.f32.mrf.mxu0
      %609 = vmatprep.mubr.f32.mxu0 0.0
      %610 = vmatmul.mubr.f32.gmra.mxu0 %v400
      %v611 = vpop.f32.mrf.mxu0
      %v612 = vadd.f32 %v321, %v611
      %v613 = vpop.f32.mrf.mxu0
      %614 = vmatprep.mubr.f32.mxu0 0.0
      %615 = vmatmul.mubr.f32.gmra.mxu0 %v403
      %v616 = vpop.f32.mrf.mxu0
      %v617 = vadd.f32 %v321, %v616
      %v618 = vpop.f32.mrf.mxu0
      %619 = vmatprep.mubr.f32.mxu0 0.0
      %620 = vmatmul.mubr.f32.gmra.mxu0 %v406
      %v621 = vpop.f32.mrf.mxu0
      %v622 = vadd.f32 %v321, %v621
      %v623 = vpop.f32.mrf.mxu0
      %624 = vmatprep.mubr.f32.mxu0 0.0
      %625 = vmatmul.mubr.f32.gmra.mxu0 %v409
      %v626 = vpop.f32.mrf.mxu0
      %v627 = vadd.f32 %v321, %v626
      %v628 = vpop.f32.mrf.mxu0
      %629 = vmatprep.mubr.f32.mxu0 0.0
      %630 = vmatmul.mubr.f32.gmra.mxu0 %v412
      %v631 = vpop.f32.mrf.mxu0
      %v632 = vadd.f32 %v321, %v631
      %v633 = vpop.f32.mrf.mxu0
      %634 = vmatprep.mubr.f32.mxu0 0.0
      %635 = vmatmul.mubr.f32.gmra.mxu0 %v415
      %v636 = vpop.f32.mrf.mxu0
      %v637 = vadd.f32 %v321, %v636
      %v638 = vpop.f32.mrf.mxu0
      %639 = vmatprep.mubr.f32.mxu0 0.0
      %640 = vmatmul.mubr.f32.gmra.mxu0 %v418
      %v641 = vpop.f32.mrf.mxu0
      %v642 = vadd.f32 %v321, %v641
      %v643 = vpop.f32.mrf.mxu0
      %644 = vdwg.mxu0
      %v645 = vmax.f32 %v487, 0.0
      %v646 = vmax.f32 %v492, 0.0
      %v647 = vmax.f32 %v497, 0.0
      %v648 = vmax.f32 %v502, 0.0
      %v649 = vmax.f32 %v507, 0.0
      %v650 = vmax.f32 %v512, 0.0
      %v651 = vmax.f32 %v517, 0.0
      %v652 = vmax.f32 %v522, 0.0
      %v653 = vmax.f32 %v527, 0.0
      %v654 = vmax.f32 %v532, 0.0
      %v655 = vmax.f32 %v537, 0.0
      %v656 = vmax.f32 %v542, 0.0
      %v657 = vmax.f32 %v547, 0.0
      %v658 = vmax.f32 %v552, 0.0
      %v659 = vmax.f32 %v557, 0.0
      %v660 = vmax.f32 %v562, 0.0
      %v661 = vmax.f32 %v567, 0.0
      %v662 = vmax.f32 %v572, 0.0
      %v663 = vmax.f32 %v577, 0.0
      %v664 = vmax.f32 %v582, 0.0
      %v665 = vmax.f32 %v587, 0.0
      %v666 = vmax.f32 %v592, 0.0
      %v667 = vmax.f32 %v597, 0.0
      %v668 = vmax.f32 %v602, 0.0
      %v669 = vmax.f32 %v607, 0.0
      %v670 = vmax.f32 %v612, 0.0
      %v671 = vmax.f32 %v617, 0.0
      %v672 = vmax.f32 %v622, 0.0
      %v673 = vmax.f32 %v627, 0.0
      %v674 = vmax.f32 %v632, 0.0
      %v675 = vmax.f32 %v637, 0.0
      %v676 = vmax.f32 %v642, 0.0
      %677 = vst.msk [vmem:[#allocation2] sm:$0xff] %vm323, 0.0
      %678 = vst.msk [vmem:[#allocation2 + $0x8] sm:$0xff] %vm323, 0.0
      %679 = vst.msk [vmem:[#allocation2 + $0x10] sm:$0xff] %vm323, 0.0
      %680 = vst.msk [vmem:[#allocation2 + $0x18] sm:$0xff] %vm323, 0.0
      %681 = vst.msk [vmem:[#allocation2 + $0x20] sm:$0xff] %vm323, 0.0
      %682 = vst.msk [vmem:[#allocation2 + $0x28] sm:$0xff] %vm323, 0.0
      %683 = vst.msk [vmem:[#allocation2 + $0x30] sm:$0xff] %vm323, 0.0
      %684 = vst.msk [vmem:[#allocation2 + $0x38] sm:$0xff] %vm323, 0.0
      %685 = vst.msk [vmem:[#allocation2 + $0x40] sm:$0xff] %vm323, 0.0
      %686 = vst.msk [vmem:[#allocation2 + $0x48] sm:$0xff] %vm323, 0.0
      %687 = vst.msk [vmem:[#allocation2 + $0x50] sm:$0xff] %vm323, 0.0
      %688 = vst.msk [vmem:[#allocation2 + $0x58] sm:$0xff] %vm323, 0.0
      %689 = vst.msk [vmem:[#allocation2 + $0x60] sm:$0xff] %vm323, 0.0
      %690 = vst.msk [vmem:[#allocation2 + $0x68] sm:$0xff] %vm323, 0.0
      %691 = vst.msk [vmem:[#allocation2 + $0x70] sm:$0xff] %vm323, 0.0
      %692 = vst.msk [vmem:[#allocation2 + $0x78] sm:$0xff] %vm323, 0.0
      %693 = vst.msk [vmem:[#allocation2 + $0x80] sm:$0xff] %vm323, 0.0
      %694 = vst.msk [vmem:[#allocation2 + $0x88] sm:$0xff] %vm323, 0.0
      %695 = vst.msk [vmem:[#allocation2 + $0x90] sm:$0xff] %vm323, 0.0
      %696 = vst.msk [vmem:[#allocation2 + $0x98] sm:$0xff] %vm323, 0.0
      %697 = vst.msk [vmem:[#allocation2 + $0xa0] sm:$0xff] %vm323, 0.0
      %698 = vst.msk [vmem:[#allocation2 + $0xa8] sm:$0xff] %vm323, 0.0
      %699 = vst.msk [vmem:[#allocation2 + $0xb0] sm:$0xff] %vm323, 0.0
      %700 = vst.msk [vmem:[#allocation2 + $0xb8] sm:$0xff] %vm323, 0.0
      %701 = vst.msk [vmem:[#allocation2 + $0xc0] sm:$0xff] %vm323, 0.0
      %702 = vst.msk [vmem:[#allocation2 + $0xc8] sm:$0xff] %vm323, 0.0
      %703 = vst.msk [vmem:[#allocation2 + $0xd0] sm:$0xff] %vm323, 0.0
      %704 = vst.msk [vmem:[#allocation2 + $0xd8] sm:$0xff] %vm323, 0.0
      %705 = vst.msk [vmem:[#allocation2 + $0xe0] sm:$0xff] %vm323, 0.0
      %706 = vst.msk [vmem:[#allocation2 + $0xe8] sm:$0xff] %vm323, 0.0
      %707 = vst.msk [vmem:[#allocation2 + $0xf0] sm:$0xff] %vm323, 0.0
      %708 = vst.msk [vmem:[#allocation2 + $0xf8] sm:$0xff] %vm323, 0.0
      %709 = vst.msk [vmem:[#allocation2 + $0x100] sm:$0xff] %vm323, 0.0
      %710 = vst.msk [vmem:[#allocation2 + $0x108] sm:$0xff] %vm323, 0.0
      %711 = vst.msk [vmem:[#allocation2 + $0x110] sm:$0xff] %vm323, 0.0
      %712 = vst.msk [vmem:[#allocation2 + $0x118] sm:$0xff] %vm323, 0.0
      %713 = vst.msk [vmem:[#allocation2 + $0x120] sm:$0xff] %vm323, 0.0
      %714 = vst.msk [vmem:[#allocation2 + $0x128] sm:$0xff] %vm323, 0.0
      %715 = vst.msk [vmem:[#allocation2 + $0x18] sm:$0xff] %vm323, %v645
      %716 = vst.msk [vmem:[#allocation2 + $0x20] sm:$0xff] %vm323, %v646
      %717 = vst.msk [vmem:[#allocation2 + $0x28] sm:$0xff] %vm323, %v647
      %718 = vst.msk [vmem:[#allocation2 + $0x30] sm:$0xff] %vm323, %v648
      %719 = vst.msk [vmem:[#allocation2 + $0x38] sm:$0xff] %vm323, %v649
      %720 = vst.msk [vmem:[#allocation2 + $0x40] sm:$0xff] %vm323, %v650
      %721 = vst.msk [vmem:[#allocation2 + $0x48] sm:$0xff] %vm323, %v651
      %722 = vst.msk [vmem:[#allocation2 + $0x50] sm:$0xff] %vm323, %v652
      %723 = vst.msk [vmem:[#allocation2 + $0x58] sm:$0xff] %vm323, %v653
      %724 = vst.msk [vmem:[#allocation2 + $0x60] sm:$0xff] %vm323, %v654
      %725 = vst.msk [vmem:[#allocation2 + $0x68] sm:$0xff] %vm323, %v655
      %726 = vst.msk [vmem:[#allocation2 + $0x70] sm:$0xff] %vm323, %v656
      %727 = vst.msk [vmem:[#allocation2 + $0x78] sm:$0xff] %vm323, %v657
      %728 = vst.msk [vmem:[#allocation2 + $0x80] sm:$0xff] %vm323, %v658
      %729 = vst.msk [vmem:[#allocation2 + $0x88] sm:$0xff] %vm323, %v659
      %730 = vst.msk [vmem:[#allocation2 + $0x90] sm:$0xff] %vm323, %v660
      %731 = vst.msk [vmem:[#allocation2 + $0x98] sm:$0xff] %vm323, %v661
      %732 = vst.msk [vmem:[#allocation2 + $0xa0] sm:$0xff] %vm323, %v662
      %733 = vst.msk [vmem:[#allocation2 + $0xa8] sm:$0xff] %vm323, %v663
      %734 = vst.msk [vmem:[#allocation2 + $0xb0] sm:$0xff] %vm323, %v664
      %735 = vst.msk [vmem:[#allocation2 + $0xb8] sm:$0xff] %vm323, %v665
      %736 = vst.msk [vmem:[#allocation2 + $0xc0] sm:$0xff] %vm323, %v666
      %737 = vst.msk [vmem:[#allocation2 + $0xc8] sm:$0xff] %vm323, %v667
      %738 = vst.msk [vmem:[#allocation2 + $0xd0] sm:$0xff] %vm323, %v668
      %739 = vst.msk [vmem:[#allocation2 + $0xd8] sm:$0xff] %vm323, %v669
      %740 = vst.msk [vmem:[#allocation2 + $0xe0] sm:$0xff] %vm323, %v670
      %741 = vst.msk [vmem:[#allocation2 + $0xe8] sm:$0xff] %vm323, %v671
      %742 = vst.msk [vmem:[#allocation2 + $0xf0] sm:$0xff] %vm323, %v672
      %743 = vst.msk [vmem:[#allocation2 + $0xf8] sm:$0xff] %vm323, %v673
      %744 = vst.msk [vmem:[#allocation2 + $0x100] sm:$0xff] %vm323, %v674
      %745 = vst.msk [vmem:[#allocation2 + $0x108] sm:$0xff] %vm323, %v675
      %746 = vst.msk [vmem:[#allocation2 + $0x110] sm:$0xff] %vm323, %v676
      %v747 = vld [vmem:[#allocation2 + $0x7] sm:$0xff]
      %v748 = vld [vmem:[#allocation2 + $0xf] sm:$0xff]
      %v749 = vld [vmem:[#allocation2 + $0x17] sm:$0xff]
      %v750 = vld [vmem:[#allocation2 + $0x1f] sm:$0xff]
      %v751 = vld [vmem:[#allocation2 + $0x27] sm:$0xff]
      %v752 = vld [vmem:[#allocation2 + $0x2f] sm:$0xff]
      %v753 = vld [vmem:[#allocation2 + $0x37] sm:$0xff]
      %v754 = vld [vmem:[#allocation2 + $0x3f] sm:$0xff]
      %v755 = vld [vmem:[#allocation2 + $0x47] sm:$0xff]
      %v756 = vld [vmem:[#allocation2 + $0x4f] sm:$0xff]
      %v757 = vld [vmem:[#allocation2 + $0x57] sm:$0xff]
      %v758 = vld [vmem:[#allocation2 + $0x5f] sm:$0xff]
      %v759 = vld [vmem:[#allocation2 + $0x67] sm:$0xff]
      %v760 = vld [vmem:[#allocation2 + $0x6f] sm:$0xff]
      %v761 = vld [vmem:[#allocation2 + $0x77] sm:$0xff]
      %v762 = vld [vmem:[#allocation2 + $0x7f] sm:$0xff]
      %v763 = vld [vmem:[#allocation2 + $0x87] sm:$0xff]
      %v764 = vld [vmem:[#allocation2 + $0x8f] sm:$0xff]
      %v765 = vld [vmem:[#allocation2 + $0x97] sm:$0xff]
      %v766 = vld [vmem:[#allocation2 + $0x9f] sm:$0xff]
      %v767 = vld [vmem:[#allocation2 + $0xa7] sm:$0xff]
      %v768 = vld [vmem:[#allocation2 + $0xaf] sm:$0xff]
      %v769 = vld [vmem:[#allocation2 + $0xb7] sm:$0xff]
      %v770 = vld [vmem:[#allocation2 + $0xbf] sm:$0xff]
      %v771 = vld [vmem:[#allocation2 + $0xc7] sm:$0xff]
      %v772 = vld [vmem:[#allocation2 + $0xcf] sm:$0xff]
      %v773 = vld [vmem:[#allocation2 + $0xd7] sm:$0xff]
      %v774 = vld [vmem:[#allocation2 + $0xdf] sm:$0xff]
      %v775 = vld [vmem:[#allocation2 + $0xe7] sm:$0xff]
      %v776 = vld [vmem:[#allocation2 + $0xef] sm:$0xff]
      %v777 = vld [vmem:[#allocation2 + $0xf7] sm:$0xff]
      %v778 = vld [vmem:[#allocation2 + $0xff] sm:$0xff]
      %v779 = vld [vmem:[%s5] sm:$0xff]
      %v780 = vld [vmem:[%s5 + $0x8] sm:$0xff]
      %v781 = vld [vmem:[%s5 + $0x10] sm:$0xff]
      %v782 = vld [vmem:[%s5 + $0x18] sm:$0xff]
      %v783 = vld [vmem:[%s5 + $0x20] sm:$0xff]
      %v784 = vld [vmem:[%s5 + $0x28] sm:$0xff]
      %v785 = vld [vmem:[%s5 + $0x30] sm:$0xff]
      %v786 = vld [vmem:[%s5 + $0x38] sm:$0xff]
      %v787 = vld [vmem:[%s5 + $0x40] sm:$0xff]
      %v788 = vld [vmem:[%s5 + $0x48] sm:$0xff]
      %v789 = vld [vmem:[%s5 + $0x50] sm:$0xff]
      %v790 = vld [vmem:[%s5 + $0x58] sm:$0xff]
      %v791 = vld [vmem:[%s5 + $0x60] sm:$0xff]
      %v792 = vld [vmem:[%s5 + $0x68] sm:$0xff]
      %v793 = vld [vmem:[%s5 + $0x70] sm:$0xff]
      %v794 = vld [vmem:[%s5 + $0x78] sm:$0xff]
      %v795 = vld [vmem:[%s5 + $0x80] sm:$0xff]
      %v796 = vld [vmem:[%s5 + $0x88] sm:$0xff]
      %v797 = vld [vmem:[%s5 + $0x90] sm:$0xff]
      %v798 = vld [vmem:[%s5 + $0x98] sm:$0xff]
      %v799 = vld [vmem:[%s5 + $0xa0] sm:$0xff]
      %v800 = vld [vmem:[%s5 + $0xa8] sm:$0xff]
      %v801 = vld [vmem:[%s5 + $0xb0] sm:$0xff]
      %v802 = vld [vmem:[%s5 + $0xb8] sm:$0xff]
      %v803 = vld [vmem:[%s5 + $0xc0] sm:$0xff]
      %v804 = vld [vmem:[%s5 + $0xc8] sm:$0xff]
      %v805 = vld [vmem:[%s5 + $0xd0] sm:$0xff]
      %v806 = vld [vmem:[%s5 + $0xd8] sm:$0xff]
      %v807 = vld [vmem:[%s5 + $0xe0] sm:$0xff]
      %v808 = vld [vmem:[%s5 + $0xe8] sm:$0xff]
      %v809 = vld [vmem:[%s5 + $0xf0] sm:$0xff]
      %v810 = vld [vmem:[%s5 + $0xf8] sm:$0xff]
      %812 = vset.pattern.permute.xlu0 0
      %813 = vperm.xlu0 %812, %v779
      %v814 = vpop.permute.xlu0 %813
      %817 = vset.pattern.permute.xlu0 0
      %818 = vperm.xlu0 %817, %v780
      %v819 = vpop.permute.xlu0 %818
      %822 = vset.pattern.permute.xlu0 0
      %823 = vperm.xlu0 %822, %v781
      %v824 = vpop.permute.xlu0 %823
      %827 = vset.pattern.permute.xlu0 0
      %828 = vperm.xlu0 %827, %v782
      %v829 = vpop.permute.xlu0 %828
      %832 = vset.pattern.permute.xlu0 0
      %833 = vperm.xlu0 %832, %v783
      %v834 = vpop.permute.xlu0 %833
      %837 = vset.pattern.permute.xlu0 0
      %838 = vperm.xlu0 %837, %v784
      %v839 = vpop.permute.xlu0 %838
      %842 = vset.pattern.permute.xlu0 0
      %843 = vperm.xlu0 %842, %v785
      %v844 = vpop.permute.xlu0 %843
      %847 = vset.pattern.permute.xlu0 0
      %848 = vperm.xlu0 %847, %v786
      %v849 = vpop.permute.xlu0 %848
      %852 = vset.pattern.permute.xlu0 0
      %853 = vperm.xlu0 %852, %v787
      %v854 = vpop.permute.xlu0 %853
      %857 = vset.pattern.permute.xlu0 0
      %858 = vperm.xlu0 %857, %v788
      %v859 = vpop.permute.xlu0 %858
      %862 = vset.pattern.permute.xlu0 0
      %863 = vperm.xlu0 %862, %v789
      %v864 = vpop.permute.xlu0 %863
      %867 = vset.pattern.permute.xlu0 0
      %868 = vperm.xlu0 %867, %v790
      %v869 = vpop.permute.xlu0 %868
      %872 = vset.pattern.permute.xlu0 0
      %873 = vperm.xlu0 %872, %v791
      %v874 = vpop.permute.xlu0 %873
      %877 = vset.pattern.permute.xlu0 0
      %878 = vperm.xlu0 %877, %v792
      %v879 = vpop.permute.xlu0 %878
      %882 = vset.pattern.permute.xlu0 0
      %883 = vperm.xlu0 %882, %v793
      %v884 = vpop.permute.xlu0 %883
      %887 = vset.pattern.permute.xlu0 0
      %888 = vperm.xlu0 %887, %v794
      %v889 = vpop.permute.xlu0 %888
      %892 = vset.pattern.permute.xlu0 0
      %893 = vperm.xlu0 %892, %v795
      %v894 = vpop.permute.xlu0 %893
      %897 = vset.pattern.permute.xlu0 0
      %898 = vperm.xlu0 %897, %v796
      %v899 = vpop.permute.xlu0 %898
      %902 = vset.pattern.permute.xlu0 0
      %903 = vperm.xlu0 %902, %v797
      %v904 = vpop.permute.xlu0 %903
      %907 = vset.pattern.permute.xlu0 0
      %908 = vperm.xlu0 %907, %v798
      %v909 = vpop.permute.xlu0 %908
      %912 = vset.pattern.permute.xlu0 0
      %913 = vperm.xlu0 %912, %v799
      %v914 = vpop.permute.xlu0 %913
      %917 = vset.pattern.permute.xlu0 0
      %918 = vperm.xlu0 %917, %v800
      %v919 = vpop.permute.xlu0 %918
      %922 = vset.pattern.permute.xlu0 0
      %923 = vperm.xlu0 %922, %v801
      %v924 = vpop.permute.xlu0 %923
      %927 = vset.pattern.permute.xlu0 0
      %928 = vperm.xlu0 %927, %v802
      %v929 = vpop.permute.xlu0 %928
      %932 = vset.pattern.permute.xlu0 0
      %933 = vperm.xlu0 %932, %v803
      %v934 = vpop.permute.xlu0 %933
      %937 = vset.pattern.permute.xlu0 0
      %938 = vperm.xlu0 %937, %v804
      %v939 = vpop.permute.xlu0 %938
      %942 = vset.pattern.permute.xlu0 0
      %943 = vperm.xlu0 %942, %v805
      %v944 = vpop.permute.xlu0 %943
      %947 = vset.pattern.permute.xlu0 0
      %948 = vperm.xlu0 %947, %v806
      %v949 = vpop.permute.xlu0 %948
      %952 = vset.pattern.permute.xlu0 0
      %953 = vperm.xlu0 %952, %v807
      %v954 = vpop.permute.xlu0 %953
      %957 = vset.pattern.permute.xlu0 0
      %958 = vperm.xlu0 %957, %v808
      %v959 = vpop.permute.xlu0 %958
      %962 = vset.pattern.permute.xlu0 0
      %963 = vperm.xlu0 %962, %v809
      %v964 = vpop.permute.xlu0 %963
      %967 = vset.pattern.permute.xlu0 0
      %968 = vperm.xlu0 %967, %v810
      %v969 = vpop.permute.xlu0 %968
      %v971 = vmul.f32 %v747, %v814
      %v972 = vmul.f32 %v748, %v819
      %v973 = vmul.f32 %v749, %v824
      %v974 = vmul.f32 %v750, %v829
      %v975 = vmul.f32 %v751, %v834
      %v976 = vmul.f32 %v752, %v839
      %v977 = vmul.f32 %v753, %v844
      %v978 = vmul.f32 %v754, %v849
      %v979 = vmul.f32 %v755, %v854
      %v980 = vmul.f32 %v756, %v859
      %v981 = vmul.f32 %v757, %v864
      %v982 = vmul.f32 %v758, %v869
      %v983 = vmul.f32 %v759, %v874
      %v984 = vmul.f32 %v760, %v879
      %v985 = vmul.f32 %v761, %v884
      %v986 = vmul.f32 %v762, %v889
      %v987 = vmul.f32 %v763, %v894
      %v988 = vmul.f32 %v764, %v899
      %v989 = vmul.f32 %v765, %v904
      %v990 = vmul.f32 %v766, %v909
      %v991 = vmul.f32 %v767, %v914
      %v992 = vmul.f32 %v768, %v919
      %v993 = vmul.f32 %v769, %v924
      %v994 = vmul.f32 %v770, %v929
      %v995 = vmul.f32 %v771, %v934
      %v996 = vmul.f32 %v772, %v939
      %v997 = vmul.f32 %v773, %v944
      %v998 = vmul.f32 %v774, %v949
      %v999 = vmul.f32 %v775, %v954
      %v1000 = vmul.f32 %v776, %v959
      %v1001 = vmul.f32 %v777, %v964
      %v1002 = vmul.f32 %v778, %v969
      %v1003 = vld [vmem:[%s3] sm:$0xff]
      %v1004 = vld [vmem:[%s3 + $0x8] sm:$0xff]
      %v1005 = vld [vmem:[#allocation2 + $0x8] sm:$0xff]
      %v1006 = vld [vmem:[#allocation2 + $0x10] sm:$0xff]
      %v1007 = vld [vmem:[#allocation2 + $0x18] sm:$0xff]
      %v1008 = vld [vmem:[#allocation2 + $0x20] sm:$0xff]
      %v1009 = vld [vmem:[#allocation2 + $0x28] sm:$0xff]
      %v1010 = vld [vmem:[#allocation2 + $0x30] sm:$0xff]
      %v1011 = vld [vmem:[#allocation2 + $0x38] sm:$0xff]
      %v1012 = vld [vmem:[#allocation2 + $0x40] sm:$0xff]
      %v1013 = vld [vmem:[#allocation2 + $0x48] sm:$0xff]
      %v1014 = vld [vmem:[#allocation2 + $0x50] sm:$0xff]
      %v1015 = vld [vmem:[#allocation2 + $0x58] sm:$0xff]
      %v1016 = vld [vmem:[#allocation2 + $0x60] sm:$0xff]
      %v1017 = vld [vmem:[#allocation2 + $0x68] sm:$0xff]
      %v1018 = vld [vmem:[#allocation2 + $0x70] sm:$0xff]
      %v1019 = vld [vmem:[#allocation2 + $0x78] sm:$0xff]
      %v1020 = vld [vmem:[#allocation2 + $0x80] sm:$0xff]
      %v1021 = vld [vmem:[#allocation2 + $0x88] sm:$0xff]
      %v1022 = vld [vmem:[#allocation2 + $0x90] sm:$0xff]
      %v1023 = vld [vmem:[#allocation2 + $0x98] sm:$0xff]
      %v1024 = vld [vmem:[#allocation2 + $0xa0] sm:$0xff]
      %v1025 = vld [vmem:[#allocation2 + $0xa8] sm:$0xff]
      %v1026 = vld [vmem:[#allocation2 + $0xb0] sm:$0xff]
      %v1027 = vld [vmem:[#allocation2 + $0xb8] sm:$0xff]
      %v1028 = vld [vmem:[#allocation2 + $0xc0] sm:$0xff]
      %v1029 = vld [vmem:[#allocation2 + $0xc8] sm:$0xff]
      %v1030 = vld [vmem:[#allocation2 + $0xd0] sm:$0xff]
      %v1031 = vld [vmem:[#allocation2 + $0xd8] sm:$0xff]
      %v1032 = vld [vmem:[#allocation2 + $0xe0] sm:$0xff]
      %v1033 = vld [vmem:[#allocation2 + $0xe8] sm:$0xff]
      %v1034 = vld [vmem:[#allocation2 + $0xf0] sm:$0xff]
      %v1035 = vld [vmem:[#allocation2 + $0xf8] sm:$0xff]
      %v1036 = vld [vmem:[#allocation2 + $0x100] sm:$0xff]
      %v1037 = vld [vmem:[%s3 + $0x10] sm:$0xff]
      %v1038 = vld [vmem:[%s3 + $0x18] sm:$0xff]
      %v1040 = vsel %vm323, %v1005, 0
      %v1043 = vsel %vm323, %v1006, 0
      %v1046 = vsel %vm323, %v1007, 0
      %v1049 = vsel %vm323, %v1008, 0
      %v1052 = vsel %vm323, %v1009, 0
      %v1055 = vsel %vm323, %v1010, 0
      %v1058 = vsel %vm323, %v1011, 0
      %v1061 = vsel %vm323, %v1012, 0
      %v1064 = vsel %vm323, %v1013, 0
      %v1067 = vsel %vm323, %v1014, 0
      %v1070 = vsel %vm323, %v1015, 0
      %v1073 = vsel %vm323, %v1016, 0
      %v1076 = vsel %vm323, %v1017, 0
      %v1079 = vsel %vm323, %v1018, 0
      %v1082 = vsel %vm323, %v1019, 0
      %v1085 = vsel %vm323, %v1020, 0
      %v1088 = vsel %vm323, %v1021, 0
      %v1091 = vsel %vm323, %v1022, 0
      %v1094 = vsel %vm323, %v1023, 0
      %v1097 = vsel %vm323, %v1024, 0
      %v1100 = vsel %vm323, %v1025, 0
      %v1103 = vsel %vm323, %v1026, 0
      %v1106 = vsel %vm323, %v1027, 0
      %v1109 = vsel %vm323, %v1028, 0
      %v1112 = vsel %vm323, %v1029, 0
      %v1115 = vsel %vm323, %v1030, 0
      %v1118 = vsel %vm323, %v1031, 0
      %v1121 = vsel %vm323, %v1032, 0
      %v1124 = vsel %vm323, %v1033, 0
      %v1127 = vsel %vm323, %v1034, 0
      %v1130 = vsel %vm323, %v1035, 0
      %v1133 = vsel %vm323, %v1036, 0
      %1135 = vmatprep.subr.mxu0 0.0
      %1136 = vmatpush1.msra.mxu0 0.0
      %1137 = vmatprep.subr.mxu0 0.0
      %1138 = vmatpush1.msra.mxu0 0.0
      %1139 = vmatprep.subr.mxu0 0.0
      %1140 = vmatpush1.msra.mxu0 0.0
      %1141 = vmatprep.subr.mxu0 0.0
      %1142 = vmatpush1.msra.mxu0 0.0
      %1143 = vmatprep.subr.mxu0 0.0
      %1144 = vmatpush1.msra.mxu0 0.0
      %1145 = vmatprep.subr.mxu0 0.0
      %1146 = vmatpush1.msra.mxu0 0.0
      %1147 = vmatprep.subr.mxu0 0.0
      %1148 = vmatpush1.msra.mxu0 0.0
      %1149 = vmatprep.subr.mxu0 0.0
      %1150 = vmatpush1.msra.mxu0 0.0
      %1151 = vmatprep.subr.mxu0 0.0
      %1152 = vmatpush1.msra.mxu0 0.0
      %1153 = vmatprep.subr.mxu0 0.0
      %1154 = vmatpush1.msra.mxu0 0.0
      %1155 = vmatprep.subr.mxu0 0.0
      %1156 = vmatpush1.msra.mxu0 0.0
      %1157 = vmatprep.subr.mxu0 0.0
      %1158 = vmatpush1.msra.mxu0 0.0
      %1159 = vmatprep.subr.mxu0 0.0
      %1160 = vmatpush1.msra.mxu0 0.0
      %1161 = vmatprep.subr.mxu0 0.0
      %1162 = vmatpush1.msra.mxu0 0.0
      %1163 = vmatprep.subr.mxu0 0.0
      %1164 = vmatpush1.msra.mxu0 %v1038
      %1165 = vmatprep.subr.mxu0 0.0
      %1166 = vmatpush1.msra.mxu0 %v1037
      %1167 = vmatprep.subr.mxu0 0.0
      %1168 = vmatpush2.msra.mxu0 0.0
      %1169 = vmatprep.subr.mxu0 0.0
      %1170 = vmatpush2.msra.mxu0 0.0
      %1171 = vmatprep.subr.mxu0 0.0
      %1172 = vmatpush2.msra.mxu0 0.0
      %1173 = vmatprep.subr.mxu0 0.0
      %1174 = vmatpush2.msra.mxu0 0.0
      %1175 = vmatprep.subr.mxu0 0.0
      %1176 = vmatpush2.msra.mxu0 0.0
      %1177 = vmatprep.subr.mxu0 0.0
      %1178 = vmatpush2.msra.mxu0 0.0
      %1179 = vmatprep.subr.mxu0 0.0
      %1180 = vmatpush2.msra.mxu0 0.0
      %1181 = vmatprep.subr.mxu0 0.0
      %1182 = vmatpush2.msra.mxu0 0.0
      %1183 = vmatprep.subr.mxu0 0.0
      %1184 = vmatpush2.msra.mxu0 0.0
      %1185 = vmatprep.subr.mxu0 0.0
      %1186 = vmatpush2.msra.mxu0 0.0
      %1187 = vmatprep.subr.mxu0 0.0
      %1188 = vmatpush2.msra.mxu0 0.0
      %1189 = vmatprep.subr.mxu0 0.0
      %1190 = vmatpush2.msra.mxu0 0.0
      %1191 = vmatprep.subr.mxu0 0.0
      %1192 = vmatpush2.msra.mxu0 0.0
      %1193 = vmatprep.subr.mxu0 0.0
      %1194 = vmatpush2.msra.mxu0 0.0
      %1195 = vmatprep.subr.mxu0 0.0
      %1196 = vmatpush2.msra.mxu0 0.0
      %1197 = vmatprep.subr.mxu0 0.0
      %1198 = vmatpush2.msra.mxu0 0.0
      %1199 = vmatprep.mubr.f32.mxu0 0.0
      %1200 = vmatmul.mubr.f32.gmra.mxu0 %v1040
      %v1201 = vpop.f32.mrf.mxu0
      %v1202 = vadd.f32 0.0, %v1201
      %v1203 = vpop.f32.mrf.mxu0
      %1204 = vmatprep.mubr.f32.mxu0 0.0
      %1205 = vmatmul.mubr.f32.gmra.mxu0 %v1043
      %v1206 = vpop.f32.mrf.mxu0
      %v1207 = vadd.f32 0.0, %v1206
      %v1208 = vpop.f32.mrf.mxu0
      %1209 = vmatprep.mubr.f32.mxu0 0.0
      %1210 = vmatmul.mubr.f32.gmra.mxu0 %v1046
      %v1211 = vpop.f32.mrf.mxu0
      %v1212 = vadd.f32 0.0, %v1211
      %v1213 = vpop.f32.mrf.mxu0
      %1214 = vmatprep.mubr.f32.mxu0 0.0
      %1215 = vmatmul.mubr.f32.gmra.mxu0 %v1049
      %v1216 = vpop.f32.mrf.mxu0
      %v1217 = vadd.f32 0.0, %v1216
      %v1218 = vpop.f32.mrf.mxu0
      %1219 = vmatprep.mubr.f32.mxu0 0.0
      %1220 = vmatmul.mubr.f32.gmra.mxu0 %v1052
      %v1221 = vpop.f32.mrf.mxu0
      %v1222 = vadd.f32 0.0, %v1221
      %v1223 = vpop.f32.mrf.mxu0
      %1224 = vmatprep.mubr.f32.mxu0 0.0
      %1225 = vmatmul.mubr.f32.gmra.mxu0 %v1055
      %v1226 = vpop.f32.mrf.mxu0
      %v1227 = vadd.f32 0.0, %v1226
      %v1228 = vpop.f32.mrf.mxu0
      %1229 = vmatprep.mubr.f32.mxu0 0.0
      %1230 = vmatmul.mubr.f32.gmra.mxu0 %v1058
      %v1231 = vpop.f32.mrf.mxu0
      %v1232 = vadd.f32 0.0, %v1231
      %v1233 = vpop.f32.mrf.mxu0
      %1234 = vmatprep.mubr.f32.mxu0 0.0
      %1235 = vmatmul.mubr.f32.gmra.mxu0 %v1061
      %v1236 = vpop.f32.mrf.mxu0
      %v1237 = vadd.f32 0.0, %v1236
      %v1238 = vpop.f32.mrf.mxu0
      %1239 = vmatprep.mubr.f32.mxu0 0.0
      %1240 = vmatmul.mubr.f32.gmra.mxu0 %v1064
      %v1241 = vpop.f32.mrf.mxu0
      %v1242 = vadd.f32 0.0, %v1241
      %v1243 = vpop.f32.mrf.mxu0
      %1244 = vmatprep.mubr.f32.mxu0 0.0
      %1245 = vmatmul.mubr.f32.gmra.mxu0 %v1067
      %v1246 = vpop.f32.mrf.mxu0
      %v1247 = vadd.f32 0.0, %v1246
      %v1248 = vpop.f32.mrf.mxu0
      %1249 = vmatprep.mubr.f32.mxu0 0.0
      %1250 = vmatmul.mubr.f32.gmra.mxu0 %v1070
      %v1251 = vpop.f32.mrf.mxu0
      %v1252 = vadd.f32 0.0, %v1251
      %v1253 = vpop.f32.mrf.mxu0
      %1254 = vmatprep.mubr.f32.mxu0 0.0
      %1255 = vmatmul.mubr.f32.gmra.mxu0 %v1073
      %v1256 = vpop.f32.mrf.mxu0
      %v1257 = vadd.f32 0.0, %v1256
      %v1258 = vpop.f32.mrf.mxu0
      %1259 = vmatprep.mubr.f32.mxu0 0.0
      %1260 = vmatmul.mubr.f32.gmra.mxu0 %v1076
      %v1261 = vpop.f32.mrf.mxu0
      %v1262 = vadd.f32 0.0, %v1261
      %v1263 = vpop.f32.mrf.mxu0
      %1264 = vmatprep.mubr.f32.mxu0 0.0
      %1265 = vmatmul.mubr.f32.gmra.mxu0 %v1079
      %v1266 = vpop.f32.mrf.mxu0
      %v1267 = vadd.f32 0.0, %v1266
      %v1268 = vpop.f32.mrf.mxu0
      %1269 = vmatprep.mubr.f32.mxu0 0.0
      %1270 = vmatmul.mubr.f32.gmra.mxu0 %v1082
      %v1271 = vpop.f32.mrf.mxu0
      %v1272 = vadd.f32 0.0, %v1271
      %v1273 = vpop.f32.mrf.mxu0
      %1274 = vmatprep.mubr.f32.mxu0 0.0
      %1275 = vmatmul.mubr.f32.gmra.mxu0 %v1085
      %v1276 = vpop.f32.mrf.mxu0
      %v1277 = vadd.f32 0.0, %v1276
      %v1278 = vpop.f32.mrf.mxu0
      %1279 = vmatprep.mubr.f32.mxu0 0.0
      %1280 = vmatmul.mubr.f32.gmra.mxu0 %v1088
      %v1281 = vpop.f32.mrf.mxu0
      %v1282 = vadd.f32 0.0, %v1281
      %v1283 = vpop.f32.mrf.mxu0
      %1284 = vmatprep.mubr.f32.mxu0 0.0
      %1285 = vmatmul.mubr.f32.gmra.mxu0 %v1091
      %v1286 = vpop.f32.mrf.mxu0
      %v1287 = vadd.f32 0.0, %v1286
      %v1288 = vpop.f32.mrf.mxu0
      %1289 = vmatprep.mubr.f32.mxu0 0.0
      %1290 = vmatmul.mubr.f32.gmra.mxu0 %v1094
      %v1291 = vpop.f32.mrf.mxu0
      %v1292 = vadd.f32 0.0, %v1291
      %v1293 = vpop.f32.mrf.mxu0
      %1294 = vmatprep.mubr.f32.mxu0 0.0
      %1295 = vmatmul.mubr.f32.gmra.mxu0 %v1097
      %v1296 = vpop.f32.mrf.mxu0
      %v1297 = vadd.f32 0.0, %v1296
      %v1298 = vpop.f32.mrf.mxu0
      %1299 = vmatprep.mubr.f32.mxu0 0.0
      %1300 = vmatmul.mubr.f32.gmra.mxu0 %v1100
      %v1301 = vpop.f32.mrf.mxu0
      %v1302 = vadd.f32 0.0, %v1301
      %v1303 = vpop.f32.mrf.mxu0
      %1304 = vmatprep.mubr.f32.mxu0 0.0
      %1305 = vmatmul.mubr.f32.gmra.mxu0 %v1103
      %v1306 = vpop.f32.mrf.mxu0
      %v1307 = vadd.f32 0.0, %v1306
      %v1308 = vpop.f32.mrf.mxu0
      %1309 = vmatprep.mubr.f32.mxu0 0.0
      %1310 = vmatmul.mubr.f32.gmra.mxu0 %v1106
      %v1311 = vpop.f32.mrf.mxu0
      %v1312 = vadd.f32 0.0, %v1311
      %v1313 = vpop.f32.mrf.mxu0
      %1314 = vmatprep.mubr.f32.mxu0 0.0
      %1315 = vmatmul.mubr.f32.gmra.mxu0 %v1109
      %v1316 = vpop.f32.mrf.mxu0
      %v1317 = vadd.f32 0.0, %v1316
      %v1318 = vpop.f32.mrf.mxu0
      %1319 = vmatprep.mubr.f32.mxu0 0.0
      %1320 = vmatmul.mubr.f32.gmra.mxu0 %v1112
      %v1321 = vpop.f32.mrf.mxu0
      %v1322 = vadd.f32 0.0, %v1321
      %v1323 = vpop.f32.mrf.mxu0
      %1324 = vmatprep.mubr.f32.mxu0 0.0
      %1325 = vmatmul.mubr.f32.gmra.mxu0 %v1115
      %v1326 = vpop.f32.mrf.mxu0
      %v1327 = vadd.f32 0.0, %v1326
      %v1328 = vpop.f32.mrf.mxu0
      %1329 = vmatprep.mubr.f32.mxu0 0.0
      %1330 = vmatmul.mubr.f32.gmra.mxu0 %v1118
      %v1331 = vpop.f32.mrf.mxu0
      %v1332 = vadd.f32 0.0, %v1331
      %v1333 = vpop.f32.mrf.mxu0
      %1334 = vmatprep.mubr.f32.mxu0 0.0
      %1335 = vmatmul.mubr.f32.gmra.mxu0 %v1121
      %v1336 = vpop.f32.mrf.mxu0
      %v1337 = vadd.f32 0.0, %v1336
      %v1338 = vpop.f32.mrf.mxu0
      %1339 = vmatprep.mubr.f32.mxu0 0.0
      %1340 = vmatmul.mubr.f32.gmra.mxu0 %v1124
      %v1341 = vpop.f32.mrf.mxu0
      %v1342 = vadd.f32 0.0, %v1341
      %v1343 = vpop.f32.mrf.mxu0
      %1344 = vmatprep.mubr.f32.mxu0 0.0
      %1345 = vmatmul.mubr.f32.gmra.mxu0 %v1127
      %v1346 = vpop.f32.mrf.mxu0
      %v1347 = vadd.f32 0.0, %v1346
      %v1348 = vpop.f32.mrf.mxu0
      %1349 = vmatprep.mubr.f32.mxu0 0.0
      %1350 = vmatmul.mubr.f32.gmra.mxu0 %v1130
      %v1351 = vpop.f32.mrf.mxu0
      %v1352 = vadd.f32 0.0, %v1351
      %v1353 = vpop.f32.mrf.mxu0
      %1354 = vmatprep.mubr.f32.mxu0 0.0
      %1355 = vmatmul.mubr.f32.gmra.mxu0 %v1133
      %v1356 = vpop.f32.mrf.mxu0
      %v1357 = vadd.f32 0.0, %v1356
      %v1358 = vpop.f32.mrf.mxu0
      %1359 = vdwg.mxu0
      %v1361 = vsel %vm323, %v971, 0
      %v1364 = vsel %vm323, %v972, 0
      %v1367 = vsel %vm323, %v973, 0
      %v1370 = vsel %vm323, %v974, 0
      %v1373 = vsel %vm323, %v975, 0
      %v1376 = vsel %vm323, %v976, 0
      %v1379 = vsel %vm323, %v977, 0
      %v1382 = vsel %vm323, %v978, 0
      %v1385 = vsel %vm323, %v979, 0
      %v1388 = vsel %vm323, %v980, 0
      %v1391 = vsel %vm323, %v981, 0
      %v1394 = vsel %vm323, %v982, 0
      %v1397 = vsel %vm323, %v983, 0
      %v1400 = vsel %vm323, %v984, 0
      %v1403 = vsel %vm323, %v985, 0
      %v1406 = vsel %vm323, %v986, 0
      %v1409 = vsel %vm323, %v987, 0
      %v1412 = vsel %vm323, %v988, 0
      %v1415 = vsel %vm323, %v989, 0
      %v1418 = vsel %vm323, %v990, 0
      %v1421 = vsel %vm323, %v991, 0
      %v1424 = vsel %vm323, %v992, 0
      %v1427 = vsel %vm323, %v993, 0
      %v1430 = vsel %vm323, %v994, 0
      %v1433 = vsel %vm323, %v995, 0
      %v1436 = vsel %vm323, %v996, 0
      %v1439 = vsel %vm323, %v997, 0
      %v1442 = vsel %vm323, %v998, 0
      %v1445 = vsel %vm323, %v999, 0
      %v1448 = vsel %vm323, %v1000, 0
      %v1451 = vsel %vm323, %v1001, 0
      %v1454 = vsel %vm323, %v1002, 0
      %1456 = vmatprep.subr.mxu0 0.0
      %1457 = vmatpush1.msra.mxu0 0.0
      %1458 = vmatprep.subr.mxu0 0.0
      %1459 = vmatpush1.msra.mxu0 0.0
      %1460 = vmatprep.subr.mxu0 0.0
      %1461 = vmatpush1.msra.mxu0 0.0
      %1462 = vmatprep.subr.mxu0 0.0
      %1463 = vmatpush1.msra.mxu0 0.0
      %1464 = vmatprep.subr.mxu0 0.0
      %1465 = vmatpush1.msra.mxu0 0.0
      %1466 = vmatprep.subr.mxu0 0.0
      %1467 = vmatpush1.msra.mxu0 0.0
      %1468 = vmatprep.subr.mxu0 0.0
      %1469 = vmatpush1.msra.mxu0 0.0
      %1470 = vmatprep.subr.mxu0 0.0
      %1471 = vmatpush1.msra.mxu0 0.0
      %1472 = vmatprep.subr.mxu0 0.0
      %1473 = vmatpush1.msra.mxu0 0.0
      %1474 = vmatprep.subr.mxu0 0.0
      %1475 = vmatpush1.msra.mxu0 0.0
      %1476 = vmatprep.subr.mxu0 0.0
      %1477 = vmatpush1.msra.mxu0 0.0
      %1478 = vmatprep.subr.mxu0 0.0
      %1479 = vmatpush1.msra.mxu0 0.0
      %1480 = vmatprep.subr.mxu0 0.0
      %1481 = vmatpush1.msra.mxu0 0.0
      %1482 = vmatprep.subr.mxu0 0.0
      %1483 = vmatpush1.msra.mxu0 0.0
      %1484 = vmatprep.subr.mxu0 0.0
      %1485 = vmatpush1.msra.mxu0 %v1004
      %1486 = vmatprep.subr.mxu0 0.0
      %1487 = vmatpush1.msra.mxu0 %v1003
      %1488 = vmatprep.subr.mxu0 0.0
      %1489 = vmatpush2.msra.mxu0 0.0
      %1490 = vmatprep.subr.mxu0 0.0
      %1491 = vmatpush2.msra.mxu0 0.0
      %1492 = vmatprep.subr.mxu0 0.0
      %1493 = vmatpush2.msra.mxu0 0.0
      %1494 = vmatprep.subr.mxu0 0.0
      %1495 = vmatpush2.msra.mxu0 0.0
      %1496 = vmatprep.subr.mxu0 0.0
      %1497 = vmatpush2.msra.mxu0 0.0
      %1498 = vmatprep.subr.mxu0 0.0
      %1499 = vmatpush2.msra.mxu0 0.0
      %1500 = vmatprep.subr.mxu0 0.0
      %1501 = vmatpush2.msra.mxu0 0.0
      %1502 = vmatprep.subr.mxu0 0.0
      %1503 = vmatpush2.msra.mxu0 0.0
      %1504 = vmatprep.subr.mxu0 0.0
      %1505 = vmatpush2.msra.mxu0 0.0
      %1506 = vmatprep.subr.mxu0 0.0
      %1507 = vmatpush2.msra.mxu0 0.0
      %1508 = vmatprep.subr.mxu0 0.0
      %1509 = vmatpush2.msra.mxu0 0.0
      %1510 = vmatprep.subr.mxu0 0.0
      %1511 = vmatpush2.msra.mxu0 0.0
      %1512 = vmatprep.subr.mxu0 0.0
      %1513 = vmatpush2.msra.mxu0 0.0
      %1514 = vmatprep.subr.mxu0 0.0
      %1515 = vmatpush2.msra.mxu0 0.0
      %1516 = vmatprep.subr.mxu0 0.0
      %1517 = vmatpush2.msra.mxu0 0.0
      %1518 = vmatprep.subr.mxu0 0.0
      %1519 = vmatpush2.msra.mxu0 0.0
      %1520 = vmatprep.mubr.f32.mxu0 0.0
      %1521 = vmatmul.mubr.f32.gmra.mxu0 %v1361
      %v1522 = vpop.f32.mrf.mxu0
      %v1523 = vadd.f32 %v1202, %v1522
      %v1524 = vpop.f32.mrf.mxu0
      %1525 = vmatprep.mubr.f32.mxu0 0.0
      %1526 = vmatmul.mubr.f32.gmra.mxu0 %v1364
      %v1527 = vpop.f32.mrf.mxu0
      %v1528 = vadd.f32 %v1207, %v1527
      %v1529 = vpop.f32.mrf.mxu0
      %1530 = vmatprep.mubr.f32.mxu0 0.0
      %1531 = vmatmul.mubr.f32.gmra.mxu0 %v1367
      %v1532 = vpop.f32.mrf.mxu0
      %v1533 = vadd.f32 %v1212, %v1532
      %v1534 = vpop.f32.mrf.mxu0
      %1535 = vmatprep.mubr.f32.mxu0 0.0
      %1536 = vmatmul.mubr.f32.gmra.mxu0 %v1370
      %v1537 = vpop.f32.mrf.mxu0
      %v1538 = vadd.f32 %v1217, %v1537
      %v1539 = vpop.f32.mrf.mxu0
      %1540 = vmatprep.mubr.f32.mxu0 0.0
      %1541 = vmatmul.mubr.f32.gmra.mxu0 %v1373
      %v1542 = vpop.f32.mrf.mxu0
      %v1543 = vadd.f32 %v1222, %v1542
      %v1544 = vpop.f32.mrf.mxu0
      %1545 = vmatprep.mubr.f32.mxu0 0.0
      %1546 = vmatmul.mubr.f32.gmra.mxu0 %v1376
      %v1547 = vpop.f32.mrf.mxu0
      %v1548 = vadd.f32 %v1227, %v1547
      %v1549 = vpop.f32.mrf.mxu0
      %1550 = vmatprep.mubr.f32.mxu0 0.0
      %1551 = vmatmul.mubr.f32.gmra.mxu0 %v1379
      %v1552 = vpop.f32.mrf.mxu0
      %v1553 = vadd.f32 %v1232, %v1552
      %v1554 = vpop.f32.mrf.mxu0
      %1555 = vmatprep.mubr.f32.mxu0 0.0
      %1556 = vmatmul.mubr.f32.gmra.mxu0 %v1382
      %v1557 = vpop.f32.mrf.mxu0
      %v1558 = vadd.f32 %v1237, %v1557
      %v1559 = vpop.f32.mrf.mxu0
      %1560 = vmatprep.mubr.f32.mxu0 0.0
      %1561 = vmatmul.mubr.f32.gmra.mxu0 %v1385
      %v1562 = vpop.f32.mrf.mxu0
      %v1563 = vadd.f32 %v1242, %v1562
      %v1564 = vpop.f32.mrf.mxu0
      %1565 = vmatprep.mubr.f32.mxu0 0.0
      %1566 = vmatmul.mubr.f32.gmra.mxu0 %v1388
      %v1567 = vpop.f32.mrf.mxu0
      %v1568 = vadd.f32 %v1247, %v1567
      %v1569 = vpop.f32.mrf.mxu0
      %1570 = vmatprep.mubr.f32.mxu0 0.0
      %1571 = vmatmul.mubr.f32.gmra.mxu0 %v1391
      %v1572 = vpop.f32.mrf.mxu0
      %v1573 = vadd.f32 %v1252, %v1572
      %v1574 = vpop.f32.mrf.mxu0
      %1575 = vmatprep.mubr.f32.mxu0 0.0
      %1576 = vmatmul.mubr.f32.gmra.mxu0 %v1394
      %v1577 = vpop.f32.mrf.mxu0
      %v1578 = vadd.f32 %v1257, %v1577
      %v1579 = vpop.f32.mrf.mxu0
      %1580 = vmatprep.mubr.f32.mxu0 0.0
      %1581 = vmatmul.mubr.f32.gmra.mxu0 %v1397
      %v1582 = vpop.f32.mrf.mxu0
      %v1583 = vadd.f32 %v1262, %v1582
      %v1584 = vpop.f32.mrf.mxu0
      %1585 = vmatprep.mubr.f32.mxu0 0.0
      %1586 = vmatmul.mubr.f32.gmra.mxu0 %v1400
      %v1587 = vpop.f32.mrf.mxu0
      %v1588 = vadd.f32 %v1267, %v1587
      %v1589 = vpop.f32.mrf.mxu0
      %1590 = vmatprep.mubr.f32.mxu0 0.0
      %1591 = vmatmul.mubr.f32.gmra.mxu0 %v1403
      %v1592 = vpop.f32.mrf.mxu0
      %v1593 = vadd.f32 %v1272, %v1592
      %v1594 = vpop.f32.mrf.mxu0
      %1595 = vmatprep.mubr.f32.mxu0 0.0
      %1596 = vmatmul.mubr.f32.gmra.mxu0 %v1406
      %v1597 = vpop.f32.mrf.mxu0
      %v1598 = vadd.f32 %v1277, %v1597
      %v1599 = vpop.f32.mrf.mxu0
      %1600 = vmatprep.mubr.f32.mxu0 0.0
      %1601 = vmatmul.mubr.f32.gmra.mxu0 %v1409
      %v1602 = vpop.f32.mrf.mxu0
      %v1603 = vadd.f32 %v1282, %v1602
      %v1604 = vpop.f32.mrf.mxu0
      %1605 = vmatprep.mubr.f32.mxu0 0.0
      %1606 = vmatmul.mubr.f32.gmra.mxu0 %v1412
      %v1607 = vpop.f32.mrf.mxu0
      %v1608 = vadd.f32 %v1287, %v1607
      %v1609 = vpop.f32.mrf.mxu0
      %1610 = vmatprep.mubr.f32.mxu0 0.0
      %1611 = vmatmul.mubr.f32.gmra.mxu0 %v1415
      %v1612 = vpop.f32.mrf.mxu0
      %v1613 = vadd.f32 %v1292, %v1612
      %v1614 = vpop.f32.mrf.mxu0
      %1615 = vmatprep.mubr.f32.mxu0 0.0
      %1616 = vmatmul.mubr.f32.gmra.mxu0 %v1418
      %v1617 = vpop.f32.mrf.mxu0
      %v1618 = vadd.f32 %v1297, %v1617
      %v1619 = vpop.f32.mrf.mxu0
      %1620 = vmatprep.mubr.f32.mxu0 0.0
      %1621 = vmatmul.mubr.f32.gmra.mxu0 %v1421
      %v1622 = vpop.f32.mrf.mxu0
      %v1623 = vadd.f32 %v1302, %v1622
      %v1624 = vpop.f32.mrf.mxu0
      %1625 = vmatprep.mubr.f32.mxu0 0.0
      %1626 = vmatmul.mubr.f32.gmra.mxu0 %v1424
      %v1627 = vpop.f32.mrf.mxu0
      %v1628 = vadd.f32 %v1307, %v1627
      %v1629 = vpop.f32.mrf.mxu0
      %1630 = vmatprep.mubr.f32.mxu0 0.0
      %1631 = vmatmul.mubr.f32.gmra.mxu0 %v1427
      %v1632 = vpop.f32.mrf.mxu0
      %v1633 = vadd.f32 %v1312, %v1632
      %v1634 = vpop.f32.mrf.mxu0
      %1635 = vmatprep.mubr.f32.mxu0 0.0
      %1636 = vmatmul.mubr.f32.gmra.mxu0 %v1430
      %v1637 = vpop.f32.mrf.mxu0
      %v1638 = vadd.f32 %v1317, %v1637
      %v1639 = vpop.f32.mrf.mxu0
      %1640 = vmatprep.mubr.f32.mxu0 0.0
      %1641 = vmatmul.mubr.f32.gmra.mxu0 %v1433
      %v1642 = vpop.f32.mrf.mxu0
      %v1643 = vadd.f32 %v1322, %v1642
      %v1644 = vpop.f32.mrf.mxu0
      %1645 = vmatprep.mubr.f32.mxu0 0.0
      %1646 = vmatmul.mubr.f32.gmra.mxu0 %v1436
      %v1647 = vpop.f32.mrf.mxu0
      %v1648 = vadd.f32 %v1327, %v1647
      %v1649 = vpop.f32.mrf.mxu0
      %1650 = vmatprep.mubr.f32.mxu0 0.0
      %1651 = vmatmul.mubr.f32.gmra.mxu0 %v1439
      %v1652 = vpop.f32.mrf.mxu0
      %v1653 = vadd.f32 %v1332, %v1652
      %v1654 = vpop.f32.mrf.mxu0
      %1655 = vmatprep.mubr.f32.mxu0 0.0
      %1656 = vmatmul.mubr.f32.gmra.mxu0 %v1442
      %v1657 = vpop.f32.mrf.mxu0
      %v1658 = vadd.f32 %v1337, %v1657
      %v1659 = vpop.f32.mrf.mxu0
      %1660 = vmatprep.mubr.f32.mxu0 0.0
      %1661 = vmatmul.mubr.f32.gmra.mxu0 %v1445
      %v1662 = vpop.f32.mrf.mxu0
      %v1663 = vadd.f32 %v1342, %v1662
      %v1664 = vpop.f32.mrf.mxu0
      %1665 = vmatprep.mubr.f32.mxu0 0.0
      %1666 = vmatmul.mubr.f32.gmra.mxu0 %v1448
      %v1667 = vpop.f32.mrf.mxu0
      %v1668 = vadd.f32 %v1347, %v1667
      %v1669 = vpop.f32.mrf.mxu0
      %1670 = vmatprep.mubr.f32.mxu0 0.0
      %1671 = vmatmul.mubr.f32.gmra.mxu0 %v1451
      %v1672 = vpop.f32.mrf.mxu0
      %v1673 = vadd.f32 %v1352, %v1672
      %v1674 = vpop.f32.mrf.mxu0
      %1675 = vmatprep.mubr.f32.mxu0 0.0
      %1676 = vmatmul.mubr.f32.gmra.mxu0 %v1454
      %v1677 = vpop.f32.mrf.mxu0
      %v1678 = vadd.f32 %v1357, %v1677
      %v1679 = vpop.f32.mrf.mxu0
      %1680 = vdwg.mxu0
      %v1681 = vld [vmem:[#allocation2 + $0x9] sm:$0xff]
      %v1682 = vld [vmem:[#allocation2 + $0x11] sm:$0xff]
      %v1683 = vld [vmem:[#allocation2 + $0x19] sm:$0xff]
      %v1684 = vld [vmem:[#allocation2 + $0x21] sm:$0xff]
      %v1685 = vld [vmem:[#allocation2 + $0x29] sm:$0xff]
      %v1686 = vld [vmem:[#allocation2 + $0x31] sm:$0xff]
      %v1687 = vld [vmem:[#allocation2 + $0x39] sm:$0xff]
      %v1688 = vld [vmem:[#allocation2 + $0x41] sm:$0xff]
      %v1689 = vld [vmem:[#allocation2 + $0x49] sm:$0xff]
      %v1690 = vld [vmem:[#allocation2 + $0x51] sm:$0xff]
      %v1691 = vld [vmem:[#allocation2 + $0x59] sm:$0xff]
      %v1692 = vld [vmem:[#allocation2 + $0x61] sm:$0xff]
      %v1693 = vld [vmem:[#allocation2 + $0x69] sm:$0xff]
      %v1694 = vld [vmem:[#allocation2 + $0x71] sm:$0xff]
      %v1695 = vld [vmem:[#allocation2 + $0x79] sm:$0xff]
      %v1696 = vld [vmem:[#allocation2 + $0x81] sm:$0xff]
      %v1697 = vld [vmem:[#allocation2 + $0x89] sm:$0xff]
      %v1698 = vld [vmem:[#allocation2 + $0x91] sm:$0xff]
      %v1699 = vld [vmem:[#allocation2 + $0x99] sm:$0xff]
      %v1700 = vld [vmem:[#allocation2 + $0xa1] sm:$0xff]
      %v1701 = vld [vmem:[#allocation2 + $0xa9] sm:$0xff]
      %v1702 = vld [vmem:[#allocation2 + $0xb1] sm:$0xff]
      %v1703 = vld [vmem:[#allocation2 + $0xb9] sm:$0xff]
      %v1704 = vld [vmem:[#allocation2 + $0xc1] sm:$0xff]
      %v1705 = vld [vmem:[#allocation2 + $0xc9] sm:$0xff]
      %v1706 = vld [vmem:[#allocation2 + $0xd1] sm:$0xff]
      %v1707 = vld [vmem:[#allocation2 + $0xd9] sm:$0xff]
      %v1708 = vld [vmem:[#allocation2 + $0xe1] sm:$0xff]
      %v1709 = vld [vmem:[#allocation2 + $0xe9] sm:$0xff]
      %v1710 = vld [vmem:[#allocation2 + $0xf1] sm:$0xff]
      %v1711 = vld [vmem:[#allocation2 + $0xf9] sm:$0xff]
      %v1712 = vld [vmem:[#allocation2 + $0x101] sm:$0xff]
      %v1713 = vld [vmem:[%s6] sm:$0xff]
      %v1714 = vld [vmem:[%s6 + $0x8] sm:$0xff]
      %v1715 = vld [vmem:[%s6 + $0x10] sm:$0xff]
      %v1716 = vld [vmem:[%s6 + $0x18] sm:$0xff]
      %v1717 = vld [vmem:[%s6 + $0x20] sm:$0xff]
      %v1718 = vld [vmem:[%s6 + $0x28] sm:$0xff]
      %v1719 = vld [vmem:[%s6 + $0x30] sm:$0xff]
      %v1720 = vld [vmem:[%s6 + $0x38] sm:$0xff]
      %v1721 = vld [vmem:[%s6 + $0x40] sm:$0xff]
      %v1722 = vld [vmem:[%s6 + $0x48] sm:$0xff]
      %v1723 = vld [vmem:[%s6 + $0x50] sm:$0xff]
      %v1724 = vld [vmem:[%s6 + $0x58] sm:$0xff]
      %v1725 = vld [vmem:[%s6 + $0x60] sm:$0xff]
      %v1726 = vld [vmem:[%s6 + $0x68] sm:$0xff]
      %v1727 = vld [vmem:[%s6 + $0x70] sm:$0xff]
      %v1728 = vld [vmem:[%s6 + $0x78] sm:$0xff]
      %v1729 = vld [vmem:[%s6 + $0x80] sm:$0xff]
      %v1730 = vld [vmem:[%s6 + $0x88] sm:$0xff]
      %v1731 = vld [vmem:[%s6 + $0x90] sm:$0xff]
      %v1732 = vld [vmem:[%s6 + $0x98] sm:$0xff]
      %v1733 = vld [vmem:[%s6 + $0xa0] sm:$0xff]
      %v1734 = vld [vmem:[%s6 + $0xa8] sm:$0xff]
      %v1735 = vld [vmem:[%s6 + $0xb0] sm:$0xff]
      %v1736 = vld [vmem:[%s6 + $0xb8] sm:$0xff]
      %v1737 = vld [vmem:[%s6 + $0xc0] sm:$0xff]
      %v1738 = vld [vmem:[%s6 + $0xc8] sm:$0xff]
      %v1739 = vld [vmem:[%s6 + $0xd0] sm:$0xff]
      %v1740 = vld [vmem:[%s6 + $0xd8] sm:$0xff]
      %v1741 = vld [vmem:[%s6 + $0xe0] sm:$0xff]
      %v1742 = vld [vmem:[%s6 + $0xe8] sm:$0xff]
      %v1743 = vld [vmem:[%s6 + $0xf0] sm:$0xff]
      %v1744 = vld [vmem:[%s6 + $0xf8] sm:$0xff]
      %1746 = vset.pattern.permute.xlu0 0
      %1747 = vperm.xlu0 %1746, %v1713
      %v1748 = vpop.permute.xlu0 %1747
      %1751 = vset.pattern.permute.xlu0 0
      %1752 = vperm.xlu0 %1751, %v1714
      %v1753 = vpop.permute.xlu0 %1752
      %1756 = vset.pattern.permute.xlu0 0
      %1757 = vperm.xlu0 %1756, %v1715
      %v1758 = vpop.permute.xlu0 %1757
      %1761 = vset.pattern.permute.xlu0 0
      %1762 = vperm.xlu0 %1761, %v1716
      %v1763 = vpop.permute.xlu0 %1762
      %1766 = vset.pattern.permute.xlu0 0
      %1767 = vperm.xlu0 %1766, %v1717
      %v1768 = vpop.permute.xlu0 %1767
      %1771 = vset.pattern.permute.xlu0 0
      %1772 = vperm.xlu0 %1771, %v1718
      %v1773 = vpop.permute.xlu0 %1772
      %1776 = vset.pattern.permute.xlu0 0
      %1777 = vperm.xlu0 %1776, %v1719
      %v1778 = vpop.permute.xlu0 %1777
      %1781 = vset.pattern.permute.xlu0 0
      %1782 = vperm.xlu0 %1781, %v1720
      %v1783 = vpop.permute.xlu0 %1782
      %1786 = vset.pattern.permute.xlu0 0
      %1787 = vperm.xlu0 %1786, %v1721
      %v1788 = vpop.permute.xlu0 %1787
      %1791 = vset.pattern.permute.xlu0 0
      %1792 = vperm.xlu0 %1791, %v1722
      %v1793 = vpop.permute.xlu0 %1792
      %1796 = vset.pattern.permute.xlu0 0
      %1797 = vperm.xlu0 %1796, %v1723
      %v1798 = vpop.permute.xlu0 %1797
      %1801 = vset.pattern.permute.xlu0 0
      %1802 = vperm.xlu0 %1801, %v1724
      %v1803 = vpop.permute.xlu0 %1802
      %1806 = vset.pattern.permute.xlu0 0
      %1807 = vperm.xlu0 %1806, %v1725
      %v1808 = vpop.permute.xlu0 %1807
      %1811 = vset.pattern.permute.xlu0 0
      %1812 = vperm.xlu0 %1811, %v1726
      %v1813 = vpop.permute.xlu0 %1812
      %1816 = vset.pattern.permute.xlu0 0
      %1817 = vperm.xlu0 %1816, %v1727
      %v1818 = vpop.permute.xlu0 %1817
      %1821 = vset.pattern.permute.xlu0 0
      %1822 = vperm.xlu0 %1821, %v1728
      %v1823 = vpop.permute.xlu0 %1822
      %1826 = vset.pattern.permute.xlu0 0
      %1827 = vperm.xlu0 %1826, %v1729
      %v1828 = vpop.permute.xlu0 %1827
      %1831 = vset.pattern.permute.xlu0 0
      %1832 = vperm.xlu0 %1831, %v1730
      %v1833 = vpop.permute.xlu0 %1832
      %1836 = vset.pattern.permute.xlu0 0
      %1837 = vperm.xlu0 %1836, %v1731
      %v1838 = vpop.permute.xlu0 %1837
      %1841 = vset.pattern.permute.xlu0 0
      %1842 = vperm.xlu0 %1841, %v1732
      %v1843 = vpop.permute.xlu0 %1842
      %1846 = vset.pattern.permute.xlu0 0
      %1847 = vperm.xlu0 %1846, %v1733
      %v1848 = vpop.permute.xlu0 %1847
      %1851 = vset.pattern.permute.xlu0 0
      %1852 = vperm.xlu0 %1851, %v1734
      %v1853 = vpop.permute.xlu0 %1852
      %1856 = vset.pattern.permute.xlu0 0
      %1857 = vperm.xlu0 %1856, %v1735
      %v1858 = vpop.permute.xlu0 %1857
      %1861 = vset.pattern.permute.xlu0 0
      %1862 = vperm.xlu0 %1861, %v1736
      %v1863 = vpop.permute.xlu0 %1862
      %1866 = vset.pattern.permute.xlu0 0
      %1867 = vperm.xlu0 %1866, %v1737
      %v1868 = vpop.permute.xlu0 %1867
      %1871 = vset.pattern.permute.xlu0 0
      %1872 = vperm.xlu0 %1871, %v1738
      %v1873 = vpop.permute.xlu0 %1872
      %1876 = vset.pattern.permute.xlu0 0
      %1877 = vperm.xlu0 %1876, %v1739
      %v1878 = vpop.permute.xlu0 %1877
      %1881 = vset.pattern.permute.xlu0 0
      %1882 = vperm.xlu0 %1881, %v1740
      %v1883 = vpop.permute.xlu0 %1882
      %1886 = vset.pattern.permute.xlu0 0
      %1887 = vperm.xlu0 %1886, %v1741
      %v1888 = vpop.permute.xlu0 %1887
      %1891 = vset.pattern.permute.xlu0 0
      %1892 = vperm.xlu0 %1891, %v1742
      %v1893 = vpop.permute.xlu0 %1892
      %1896 = vset.pattern.permute.xlu0 0
      %1897 = vperm.xlu0 %1896, %v1743
      %v1898 = vpop.permute.xlu0 %1897
      %1901 = vset.pattern.permute.xlu0 0
      %1902 = vperm.xlu0 %1901, %v1744
      %v1903 = vpop.permute.xlu0 %1902
      %v1905 = vmul.f32 %v1681, %v1748
      %v1906 = vmul.f32 %v1682, %v1753
      %v1907 = vmul.f32 %v1683, %v1758
      %v1908 = vmul.f32 %v1684, %v1763
      %v1909 = vmul.f32 %v1685, %v1768
      %v1910 = vmul.f32 %v1686, %v1773
      %v1911 = vmul.f32 %v1687, %v1778
      %v1912 = vmul.f32 %v1688, %v1783
      %v1913 = vmul.f32 %v1689, %v1788
      %v1914 = vmul.f32 %v1690, %v1793
      %v1915 = vmul.f32 %v1691, %v1798
      %v1916 = vmul.f32 %v1692, %v1803
      %v1917 = vmul.f32 %v1693, %v1808
      %v1918 = vmul.f32 %v1694, %v1813
      %v1919 = vmul.f32 %v1695, %v1818
      %v1920 = vmul.f32 %v1696, %v1823
      %v1921 = vmul.f32 %v1697, %v1828
      %v1922 = vmul.f32 %v1698, %v1833
      %v1923 = vmul.f32 %v1699, %v1838
      %v1924 = vmul.f32 %v1700, %v1843
      %v1925 = vmul.f32 %v1701, %v1848
      %v1926 = vmul.f32 %v1702, %v1853
      %v1927 = vmul.f32 %v1703, %v1858
      %v1928 = vmul.f32 %v1704, %v1863
      %v1929 = vmul.f32 %v1705, %v1868
      %v1930 = vmul.f32 %v1706, %v1873
      %v1931 = vmul.f32 %v1707, %v1878
      %v1932 = vmul.f32 %v1708, %v1883
      %v1933 = vmul.f32 %v1709, %v1888
      %v1934 = vmul.f32 %v1710, %v1893
      %v1935 = vmul.f32 %v1711, %v1898
      %v1936 = vmul.f32 %v1712, %v1903
      %v1937 = vld [vmem:[%s3 + $0x20] sm:$0xff]
      %v1938 = vld [vmem:[%s3 + $0x28] sm:$0xff]
      %v1940 = vsel %vm323, %v1905, 0
      %v1943 = vsel %vm323, %v1906, 0
      %v1946 = vsel %vm323, %v1907, 0
      %v1949 = vsel %vm323, %v1908, 0
      %v1952 = vsel %vm323, %v1909, 0
      %v1955 = vsel %vm323, %v1910, 0
      %v1958 = vsel %vm323, %v1911, 0
      %v1961 = vsel %vm323, %v1912, 0
      %v1964 = vsel %vm323, %v1913, 0
      %v1967 = vsel %vm323, %v1914, 0
      %v1970 = vsel %vm323, %v1915, 0
      %v1973 = vsel %vm323, %v1916, 0
      %v1976 = vsel %vm323, %v1917, 0
      %v1979 = vsel %vm323, %v1918, 0
      %v1982 = vsel %vm323, %v1919, 0
      %v1985 = vsel %vm323, %v1920, 0
      %v1988 = vsel %vm323, %v1921, 0
      %v1991 = vsel %vm323, %v1922, 0
      %v1994 = vsel %vm323, %v1923, 0
      %v1997 = vsel %vm323, %v1924, 0
      %v2000 = vsel %vm323, %v1925, 0
      %v2003 = vsel %vm323, %v1926, 0
      %v2006 = vsel %vm323, %v1927, 0
      %v2009 = vsel %vm323, %v1928, 0
      %v2012 = vsel %vm323, %v1929, 0
      %v2015 = vsel %vm323, %v1930, 0
      %v2018 = vsel %vm323, %v1931, 0
      %v2021 = vsel %vm323, %v1932, 0
      %v2024 = vsel %vm323, %v1933, 0
      %v2027 = vsel %vm323, %v1934, 0
      %v2030 = vsel %vm323, %v1935, 0
      %v2033 = vsel %vm323, %v1936, 0
      %2035 = vmatprep.subr.mxu0 0.0
      %2036 = vmatpush1.msra.mxu0 0.0
      %2037 = vmatprep.subr.mxu0 0.0
      %2038 = vmatpush1.msra.mxu0 0.0
      %2039 = vmatprep.subr.mxu0 0.0
      %2040 = vmatpush1.msra.mxu0 0.0
      %2041 = vmatprep.subr.mxu0 0.0
      %2042 = vmatpush1.msra.mxu0 0.0
      %2043 = vmatprep.subr.mxu0 0.0
      %2044 = vmatpush1.msra.mxu0 0.0
      %2045 = vmatprep.subr.mxu0 0.0
      %2046 = vmatpush1.msra.mxu0 0.0
      %2047 = vmatprep.subr.mxu0 0.0
      %2048 = vmatpush1.msra.mxu0 0.0
      %2049 = vmatprep.subr.mxu0 0.0
      %2050 = vmatpush1.msra.mxu0 0.0
      %2051 = vmatprep.subr.mxu0 0.0
      %2052 = vmatpush1.msra.mxu0 0.0
      %2053 = vmatprep.subr.mxu0 0.0
      %2054 = vmatpush1.msra.mxu0 0.0
      %2055 = vmatprep.subr.mxu0 0.0
      %2056 = vmatpush1.msra.mxu0 0.0
      %2057 = vmatprep.subr.mxu0 0.0
      %2058 = vmatpush1.msra.mxu0 0.0
      %2059 = vmatprep.subr.mxu0 0.0
      %2060 = vmatpush1.msra.mxu0 0.0
      %2061 = vmatprep.subr.mxu0 0.0
      %2062 = vmatpush1.msra.mxu0 0.0
      %2063 = vmatprep.subr.mxu0 0.0
      %2064 = vmatpush1.msra.mxu0 %v1938
      %2065 = vmatprep.subr.mxu0 0.0
      %2066 = vmatpush1.msra.mxu0 %v1937
      %2067 = vmatprep.subr.mxu0 0.0
      %2068 = vmatpush2.msra.mxu0 0.0
      %2069 = vmatprep.subr.mxu0 0.0
      %2070 = vmatpush2.msra.mxu0 0.0
      %2071 = vmatprep.subr.mxu0 0.0
      %2072 = vmatpush2.msra.mxu0 0.0
      %2073 = vmatprep.subr.mxu0 0.0
      %2074 = vmatpush2.msra.mxu0 0.0
      %2075 = vmatprep.subr.mxu0 0.0
      %2076 = vmatpush2.msra.mxu0 0.0
      %2077 = vmatprep.subr.mxu0 0.0
      %2078 = vmatpush2.msra.mxu0 0.0
      %2079 = vmatprep.subr.mxu0 0.0
      %2080 = vmatpush2.msra.mxu0 0.0
      %2081 = vmatprep.subr.mxu0 0.0
      %2082 = vmatpush2.msra.mxu0 0.0
      %2083 = vmatprep.subr.mxu0 0.0
      %2084 = vmatpush2.msra.mxu0 0.0
      %2085 = vmatprep.subr.mxu0 0.0
      %2086 = vmatpush2.msra.mxu0 0.0
      %2087 = vmatprep.subr.mxu0 0.0
      %2088 = vmatpush2.msra.mxu0 0.0
      %2089 = vmatprep.subr.mxu0 0.0
      %2090 = vmatpush2.msra.mxu0 0.0
      %2091 = vmatprep.subr.mxu0 0.0
      %2092 = vmatpush2.msra.mxu0 0.0
      %2093 = vmatprep.subr.mxu0 0.0
      %2094 = vmatpush2.msra.mxu0 0.0
      %2095 = vmatprep.subr.mxu0 0.0
      %2096 = vmatpush2.msra.mxu0 0.0
      %2097 = vmatprep.subr.mxu0 0.0
      %2098 = vmatpush2.msra.mxu0 0.0
      %2099 = vmatprep.mubr.f32.mxu0 0.0
      %2100 = vmatmul.mubr.f32.gmra.mxu0 %v1940
      %v2101 = vpop.f32.mrf.mxu0
      %v2102 = vadd.f32 0.0, %v2101
      %v2103 = vpop.f32.mrf.mxu0
      %2104 = vmatprep.mubr.f32.mxu0 0.0
      %2105 = vmatmul.mubr.f32.gmra.mxu0 %v1943
      %v2106 = vpop.f32.mrf.mxu0
      %v2107 = vadd.f32 0.0, %v2106
      %v2108 = vpop.f32.mrf.mxu0
      %2109 = vmatprep.mubr.f32.mxu0 0.0
      %2110 = vmatmul.mubr.f32.gmra.mxu0 %v1946
      %v2111 = vpop.f32.mrf.mxu0
      %v2112 = vadd.f32 0.0, %v2111
      %v2113 = vpop.f32.mrf.mxu0
      %2114 = vmatprep.mubr.f32.mxu0 0.0
      %2115 = vmatmul.mubr.f32.gmra.mxu0 %v1949
      %v2116 = vpop.f32.mrf.mxu0
      %v2117 = vadd.f32 0.0, %v2116
      %v2118 = vpop.f32.mrf.mxu0
      %2119 = vmatprep.mubr.f32.mxu0 0.0
      %2120 = vmatmul.mubr.f32.gmra.mxu0 %v1952
      %v2121 = vpop.f32.mrf.mxu0
      %v2122 = vadd.f32 0.0, %v2121
      %v2123 = vpop.f32.mrf.mxu0
      %2124 = vmatprep.mubr.f32.mxu0 0.0
      %2125 = vmatmul.mubr.f32.gmra.mxu0 %v1955
      %v2126 = vpop.f32.mrf.mxu0
      %v2127 = vadd.f32 0.0, %v2126
      %v2128 = vpop.f32.mrf.mxu0
      %2129 = vmatprep.mubr.f32.mxu0 0.0
      %2130 = vmatmul.mubr.f32.gmra.mxu0 %v1958
      %v2131 = vpop.f32.mrf.mxu0
      %v2132 = vadd.f32 0.0, %v2131
      %v2133 = vpop.f32.mrf.mxu0
      %2134 = vmatprep.mubr.f32.mxu0 0.0
      %2135 = vmatmul.mubr.f32.gmra.mxu0 %v1961
      %v2136 = vpop.f32.mrf.mxu0
      %v2137 = vadd.f32 0.0, %v2136
      %v2138 = vpop.f32.mrf.mxu0
      %2139 = vmatprep.mubr.f32.mxu0 0.0
      %2140 = vmatmul.mubr.f32.gmra.mxu0 %v1964
      %v2141 = vpop.f32.mrf.mxu0
      %v2142 = vadd.f32 0.0, %v2141
      %v2143 = vpop.f32.mrf.mxu0
      %2144 = vmatprep.mubr.f32.mxu0 0.0
      %2145 = vmatmul.mubr.f32.gmra.mxu0 %v1967
      %v2146 = vpop.f32.mrf.mxu0
      %v2147 = vadd.f32 0.0, %v2146
      %v2148 = vpop.f32.mrf.mxu0
      %2149 = vmatprep.mubr.f32.mxu0 0.0
      %2150 = vmatmul.mubr.f32.gmra.mxu0 %v1970
      %v2151 = vpop.f32.mrf.mxu0
      %v2152 = vadd.f32 0.0, %v2151
      %v2153 = vpop.f32.mrf.mxu0
      %2154 = vmatprep.mubr.f32.mxu0 0.0
      %2155 = vmatmul.mubr.f32.gmra.mxu0 %v1973
      %v2156 = vpop.f32.mrf.mxu0
      %v2157 = vadd.f32 0.0, %v2156
      %v2158 = vpop.f32.mrf.mxu0
      %2159 = vmatprep.mubr.f32.mxu0 0.0
      %2160 = vmatmul.mubr.f32.gmra.mxu0 %v1976
      %v2161 = vpop.f32.mrf.mxu0
      %v2162 = vadd.f32 0.0, %v2161
      %v2163 = vpop.f32.mrf.mxu0
      %2164 = vmatprep.mubr.f32.mxu0 0.0
      %2165 = vmatmul.mubr.f32.gmra.mxu0 %v1979
      %v2166 = vpop.f32.mrf.mxu0
      %v2167 = vadd.f32 0.0, %v2166
      %v2168 = vpop.f32.mrf.mxu0
      %2169 = vmatprep.mubr.f32.mxu0 0.0
      %2170 = vmatmul.mubr.f32.gmra.mxu0 %v1982
      %v2171 = vpop.f32.mrf.mxu0
      %v2172 = vadd.f32 0.0, %v2171
      %v2173 = vpop.f32.mrf.mxu0
      %2174 = vmatprep.mubr.f32.mxu0 0.0
      %2175 = vmatmul.mubr.f32.gmra.mxu0 %v1985
      %v2176 = vpop.f32.mrf.mxu0
      %v2177 = vadd.f32 0.0, %v2176
      %v2178 = vpop.f32.mrf.mxu0
      %2179 = vmatprep.mubr.f32.mxu0 0.0
      %2180 = vmatmul.mubr.f32.gmra.mxu0 %v1988
      %v2181 = vpop.f32.mrf.mxu0
      %v2182 = vadd.f32 0.0, %v2181
      %v2183 = vpop.f32.mrf.mxu0
      %2184 = vmatprep.mubr.f32.mxu0 0.0
      %2185 = vmatmul.mubr.f32.gmra.mxu0 %v1991
      %v2186 = vpop.f32.mrf.mxu0
      %v2187 = vadd.f32 0.0, %v2186
      %v2188 = vpop.f32.mrf.mxu0
      %2189 = vmatprep.mubr.f32.mxu0 0.0
      %2190 = vmatmul.mubr.f32.gmra.mxu0 %v1994
      %v2191 = vpop.f32.mrf.mxu0
      %v2192 = vadd.f32 0.0, %v2191
      %v2193 = vpop.f32.mrf.mxu0
      %2194 = vmatprep.mubr.f32.mxu0 0.0
      %2195 = vmatmul.mubr.f32.gmra.mxu0 %v1997
      %v2196 = vpop.f32.mrf.mxu0
      %v2197 = vadd.f32 0.0, %v2196
      %v2198 = vpop.f32.mrf.mxu0
      %2199 = vmatprep.mubr.f32.mxu0 0.0
      %2200 = vmatmul.mubr.f32.gmra.mxu0 %v2000
      %v2201 = vpop.f32.mrf.mxu0
      %v2202 = vadd.f32 0.0, %v2201
      %v2203 = vpop.f32.mrf.mxu0
      %2204 = vmatprep.mubr.f32.mxu0 0.0
      %2205 = vmatmul.mubr.f32.gmra.mxu0 %v2003
      %v2206 = vpop.f32.mrf.mxu0
      %v2207 = vadd.f32 0.0, %v2206
      %v2208 = vpop.f32.mrf.mxu0
      %2209 = vmatprep.mubr.f32.mxu0 0.0
      %2210 = vmatmul.mubr.f32.gmra.mxu0 %v2006
      %v2211 = vpop.f32.mrf.mxu0
      %v2212 = vadd.f32 0.0, %v2211
      %v2213 = vpop.f32.mrf.mxu0
      %2214 = vmatprep.mubr.f32.mxu0 0.0
      %2215 = vmatmul.mubr.f32.gmra.mxu0 %v2009
      %v2216 = vpop.f32.mrf.mxu0
      %v2217 = vadd.f32 0.0, %v2216
      %v2218 = vpop.f32.mrf.mxu0
      %2219 = vmatprep.mubr.f32.mxu0 0.0
      %2220 = vmatmul.mubr.f32.gmra.mxu0 %v2012
      %v2221 = vpop.f32.mrf.mxu0
      %v2222 = vadd.f32 0.0, %v2221
      %v2223 = vpop.f32.mrf.mxu0
      %2224 = vmatprep.mubr.f32.mxu0 0.0
      %2225 = vmatmul.mubr.f32.gmra.mxu0 %v2015
      %v2226 = vpop.f32.mrf.mxu0
      %v2227 = vadd.f32 0.0, %v2226
      %v2228 = vpop.f32.mrf.mxu0
      %2229 = vmatprep.mubr.f32.mxu0 0.0
      %2230 = vmatmul.mubr.f32.gmra.mxu0 %v2018
      %v2231 = vpop.f32.mrf.mxu0
      %v2232 = vadd.f32 0.0, %v2231
      %v2233 = vpop.f32.mrf.mxu0
      %2234 = vmatprep.mubr.f32.mxu0 0.0
      %2235 = vmatmul.mubr.f32.gmra.mxu0 %v2021
      %v2236 = vpop.f32.mrf.mxu0
      %v2237 = vadd.f32 0.0, %v2236
      %v2238 = vpop.f32.mrf.mxu0
      %2239 = vmatprep.mubr.f32.mxu0 0.0
      %2240 = vmatmul.mubr.f32.gmra.mxu0 %v2024
      %v2241 = vpop.f32.mrf.mxu0
      %v2242 = vadd.f32 0.0, %v2241
      %v2243 = vpop.f32.mrf.mxu0
      %2244 = vmatprep.mubr.f32.mxu0 0.0
      %2245 = vmatmul.mubr.f32.gmra.mxu0 %v2027
      %v2246 = vpop.f32.mrf.mxu0
      %v2247 = vadd.f32 0.0, %v2246
      %v2248 = vpop.f32.mrf.mxu0
      %2249 = vmatprep.mubr.f32.mxu0 0.0
      %2250 = vmatmul.mubr.f32.gmra.mxu0 %v2030
      %v2251 = vpop.f32.mrf.mxu0
      %v2252 = vadd.f32 0.0, %v2251
      %v2253 = vpop.f32.mrf.mxu0
      %2254 = vmatprep.mubr.f32.mxu0 0.0
      %2255 = vmatmul.mubr.f32.gmra.mxu0 %v2033
      %v2256 = vpop.f32.mrf.mxu0
      %v2257 = vadd.f32 0.0, %v2256
      %v2258 = vpop.f32.mrf.mxu0
      %2259 = vdwg.mxu0
      %v2260 = vadd.f32 %v1523, %v2102
      %v2261 = vadd.f32 %v1528, %v2107
      %v2262 = vadd.f32 %v1533, %v2112
      %v2263 = vadd.f32 %v1538, %v2117
      %v2264 = vadd.f32 %v1543, %v2122
      %v2265 = vadd.f32 %v1548, %v2127
      %v2266 = vadd.f32 %v1553, %v2132
      %v2267 = vadd.f32 %v1558, %v2137
      %v2268 = vadd.f32 %v1563, %v2142
      %v2269 = vadd.f32 %v1568, %v2147
      %v2270 = vadd.f32 %v1573, %v2152
      %v2271 = vadd.f32 %v1578, %v2157
      %v2272 = vadd.f32 %v1583, %v2162
      %v2273 = vadd.f32 %v1588, %v2167
      %v2274 = vadd.f32 %v1593, %v2172
      %v2275 = vadd.f32 %v1598, %v2177
      %v2276 = vadd.f32 %v1603, %v2182
      %v2277 = vadd.f32 %v1608, %v2187
      %v2278 = vadd.f32 %v1613, %v2192
      %v2279 = vadd.f32 %v1618, %v2197
      %v2280 = vadd.f32 %v1623, %v2202
      %v2281 = vadd.f32 %v1628, %v2207
      %v2282 = vadd.f32 %v1633, %v2212
      %v2283 = vadd.f32 %v1638, %v2217
      %v2284 = vadd.f32 %v1643, %v2222
      %v2285 = vadd.f32 %v1648, %v2227
      %v2286 = vadd.f32 %v1653, %v2232
      %v2287 = vadd.f32 %v1658, %v2237
      %v2288 = vadd.f32 %v1663, %v2242
      %v2289 = vadd.f32 %v1668, %v2247
      %v2290 = vadd.f32 %v1673, %v2252
      %v2291 = vadd.f32 %v1678, %v2257
      %v2292 = vld [vmem:[#allocation2 + $0x17] sm:$0xff]
      %v2293 = vld [vmem:[#allocation2 + $0x1f] sm:$0xff]
      %v2294 = vld [vmem:[#allocation2 + $0x27] sm:$0xff]
      %v2295 = vld [vmem:[#allocation2 + $0x2f] sm:$0xff]
      %v2296 = vld [vmem:[#allocation2 + $0x37] sm:$0xff]
      %v2297 = vld [vmem:[#allocation2 + $0x3f] sm:$0xff]
      %v2298 = vld [vmem:[#allocation2 + $0x47] sm:$0xff]
      %v2299 = vld [vmem:[#allocation2 + $0x4f] sm:$0xff]
      %v2300 = vld [vmem:[#allocation2 + $0x57] sm:$0xff]
      %v2301 = vld [vmem:[#allocation2 + $0x5f] sm:$0xff]
      %v2302 = vld [vmem:[#allocation2 + $0x67] sm:$0xff]
      %v2303 = vld [vmem:[#allocation2 + $0x6f] sm:$0xff]
      %v2304 = vld [vmem:[#allocation2 + $0x77] sm:$0xff]
      %v2305 = vld [vmem:[#allocation2 + $0x7f] sm:$0xff]
      %v2306 = vld [vmem:[#allocation2 + $0x87] sm:$0xff]
      %v2307 = vld [vmem:[#allocation2 + $0x8f] sm:$0xff]
      %v2308 = vld [vmem:[#allocation2 + $0x97] sm:$0xff]
      %v2309 = vld [vmem:[#allocation2 + $0x9f] sm:$0xff]
      %v2310 = vld [vmem:[#allocation2 + $0xa7] sm:$0xff]
      %v2311 = vld [vmem:[#allocation2 + $0xaf] sm:$0xff]
      %v2312 = vld [vmem:[#allocation2 + $0xb7] sm:$0xff]
      %v2313 = vld [vmem:[#allocation2 + $0xbf] sm:$0xff]
      %v2314 = vld [vmem:[#allocation2 + $0xc7] sm:$0xff]
      %v2315 = vld [vmem:[#allocation2 + $0xcf] sm:$0xff]
      %v2316 = vld [vmem:[#allocation2 + $0xd7] sm:$0xff]
      %v2317 = vld [vmem:[#allocation2 + $0xdf] sm:$0xff]
      %v2318 = vld [vmem:[#allocation2 + $0xe7] sm:$0xff]
      %v2319 = vld [vmem:[#allocation2 + $0xef] sm:$0xff]
      %v2320 = vld [vmem:[#allocation2 + $0xf7] sm:$0xff]
      %v2321 = vld [vmem:[#allocation2 + $0xff] sm:$0xff]
      %v2322 = vld [vmem:[#allocation2 + $0x107] sm:$0xff]
      %v2323 = vld [vmem:[#allocation2 + $0x10f] sm:$0xff]
      %v2324 = vmul.f32 %v2292, %v814
      %v2325 = vmul.f32 %v2293, %v819
      %v2326 = vmul.f32 %v2294, %v824
      %v2327 = vmul.f32 %v2295, %v829
      %v2328 = vmul.f32 %v2296, %v834
      %v2329 = vmul.f32 %v2297, %v839
      %v2330 = vmul.f32 %v2298, %v844
      %v2331 = vmul.f32 %v2299, %v849
      %v2332 = vmul.f32 %v2300, %v854
      %v2333 = vmul.f32 %v2301, %v859
      %v2334 = vmul.f32 %v2302, %v864
      %v2335 = vmul.f32 %v2303, %v869
      %v2336 = vmul.f32 %v2304, %v874
      %v2337 = vmul.f32 %v2305, %v879
      %v2338 = vmul.f32 %v2306, %v884
      %v2339 = vmul.f32 %v2307, %v889
      %v2340 = vmul.f32 %v2308, %v894
      %v2341 = vmul.f32 %v2309, %v899
      %v2342 = vmul.f32 %v2310, %v904
      %v2343 = vmul.f32 %v2311, %v909
      %v2344 = vmul.f32 %v2312, %v914
      %v2345 = vmul.f32 %v2313, %v919
      %v2346 = vmul.f32 %v2314, %v924
      %v2347 = vmul.f32 %v2315, %v929
      %v2348 = vmul.f32 %v2316, %v934
      %v2349 = vmul.f32 %v2317, %v939
      %v2350 = vmul.f32 %v2318, %v944
      %v2351 = vmul.f32 %v2319, %v949
      %v2352 = vmul.f32 %v2320, %v954
      %v2353 = vmul.f32 %v2321, %v959
      %v2354 = vmul.f32 %v2322, %v964
      %v2355 = vmul.f32 %v2323, %v969
      %v2356 = vld [vmem:[%s3 + $0x30] sm:$0xff]
      %v2357 = vld [vmem:[%s3 + $0x38] sm:$0xff]
      %v2359 = vsel %vm323, %v2324, 0
      %v2362 = vsel %vm323, %v2325, 0
      %v2365 = vsel %vm323, %v2326, 0
      %v2368 = vsel %vm323, %v2327, 0
      %v2371 = vsel %vm323, %v2328, 0
      %v2374 = vsel %vm323, %v2329, 0
      %v2377 = vsel %vm323, %v2330, 0
      %v2380 = vsel %vm323, %v2331, 0
      %v2383 = vsel %vm323, %v2332, 0
      %v2386 = vsel %vm323, %v2333, 0
      %v2389 = vsel %vm323, %v2334, 0
      %v2392 = vsel %vm323, %v2335, 0
      %v2395 = vsel %vm323, %v2336, 0
      %v2398 = vsel %vm323, %v2337, 0
      %v2401 = vsel %vm323, %v2338, 0
      %v2404 = vsel %vm323, %v2339, 0
      %v2407 = vsel %vm323, %v2340, 0
      %v2410 = vsel %vm323, %v2341, 0
      %v2413 = vsel %vm323, %v2342, 0
      %v2416 = vsel %vm323, %v2343, 0
      %v2419 = vsel %vm323, %v2344, 0
      %v2422 = vsel %vm323, %v2345, 0
      %v2425 = vsel %vm323, %v2346, 0
      %v2428 = vsel %vm323, %v2347, 0
      %v2431 = vsel %vm323, %v2348, 0
      %v2434 = vsel %vm323, %v2349, 0
      %v2437 = vsel %vm323, %v2350, 0
      %v2440 = vsel %vm323, %v2351, 0
      %v2443 = vsel %vm323, %v2352, 0
      %v2446 = vsel %vm323, %v2353, 0
      %v2449 = vsel %vm323, %v2354, 0
      %v2452 = vsel %vm323, %v2355, 0
      %2454 = vmatprep.subr.mxu0 0.0
      %2455 = vmatpush1.msra.mxu0 0.0
      %2456 = vmatprep.subr.mxu0 0.0
      %2457 = vmatpush1.msra.mxu0 0.0
      %2458 = vmatprep.subr.mxu0 0.0
      %2459 = vmatpush1.msra.mxu0 0.0
      %2460 = vmatprep.subr.mxu0 0.0
      %2461 = vmatpush1.msra.mxu0 0.0
      %2462 = vmatprep.subr.mxu0 0.0
      %2463 = vmatpush1.msra.mxu0 0.0
      %2464 = vmatprep.subr.mxu0 0.0
      %2465 = vmatpush1.msra.mxu0 0.0
      %2466 = vmatprep.subr.mxu0 0.0
      %2467 = vmatpush1.msra.mxu0 0.0
      %2468 = vmatprep.subr.mxu0 0.0
      %2469 = vmatpush1.msra.mxu0 0.0
      %2470 = vmatprep.subr.mxu0 0.0
      %2471 = vmatpush1.msra.mxu0 0.0
      %2472 = vmatprep.subr.mxu0 0.0
      %2473 = vmatpush1.msra.mxu0 0.0
      %2474 = vmatprep.subr.mxu0 0.0
      %2475 = vmatpush1.msra.mxu0 0.0
      %2476 = vmatprep.subr.mxu0 0.0
      %2477 = vmatpush1.msra.mxu0 0.0
      %2478 = vmatprep.subr.mxu0 0.0
      %2479 = vmatpush1.msra.mxu0 0.0
      %2480 = vmatprep.subr.mxu0 0.0
      %2481 = vmatpush1.msra.mxu0 0.0
      %2482 = vmatprep.subr.mxu0 0.0
      %2483 = vmatpush1.msra.mxu0 %v2357
      %2484 = vmatprep.subr.mxu0 0.0
      %2485 = vmatpush1.msra.mxu0 %v2356
      %2486 = vmatprep.subr.mxu0 0.0
      %2487 = vmatpush2.msra.mxu0 0.0
      %2488 = vmatprep.subr.mxu0 0.0
      %2489 = vmatpush2.msra.mxu0 0.0
      %2490 = vmatprep.subr.mxu0 0.0
      %2491 = vmatpush2.msra.mxu0 0.0
      %2492 = vmatprep.subr.mxu0 0.0
      %2493 = vmatpush2.msra.mxu0 0.0
      %2494 = vmatprep.subr.mxu0 0.0
      %2495 = vmatpush2.msra.mxu0 0.0
      %2496 = vmatprep.subr.mxu0 0.0
      %2497 = vmatpush2.msra.mxu0 0.0
      %2498 = vmatprep.subr.mxu0 0.0
      %2499 = vmatpush2.msra.mxu0 0.0
      %2500 = vmatprep.subr.mxu0 0.0
      %2501 = vmatpush2.msra.mxu0 0.0
      %2502 = vmatprep.subr.mxu0 0.0
      %2503 = vmatpush2.msra.mxu0 0.0
      %2504 = vmatprep.subr.mxu0 0.0
      %2505 = vmatpush2.msra.mxu0 0.0
      %2506 = vmatprep.subr.mxu0 0.0
      %2507 = vmatpush2.msra.mxu0 0.0
      %2508 = vmatprep.subr.mxu0 0.0
      %2509 = vmatpush2.msra.mxu0 0.0
      %2510 = vmatprep.subr.mxu0 0.0
      %2511 = vmatpush2.msra.mxu0 0.0
      %2512 = vmatprep.subr.mxu0 0.0
      %2513 = vmatpush2.msra.mxu0 0.0
      %2514 = vmatprep.subr.mxu0 0.0
      %2515 = vmatpush2.msra.mxu0 0.0
      %2516 = vmatprep.subr.mxu0 0.0
      %2517 = vmatpush2.msra.mxu0 0.0
      %2518 = vmatprep.mubr.f32.mxu0 0.0
      %2519 = vmatmul.mubr.f32.gmra.mxu0 %v2359
      %v2520 = vpop.f32.mrf.mxu0
      %v2521 = vadd.f32 0.0, %v2520
      %v2522 = vpop.f32.mrf.mxu0
      %2523 = vmatprep.mubr.f32.mxu0 0.0
      %2524 = vmatmul.mubr.f32.gmra.mxu0 %v2362
      %v2525 = vpop.f32.mrf.mxu0
      %v2526 = vadd.f32 0.0, %v2525
      %v2527 = vpop.f32.mrf.mxu0
      %2528 = vmatprep.mubr.f32.mxu0 0.0
      %2529 = vmatmul.mubr.f32.gmra.mxu0 %v2365
      %v2530 = vpop.f32.mrf.mxu0
      %v2531 = vadd.f32 0.0, %v2530
      %v2532 = vpop.f32.mrf.mxu0
      %2533 = vmatprep.mubr.f32.mxu0 0.0
      %2534 = vmatmul.mubr.f32.gmra.mxu0 %v2368
      %v2535 = vpop.f32.mrf.mxu0
      %v2536 = vadd.f32 0.0, %v2535
      %v2537 = vpop.f32.mrf.mxu0
      %2538 = vmatprep.mubr.f32.mxu0 0.0
      %2539 = vmatmul.mubr.f32.gmra.mxu0 %v2371
      %v2540 = vpop.f32.mrf.mxu0
      %v2541 = vadd.f32 0.0, %v2540
      %v2542 = vpop.f32.mrf.mxu0
      %2543 = vmatprep.mubr.f32.mxu0 0.0
      %2544 = vmatmul.mubr.f32.gmra.mxu0 %v2374
      %v2545 = vpop.f32.mrf.mxu0
      %v2546 = vadd.f32 0.0, %v2545
      %v2547 = vpop.f32.mrf.mxu0
      %2548 = vmatprep.mubr.f32.mxu0 0.0
      %2549 = vmatmul.mubr.f32.gmra.mxu0 %v2377
      %v2550 = vpop.f32.mrf.mxu0
      %v2551 = vadd.f32 0.0, %v2550
      %v2552 = vpop.f32.mrf.mxu0
      %2553 = vmatprep.mubr.f32.mxu0 0.0
      %2554 = vmatmul.mubr.f32.gmra.mxu0 %v2380
      %v2555 = vpop.f32.mrf.mxu0
      %v2556 = vadd.f32 0.0, %v2555
      %v2557 = vpop.f32.mrf.mxu0
      %2558 = vmatprep.mubr.f32.mxu0 0.0
      %2559 = vmatmul.mubr.f32.gmra.mxu0 %v2383
      %v2560 = vpop.f32.mrf.mxu0
      %v2561 = vadd.f32 0.0, %v2560
      %v2562 = vpop.f32.mrf.mxu0
      %2563 = vmatprep.mubr.f32.mxu0 0.0
      %2564 = vmatmul.mubr.f32.gmra.mxu0 %v2386
      %v2565 = vpop.f32.mrf.mxu0
      %v2566 = vadd.f32 0.0, %v2565
      %v2567 = vpop.f32.mrf.mxu0
      %2568 = vmatprep.mubr.f32.mxu0 0.0
      %2569 = vmatmul.mubr.f32.gmra.mxu0 %v2389
      %v2570 = vpop.f32.mrf.mxu0
      %v2571 = vadd.f32 0.0, %v2570
      %v2572 = vpop.f32.mrf.mxu0
      %2573 = vmatprep.mubr.f32.mxu0 0.0
      %2574 = vmatmul.mubr.f32.gmra.mxu0 %v2392
      %v2575 = vpop.f32.mrf.mxu0
      %v2576 = vadd.f32 0.0, %v2575
      %v2577 = vpop.f32.mrf.mxu0
      %2578 = vmatprep.mubr.f32.mxu0 0.0
      %2579 = vmatmul.mubr.f32.gmra.mxu0 %v2395
      %v2580 = vpop.f32.mrf.mxu0
      %v2581 = vadd.f32 0.0, %v2580
      %v2582 = vpop.f32.mrf.mxu0
      %2583 = vmatprep.mubr.f32.mxu0 0.0
      %2584 = vmatmul.mubr.f32.gmra.mxu0 %v2398
      %v2585 = vpop.f32.mrf.mxu0
      %v2586 = vadd.f32 0.0, %v2585
      %v2587 = vpop.f32.mrf.mxu0
      %2588 = vmatprep.mubr.f32.mxu0 0.0
      %2589 = vmatmul.mubr.f32.gmra.mxu0 %v2401
      %v2590 = vpop.f32.mrf.mxu0
      %v2591 = vadd.f32 0.0, %v2590
      %v2592 = vpop.f32.mrf.mxu0
      %2593 = vmatprep.mubr.f32.mxu0 0.0
      %2594 = vmatmul.mubr.f32.gmra.mxu0 %v2404
      %v2595 = vpop.f32.mrf.mxu0
      %v2596 = vadd.f32 0.0, %v2595
      %v2597 = vpop.f32.mrf.mxu0
      %2598 = vmatprep.mubr.f32.mxu0 0.0
      %2599 = vmatmul.mubr.f32.gmra.mxu0 %v2407
      %v2600 = vpop.f32.mrf.mxu0
      %v2601 = vadd.f32 0.0, %v2600
      %v2602 = vpop.f32.mrf.mxu0
      %2603 = vmatprep.mubr.f32.mxu0 0.0
      %2604 = vmatmul.mubr.f32.gmra.mxu0 %v2410
      %v2605 = vpop.f32.mrf.mxu0
      %v2606 = vadd.f32 0.0, %v2605
      %v2607 = vpop.f32.mrf.mxu0
      %2608 = vmatprep.mubr.f32.mxu0 0.0
      %2609 = vmatmul.mubr.f32.gmra.mxu0 %v2413
      %v2610 = vpop.f32.mrf.mxu0
      %v2611 = vadd.f32 0.0, %v2610
      %v2612 = vpop.f32.mrf.mxu0
      %2613 = vmatprep.mubr.f32.mxu0 0.0
      %2614 = vmatmul.mubr.f32.gmra.mxu0 %v2416
      %v2615 = vpop.f32.mrf.mxu0
      %v2616 = vadd.f32 0.0, %v2615
      %v2617 = vpop.f32.mrf.mxu0
      %2618 = vmatprep.mubr.f32.mxu0 0.0
      %2619 = vmatmul.mubr.f32.gmra.mxu0 %v2419
      %v2620 = vpop.f32.mrf.mxu0
      %v2621 = vadd.f32 0.0, %v2620
      %v2622 = vpop.f32.mrf.mxu0
      %2623 = vmatprep.mubr.f32.mxu0 0.0
      %2624 = vmatmul.mubr.f32.gmra.mxu0 %v2422
      %v2625 = vpop.f32.mrf.mxu0
      %v2626 = vadd.f32 0.0, %v2625
      %v2627 = vpop.f32.mrf.mxu0
      %2628 = vmatprep.mubr.f32.mxu0 0.0
      %2629 = vmatmul.mubr.f32.gmra.mxu0 %v2425
      %v2630 = vpop.f32.mrf.mxu0
      %v2631 = vadd.f32 0.0, %v2630
      %v2632 = vpop.f32.mrf.mxu0
      %2633 = vmatprep.mubr.f32.mxu0 0.0
      %2634 = vmatmul.mubr.f32.gmra.mxu0 %v2428
      %v2635 = vpop.f32.mrf.mxu0
      %v2636 = vadd.f32 0.0, %v2635
      %v2637 = vpop.f32.mrf.mxu0
      %2638 = vmatprep.mubr.f32.mxu0 0.0
      %2639 = vmatmul.mubr.f32.gmra.mxu0 %v2431
      %v2640 = vpop.f32.mrf.mxu0
      %v2641 = vadd.f32 0.0, %v2640
      %v2642 = vpop.f32.mrf.mxu0
      %2643 = vmatprep.mubr.f32.mxu0 0.0
      %2644 = vmatmul.mubr.f32.gmra.mxu0 %v2434
      %v2645 = vpop.f32.mrf.mxu0
      %v2646 = vadd.f32 0.0, %v2645
      %v2647 = vpop.f32.mrf.mxu0
      %2648 = vmatprep.mubr.f32.mxu0 0.0
      %2649 = vmatmul.mubr.f32.gmra.mxu0 %v2437
      %v2650 = vpop.f32.mrf.mxu0
      %v2651 = vadd.f32 0.0, %v2650
      %v2652 = vpop.f32.mrf.mxu0
      %2653 = vmatprep.mubr.f32.mxu0 0.0
      %2654 = vmatmul.mubr.f32.gmra.mxu0 %v2440
      %v2655 = vpop.f32.mrf.mxu0
      %v2656 = vadd.f32 0.0, %v2655
      %v2657 = vpop.f32.mrf.mxu0
      %2658 = vmatprep.mubr.f32.mxu0 0.0
      %2659 = vmatmul.mubr.f32.gmra.mxu0 %v2443
      %v2660 = vpop.f32.mrf.mxu0
      %v2661 = vadd.f32 0.0, %v2660
      %v2662 = vpop.f32.mrf.mxu0
      %2663 = vmatprep.mubr.f32.mxu0 0.0
      %2664 = vmatmul.mubr.f32.gmra.mxu0 %v2446
      %v2665 = vpop.f32.mrf.mxu0
      %v2666 = vadd.f32 0.0, %v2665
      %v2667 = vpop.f32.mrf.mxu0
      %2668 = vmatprep.mubr.f32.mxu0 0.0
      %2669 = vmatmul.mubr.f32.gmra.mxu0 %v2449
      %v2670 = vpop.f32.mrf.mxu0
      %v2671 = vadd.f32 0.0, %v2670
      %v2672 = vpop.f32.mrf.mxu0
      %2673 = vmatprep.mubr.f32.mxu0 0.0
      %2674 = vmatmul.mubr.f32.gmra.mxu0 %v2452
      %v2675 = vpop.f32.mrf.mxu0
      %v2676 = vadd.f32 0.0, %v2675
      %v2677 = vpop.f32.mrf.mxu0
      %2678 = vdwg.mxu0
      %v2679 = vadd.f32 %v2260, %v2521
      %v2680 = vadd.f32 %v2261, %v2526
      %v2681 = vadd.f32 %v2262, %v2531
      %v2682 = vadd.f32 %v2263, %v2536
      %v2683 = vadd.f32 %v2264, %v2541
      %v2684 = vadd.f32 %v2265, %v2546
      %v2685 = vadd.f32 %v2266, %v2551
      %v2686 = vadd.f32 %v2267, %v2556
      %v2687 = vadd.f32 %v2268, %v2561
      %v2688 = vadd.f32 %v2269, %v2566
      %v2689 = vadd.f32 %v2270, %v2571
      %v2690 = vadd.f32 %v2271, %v2576
      %v2691 = vadd.f32 %v2272, %v2581
      %v2692 = vadd.f32 %v2273, %v2586
      %v2693 = vadd.f32 %v2274, %v2591
      %v2694 = vadd.f32 %v2275, %v2596
      %v2695 = vadd.f32 %v2276, %v2601
      %v2696 = vadd.f32 %v2277, %v2606
      %v2697 = vadd.f32 %v2278, %v2611
      %v2698 = vadd.f32 %v2279, %v2616
      %v2699 = vadd.f32 %v2280, %v2621
      %v2700 = vadd.f32 %v2281, %v2626
      %v2701 = vadd.f32 %v2282, %v2631
      %v2702 = vadd.f32 %v2283, %v2636
      %v2703 = vadd.f32 %v2284, %v2641
      %v2704 = vadd.f32 %v2285, %v2646
      %v2705 = vadd.f32 %v2286, %v2651
      %v2706 = vadd.f32 %v2287, %v2656
      %v2707 = vadd.f32 %v2288, %v2661
      %v2708 = vadd.f32 %v2289, %v2666
      %v2709 = vadd.f32 %v2290, %v2671
      %v2710 = vadd.f32 %v2291, %v2676
      %v2711 = vld [vmem:[#allocation2 + $0x18] sm:$0xff]
      %v2712 = vld [vmem:[#allocation2 + $0x20] sm:$0xff]
      %v2713 = vld [vmem:[#allocation2 + $0x28] sm:$0xff]
      %v2714 = vld [vmem:[#allocation2 + $0x30] sm:$0xff]
      %v2715 = vld [vmem:[#allocation2 + $0x38] sm:$0xff]
      %v2716 = vld [vmem:[#allocation2 + $0x40] sm:$0xff]
      %v2717 = vld [vmem:[#allocation2 + $0x48] sm:$0xff]
      %v2718 = vld [vmem:[#allocation2 + $0x50] sm:$0xff]
      %v2719 = vld [vmem:[#allocation2 + $0x58] sm:$0xff]
      %v2720 = vld [vmem:[#allocation2 + $0x60] sm:$0xff]
      %v2721 = vld [vmem:[#allocation2 + $0x68] sm:$0xff]
      %v2722 = vld [vmem:[#allocation2 + $0x70] sm:$0xff]
      %v2723 = vld [vmem:[#allocation2 + $0x78] sm:$0xff]
      %v2724 = vld [vmem:[#allocation2 + $0x80] sm:$0xff]
      %v2725 = vld [vmem:[#allocation2 + $0x88] sm:$0xff]
      %v2726 = vld [vmem:[#allocation2 + $0x90] sm:$0xff]
      %v2727 = vld [vmem:[#allocation2 + $0x98] sm:$0xff]
      %v2728 = vld [vmem:[#allocation2 + $0xa0] sm:$0xff]
      %v2729 = vld [vmem:[#allocation2 + $0xa8] sm:$0xff]
      %v2730 = vld [vmem:[#allocation2 + $0xb0] sm:$0xff]
      %v2731 = vld [vmem:[#allocation2 + $0xb8] sm:$0xff]
      %v2732 = vld [vmem:[#allocation2 + $0xc0] sm:$0xff]
      %v2733 = vld [vmem:[#allocation2 + $0xc8] sm:$0xff]
      %v2734 = vld [vmem:[#allocation2 + $0xd0] sm:$0xff]
      %v2735 = vld [vmem:[#allocation2 + $0xd8] sm:$0xff]
      %v2736 = vld [vmem:[#allocation2 + $0xe0] sm:$0xff]
      %v2737 = vld [vmem:[#allocation2 + $0xe8] sm:$0xff]
      %v2738 = vld [vmem:[#allocation2 + $0xf0] sm:$0xff]
      %v2739 = vld [vmem:[#allocation2 + $0xf8] sm:$0xff]
      %v2740 = vld [vmem:[#allocation2 + $0x100] sm:$0xff]
      %v2741 = vld [vmem:[#allocation2 + $0x108] sm:$0xff]
      %v2742 = vld [vmem:[#allocation2 + $0x110] sm:$0xff]
      %v2743 = vld [vmem:[%s3 + $0x40] sm:$0xff]
      %v2744 = vld [vmem:[%s3 + $0x48] sm:$0xff]
      %v2746 = vsel %vm323, %v2711, 0
      %v2749 = vsel %vm323, %v2712, 0
      %v2752 = vsel %vm323, %v2713, 0
      %v2755 = vsel %vm323, %v2714, 0
      %v2758 = vsel %vm323, %v2715, 0
      %v2761 = vsel %vm323, %v2716, 0
      %v2764 = vsel %vm323, %v2717, 0
      %v2767 = vsel %vm323, %v2718, 0
      %v2770 = vsel %vm323, %v2719, 0
      %v2773 = vsel %vm323, %v2720, 0
      %v2776 = vsel %vm323, %v2721, 0
      %v2779 = vsel %vm323, %v2722, 0
      %v2782 = vsel %vm323, %v2723, 0
      %v2785 = vsel %vm323, %v2724, 0
      %v2788 = vsel %vm323, %v2725, 0
      %v2791 = vsel %vm323, %v2726, 0
      %v2794 = vsel %vm323, %v2727, 0
      %v2797 = vsel %vm323, %v2728, 0
      %v2800 = vsel %vm323, %v2729, 0
      %v2803 = vsel %vm323, %v2730, 0
      %v2806 = vsel %vm323, %v2731, 0
      %v2809 = vsel %vm323, %v2732, 0
      %v2812 = vsel %vm323, %v2733, 0
      %v2815 = vsel %vm323, %v2734, 0
      %v2818 = vsel %vm323, %v2735, 0
      %v2821 = vsel %vm323, %v2736, 0
      %v2824 = vsel %vm323, %v2737, 0
      %v2827 = vsel %vm323, %v2738, 0
      %v2830 = vsel %vm323, %v2739, 0
      %v2833 = vsel %vm323, %v2740, 0
      %v2836 = vsel %vm323, %v2741, 0
      %v2839 = vsel %vm323, %v2742, 0
      %2841 = vmatprep.subr.mxu0 0.0
      %2842 = vmatpush1.msra.mxu0 0.0
      %2843 = vmatprep.subr.mxu0 0.0
      %2844 = vmatpush1.msra.mxu0 0.0
      %2845 = vmatprep.subr.mxu0 0.0
      %2846 = vmatpush1.msra.mxu0 0.0
      %2847 = vmatprep.subr.mxu0 0.0
      %2848 = vmatpush1.msra.mxu0 0.0
      %2849 = vmatprep.subr.mxu0 0.0
      %2850 = vmatpush1.msra.mxu0 0.0
      %2851 = vmatprep.subr.mxu0 0.0
      %2852 = vmatpush1.msra.mxu0 0.0
      %2853 = vmatprep.subr.mxu0 0.0
      %2854 = vmatpush1.msra.mxu0 0.0
      %2855 = vmatprep.subr.mxu0 0.0
      %2856 = vmatpush1.msra.mxu0 0.0
      %2857 = vmatprep.subr.mxu0 0.0
      %2858 = vmatpush1.msra.mxu0 0.0
      %2859 = vmatprep.subr.mxu0 0.0
      %2860 = vmatpush1.msra.mxu0 0.0
      %2861 = vmatprep.subr.mxu0 0.0
      %2862 = vmatpush1.msra.mxu0 0.0
      %2863 = vmatprep.subr.mxu0 0.0
      %2864 = vmatpush1.msra.mxu0 0.0
      %2865 = vmatprep.subr.mxu0 0.0
      %2866 = vmatpush1.msra.mxu0 0.0
      %2867 = vmatprep.subr.mxu0 0.0
      %2868 = vmatpush1.msra.mxu0 0.0
      %2869 = vmatprep.subr.mxu0 0.0
      %2870 = vmatpush1.msra.mxu0 %v2744
      %2871 = vmatprep.subr.mxu0 0.0
      %2872 = vmatpush1.msra.mxu0 %v2743
      %2873 = vmatprep.subr.mxu0 0.0
      %2874 = vmatpush2.msra.mxu0 0.0
      %2875 = vmatprep.subr.mxu0 0.0
      %2876 = vmatpush2.msra.mxu0 0.0
      %2877 = vmatprep.subr.mxu0 0.0
      %2878 = vmatpush2.msra.mxu0 0.0
      %2879 = vmatprep.subr.mxu0 0.0
      %2880 = vmatpush2.msra.mxu0 0.0
      %2881 = vmatprep.subr.mxu0 0.0
      %2882 = vmatpush2.msra.mxu0 0.0
      %2883 = vmatprep.subr.mxu0 0.0
      %2884 = vmatpush2.msra.mxu0 0.0
      %2885 = vmatprep.subr.mxu0 0.0
      %2886 = vmatpush2.msra.mxu0 0.0
      %2887 = vmatprep.subr.mxu0 0.0
      %2888 = vmatpush2.msra.mxu0 0.0
      %2889 = vmatprep.subr.mxu0 0.0
      %2890 = vmatpush2.msra.mxu0 0.0
      %2891 = vmatprep.subr.mxu0 0.0
      %2892 = vmatpush2.msra.mxu0 0.0
      %2893 = vmatprep.subr.mxu0 0.0
      %2894 = vmatpush2.msra.mxu0 0.0
      %2895 = vmatprep.subr.mxu0 0.0
      %2896 = vmatpush2.msra.mxu0 0.0
      %2897 = vmatprep.subr.mxu0 0.0
      %2898 = vmatpush2.msra.mxu0 0.0
      %2899 = vmatprep.subr.mxu0 0.0
      %2900 = vmatpush2.msra.mxu0 0.0
      %2901 = vmatprep.subr.mxu0 0.0
      %2902 = vmatpush2.msra.mxu0 0.0
      %2903 = vmatprep.subr.mxu0 0.0
      %2904 = vmatpush2.msra.mxu0 0.0
      %2905 = vmatprep.mubr.f32.mxu0 0.0
      %2906 = vmatmul.mubr.f32.gmra.mxu0 %v2746
      %v2907 = vpop.f32.mrf.mxu0
      %v2908 = vadd.f32 0.0, %v2907
      %v2909 = vpop.f32.mrf.mxu0
      %2910 = vmatprep.mubr.f32.mxu0 0.0
      %2911 = vmatmul.mubr.f32.gmra.mxu0 %v2749
      %v2912 = vpop.f32.mrf.mxu0
      %v2913 = vadd.f32 0.0, %v2912
      %v2914 = vpop.f32.mrf.mxu0
      %2915 = vmatprep.mubr.f32.mxu0 0.0
      %2916 = vmatmul.mubr.f32.gmra.mxu0 %v2752
      %v2917 = vpop.f32.mrf.mxu0
      %v2918 = vadd.f32 0.0, %v2917
      %v2919 = vpop.f32.mrf.mxu0
      %2920 = vmatprep.mubr.f32.mxu0 0.0
      %2921 = vmatmul.mubr.f32.gmra.mxu0 %v2755
      %v2922 = vpop.f32.mrf.mxu0
      %v2923 = vadd.f32 0.0, %v2922
      %v2924 = vpop.f32.mrf.mxu0
      %2925 = vmatprep.mubr.f32.mxu0 0.0
      %2926 = vmatmul.mubr.f32.gmra.mxu0 %v2758
      %v2927 = vpop.f32.mrf.mxu0
      %v2928 = vadd.f32 0.0, %v2927
      %v2929 = vpop.f32.mrf.mxu0
      %2930 = vmatprep.mubr.f32.mxu0 0.0
      %2931 = vmatmul.mubr.f32.gmra.mxu0 %v2761
      %v2932 = vpop.f32.mrf.mxu0
      %v2933 = vadd.f32 0.0, %v2932
      %v2934 = vpop.f32.mrf.mxu0
      %2935 = vmatprep.mubr.f32.mxu0 0.0
      %2936 = vmatmul.mubr.f32.gmra.mxu0 %v2764
      %v2937 = vpop.f32.mrf.mxu0
      %v2938 = vadd.f32 0.0, %v2937
      %v2939 = vpop.f32.mrf.mxu0
      %2940 = vmatprep.mubr.f32.mxu0 0.0
      %2941 = vmatmul.mubr.f32.gmra.mxu0 %v2767
      %v2942 = vpop.f32.mrf.mxu0
      %v2943 = vadd.f32 0.0, %v2942
      %v2944 = vpop.f32.mrf.mxu0
      %2945 = vmatprep.mubr.f32.mxu0 0.0
      %2946 = vmatmul.mubr.f32.gmra.mxu0 %v2770
      %v2947 = vpop.f32.mrf.mxu0
      %v2948 = vadd.f32 0.0, %v2947
      %v2949 = vpop.f32.mrf.mxu0
      %2950 = vmatprep.mubr.f32.mxu0 0.0
      %2951 = vmatmul.mubr.f32.gmra.mxu0 %v2773
      %v2952 = vpop.f32.mrf.mxu0
      %v2953 = vadd.f32 0.0, %v2952
      %v2954 = vpop.f32.mrf.mxu0
      %2955 = vmatprep.mubr.f32.mxu0 0.0
      %2956 = vmatmul.mubr.f32.gmra.mxu0 %v2776
      %v2957 = vpop.f32.mrf.mxu0
      %v2958 = vadd.f32 0.0, %v2957
      %v2959 = vpop.f32.mrf.mxu0
      %2960 = vmatprep.mubr.f32.mxu0 0.0
      %2961 = vmatmul.mubr.f32.gmra.mxu0 %v2779
      %v2962 = vpop.f32.mrf.mxu0
      %v2963 = vadd.f32 0.0, %v2962
      %v2964 = vpop.f32.mrf.mxu0
      %2965 = vmatprep.mubr.f32.mxu0 0.0
      %2966 = vmatmul.mubr.f32.gmra.mxu0 %v2782
      %v2967 = vpop.f32.mrf.mxu0
      %v2968 = vadd.f32 0.0, %v2967
      %v2969 = vpop.f32.mrf.mxu0
      %2970 = vmatprep.mubr.f32.mxu0 0.0
      %2971 = vmatmul.mubr.f32.gmra.mxu0 %v2785
      %v2972 = vpop.f32.mrf.mxu0
      %v2973 = vadd.f32 0.0, %v2972
      %v2974 = vpop.f32.mrf.mxu0
      %2975 = vmatprep.mubr.f32.mxu0 0.0
      %2976 = vmatmul.mubr.f32.gmra.mxu0 %v2788
      %v2977 = vpop.f32.mrf.mxu0
      %v2978 = vadd.f32 0.0, %v2977
      %v2979 = vpop.f32.mrf.mxu0
      %2980 = vmatprep.mubr.f32.mxu0 0.0
      %2981 = vmatmul.mubr.f32.gmra.mxu0 %v2791
      %v2982 = vpop.f32.mrf.mxu0
      %v2983 = vadd.f32 0.0, %v2982
      %v2984 = vpop.f32.mrf.mxu0
      %2985 = vmatprep.mubr.f32.mxu0 0.0
      %2986 = vmatmul.mubr.f32.gmra.mxu0 %v2794
      %v2987 = vpop.f32.mrf.mxu0
      %v2988 = vadd.f32 0.0, %v2987
      %v2989 = vpop.f32.mrf.mxu0
      %2990 = vmatprep.mubr.f32.mxu0 0.0
      %2991 = vmatmul.mubr.f32.gmra.mxu0 %v2797
      %v2992 = vpop.f32.mrf.mxu0
      %v2993 = vadd.f32 0.0, %v2992
      %v2994 = vpop.f32.mrf.mxu0
      %2995 = vmatprep.mubr.f32.mxu0 0.0
      %2996 = vmatmul.mubr.f32.gmra.mxu0 %v2800
      %v2997 = vpop.f32.mrf.mxu0
      %v2998 = vadd.f32 0.0, %v2997
      %v2999 = vpop.f32.mrf.mxu0
      %3000 = vmatprep.mubr.f32.mxu0 0.0
      %3001 = vmatmul.mubr.f32.gmra.mxu0 %v2803
      %v3002 = vpop.f32.mrf.mxu0
      %v3003 = vadd.f32 0.0, %v3002
      %v3004 = vpop.f32.mrf.mxu0
      %3005 = vmatprep.mubr.f32.mxu0 0.0
      %3006 = vmatmul.mubr.f32.gmra.mxu0 %v2806
      %v3007 = vpop.f32.mrf.mxu0
      %v3008 = vadd.f32 0.0, %v3007
      %v3009 = vpop.f32.mrf.mxu0
      %3010 = vmatprep.mubr.f32.mxu0 0.0
      %3011 = vmatmul.mubr.f32.gmra.mxu0 %v2809
      %v3012 = vpop.f32.mrf.mxu0
      %v3013 = vadd.f32 0.0, %v3012
      %v3014 = vpop.f32.mrf.mxu0
      %3015 = vmatprep.mubr.f32.mxu0 0.0
      %3016 = vmatmul.mubr.f32.gmra.mxu0 %v2812
      %v3017 = vpop.f32.mrf.mxu0
      %v3018 = vadd.f32 0.0, %v3017
      %v3019 = vpop.f32.mrf.mxu0
      %3020 = vmatprep.mubr.f32.mxu0 0.0
      %3021 = vmatmul.mubr.f32.gmra.mxu0 %v2815
      %v3022 = vpop.f32.mrf.mxu0
      %v3023 = vadd.f32 0.0, %v3022
      %v3024 = vpop.f32.mrf.mxu0
      %3025 = vmatprep.mubr.f32.mxu0 0.0
      %3026 = vmatmul.mubr.f32.gmra.mxu0 %v2818
      %v3027 = vpop.f32.mrf.mxu0
      %v3028 = vadd.f32 0.0, %v3027
      %v3029 = vpop.f32.mrf.mxu0
      %3030 = vmatprep.mubr.f32.mxu0 0.0
      %3031 = vmatmul.mubr.f32.gmra.mxu0 %v2821
      %v3032 = vpop.f32.mrf.mxu0
      %v3033 = vadd.f32 0.0, %v3032
      %v3034 = vpop.f32.mrf.mxu0
      %3035 = vmatprep.mubr.f32.mxu0 0.0
      %3036 = vmatmul.mubr.f32.gmra.mxu0 %v2824
      %v3037 = vpop.f32.mrf.mxu0
      %v3038 = vadd.f32 0.0, %v3037
      %v3039 = vpop.f32.mrf.mxu0
      %3040 = vmatprep.mubr.f32.mxu0 0.0
      %3041 = vmatmul.mubr.f32.gmra.mxu0 %v2827
      %v3042 = vpop.f32.mrf.mxu0
      %v3043 = vadd.f32 0.0, %v3042
      %v3044 = vpop.f32.mrf.mxu0
      %3045 = vmatprep.mubr.f32.mxu0 0.0
      %3046 = vmatmul.mubr.f32.gmra.mxu0 %v2830
      %v3047 = vpop.f32.mrf.mxu0
      %v3048 = vadd.f32 0.0, %v3047
      %v3049 = vpop.f32.mrf.mxu0
      %3050 = vmatprep.mubr.f32.mxu0 0.0
      %3051 = vmatmul.mubr.f32.gmra.mxu0 %v2833
      %v3052 = vpop.f32.mrf.mxu0
      %v3053 = vadd.f32 0.0, %v3052
      %v3054 = vpop.f32.mrf.mxu0
      %3055 = vmatprep.mubr.f32.mxu0 0.0
      %3056 = vmatmul.mubr.f32.gmra.mxu0 %v2836
      %v3057 = vpop.f32.mrf.mxu0
      %v3058 = vadd.f32 0.0, %v3057
      %v3059 = vpop.f32.mrf.mxu0
      %3060 = vmatprep.mubr.f32.mxu0 0.0
      %3061 = vmatmul.mubr.f32.gmra.mxu0 %v2839
      %v3062 = vpop.f32.mrf.mxu0
      %v3063 = vadd.f32 0.0, %v3062
      %v3064 = vpop.f32.mrf.mxu0
      %3065 = vdwg.mxu0
      %v3066 = vadd.f32 %v2679, %v2908
      %v3067 = vadd.f32 %v2680, %v2913
      %v3068 = vadd.f32 %v2681, %v2918
      %v3069 = vadd.f32 %v2682, %v2923
      %v3070 = vadd.f32 %v2683, %v2928
      %v3071 = vadd.f32 %v2684, %v2933
      %v3072 = vadd.f32 %v2685, %v2938
      %v3073 = vadd.f32 %v2686, %v2943
      %v3074 = vadd.f32 %v2687, %v2948
      %v3075 = vadd.f32 %v2688, %v2953
      %v3076 = vadd.f32 %v2689, %v2958
      %v3077 = vadd.f32 %v2690, %v2963
      %v3078 = vadd.f32 %v2691, %v2968
      %v3079 = vadd.f32 %v2692, %v2973
      %v3080 = vadd.f32 %v2693, %v2978
      %v3081 = vadd.f32 %v2694, %v2983
      %v3082 = vadd.f32 %v2695, %v2988
      %v3083 = vadd.f32 %v2696, %v2993
      %v3084 = vadd.f32 %v2697, %v2998
      %v3085 = vadd.f32 %v2698, %v3003
      %v3086 = vadd.f32 %v2699, %v3008
      %v3087 = vadd.f32 %v2700, %v3013
      %v3088 = vadd.f32 %v2701, %v3018
      %v3089 = vadd.f32 %v2702, %v3023
      %v3090 = vadd.f32 %v2703, %v3028
      %v3091 = vadd.f32 %v2704, %v3033
      %v3092 = vadd.f32 %v2705, %v3038
      %v3093 = vadd.f32 %v2706, %v3043
      %v3094 = vadd.f32 %v2707, %v3048
      %v3095 = vadd.f32 %v2708, %v3053
      %v3096 = vadd.f32 %v2709, %v3058
      %v3097 = vadd.f32 %v2710, %v3063
      %v3098 = vld [vmem:[#allocation2 + $0x19] sm:$0xff]
      %v3099 = vld [vmem:[#allocation2 + $0x21] sm:$0xff]
      %v3100 = vld [vmem:[#allocation2 + $0x29] sm:$0xff]
      %v3101 = vld [vmem:[#allocation2 + $0x31] sm:$0xff]
      %v3102 = vld [vmem:[#allocation2 + $0x39] sm:$0xff]
      %v3103 = vld [vmem:[#allocation2 + $0x41] sm:$0xff]
      %v3104 = vld [vmem:[#allocation2 + $0x49] sm:$0xff]
      %v3105 = vld [vmem:[#allocation2 + $0x51] sm:$0xff]
      %v3106 = vld [vmem:[#allocation2 + $0x59] sm:$0xff]
      %v3107 = vld [vmem:[#allocation2 + $0x61] sm:$0xff]
      %v3108 = vld [vmem:[#allocation2 + $0x69] sm:$0xff]
      %v3109 = vld [vmem:[#allocation2 + $0x71] sm:$0xff]
      %v3110 = vld [vmem:[#allocation2 + $0x79] sm:$0xff]
      %v3111 = vld [vmem:[#allocation2 + $0x81] sm:$0xff]
      %v3112 = vld [vmem:[#allocation2 + $0x89] sm:$0xff]
      %v3113 = vld [vmem:[#allocation2 + $0x91] sm:$0xff]
      %v3114 = vld [vmem:[#allocation2 + $0x99] sm:$0xff]
      %v3115 = vld [vmem:[#allocation2 + $0xa1] sm:$0xff]
      %v3116 = vld [vmem:[#allocation2 + $0xa9] sm:$0xff]
      %v3117 = vld [vmem:[#allocation2 + $0xb1] sm:$0xff]
      %v3118 = vld [vmem:[#allocation2 + $0xb9] sm:$0xff]
      %v3119 = vld [vmem:[#allocation2 + $0xc1] sm:$0xff]
      %v3120 = vld [vmem:[#allocation2 + $0xc9] sm:$0xff]
      %v3121 = vld [vmem:[#allocation2 + $0xd1] sm:$0xff]
      %v3122 = vld [vmem:[#allocation2 + $0xd9] sm:$0xff]
      %v3123 = vld [vmem:[#allocation2 + $0xe1] sm:$0xff]
      %v3124 = vld [vmem:[#allocation2 + $0xe9] sm:$0xff]
      %v3125 = vld [vmem:[#allocation2 + $0xf1] sm:$0xff]
      %v3126 = vld [vmem:[#allocation2 + $0xf9] sm:$0xff]
      %v3127 = vld [vmem:[#allocation2 + $0x101] sm:$0xff]
      %v3128 = vld [vmem:[#allocation2 + $0x109] sm:$0xff]
      %v3129 = vld [vmem:[#allocation2 + $0x111] sm:$0xff]
      %v3130 = vmul.f32 %v3098, %v1748
      %v3131 = vmul.f32 %v3099, %v1753
      %v3132 = vmul.f32 %v3100, %v1758
      %v3133 = vmul.f32 %v3101, %v1763
      %v3134 = vmul.f32 %v3102, %v1768
      %v3135 = vmul.f32 %v3103, %v1773
      %v3136 = vmul.f32 %v3104, %v1778
      %v3137 = vmul.f32 %v3105, %v1783
      %v3138 = vmul.f32 %v3106, %v1788
      %v3139 = vmul.f32 %v3107, %v1793
      %v3140 = vmul.f32 %v3108, %v1798
      %v3141 = vmul.f32 %v3109, %v1803
      %v3142 = vmul.f32 %v3110, %v1808
      %v3143 = vmul.f32 %v3111, %v1813
      %v3144 = vmul.f32 %v3112, %v1818
      %v3145 = vmul.f32 %v3113, %v1823
      %v3146 = vmul.f32 %v3114, %v1828
      %v3147 = vmul.f32 %v3115, %v1833
      %v3148 = vmul.f32 %v3116, %v1838
      %v3149 = vmul.f32 %v3117, %v1843
      %v3150 = vmul.f32 %v3118, %v1848
      %v3151 = vmul.f32 %v3119, %v1853
      %v3152 = vmul.f32 %v3120, %v1858
      %v3153 = vmul.f32 %v3121, %v1863
      %v3154 = vmul.f32 %v3122, %v1868
      %v3155 = vmul.f32 %v3123, %v1873
      %v3156 = vmul.f32 %v3124, %v1878
      %v3157 = vmul.f32 %v3125, %v1883
      %v3158 = vmul.f32 %v3126, %v1888
      %v3159 = vmul.f32 %v3127, %v1893
      %v3160 = vmul.f32 %v3128, %v1898
      %v3161 = vmul.f32 %v3129, %v1903
      %v3162 = vld [vmem:[%s3 + $0x50] sm:$0xff]
      %v3163 = vld [vmem:[%s3 + $0x58] sm:$0xff]
      %v3165 = vsel %vm323, %v3130, 0
      %v3168 = vsel %vm323, %v3131, 0
      %v3171 = vsel %vm323, %v3132, 0
      %v3174 = vsel %vm323, %v3133, 0
      %v3177 = vsel %vm323, %v3134, 0
      %v3180 = vsel %vm323, %v3135, 0
      %v3183 = vsel %vm323, %v3136, 0
      %v3186 = vsel %vm323, %v3137, 0
      %v3189 = vsel %vm323, %v3138, 0
      %v3192 = vsel %vm323, %v3139, 0
      %v3195 = vsel %vm323, %v3140, 0
      %v3198 = vsel %vm323, %v3141, 0
      %v3201 = vsel %vm323, %v3142, 0
      %v3204 = vsel %vm323, %v3143, 0
      %v3207 = vsel %vm323, %v3144, 0
      %v3210 = vsel %vm323, %v3145, 0
      %v3213 = vsel %vm323, %v3146, 0
      %v3216 = vsel %vm323, %v3147, 0
      %v3219 = vsel %vm323, %v3148, 0
      %v3222 = vsel %vm323, %v3149, 0
      %v3225 = vsel %vm323, %v3150, 0
      %v3228 = vsel %vm323, %v3151, 0
      %v3231 = vsel %vm323, %v3152, 0
      %v3234 = vsel %vm323, %v3153, 0
      %v3237 = vsel %vm323, %v3154, 0
      %v3240 = vsel %vm323, %v3155, 0
      %v3243 = vsel %vm323, %v3156, 0
      %v3246 = vsel %vm323, %v3157, 0
      %v3249 = vsel %vm323, %v3158, 0
      %v3252 = vsel %vm323, %v3159, 0
      %v3255 = vsel %vm323, %v3160, 0
      %v3258 = vsel %vm323, %v3161, 0
      %3260 = vmatprep.subr.mxu0 0.0
      %3261 = vmatpush1.msra.mxu0 0.0
      %3262 = vmatprep.subr.mxu0 0.0
      %3263 = vmatpush1.msra.mxu0 0.0
      %3264 = vmatprep.subr.mxu0 0.0
      %3265 = vmatpush1.msra.mxu0 0.0
      %3266 = vmatprep.subr.mxu0 0.0
      %3267 = vmatpush1.msra.mxu0 0.0
      %3268 = vmatprep.subr.mxu0 0.0
      %3269 = vmatpush1.msra.mxu0 0.0
      %3270 = vmatprep.subr.mxu0 0.0
      %3271 = vmatpush1.msra.mxu0 0.0
      %3272 = vmatprep.subr.mxu0 0.0
      %3273 = vmatpush1.msra.mxu0 0.0
      %3274 = vmatprep.subr.mxu0 0.0
      %3275 = vmatpush1.msra.mxu0 0.0
      %3276 = vmatprep.subr.mxu0 0.0
      %3277 = vmatpush1.msra.mxu0 0.0
      %3278 = vmatprep.subr.mxu0 0.0
      %3279 = vmatpush1.msra.mxu0 0.0
      %3280 = vmatprep.subr.mxu0 0.0
      %3281 = vmatpush1.msra.mxu0 0.0
      %3282 = vmatprep.subr.mxu0 0.0
      %3283 = vmatpush1.msra.mxu0 0.0
      %3284 = vmatprep.subr.mxu0 0.0
      %3285 = vmatpush1.msra.mxu0 0.0
      %3286 = vmatprep.subr.mxu0 0.0
      %3287 = vmatpush1.msra.mxu0 0.0
      %3288 = vmatprep.subr.mxu0 0.0
      %3289 = vmatpush1.msra.mxu0 %v3163
      %3290 = vmatprep.subr.mxu0 0.0
      %3291 = vmatpush1.msra.mxu0 %v3162
      %3292 = vmatprep.subr.mxu0 0.0
      %3293 = vmatpush2.msra.mxu0 0.0
      %3294 = vmatprep.subr.mxu0 0.0
      %3295 = vmatpush2.msra.mxu0 0.0
      %3296 = vmatprep.subr.mxu0 0.0
      %3297 = vmatpush2.msra.mxu0 0.0
      %3298 = vmatprep.subr.mxu0 0.0
      %3299 = vmatpush2.msra.mxu0 0.0
      %3300 = vmatprep.subr.mxu0 0.0
      %3301 = vmatpush2.msra.mxu0 0.0
      %3302 = vmatprep.subr.mxu0 0.0
      %3303 = vmatpush2.msra.mxu0 0.0
      %3304 = vmatprep.subr.mxu0 0.0
      %3305 = vmatpush2.msra.mxu0 0.0
      %3306 = vmatprep.subr.mxu0 0.0
      %3307 = vmatpush2.msra.mxu0 0.0
      %3308 = vmatprep.subr.mxu0 0.0
      %3309 = vmatpush2.msra.mxu0 0.0
      %3310 = vmatprep.subr.mxu0 0.0
      %3311 = vmatpush2.msra.mxu0 0.0
      %3312 = vmatprep.subr.mxu0 0.0
      %3313 = vmatpush2.msra.mxu0 0.0
      %3314 = vmatprep.subr.mxu0 0.0
      %3315 = vmatpush2.msra.mxu0 0.0
      %3316 = vmatprep.subr.mxu0 0.0
      %3317 = vmatpush2.msra.mxu0 0.0
      %3318 = vmatprep.subr.mxu0 0.0
      %3319 = vmatpush2.msra.mxu0 0.0
      %3320 = vmatprep.subr.mxu0 0.0
      %3321 = vmatpush2.msra.mxu0 0.0
      %3322 = vmatprep.subr.mxu0 0.0
      %3323 = vmatpush2.msra.mxu0 0.0
      %3324 = vmatprep.mubr.f32.mxu0 0.0
      %3325 = vmatmul.mubr.f32.gmra.mxu0 %v3165
      %v3326 = vpop.f32.mrf.mxu0
      %v3327 = vadd.f32 0.0, %v3326
      %v3328 = vpop.f32.mrf.mxu0
      %3329 = vmatprep.mubr.f32.mxu0 0.0
      %3330 = vmatmul.mubr.f32.gmra.mxu0 %v3168
      %v3331 = vpop.f32.mrf.mxu0
      %v3332 = vadd.f32 0.0, %v3331
      %v3333 = vpop.f32.mrf.mxu0
      %3334 = vmatprep.mubr.f32.mxu0 0.0
      %3335 = vmatmul.mubr.f32.gmra.mxu0 %v3171
      %v3336 = vpop.f32.mrf.mxu0
      %v3337 = vadd.f32 0.0, %v3336
      %v3338 = vpop.f32.mrf.mxu0
      %3339 = vmatprep.mubr.f32.mxu0 0.0
      %3340 = vmatmul.mubr.f32.gmra.mxu0 %v3174
      %v3341 = vpop.f32.mrf.mxu0
      %v3342 = vadd.f32 0.0, %v3341
      %v3343 = vpop.f32.mrf.mxu0
      %3344 = vmatprep.mubr.f32.mxu0 0.0
      %3345 = vmatmul.mubr.f32.gmra.mxu0 %v3177
      %v3346 = vpop.f32.mrf.mxu0
      %v3347 = vadd.f32 0.0, %v3346
      %v3348 = vpop.f32.mrf.mxu0
      %3349 = vmatprep.mubr.f32.mxu0 0.0
      %3350 = vmatmul.mubr.f32.gmra.mxu0 %v3180
      %v3351 = vpop.f32.mrf.mxu0
      %v3352 = vadd.f32 0.0, %v3351
      %v3353 = vpop.f32.mrf.mxu0
      %3354 = vmatprep.mubr.f32.mxu0 0.0
      %3355 = vmatmul.mubr.f32.gmra.mxu0 %v3183
      %v3356 = vpop.f32.mrf.mxu0
      %v3357 = vadd.f32 0.0, %v3356
      %v3358 = vpop.f32.mrf.mxu0
      %3359 = vmatprep.mubr.f32.mxu0 0.0
      %3360 = vmatmul.mubr.f32.gmra.mxu0 %v3186
      %v3361 = vpop.f32.mrf.mxu0
      %v3362 = vadd.f32 0.0, %v3361
      %v3363 = vpop.f32.mrf.mxu0
      %3364 = vmatprep.mubr.f32.mxu0 0.0
      %3365 = vmatmul.mubr.f32.gmra.mxu0 %v3189
      %v3366 = vpop.f32.mrf.mxu0
      %v3367 = vadd.f32 0.0, %v3366
      %v3368 = vpop.f32.mrf.mxu0
      %3369 = vmatprep.mubr.f32.mxu0 0.0
      %3370 = vmatmul.mubr.f32.gmra.mxu0 %v3192
      %v3371 = vpop.f32.mrf.mxu0
      %v3372 = vadd.f32 0.0, %v3371
      %v3373 = vpop.f32.mrf.mxu0
      %3374 = vmatprep.mubr.f32.mxu0 0.0
      %3375 = vmatmul.mubr.f32.gmra.mxu0 %v3195
      %v3376 = vpop.f32.mrf.mxu0
      %v3377 = vadd.f32 0.0, %v3376
      %v3378 = vpop.f32.mrf.mxu0
      %3379 = vmatprep.mubr.f32.mxu0 0.0
      %3380 = vmatmul.mubr.f32.gmra.mxu0 %v3198
      %v3381 = vpop.f32.mrf.mxu0
      %v3382 = vadd.f32 0.0, %v3381
      %v3383 = vpop.f32.mrf.mxu0
      %3384 = vmatprep.mubr.f32.mxu0 0.0
      %3385 = vmatmul.mubr.f32.gmra.mxu0 %v3201
      %v3386 = vpop.f32.mrf.mxu0
      %v3387 = vadd.f32 0.0, %v3386
      %v3388 = vpop.f32.mrf.mxu0
      %3389 = vmatprep.mubr.f32.mxu0 0.0
      %3390 = vmatmul.mubr.f32.gmra.mxu0 %v3204
      %v3391 = vpop.f32.mrf.mxu0
      %v3392 = vadd.f32 0.0, %v3391
      %v3393 = vpop.f32.mrf.mxu0
      %3394 = vmatprep.mubr.f32.mxu0 0.0
      %3395 = vmatmul.mubr.f32.gmra.mxu0 %v3207
      %v3396 = vpop.f32.mrf.mxu0
      %v3397 = vadd.f32 0.0, %v3396
      %v3398 = vpop.f32.mrf.mxu0
      %3399 = vmatprep.mubr.f32.mxu0 0.0
      %3400 = vmatmul.mubr.f32.gmra.mxu0 %v3210
      %v3401 = vpop.f32.mrf.mxu0
      %v3402 = vadd.f32 0.0, %v3401
      %v3403 = vpop.f32.mrf.mxu0
      %3404 = vmatprep.mubr.f32.mxu0 0.0
      %3405 = vmatmul.mubr.f32.gmra.mxu0 %v3213
      %v3406 = vpop.f32.mrf.mxu0
      %v3407 = vadd.f32 0.0, %v3406
      %v3408 = vpop.f32.mrf.mxu0
      %3409 = vmatprep.mubr.f32.mxu0 0.0
      %3410 = vmatmul.mubr.f32.gmra.mxu0 %v3216
      %v3411 = vpop.f32.mrf.mxu0
      %v3412 = vadd.f32 0.0, %v3411
      %v3413 = vpop.f32.mrf.mxu0
      %3414 = vmatprep.mubr.f32.mxu0 0.0
      %3415 = vmatmul.mubr.f32.gmra.mxu0 %v3219
      %v3416 = vpop.f32.mrf.mxu0
      %v3417 = vadd.f32 0.0, %v3416
      %v3418 = vpop.f32.mrf.mxu0
      %3419 = vmatprep.mubr.f32.mxu0 0.0
      %3420 = vmatmul.mubr.f32.gmra.mxu0 %v3222
      %v3421 = vpop.f32.mrf.mxu0
      %v3422 = vadd.f32 0.0, %v3421
      %v3423 = vpop.f32.mrf.mxu0
      %3424 = vmatprep.mubr.f32.mxu0 0.0
      %3425 = vmatmul.mubr.f32.gmra.mxu0 %v3225
      %v3426 = vpop.f32.mrf.mxu0
      %v3427 = vadd.f32 0.0, %v3426
      %v3428 = vpop.f32.mrf.mxu0
      %3429 = vmatprep.mubr.f32.mxu0 0.0
      %3430 = vmatmul.mubr.f32.gmra.mxu0 %v3228
      %v3431 = vpop.f32.mrf.mxu0
      %v3432 = vadd.f32 0.0, %v3431
      %v3433 = vpop.f32.mrf.mxu0
      %3434 = vmatprep.mubr.f32.mxu0 0.0
      %3435 = vmatmul.mubr.f32.gmra.mxu0 %v3231
      %v3436 = vpop.f32.mrf.mxu0
      %v3437 = vadd.f32 0.0, %v3436
      %v3438 = vpop.f32.mrf.mxu0
      %3439 = vmatprep.mubr.f32.mxu0 0.0
      %3440 = vmatmul.mubr.f32.gmra.mxu0 %v3234
      %v3441 = vpop.f32.mrf.mxu0
      %v3442 = vadd.f32 0.0, %v3441
      %v3443 = vpop.f32.mrf.mxu0
      %3444 = vmatprep.mubr.f32.mxu0 0.0
      %3445 = vmatmul.mubr.f32.gmra.mxu0 %v3237
      %v3446 = vpop.f32.mrf.mxu0
      %v3447 = vadd.f32 0.0, %v3446
      %v3448 = vpop.f32.mrf.mxu0
      %3449 = vmatprep.mubr.f32.mxu0 0.0
      %3450 = vmatmul.mubr.f32.gmra.mxu0 %v3240
      %v3451 = vpop.f32.mrf.mxu0
      %v3452 = vadd.f32 0.0, %v3451
      %v3453 = vpop.f32.mrf.mxu0
      %3454 = vmatprep.mubr.f32.mxu0 0.0
      %3455 = vmatmul.mubr.f32.gmra.mxu0 %v3243
      %v3456 = vpop.f32.mrf.mxu0
      %v3457 = vadd.f32 0.0, %v3456
      %v3458 = vpop.f32.mrf.mxu0
      %3459 = vmatprep.mubr.f32.mxu0 0.0
      %3460 = vmatmul.mubr.f32.gmra.mxu0 %v3246
      %v3461 = vpop.f32.mrf.mxu0
      %v3462 = vadd.f32 0.0, %v3461
      %v3463 = vpop.f32.mrf.mxu0
      %3464 = vmatprep.mubr.f32.mxu0 0.0
      %3465 = vmatmul.mubr.f32.gmra.mxu0 %v3249
      %v3466 = vpop.f32.mrf.mxu0
      %v3467 = vadd.f32 0.0, %v3466
      %v3468 = vpop.f32.mrf.mxu0
      %3469 = vmatprep.mubr.f32.mxu0 0.0
      %3470 = vmatmul.mubr.f32.gmra.mxu0 %v3252
      %v3471 = vpop.f32.mrf.mxu0
      %v3472 = vadd.f32 0.0, %v3471
      %v3473 = vpop.f32.mrf.mxu0
      %3474 = vmatprep.mubr.f32.mxu0 0.0
      %3475 = vmatmul.mubr.f32.gmra.mxu0 %v3255
      %v3476 = vpop.f32.mrf.mxu0
      %v3477 = vadd.f32 0.0, %v3476
      %v3478 = vpop.f32.mrf.mxu0
      %3479 = vmatprep.mubr.f32.mxu0 0.0
      %3480 = vmatmul.mubr.f32.gmra.mxu0 %v3258
      %v3481 = vpop.f32.mrf.mxu0
      %v3482 = vadd.f32 0.0, %v3481
      %v3483 = vpop.f32.mrf.mxu0
      %3484 = vdwg.mxu0
      %v3485 = vadd.f32 %v3066, %v3327
      %v3486 = vadd.f32 %v3067, %v3332
      %v3487 = vadd.f32 %v3068, %v3337
      %v3488 = vadd.f32 %v3069, %v3342
      %v3489 = vadd.f32 %v3070, %v3347
      %v3490 = vadd.f32 %v3071, %v3352
      %v3491 = vadd.f32 %v3072, %v3357
      %v3492 = vadd.f32 %v3073, %v3362
      %v3493 = vadd.f32 %v3074, %v3367
      %v3494 = vadd.f32 %v3075, %v3372
      %v3495 = vadd.f32 %v3076, %v3377
      %v3496 = vadd.f32 %v3077, %v3382
      %v3497 = vadd.f32 %v3078, %v3387
      %v3498 = vadd.f32 %v3079, %v3392
      %v3499 = vadd.f32 %v3080, %v3397
      %v3500 = vadd.f32 %v3081, %v3402
      %v3501 = vadd.f32 %v3082, %v3407
      %v3502 = vadd.f32 %v3083, %v3412
      %v3503 = vadd.f32 %v3084, %v3417
      %v3504 = vadd.f32 %v3085, %v3422
      %v3505 = vadd.f32 %v3086, %v3427
      %v3506 = vadd.f32 %v3087, %v3432
      %v3507 = vadd.f32 %v3088, %v3437
      %v3508 = vadd.f32 %v3089, %v3442
      %v3509 = vadd.f32 %v3090, %v3447
      %v3510 = vadd.f32 %v3091, %v3452
      %v3511 = vadd.f32 %v3092, %v3457
      %v3512 = vadd.f32 %v3093, %v3462
      %v3513 = vadd.f32 %v3094, %v3467
      %v3514 = vadd.f32 %v3095, %v3472
      %v3515 = vadd.f32 %v3096, %v3477
      %v3516 = vadd.f32 %v3097, %v3482
      %v3517 = vld [vmem:[#allocation2 + $0x27] sm:$0xff]
      %v3518 = vld [vmem:[#allocation2 + $0x2f] sm:$0xff]
      %v3519 = vld [vmem:[#allocation2 + $0x37] sm:$0xff]
      %v3520 = vld [vmem:[#allocation2 + $0x3f] sm:$0xff]
      %v3521 = vld [vmem:[#allocation2 + $0x47] sm:$0xff]
      %v3522 = vld [vmem:[#allocation2 + $0x4f] sm:$0xff]
      %v3523 = vld [vmem:[#allocation2 + $0x57] sm:$0xff]
      %v3524 = vld [vmem:[#allocation2 + $0x5f] sm:$0xff]
      %v3525 = vld [vmem:[#allocation2 + $0x67] sm:$0xff]
      %v3526 = vld [vmem:[#allocation2 + $0x6f] sm:$0xff]
      %v3527 = vld [vmem:[#allocation2 + $0x77] sm:$0xff]
      %v3528 = vld [vmem:[#allocation2 + $0x7f] sm:$0xff]
      %v3529 = vld [vmem:[#allocation2 + $0x87] sm:$0xff]
      %v3530 = vld [vmem:[#allocation2 + $0x8f] sm:$0xff]
      %v3531 = vld [vmem:[#allocation2 + $0x97] sm:$0xff]
      %v3532 = vld [vmem:[#allocation2 + $0x9f] sm:$0xff]
      %v3533 = vld [vmem:[#allocation2 + $0xa7] sm:$0xff]
      %v3534 = vld [vmem:[#allocation2 + $0xaf] sm:$0xff]
      %v3535 = vld [vmem:[#allocation2 + $0xb7] sm:$0xff]
      %v3536 = vld [vmem:[#allocation2 + $0xbf] sm:$0xff]
      %v3537 = vld [vmem:[#allocation2 + $0xc7] sm:$0xff]
      %v3538 = vld [vmem:[#allocation2 + $0xcf] sm:$0xff]
      %v3539 = vld [vmem:[#allocation2 + $0xd7] sm:$0xff]
      %v3540 = vld [vmem:[#allocation2 + $0xdf] sm:$0xff]
      %v3541 = vld [vmem:[#allocation2 + $0xe7] sm:$0xff]
      %v3542 = vld [vmem:[#allocation2 + $0xef] sm:$0xff]
      %v3543 = vld [vmem:[#allocation2 + $0xf7] sm:$0xff]
      %v3544 = vld [vmem:[#allocation2 + $0xff] sm:$0xff]
      %v3545 = vld [vmem:[#allocation2 + $0x107] sm:$0xff]
      %v3546 = vld [vmem:[#allocation2 + $0x10f] sm:$0xff]
      %v3547 = vld [vmem:[#allocation2 + $0x117] sm:$0xff]
      %v3548 = vld [vmem:[#allocation2 + $0x11f] sm:$0xff]
      %v3549 = vmul.f32 %v3517, %v814
      %v3550 = vmul.f32 %v3518, %v819
      %v3551 = vmul.f32 %v3519, %v824
      %v3552 = vmul.f32 %v3520, %v829
      %v3553 = vmul.f32 %v3521, %v834
      %v3554 = vmul.f32 %v3522, %v839
      %v3555 = vmul.f32 %v3523, %v844
      %v3556 = vmul.f32 %v3524, %v849
      %v3557 = vmul.f32 %v3525, %v854
      %v3558 = vmul.f32 %v3526, %v859
      %v3559 = vmul.f32 %v3527, %v864
      %v3560 = vmul.f32 %v3528, %v869
      %v3561 = vmul.f32 %v3529, %v874
      %v3562 = vmul.f32 %v3530, %v879
      %v3563 = vmul.f32 %v3531, %v884
      %v3564 = vmul.f32 %v3532, %v889
      %v3565 = vmul.f32 %v3533, %v894
      %v3566 = vmul.f32 %v3534, %v899
      %v3567 = vmul.f32 %v3535, %v904
      %v3568 = vmul.f32 %v3536, %v909
      %v3569 = vmul.f32 %v3537, %v914
      %v3570 = vmul.f32 %v3538, %v919
      %v3571 = vmul.f32 %v3539, %v924
      %v3572 = vmul.f32 %v3540, %v929
      %v3573 = vmul.f32 %v3541, %v934
      %v3574 = vmul.f32 %v3542, %v939
      %v3575 = vmul.f32 %v3543, %v944
      %v3576 = vmul.f32 %v3544, %v949
      %v3577 = vmul.f32 %v3545, %v954
      %v3578 = vmul.f32 %v3546, %v959
      %v3579 = vmul.f32 %v3547, %v964
      %v3580 = vmul.f32 %v3548, %v969
      %v3581 = vld [vmem:[%s3 + $0x60] sm:$0xff]
      %v3582 = vld [vmem:[%s3 + $0x68] sm:$0xff]
      %v3584 = vsel %vm323, %v3549, 0
      %v3587 = vsel %vm323, %v3550, 0
      %v3590 = vsel %vm323, %v3551, 0
      %v3593 = vsel %vm323, %v3552, 0
      %v3596 = vsel %vm323, %v3553, 0
      %v3599 = vsel %vm323, %v3554, 0
      %v3602 = vsel %vm323, %v3555, 0
      %v3605 = vsel %vm323, %v3556, 0
      %v3608 = vsel %vm323, %v3557, 0
      %v3611 = vsel %vm323, %v3558, 0
      %v3614 = vsel %vm323, %v3559, 0
      %v3617 = vsel %vm323, %v3560, 0
      %v3620 = vsel %vm323, %v3561, 0
      %v3623 = vsel %vm323, %v3562, 0
      %v3626 = vsel %vm323, %v3563, 0
      %v3629 = vsel %vm323, %v3564, 0
      %v3632 = vsel %vm323, %v3565, 0
      %v3635 = vsel %vm323, %v3566, 0
      %v3638 = vsel %vm323, %v3567, 0
      %v3641 = vsel %vm323, %v3568, 0
      %v3644 = vsel %vm323, %v3569, 0
      %v3647 = vsel %vm323, %v3570, 0
      %v3650 = vsel %vm323, %v3571, 0
      %v3653 = vsel %vm323, %v3572, 0
      %v3656 = vsel %vm323, %v3573, 0
      %v3659 = vsel %vm323, %v3574, 0
      %v3662 = vsel %vm323, %v3575, 0
      %v3665 = vsel %vm323, %v3576, 0
      %v3668 = vsel %vm323, %v3577, 0
      %v3671 = vsel %vm323, %v3578, 0
      %v3674 = vsel %vm323, %v3579, 0
      %v3677 = vsel %vm323, %v3580, 0
      %3679 = vmatprep.subr.mxu0 0.0
      %3680 = vmatpush1.msra.mxu0 0.0
      %3681 = vmatprep.subr.mxu0 0.0
      %3682 = vmatpush1.msra.mxu0 0.0
      %3683 = vmatprep.subr.mxu0 0.0
      %3684 = vmatpush1.msra.mxu0 0.0
      %3685 = vmatprep.subr.mxu0 0.0
      %3686 = vmatpush1.msra.mxu0 0.0
      %3687 = vmatprep.subr.mxu0 0.0
      %3688 = vmatpush1.msra.mxu0 0.0
      %3689 = vmatprep.subr.mxu0 0.0
      %3690 = vmatpush1.msra.mxu0 0.0
      %3691 = vmatprep.subr.mxu0 0.0
      %3692 = vmatpush1.msra.mxu0 0.0
      %3693 = vmatprep.subr.mxu0 0.0
      %3694 = vmatpush1.msra.mxu0 0.0
      %3695 = vmatprep.subr.mxu0 0.0
      %3696 = vmatpush1.msra.mxu0 0.0
      %3697 = vmatprep.subr.mxu0 0.0
      %3698 = vmatpush1.msra.mxu0 0.0
      %3699 = vmatprep.subr.mxu0 0.0
      %3700 = vmatpush1.msra.mxu0 0.0
      %3701 = vmatprep.subr.mxu0 0.0
      %3702 = vmatpush1.msra.mxu0 0.0
      %3703 = vmatprep.subr.mxu0 0.0
      %3704 = vmatpush1.msra.mxu0 0.0
      %3705 = vmatprep.subr.mxu0 0.0
      %3706 = vmatpush1.msra.mxu0 0.0
      %3707 = vmatprep.subr.mxu0 0.0
      %3708 = vmatpush1.msra.mxu0 %v3582
      %3709 = vmatprep.subr.mxu0 0.0
      %3710 = vmatpush1.msra.mxu0 %v3581
      %3711 = vmatprep.subr.mxu0 0.0
      %3712 = vmatpush2.msra.mxu0 0.0
      %3713 = vmatprep.subr.mxu0 0.0
      %3714 = vmatpush2.msra.mxu0 0.0
      %3715 = vmatprep.subr.mxu0 0.0
      %3716 = vmatpush2.msra.mxu0 0.0
      %3717 = vmatprep.subr.mxu0 0.0
      %3718 = vmatpush2.msra.mxu0 0.0
      %3719 = vmatprep.subr.mxu0 0.0
      %3720 = vmatpush2.msra.mxu0 0.0
      %3721 = vmatprep.subr.mxu0 0.0
      %3722 = vmatpush2.msra.mxu0 0.0
      %3723 = vmatprep.subr.mxu0 0.0
      %3724 = vmatpush2.msra.mxu0 0.0
      %3725 = vmatprep.subr.mxu0 0.0
      %3726 = vmatpush2.msra.mxu0 0.0
      %3727 = vmatprep.subr.mxu0 0.0
      %3728 = vmatpush2.msra.mxu0 0.0
      %3729 = vmatprep.subr.mxu0 0.0
      %3730 = vmatpush2.msra.mxu0 0.0
      %3731 = vmatprep.subr.mxu0 0.0
      %3732 = vmatpush2.msra.mxu0 0.0
      %3733 = vmatprep.subr.mxu0 0.0
      %3734 = vmatpush2.msra.mxu0 0.0
      %3735 = vmatprep.subr.mxu0 0.0
      %3736 = vmatpush2.msra.mxu0 0.0
      %3737 = vmatprep.subr.mxu0 0.0
      %3738 = vmatpush2.msra.mxu0 0.0
      %3739 = vmatprep.subr.mxu0 0.0
      %3740 = vmatpush2.msra.mxu0 0.0
      %3741 = vmatprep.subr.mxu0 0.0
      %3742 = vmatpush2.msra.mxu0 0.0
      %3743 = vmatprep.mubr.f32.mxu0 0.0
      %3744 = vmatmul.mubr.f32.gmra.mxu0 %v3584
      %v3745 = vpop.f32.mrf.mxu0
      %v3746 = vadd.f32 0.0, %v3745
      %v3747 = vpop.f32.mrf.mxu0
      %3748 = vmatprep.mubr.f32.mxu0 0.0
      %3749 = vmatmul.mubr.f32.gmra.mxu0 %v3587
      %v3750 = vpop.f32.mrf.mxu0
      %v3751 = vadd.f32 0.0, %v3750
      %v3752 = vpop.f32.mrf.mxu0
      %3753 = vmatprep.mubr.f32.mxu0 0.0
      %3754 = vmatmul.mubr.f32.gmra.mxu0 %v3590
      %v3755 = vpop.f32.mrf.mxu0
      %v3756 = vadd.f32 0.0, %v3755
      %v3757 = vpop.f32.mrf.mxu0
      %3758 = vmatprep.mubr.f32.mxu0 0.0
      %3759 = vmatmul.mubr.f32.gmra.mxu0 %v3593
      %v3760 = vpop.f32.mrf.mxu0
      %v3761 = vadd.f32 0.0, %v3760
      %v3762 = vpop.f32.mrf.mxu0
      %3763 = vmatprep.mubr.f32.mxu0 0.0
      %3764 = vmatmul.mubr.f32.gmra.mxu0 %v3596
      %v3765 = vpop.f32.mrf.mxu0
      %v3766 = vadd.f32 0.0, %v3765
      %v3767 = vpop.f32.mrf.mxu0
      %3768 = vmatprep.mubr.f32.mxu0 0.0
      %3769 = vmatmul.mubr.f32.gmra.mxu0 %v3599
      %v3770 = vpop.f32.mrf.mxu0
      %v3771 = vadd.f32 0.0, %v3770
      %v3772 = vpop.f32.mrf.mxu0
      %3773 = vmatprep.mubr.f32.mxu0 0.0
      %3774 = vmatmul.mubr.f32.gmra.mxu0 %v3602
      %v3775 = vpop.f32.mrf.mxu0
      %v3776 = vadd.f32 0.0, %v3775
      %v3777 = vpop.f32.mrf.mxu0
      %3778 = vmatprep.mubr.f32.mxu0 0.0
      %3779 = vmatmul.mubr.f32.gmra.mxu0 %v3605
      %v3780 = vpop.f32.mrf.mxu0
      %v3781 = vadd.f32 0.0, %v3780
      %v3782 = vpop.f32.mrf.mxu0
      %3783 = vmatprep.mubr.f32.mxu0 0.0
      %3784 = vmatmul.mubr.f32.gmra.mxu0 %v3608
      %v3785 = vpop.f32.mrf.mxu0
      %v3786 = vadd.f32 0.0, %v3785
      %v3787 = vpop.f32.mrf.mxu0
      %3788 = vmatprep.mubr.f32.mxu0 0.0
      %3789 = vmatmul.mubr.f32.gmra.mxu0 %v3611
      %v3790 = vpop.f32.mrf.mxu0
      %v3791 = vadd.f32 0.0, %v3790
      %v3792 = vpop.f32.mrf.mxu0
      %3793 = vmatprep.mubr.f32.mxu0 0.0
      %3794 = vmatmul.mubr.f32.gmra.mxu0 %v3614
      %v3795 = vpop.f32.mrf.mxu0
      %v3796 = vadd.f32 0.0, %v3795
      %v3797 = vpop.f32.mrf.mxu0
      %3798 = vmatprep.mubr.f32.mxu0 0.0
      %3799 = vmatmul.mubr.f32.gmra.mxu0 %v3617
      %v3800 = vpop.f32.mrf.mxu0
      %v3801 = vadd.f32 0.0, %v3800
      %v3802 = vpop.f32.mrf.mxu0
      %3803 = vmatprep.mubr.f32.mxu0 0.0
      %3804 = vmatmul.mubr.f32.gmra.mxu0 %v3620
      %v3805 = vpop.f32.mrf.mxu0
      %v3806 = vadd.f32 0.0, %v3805
      %v3807 = vpop.f32.mrf.mxu0
      %3808 = vmatprep.mubr.f32.mxu0 0.0
      %3809 = vmatmul.mubr.f32.gmra.mxu0 %v3623
      %v3810 = vpop.f32.mrf.mxu0
      %v3811 = vadd.f32 0.0, %v3810
      %v3812 = vpop.f32.mrf.mxu0
      %3813 = vmatprep.mubr.f32.mxu0 0.0
      %3814 = vmatmul.mubr.f32.gmra.mxu0 %v3626
      %v3815 = vpop.f32.mrf.mxu0
      %v3816 = vadd.f32 0.0, %v3815
      %v3817 = vpop.f32.mrf.mxu0
      %3818 = vmatprep.mubr.f32.mxu0 0.0
      %3819 = vmatmul.mubr.f32.gmra.mxu0 %v3629
      %v3820 = vpop.f32.mrf.mxu0
      %v3821 = vadd.f32 0.0, %v3820
      %v3822 = vpop.f32.mrf.mxu0
      %3823 = vmatprep.mubr.f32.mxu0 0.0
      %3824 = vmatmul.mubr.f32.gmra.mxu0 %v3632
      %v3825 = vpop.f32.mrf.mxu0
      %v3826 = vadd.f32 0.0, %v3825
      %v3827 = vpop.f32.mrf.mxu0
      %3828 = vmatprep.mubr.f32.mxu0 0.0
      %3829 = vmatmul.mubr.f32.gmra.mxu0 %v3635
      %v3830 = vpop.f32.mrf.mxu0
      %v3831 = vadd.f32 0.0, %v3830
      %v3832 = vpop.f32.mrf.mxu0
      %3833 = vmatprep.mubr.f32.mxu0 0.0
      %3834 = vmatmul.mubr.f32.gmra.mxu0 %v3638
      %v3835 = vpop.f32.mrf.mxu0
      %v3836 = vadd.f32 0.0, %v3835
      %v3837 = vpop.f32.mrf.mxu0
      %3838 = vmatprep.mubr.f32.mxu0 0.0
      %3839 = vmatmul.mubr.f32.gmra.mxu0 %v3641
      %v3840 = vpop.f32.mrf.mxu0
      %v3841 = vadd.f32 0.0, %v3840
      %v3842 = vpop.f32.mrf.mxu0
      %3843 = vmatprep.mubr.f32.mxu0 0.0
      %3844 = vmatmul.mubr.f32.gmra.mxu0 %v3644
      %v3845 = vpop.f32.mrf.mxu0
      %v3846 = vadd.f32 0.0, %v3845
      %v3847 = vpop.f32.mrf.mxu0
      %3848 = vmatprep.mubr.f32.mxu0 0.0
      %3849 = vmatmul.mubr.f32.gmra.mxu0 %v3647
      %v3850 = vpop.f32.mrf.mxu0
      %v3851 = vadd.f32 0.0, %v3850
      %v3852 = vpop.f32.mrf.mxu0
      %3853 = vmatprep.mubr.f32.mxu0 0.0
      %3854 = vmatmul.mubr.f32.gmra.mxu0 %v3650
      %v3855 = vpop.f32.mrf.mxu0
      %v3856 = vadd.f32 0.0, %v3855
      %v3857 = vpop.f32.mrf.mxu0
      %3858 = vmatprep.mubr.f32.mxu0 0.0
      %3859 = vmatmul.mubr.f32.gmra.mxu0 %v3653
      %v3860 = vpop.f32.mrf.mxu0
      %v3861 = vadd.f32 0.0, %v3860
      %v3862 = vpop.f32.mrf.mxu0
      %3863 = vmatprep.mubr.f32.mxu0 0.0
      %3864 = vmatmul.mubr.f32.gmra.mxu0 %v3656
      %v3865 = vpop.f32.mrf.mxu0
      %v3866 = vadd.f32 0.0, %v3865
      %v3867 = vpop.f32.mrf.mxu0
      %3868 = vmatprep.mubr.f32.mxu0 0.0
      %3869 = vmatmul.mubr.f32.gmra.mxu0 %v3659
      %v3870 = vpop.f32.mrf.mxu0
      %v3871 = vadd.f32 0.0, %v3870
      %v3872 = vpop.f32.mrf.mxu0
      %3873 = vmatprep.mubr.f32.mxu0 0.0
      %3874 = vmatmul.mubr.f32.gmra.mxu0 %v3662
      %v3875 = vpop.f32.mrf.mxu0
      %v3876 = vadd.f32 0.0, %v3875
      %v3877 = vpop.f32.mrf.mxu0
      %3878 = vmatprep.mubr.f32.mxu0 0.0
      %3879 = vmatmul.mubr.f32.gmra.mxu0 %v3665
      %v3880 = vpop.f32.mrf.mxu0
      %v3881 = vadd.f32 0.0, %v3880
      %v3882 = vpop.f32.mrf.mxu0
      %3883 = vmatprep.mubr.f32.mxu0 0.0
      %3884 = vmatmul.mubr.f32.gmra.mxu0 %v3668
      %v3885 = vpop.f32.mrf.mxu0
      %v3886 = vadd.f32 0.0, %v3885
      %v3887 = vpop.f32.mrf.mxu0
      %3888 = vmatprep.mubr.f32.mxu0 0.0
      %3889 = vmatmul.mubr.f32.gmra.mxu0 %v3671
      %v3890 = vpop.f32.mrf.mxu0
      %v3891 = vadd.f32 0.0, %v3890
      %v3892 = vpop.f32.mrf.mxu0
      %3893 = vmatprep.mubr.f32.mxu0 0.0
      %3894 = vmatmul.mubr.f32.gmra.mxu0 %v3674
      %v3895 = vpop.f32.mrf.mxu0
      %v3896 = vadd.f32 0.0, %v3895
      %v3897 = vpop.f32.mrf.mxu0
      %3898 = vmatprep.mubr.f32.mxu0 0.0
      %3899 = vmatmul.mubr.f32.gmra.mxu0 %v3677
      %v3900 = vpop.f32.mrf.mxu0
      %v3901 = vadd.f32 0.0, %v3900
      %v3902 = vpop.f32.mrf.mxu0
      %3903 = vdwg.mxu0
      %v3904 = vadd.f32 %v3485, %v3746
      %v3905 = vadd.f32 %v3486, %v3751
      %v3906 = vadd.f32 %v3487, %v3756
      %v3907 = vadd.f32 %v3488, %v3761
      %v3908 = vadd.f32 %v3489, %v3766
      %v3909 = vadd.f32 %v3490, %v3771
      %v3910 = vadd.f32 %v3491, %v3776
      %v3911 = vadd.f32 %v3492, %v3781
      %v3912 = vadd.f32 %v3493, %v3786
      %v3913 = vadd.f32 %v3494, %v3791
      %v3914 = vadd.f32 %v3495, %v3796
      %v3915 = vadd.f32 %v3496, %v3801
      %v3916 = vadd.f32 %v3497, %v3806
      %v3917 = vadd.f32 %v3498, %v3811
      %v3918 = vadd.f32 %v3499, %v3816
      %v3919 = vadd.f32 %v3500, %v3821
      %v3920 = vadd.f32 %v3501, %v3826
      %v3921 = vadd.f32 %v3502, %v3831
      %v3922 = vadd.f32 %v3503, %v3836
      %v3923 = vadd.f32 %v3504, %v3841
      %v3924 = vadd.f32 %v3505, %v3846
      %v3925 = vadd.f32 %v3506, %v3851
      %v3926 = vadd.f32 %v3507, %v3856
      %v3927 = vadd.f32 %v3508, %v3861
      %v3928 = vadd.f32 %v3509, %v3866
      %v3929 = vadd.f32 %v3510, %v3871
      %v3930 = vadd.f32 %v3511, %v3876
      %v3931 = vadd.f32 %v3512, %v3881
      %v3932 = vadd.f32 %v3513, %v3886
      %v3933 = vadd.f32 %v3514, %v3891
      %v3934 = vadd.f32 %v3515, %v3896
      %v3935 = vadd.f32 %v3516, %v3901
      %v3936 = vld [vmem:[#allocation2 + $0x28] sm:$0xff]
      %v3937 = vld [vmem:[#allocation2 + $0x30] sm:$0xff]
      %v3938 = vld [vmem:[#allocation2 + $0x38] sm:$0xff]
      %v3939 = vld [vmem:[#allocation2 + $0x40] sm:$0xff]
      %v3940 = vld [vmem:[#allocation2 + $0x48] sm:$0xff]
      %v3941 = vld [vmem:[#allocation2 + $0x50] sm:$0xff]
      %v3942 = vld [vmem:[#allocation2 + $0x58] sm:$0xff]
      %v3943 = vld [vmem:[#allocation2 + $0x60] sm:$0xff]
      %v3944 = vld [vmem:[#allocation2 + $0x68] sm:$0xff]
      %v3945 = vld [vmem:[#allocation2 + $0x70] sm:$0xff]
      %v3946 = vld [vmem:[#allocation2 + $0x78] sm:$0xff]
      %v3947 = vld [vmem:[#allocation2 + $0x80] sm:$0xff]
      %v3948 = vld [vmem:[#allocation2 + $0x88] sm:$0xff]
      %v3949 = vld [vmem:[#allocation2 + $0x90] sm:$0xff]
      %v3950 = vld [vmem:[#allocation2 + $0x98] sm:$0xff]
      %v3951 = vld [vmem:[#allocation2 + $0xa0] sm:$0xff]
      %v3952 = vld [vmem:[#allocation2 + $0xa8] sm:$0xff]
      %v3953 = vld [vmem:[#allocation2 + $0xb0] sm:$0xff]
      %v3954 = vld [vmem:[#allocation2 + $0xb8] sm:$0xff]
      %v3955 = vld [vmem:[#allocation2 + $0xc0] sm:$0xff]
      %v3956 = vld [vmem:[#allocation2 + $0xc8] sm:$0xff]
      %v3957 = vld [vmem:[#allocation2 + $0xd0] sm:$0xff]
      %v3958 = vld [vmem:[#allocation2 + $0xd8] sm:$0xff]
      %v3959 = vld [vmem:[#allocation2 + $0xe0] sm:$0xff]
      %v3960 = vld [vmem:[#allocation2 + $0xe8] sm:$0xff]
      %v3961 = vld [vmem:[#allocation2 + $0xf0] sm:$0xff]
      %v3962 = vld [vmem:[#allocation2 + $0xf8] sm:$0xff]
      %v3963 = vld [vmem:[#allocation2 + $0x100] sm:$0xff]
      %v3964 = vld [vmem:[#allocation2 + $0x108] sm:$0xff]
      %v3965 = vld [vmem:[#allocation2 + $0x110] sm:$0xff]
      %v3966 = vld [vmem:[#allocation2 + $0x118] sm:$0xff]
      %v3967 = vld [vmem:[#allocation2 + $0x120] sm:$0xff]
      %v3968 = vld [vmem:[%s3 + $0x70] sm:$0xff]
      %v3969 = vld [vmem:[%s3 + $0x78] sm:$0xff]
      %v3971 = vsel %vm323, %v3936, 0
      %v3974 = vsel %vm323, %v3937, 0
      %v3977 = vsel %vm323, %v3938, 0
      %v3980 = vsel %vm323, %v3939, 0
      %v3983 = vsel %vm323, %v3940, 0
      %v3986 = vsel %vm323, %v3941, 0
      %v3989 = vsel %vm323, %v3942, 0
      %v3992 = vsel %vm323, %v3943, 0
      %v3995 = vsel %vm323, %v3944, 0
      %v3998 = vsel %vm323, %v3945, 0
      %v4001 = vsel %vm323, %v3946, 0
      %v4004 = vsel %vm323, %v3947, 0
      %v4007 = vsel %vm323, %v3948, 0
      %v4010 = vsel %vm323, %v3949, 0
      %v4013 = vsel %vm323, %v3950, 0
      %v4016 = vsel %vm323, %v3951, 0
      %v4019 = vsel %vm323, %v3952, 0
      %v4022 = vsel %vm323, %v3953, 0
      %v4025 = vsel %vm323, %v3954, 0
      %v4028 = vsel %vm323, %v3955, 0
      %v4031 = vsel %vm323, %v3956, 0
      %v4034 = vsel %vm323, %v3957, 0
      %v4037 = vsel %vm323, %v3958, 0
      %v4040 = vsel %vm323, %v3959, 0
      %v4043 = vsel %vm323, %v3960, 0
      %v4046 = vsel %vm323, %v3961, 0
      %v4049 = vsel %vm323, %v3962, 0
      %v4052 = vsel %vm323, %v3963, 0
      %v4055 = vsel %vm323, %v3964, 0
      %v4058 = vsel %vm323, %v3965, 0
      %v4061 = vsel %vm323, %v3966, 0
      %v4064 = vsel %vm323, %v3967, 0
      %4066 = vmatprep.subr.mxu0 0.0
      %4067 = vmatpush1.msra.mxu0 0.0
      %4068 = vmatprep.subr.mxu0 0.0
      %4069 = vmatpush1.msra.mxu0 0.0
      %4070 = vmatprep.subr.mxu0 0.0
      %4071 = vmatpush1.msra.mxu0 0.0
      %4072 = vmatprep.subr.mxu0 0.0
      %4073 = vmatpush1.msra.mxu0 0.0
      %4074 = vmatprep.subr.mxu0 0.0
      %4075 = vmatpush1.msra.mxu0 0.0
      %4076 = vmatprep.subr.mxu0 0.0
      %4077 = vmatpush1.msra.mxu0 0.0
      %4078 = vmatprep.subr.mxu0 0.0
      %4079 = vmatpush1.msra.mxu0 0.0
      %4080 = vmatprep.subr.mxu0 0.0
      %4081 = vmatpush1.msra.mxu0 0.0
      %4082 = vmatprep.subr.mxu0 0.0
      %4083 = vmatpush1.msra.mxu0 0.0
      %4084 = vmatprep.subr.mxu0 0.0
      %4085 = vmatpush1.msra.mxu0 0.0
      %4086 = vmatprep.subr.mxu0 0.0
      %4087 = vmatpush1.msra.mxu0 0.0
      %4088 = vmatprep.subr.mxu0 0.0
      %4089 = vmatpush1.msra.mxu0 0.0
      %4090 = vmatprep.subr.mxu0 0.0
      %4091 = vmatpush1.msra.mxu0 0.0
      %4092 = vmatprep.subr.mxu0 0.0
      %4093 = vmatpush1.msra.mxu0 0.0
      %4094 = vmatprep.subr.mxu0 0.0
      %4095 = vmatpush1.msra.mxu0 %v3969
      %4096 = vmatprep.subr.mxu0 0.0
      %4097 = vmatpush1.msra.mxu0 %v3968
      %4098 = vmatprep.subr.mxu0 0.0
      %4099 = vmatpush2.msra.mxu0 0.0
      %4100 = vmatprep.subr.mxu0 0.0
      %4101 = vmatpush2.msra.mxu0 0.0
      %4102 = vmatprep.subr.mxu0 0.0
      %4103 = vmatpush2.msra.mxu0 0.0
      %4104 = vmatprep.subr.mxu0 0.0
      %4105 = vmatpush2.msra.mxu0 0.0
      %4106 = vmatprep.subr.mxu0 0.0
      %4107 = vmatpush2.msra.mxu0 0.0
      %4108 = vmatprep.subr.mxu0 0.0
      %4109 = vmatpush2.msra.mxu0 0.0
      %4110 = vmatprep.subr.mxu0 0.0
      %4111 = vmatpush2.msra.mxu0 0.0
      %4112 = vmatprep.subr.mxu0 0.0
      %4113 = vmatpush2.msra.mxu0 0.0
      %4114 = vmatprep.subr.mxu0 0.0
      %4115 = vmatpush2.msra.mxu0 0.0
      %4116 = vmatprep.subr.mxu0 0.0
      %4117 = vmatpush2.msra.mxu0 0.0
      %4118 = vmatprep.subr.mxu0 0.0
      %4119 = vmatpush2.msra.mxu0 0.0
      %4120 = vmatprep.subr.mxu0 0.0
      %4121 = vmatpush2.msra.mxu0 0.0
      %4122 = vmatprep.subr.mxu0 0.0
      %4123 = vmatpush2.msra.mxu0 0.0
      %4124 = vmatprep.subr.mxu0 0.0
      %4125 = vmatpush2.msra.mxu0 0.0
      %4126 = vmatprep.subr.mxu0 0.0
      %4127 = vmatpush2.msra.mxu0 0.0
      %4128 = vmatprep.subr.mxu0 0.0
      %4129 = vmatpush2.msra.mxu0 0.0
      %4130 = vmatprep.mubr.f32.mxu0 0.0
      %4131 = vmatmul.mubr.f32.gmra.mxu0 %v3971
      %v4132 = vpop.f32.mrf.mxu0
      %v4133 = vadd.f32 0.0, %v4132
      %v4134 = vpop.f32.mrf.mxu0
      %4135 = vmatprep.mubr.f32.mxu0 0.0
      %4136 = vmatmul.mubr.f32.gmra.mxu0 %v3974
      %v4137 = vpop.f32.mrf.mxu0
      %v4138 = vadd.f32 0.0, %v4137
      %v4139 = vpop.f32.mrf.mxu0
      %4140 = vmatprep.mubr.f32.mxu0 0.0
      %4141 = vmatmul.mubr.f32.gmra.mxu0 %v3977
      %v4142 = vpop.f32.mrf.mxu0
      %v4143 = vadd.f32 0.0, %v4142
      %v4144 = vpop.f32.mrf.mxu0
      %4145 = vmatprep.mubr.f32.mxu0 0.0
      %4146 = vmatmul.mubr.f32.gmra.mxu0 %v3980
      %v4147 = vpop.f32.mrf.mxu0
      %v4148 = vadd.f32 0.0, %v4147
      %v4149 = vpop.f32.mrf.mxu0
      %4150 = vmatprep.mubr.f32.mxu0 0.0
      %4151 = vmatmul.mubr.f32.gmra.mxu0 %v3983
      %v4152 = vpop.f32.mrf.mxu0
      %v4153 = vadd.f32 0.0, %v4152
      %v4154 = vpop.f32.mrf.mxu0
      %4155 = vmatprep.mubr.f32.mxu0 0.0
      %4156 = vmatmul.mubr.f32.gmra.mxu0 %v3986
      %v4157 = vpop.f32.mrf.mxu0
      %v4158 = vadd.f32 0.0, %v4157
      %v4159 = vpop.f32.mrf.mxu0
      %4160 = vmatprep.mubr.f32.mxu0 0.0
      %4161 = vmatmul.mubr.f32.gmra.mxu0 %v3989
      %v4162 = vpop.f32.mrf.mxu0
      %v4163 = vadd.f32 0.0, %v4162
      %v4164 = vpop.f32.mrf.mxu0
      %4165 = vmatprep.mubr.f32.mxu0 0.0
      %4166 = vmatmul.mubr.f32.gmra.mxu0 %v3992
      %v4167 = vpop.f32.mrf.mxu0
      %v4168 = vadd.f32 0.0, %v4167
      %v4169 = vpop.f32.mrf.mxu0
      %4170 = vmatprep.mubr.f32.mxu0 0.0
      %4171 = vmatmul.mubr.f32.gmra.mxu0 %v3995
      %v4172 = vpop.f32.mrf.mxu0
      %v4173 = vadd.f32 0.0, %v4172
      %v4174 = vpop.f32.mrf.mxu0
      %4175 = vmatprep.mubr.f32.mxu0 0.0
      %4176 = vmatmul.mubr.f32.gmra.mxu0 %v3998
      %v4177 = vpop.f32.mrf.mxu0
      %v4178 = vadd.f32 0.0, %v4177
      %v4179 = vpop.f32.mrf.mxu0
      %4180 = vmatprep.mubr.f32.mxu0 0.0
      %4181 = vmatmul.mubr.f32.gmra.mxu0 %v4001
      %v4182 = vpop.f32.mrf.mxu0
      %v4183 = vadd.f32 0.0, %v4182
      %v4184 = vpop.f32.mrf.mxu0
      %4185 = vmatprep.mubr.f32.mxu0 0.0
      %4186 = vmatmul.mubr.f32.gmra.mxu0 %v4004
      %v4187 = vpop.f32.mrf.mxu0
      %v4188 = vadd.f32 0.0, %v4187
      %v4189 = vpop.f32.mrf.mxu0
      %4190 = vmatprep.mubr.f32.mxu0 0.0
      %4191 = vmatmul.mubr.f32.gmra.mxu0 %v4007
      %v4192 = vpop.f32.mrf.mxu0
      %v4193 = vadd.f32 0.0, %v4192
      %v4194 = vpop.f32.mrf.mxu0
      %4195 = vmatprep.mubr.f32.mxu0 0.0
      %4196 = vmatmul.mubr.f32.gmra.mxu0 %v4010
      %v4197 = vpop.f32.mrf.mxu0
      %v4198 = vadd.f32 0.0, %v4197
      %v4199 = vpop.f32.mrf.mxu0
      %4200 = vmatprep.mubr.f32.mxu0 0.0
      %4201 = vmatmul.mubr.f32.gmra.mxu0 %v4013
      %v4202 = vpop.f32.mrf.mxu0
      %v4203 = vadd.f32 0.0, %v4202
      %v4204 = vpop.f32.mrf.mxu0
      %4205 = vmatprep.mubr.f32.mxu0 0.0
      %4206 = vmatmul.mubr.f32.gmra.mxu0 %v4016
      %v4207 = vpop.f32.mrf.mxu0
      %v4208 = vadd.f32 0.0, %v4207
      %v4209 = vpop.f32.mrf.mxu0
      %4210 = vmatprep.mubr.f32.mxu0 0.0
      %4211 = vmatmul.mubr.f32.gmra.mxu0 %v4019
      %v4212 = vpop.f32.mrf.mxu0
      %v4213 = vadd.f32 0.0, %v4212
      %v4214 = vpop.f32.mrf.mxu0
      %4215 = vmatprep.mubr.f32.mxu0 0.0
      %4216 = vmatmul.mubr.f32.gmra.mxu0 %v4022
      %v4217 = vpop.f32.mrf.mxu0
      %v4218 = vadd.f32 0.0, %v4217
      %v4219 = vpop.f32.mrf.mxu0
      %4220 = vmatprep.mubr.f32.mxu0 0.0
      %4221 = vmatmul.mubr.f32.gmra.mxu0 %v4025
      %v4222 = vpop.f32.mrf.mxu0
      %v4223 = vadd.f32 0.0, %v4222
      %v4224 = vpop.f32.mrf.mxu0
      %4225 = vmatprep.mubr.f32.mxu0 0.0
      %4226 = vmatmul.mubr.f32.gmra.mxu0 %v4028
      %v4227 = vpop.f32.mrf.mxu0
      %v4228 = vadd.f32 0.0, %v4227
      %v4229 = vpop.f32.mrf.mxu0
      %4230 = vmatprep.mubr.f32.mxu0 0.0
      %4231 = vmatmul.mubr.f32.gmra.mxu0 %v4031
      %v4232 = vpop.f32.mrf.mxu0
      %v4233 = vadd.f32 0.0, %v4232
      %v4234 = vpop.f32.mrf.mxu0
      %4235 = vmatprep.mubr.f32.mxu0 0.0
      %4236 = vmatmul.mubr.f32.gmra.mxu0 %v4034
      %v4237 = vpop.f32.mrf.mxu0
      %v4238 = vadd.f32 0.0, %v4237
      %v4239 = vpop.f32.mrf.mxu0
      %4240 = vmatprep.mubr.f32.mxu0 0.0
      %4241 = vmatmul.mubr.f32.gmra.mxu0 %v4037
      %v4242 = vpop.f32.mrf.mxu0
      %v4243 = vadd.f32 0.0, %v4242
      %v4244 = vpop.f32.mrf.mxu0
      %4245 = vmatprep.mubr.f32.mxu0 0.0
      %4246 = vmatmul.mubr.f32.gmra.mxu0 %v4040
      %v4247 = vpop.f32.mrf.mxu0
      %v4248 = vadd.f32 0.0, %v4247
      %v4249 = vpop.f32.mrf.mxu0
      %4250 = vmatprep.mubr.f32.mxu0 0.0
      %4251 = vmatmul.mubr.f32.gmra.mxu0 %v4043
      %v4252 = vpop.f32.mrf.mxu0
      %v4253 = vadd.f32 0.0, %v4252
      %v4254 = vpop.f32.mrf.mxu0
      %4255 = vmatprep.mubr.f32.mxu0 0.0
      %4256 = vmatmul.mubr.f32.gmra.mxu0 %v4046
      %v4257 = vpop.f32.mrf.mxu0
      %v4258 = vadd.f32 0.0, %v4257
      %v4259 = vpop.f32.mrf.mxu0
      %4260 = vmatprep.mubr.f32.mxu0 0.0
      %4261 = vmatmul.mubr.f32.gmra.mxu0 %v4049
      %v4262 = vpop.f32.mrf.mxu0
      %v4263 = vadd.f32 0.0, %v4262
      %v4264 = vpop.f32.mrf.mxu0
      %4265 = vmatprep.mubr.f32.mxu0 0.0
      %4266 = vmatmul.mubr.f32.gmra.mxu0 %v4052
      %v4267 = vpop.f32.mrf.mxu0
      %v4268 = vadd.f32 0.0, %v4267
      %v4269 = vpop.f32.mrf.mxu0
      %4270 = vmatprep.mubr.f32.mxu0 0.0
      %4271 = vmatmul.mubr.f32.gmra.mxu0 %v4055
      %v4272 = vpop.f32.mrf.mxu0
      %v4273 = vadd.f32 0.0, %v4272
      %v4274 = vpop.f32.mrf.mxu0
      %4275 = vmatprep.mubr.f32.mxu0 0.0
      %4276 = vmatmul.mubr.f32.gmra.mxu0 %v4058
      %v4277 = vpop.f32.mrf.mxu0
      %v4278 = vadd.f32 0.0, %v4277
      %v4279 = vpop.f32.mrf.mxu0
      %4280 = vmatprep.mubr.f32.mxu0 0.0
      %4281 = vmatmul.mubr.f32.gmra.mxu0 %v4061
      %v4282 = vpop.f32.mrf.mxu0
      %v4283 = vadd.f32 0.0, %v4282
      %v4284 = vpop.f32.mrf.mxu0
      %4285 = vmatprep.mubr.f32.mxu0 0.0
      %4286 = vmatmul.mubr.f32.gmra.mxu0 %v4064
      %v4287 = vpop.f32.mrf.mxu0
      %v4288 = vadd.f32 0.0, %v4287
      %v4289 = vpop.f32.mrf.mxu0
      %4290 = vdwg.mxu0
      %v4291 = vadd.f32 %v3904, %v4133
      %v4292 = vadd.f32 %v3905, %v4138
      %v4293 = vadd.f32 %v3906, %v4143
      %v4294 = vadd.f32 %v3907, %v4148
      %v4295 = vadd.f32 %v3908, %v4153
      %v4296 = vadd.f32 %v3909, %v4158
      %v4297 = vadd.f32 %v3910, %v4163
      %v4298 = vadd.f32 %v3911, %v4168
      %v4299 = vadd.f32 %v3912, %v4173
      %v4300 = vadd.f32 %v3913, %v4178
      %v4301 = vadd.f32 %v3914, %v4183
      %v4302 = vadd.f32 %v3915, %v4188
      %v4303 = vadd.f32 %v3916, %v4193
      %v4304 = vadd.f32 %v3917, %v4198
      %v4305 = vadd.f32 %v3918, %v4203
      %v4306 = vadd.f32 %v3919, %v4208
      %v4307 = vadd.f32 %v3920, %v4213
      %v4308 = vadd.f32 %v3921, %v4218
      %v4309 = vadd.f32 %v3922, %v4223
      %v4310 = vadd.f32 %v3923, %v4228
      %v4311 = vadd.f32 %v3924, %v4233
      %v4312 = vadd.f32 %v3925, %v4238
      %v4313 = vadd.f32 %v3926, %v4243
      %v4314 = vadd.f32 %v3927, %v4248
      %v4315 = vadd.f32 %v3928, %v4253
      %v4316 = vadd.f32 %v3929, %v4258
      %v4317 = vadd.f32 %v3930, %v4263
      %v4318 = vadd.f32 %v3931, %v4268
      %v4319 = vadd.f32 %v3932, %v4273
      %v4320 = vadd.f32 %v3933, %v4278
      %v4321 = vadd.f32 %v3934, %v4283
      %v4322 = vadd.f32 %v3935, %v4288
      %v4323 = vld [vmem:[#allocation2 + $0x29] sm:$0xff]
      %v4324 = vld [vmem:[#allocation2 + $0x31] sm:$0xff]
      %v4325 = vld [vmem:[#allocation2 + $0x39] sm:$0xff]
      %v4326 = vld [vmem:[#allocation2 + $0x41] sm:$0xff]
      %v4327 = vld [vmem:[#allocation2 + $0x49] sm:$0xff]
      %v4328 = vld [vmem:[#allocation2 + $0x51] sm:$0xff]
      %v4329 = vld [vmem:[#allocation2 + $0x59] sm:$0xff]
      %v4330 = vld [vmem:[#allocation2 + $0x61] sm:$0xff]
      %v4331 = vld [vmem:[#allocation2 + $0x69] sm:$0xff]
      %v4332 = vld [vmem:[#allocation2 + $0x71] sm:$0xff]
      %v4333 = vld [vmem:[#allocation2 + $0x79] sm:$0xff]
      %v4334 = vld [vmem:[#allocation2 + $0x81] sm:$0xff]
      %v4335 = vld [vmem:[#allocation2 + $0x89] sm:$0xff]
      %v4336 = vld [vmem:[#allocation2 + $0x91] sm:$0xff]
      %v4337 = vld [vmem:[#allocation2 + $0x99] sm:$0xff]
      %v4338 = vld [vmem:[#allocation2 + $0xa1] sm:$0xff]
      %v4339 = vld [vmem:[#allocation2 + $0xa9] sm:$0xff]
      %v4340 = vld [vmem:[#allocation2 + $0xb1] sm:$0xff]
      %v4341 = vld [vmem:[#allocation2 + $0xb9] sm:$0xff]
      %v4342 = vld [vmem:[#allocation2 + $0xc1] sm:$0xff]
      %v4343 = vld [vmem:[#allocation2 + $0xc9] sm:$0xff]
      %v4344 = vld [vmem:[#allocation2 + $0xd1] sm:$0xff]
      %v4345 = vld [vmem:[#allocation2 + $0xd9] sm:$0xff]
      %v4346 = vld [vmem:[#allocation2 + $0xe1] sm:$0xff]
      %v4347 = vld [vmem:[#allocation2 + $0xe9] sm:$0xff]
      %v4348 = vld [vmem:[#allocation2 + $0xf1] sm:$0xff]
      %v4349 = vld [vmem:[#allocation2 + $0xf9] sm:$0xff]
      %v4350 = vld [vmem:[#allocation2 + $0x101] sm:$0xff]
      %v4351 = vld [vmem:[#allocation2 + $0x109] sm:$0xff]
      %v4352 = vld [vmem:[#allocation2 + $0x111] sm:$0xff]
      %v4353 = vld [vmem:[#allocation2 + $0x119] sm:$0xff]
      %v4354 = vld [vmem:[#allocation2 + $0x121] sm:$0xff]
      %v4355 = vmul.f32 %v4323, %v1748
      %v4356 = vmul.f32 %v4324, %v1753
      %v4357 = vmul.f32 %v4325, %v1758
      %v4358 = vmul.f32 %v4326, %v1763
      %v4359 = vmul.f32 %v4327, %v1768
      %v4360 = vmul.f32 %v4328, %v1773
      %v4361 = vmul.f32 %v4329, %v1778
      %v4362 = vmul.f32 %v4330, %v1783
      %v4363 = vmul.f32 %v4331, %v1788
      %v4364 = vmul.f32 %v4332, %v1793
      %v4365 = vmul.f32 %v4333, %v1798
      %v4366 = vmul.f32 %v4334, %v1803
      %v4367 = vmul.f32 %v4335, %v1808
      %v4368 = vmul.f32 %v4336, %v1813
      %v4369 = vmul.f32 %v4337, %v1818
      %v4370 = vmul.f32 %v4338, %v1823
      %v4371 = vmul.f32 %v4339, %v1828
      %v4372 = vmul.f32 %v4340, %v1833
      %v4373 = vmul.f32 %v4341, %v1838
      %v4374 = vmul.f32 %v4342, %v1843
      %v4375 = vmul.f32 %v4343, %v1848
      %v4376 = vmul.f32 %v4344, %v1853
      %v4377 = vmul.f32 %v4345, %v1858
      %v4378 = vmul.f32 %v4346, %v1863
      %v4379 = vmul.f32 %v4347, %v1868
      %v4380 = vmul.f32 %v4348, %v1873
      %v4381 = vmul.f32 %v4349, %v1878
      %v4382 = vmul.f32 %v4350, %v1883
      %v4383 = vmul.f32 %v4351, %v1888
      %v4384 = vmul.f32 %v4352, %v1893
      %v4385 = vmul.f32 %v4353, %v1898
      %v4386 = vmul.f32 %v4354, %v1903
      %v4387 = vld [vmem:[%s3 + $0x80] sm:$0xff]
      %v4388 = vld [vmem:[%s3 + $0x88] sm:$0xff]
      %v4390 = vsel %vm323, %v4355, 0
      %v4393 = vsel %vm323, %v4356, 0
      %v4396 = vsel %vm323, %v4357, 0
      %v4399 = vsel %vm323, %v4358, 0
      %v4402 = vsel %vm323, %v4359, 0
      %v4405 = vsel %vm323, %v4360, 0
      %v4408 = vsel %vm323, %v4361, 0
      %v4411 = vsel %vm323, %v4362, 0
      %v4414 = vsel %vm323, %v4363, 0
      %v4417 = vsel %vm323, %v4364, 0
      %v4420 = vsel %vm323, %v4365, 0
      %v4423 = vsel %vm323, %v4366, 0
      %v4426 = vsel %vm323, %v4367, 0
      %v4429 = vsel %vm323, %v4368, 0
      %v4432 = vsel %vm323, %v4369, 0
      %v4435 = vsel %vm323, %v4370, 0
      %v4438 = vsel %vm323, %v4371, 0
      %v4441 = vsel %vm323, %v4372, 0
      %v4444 = vsel %vm323, %v4373, 0
      %v4447 = vsel %vm323, %v4374, 0
      %v4450 = vsel %vm323, %v4375, 0
      %v4453 = vsel %vm323, %v4376, 0
      %v4456 = vsel %vm323, %v4377, 0
      %v4459 = vsel %vm323, %v4378, 0
      %v4462 = vsel %vm323, %v4379, 0
      %v4465 = vsel %vm323, %v4380, 0
      %v4468 = vsel %vm323, %v4381, 0
      %v4471 = vsel %vm323, %v4382, 0
      %v4474 = vsel %vm323, %v4383, 0
      %v4477 = vsel %vm323, %v4384, 0
      %v4480 = vsel %vm323, %v4385, 0
      %v4483 = vsel %vm323, %v4386, 0
      %4485 = vmatprep.subr.mxu0 0.0
      %4486 = vmatpush1.msra.mxu0 0.0
      %4487 = vmatprep.subr.mxu0 0.0
      %4488 = vmatpush1.msra.mxu0 0.0
      %4489 = vmatprep.subr.mxu0 0.0
      %4490 = vmatpush1.msra.mxu0 0.0
      %4491 = vmatprep.subr.mxu0 0.0
      %4492 = vmatpush1.msra.mxu0 0.0
      %4493 = vmatprep.subr.mxu0 0.0
      %4494 = vmatpush1.msra.mxu0 0.0
      %4495 = vmatprep.subr.mxu0 0.0
      %4496 = vmatpush1.msra.mxu0 0.0
      %4497 = vmatprep.subr.mxu0 0.0
      %4498 = vmatpush1.msra.mxu0 0.0
      %4499 = vmatprep.subr.mxu0 0.0
      %4500 = vmatpush1.msra.mxu0 0.0
      %4501 = vmatprep.subr.mxu0 0.0
      %4502 = vmatpush1.msra.mxu0 0.0
      %4503 = vmatprep.subr.mxu0 0.0
      %4504 = vmatpush1.msra.mxu0 0.0
      %4505 = vmatprep.subr.mxu0 0.0
      %4506 = vmatpush1.msra.mxu0 0.0
      %4507 = vmatprep.subr.mxu0 0.0
      %4508 = vmatpush1.msra.mxu0 0.0
      %4509 = vmatprep.subr.mxu0 0.0
      %4510 = vmatpush1.msra.mxu0 0.0
      %4511 = vmatprep.subr.mxu0 0.0
      %4512 = vmatpush1.msra.mxu0 0.0
      %4513 = vmatprep.subr.mxu0 0.0
      %4514 = vmatpush1.msra.mxu0 %v4388
      %4515 = vmatprep.subr.mxu0 0.0
      %4516 = vmatpush1.msra.mxu0 %v4387
      %4517 = vmatprep.subr.mxu0 0.0
      %4518 = vmatpush2.msra.mxu0 0.0
      %4519 = vmatprep.subr.mxu0 0.0
      %4520 = vmatpush2.msra.mxu0 0.0
      %4521 = vmatprep.subr.mxu0 0.0
      %4522 = vmatpush2.msra.mxu0 0.0
      %4523 = vmatprep.subr.mxu0 0.0
      %4524 = vmatpush2.msra.mxu0 0.0
      %4525 = vmatprep.subr.mxu0 0.0
      %4526 = vmatpush2.msra.mxu0 0.0
      %4527 = vmatprep.subr.mxu0 0.0
      %4528 = vmatpush2.msra.mxu0 0.0
      %4529 = vmatprep.subr.mxu0 0.0
      %4530 = vmatpush2.msra.mxu0 0.0
      %4531 = vmatprep.subr.mxu0 0.0
      %4532 = vmatpush2.msra.mxu0 0.0
      %4533 = vmatprep.subr.mxu0 0.0
      %4534 = vmatpush2.msra.mxu0 0.0
      %4535 = vmatprep.subr.mxu0 0.0
      %4536 = vmatpush2.msra.mxu0 0.0
      %4537 = vmatprep.subr.mxu0 0.0
      %4538 = vmatpush2.msra.mxu0 0.0
      %4539 = vmatprep.subr.mxu0 0.0
      %4540 = vmatpush2.msra.mxu0 0.0
      %4541 = vmatprep.subr.mxu0 0.0
      %4542 = vmatpush2.msra.mxu0 0.0
      %4543 = vmatprep.subr.mxu0 0.0
      %4544 = vmatpush2.msra.mxu0 0.0
      %4545 = vmatprep.subr.mxu0 0.0
      %4546 = vmatpush2.msra.mxu0 0.0
      %4547 = vmatprep.subr.mxu0 0.0
      %4548 = vmatpush2.msra.mxu0 0.0
      %4549 = vmatprep.mubr.f32.mxu0 0.0
      %4550 = vmatmul.mubr.f32.gmra.mxu0 %v4390
      %v4551 = vpop.f32.mrf.mxu0
      %v4552 = vadd.f32 0.0, %v4551
      %v4553 = vpop.f32.mrf.mxu0
      %4554 = vmatprep.mubr.f32.mxu0 0.0
      %4555 = vmatmul.mubr.f32.gmra.mxu0 %v4393
      %v4556 = vpop.f32.mrf.mxu0
      %v4557 = vadd.f32 0.0, %v4556
      %v4558 = vpop.f32.mrf.mxu0
      %4559 = vmatprep.mubr.f32.mxu0 0.0
      %4560 = vmatmul.mubr.f32.gmra.mxu0 %v4396
      %v4561 = vpop.f32.mrf.mxu0
      %v4562 = vadd.f32 0.0, %v4561
      %v4563 = vpop.f32.mrf.mxu0
      %4564 = vmatprep.mubr.f32.mxu0 0.0
      %4565 = vmatmul.mubr.f32.gmra.mxu0 %v4399
      %v4566 = vpop.f32.mrf.mxu0
      %v4567 = vadd.f32 0.0, %v4566
      %v4568 = vpop.f32.mrf.mxu0
      %4569 = vmatprep.mubr.f32.mxu0 0.0
      %4570 = vmatmul.mubr.f32.gmra.mxu0 %v4402
      %v4571 = vpop.f32.mrf.mxu0
      %v4572 = vadd.f32 0.0, %v4571
      %v4573 = vpop.f32.mrf.mxu0
      %4574 = vmatprep.mubr.f32.mxu0 0.0
      %4575 = vmatmul.mubr.f32.gmra.mxu0 %v4405
      %v4576 = vpop.f32.mrf.mxu0
      %v4577 = vadd.f32 0.0, %v4576
      %v4578 = vpop.f32.mrf.mxu0
      %4579 = vmatprep.mubr.f32.mxu0 0.0
      %4580 = vmatmul.mubr.f32.gmra.mxu0 %v4408
      %v4581 = vpop.f32.mrf.mxu0
      %v4582 = vadd.f32 0.0, %v4581
      %v4583 = vpop.f32.mrf.mxu0
      %4584 = vmatprep.mubr.f32.mxu0 0.0
      %4585 = vmatmul.mubr.f32.gmra.mxu0 %v4411
      %v4586 = vpop.f32.mrf.mxu0
      %v4587 = vadd.f32 0.0, %v4586
      %v4588 = vpop.f32.mrf.mxu0
      %4589 = vmatprep.mubr.f32.mxu0 0.0
      %4590 = vmatmul.mubr.f32.gmra.mxu0 %v4414
      %v4591 = vpop.f32.mrf.mxu0
      %v4592 = vadd.f32 0.0, %v4591
      %v4593 = vpop.f32.mrf.mxu0
      %4594 = vmatprep.mubr.f32.mxu0 0.0
      %4595 = vmatmul.mubr.f32.gmra.mxu0 %v4417
      %v4596 = vpop.f32.mrf.mxu0
      %v4597 = vadd.f32 0.0, %v4596
      %v4598 = vpop.f32.mrf.mxu0
      %4599 = vmatprep.mubr.f32.mxu0 0.0
      %4600 = vmatmul.mubr.f32.gmra.mxu0 %v4420
      %v4601 = vpop.f32.mrf.mxu0
      %v4602 = vadd.f32 0.0, %v4601
      %v4603 = vpop.f32.mrf.mxu0
      %4604 = vmatprep.mubr.f32.mxu0 0.0
      %4605 = vmatmul.mubr.f32.gmra.mxu0 %v4423
      %v4606 = vpop.f32.mrf.mxu0
      %v4607 = vadd.f32 0.0, %v4606
      %v4608 = vpop.f32.mrf.mxu0
      %4609 = vmatprep.mubr.f32.mxu0 0.0
      %4610 = vmatmul.mubr.f32.gmra.mxu0 %v4426
      %v4611 = vpop.f32.mrf.mxu0
      %v4612 = vadd.f32 0.0, %v4611
      %v4613 = vpop.f32.mrf.mxu0
      %4614 = vmatprep.mubr.f32.mxu0 0.0
      %4615 = vmatmul.mubr.f32.gmra.mxu0 %v4429
      %v4616 = vpop.f32.mrf.mxu0
      %v4617 = vadd.f32 0.0, %v4616
      %v4618 = vpop.f32.mrf.mxu0
      %4619 = vmatprep.mubr.f32.mxu0 0.0
      %4620 = vmatmul.mubr.f32.gmra.mxu0 %v4432
      %v4621 = vpop.f32.mrf.mxu0
      %v4622 = vadd.f32 0.0, %v4621
      %v4623 = vpop.f32.mrf.mxu0
      %4624 = vmatprep.mubr.f32.mxu0 0.0
      %4625 = vmatmul.mubr.f32.gmra.mxu0 %v4435
      %v4626 = vpop.f32.mrf.mxu0
      %v4627 = vadd.f32 0.0, %v4626
      %v4628 = vpop.f32.mrf.mxu0
      %4629 = vmatprep.mubr.f32.mxu0 0.0
      %4630 = vmatmul.mubr.f32.gmra.mxu0 %v4438
      %v4631 = vpop.f32.mrf.mxu0
      %v4632 = vadd.f32 0.0, %v4631
      %v4633 = vpop.f32.mrf.mxu0
      %4634 = vmatprep.mubr.f32.mxu0 0.0
      %4635 = vmatmul.mubr.f32.gmra.mxu0 %v4441
      %v4636 = vpop.f32.mrf.mxu0
      %v4637 = vadd.f32 0.0, %v4636
      %v4638 = vpop.f32.mrf.mxu0
      %4639 = vmatprep.mubr.f32.mxu0 0.0
      %4640 = vmatmul.mubr.f32.gmra.mxu0 %v4444
      %v4641 = vpop.f32.mrf.mxu0
      %v4642 = vadd.f32 0.0, %v4641
      %v4643 = vpop.f32.mrf.mxu0
      %4644 = vmatprep.mubr.f32.mxu0 0.0
      %4645 = vmatmul.mubr.f32.gmra.mxu0 %v4447
      %v4646 = vpop.f32.mrf.mxu0
      %v4647 = vadd.f32 0.0, %v4646
      %v4648 = vpop.f32.mrf.mxu0
      %4649 = vmatprep.mubr.f32.mxu0 0.0
      %4650 = vmatmul.mubr.f32.gmra.mxu0 %v4450
      %v4651 = vpop.f32.mrf.mxu0
      %v4652 = vadd.f32 0.0, %v4651
      %v4653 = vpop.f32.mrf.mxu0
      %4654 = vmatprep.mubr.f32.mxu0 0.0
      %4655 = vmatmul.mubr.f32.gmra.mxu0 %v4453
      %v4656 = vpop.f32.mrf.mxu0
      %v4657 = vadd.f32 0.0, %v4656
      %v4658 = vpop.f32.mrf.mxu0
      %4659 = vmatprep.mubr.f32.mxu0 0.0
      %4660 = vmatmul.mubr.f32.gmra.mxu0 %v4456
      %v4661 = vpop.f32.mrf.mxu0
      %v4662 = vadd.f32 0.0, %v4661
      %v4663 = vpop.f32.mrf.mxu0
      %4664 = vmatprep.mubr.f32.mxu0 0.0
      %4665 = vmatmul.mubr.f32.gmra.mxu0 %v4459
      %v4666 = vpop.f32.mrf.mxu0
      %v4667 = vadd.f32 0.0, %v4666
      %v4668 = vpop.f32.mrf.mxu0
      %4669 = vmatprep.mubr.f32.mxu0 0.0
      %4670 = vmatmul.mubr.f32.gmra.mxu0 %v4462
      %v4671 = vpop.f32.mrf.mxu0
      %v4672 = vadd.f32 0.0, %v4671
      %v4673 = vpop.f32.mrf.mxu0
      %4674 = vmatprep.mubr.f32.mxu0 0.0
      %4675 = vmatmul.mubr.f32.gmra.mxu0 %v4465
      %v4676 = vpop.f32.mrf.mxu0
      %v4677 = vadd.f32 0.0, %v4676
      %v4678 = vpop.f32.mrf.mxu0
      %4679 = vmatprep.mubr.f32.mxu0 0.0
      %4680 = vmatmul.mubr.f32.gmra.mxu0 %v4468
      %v4681 = vpop.f32.mrf.mxu0
      %v4682 = vadd.f32 0.0, %v4681
      %v4683 = vpop.f32.mrf.mxu0
      %4684 = vmatprep.mubr.f32.mxu0 0.0
      %4685 = vmatmul.mubr.f32.gmra.mxu0 %v4471
      %v4686 = vpop.f32.mrf.mxu0
      %v4687 = vadd.f32 0.0, %v4686
      %v4688 = vpop.f32.mrf.mxu0
      %4689 = vmatprep.mubr.f32.mxu0 0.0
      %4690 = vmatmul.mubr.f32.gmra.mxu0 %v4474
      %v4691 = vpop.f32.mrf.mxu0
      %v4692 = vadd.f32 0.0, %v4691
      %v4693 = vpop.f32.mrf.mxu0
      %4694 = vmatprep.mubr.f32.mxu0 0.0
      %4695 = vmatmul.mubr.f32.gmra.mxu0 %v4477
      %v4696 = vpop.f32.mrf.mxu0
      %v4697 = vadd.f32 0.0, %v4696
      %v4698 = vpop.f32.mrf.mxu0
      %4699 = vmatprep.mubr.f32.mxu0 0.0
      %4700 = vmatmul.mubr.f32.gmra.mxu0 %v4480
      %v4701 = vpop.f32.mrf.mxu0
      %v4702 = vadd.f32 0.0, %v4701
      %v4703 = vpop.f32.mrf.mxu0
      %4704 = vmatprep.mubr.f32.mxu0 0.0
      %4705 = vmatmul.mubr.f32.gmra.mxu0 %v4483
      %v4706 = vpop.f32.mrf.mxu0
      %v4707 = vadd.f32 0.0, %v4706
      %v4708 = vpop.f32.mrf.mxu0
      %4709 = vdwg.mxu0
      %v4710 = vadd.f32 %v4291, %v4552
      %v4711 = vadd.f32 %v4292, %v4557
      %v4712 = vadd.f32 %v4293, %v4562
      %v4713 = vadd.f32 %v4294, %v4567
      %v4714 = vadd.f32 %v4295, %v4572
      %v4715 = vadd.f32 %v4296, %v4577
      %v4716 = vadd.f32 %v4297, %v4582
      %v4717 = vadd.f32 %v4298, %v4587
      %v4718 = vadd.f32 %v4299, %v4592
      %v4719 = vadd.f32 %v4300, %v4597
      %v4720 = vadd.f32 %v4301, %v4602
      %v4721 = vadd.f32 %v4302, %v4607
      %v4722 = vadd.f32 %v4303, %v4612
      %v4723 = vadd.f32 %v4304, %v4617
      %v4724 = vadd.f32 %v4305, %v4622
      %v4725 = vadd.f32 %v4306, %v4627
      %v4726 = vadd.f32 %v4307, %v4632
      %v4727 = vadd.f32 %v4308, %v4637
      %v4728 = vadd.f32 %v4309, %v4642
      %v4729 = vadd.f32 %v4310, %v4647
      %v4730 = vadd.f32 %v4311, %v4652
      %v4731 = vadd.f32 %v4312, %v4657
      %v4732 = vadd.f32 %v4313, %v4662
      %v4733 = vadd.f32 %v4314, %v4667
      %v4734 = vadd.f32 %v4315, %v4672
      %v4735 = vadd.f32 %v4316, %v4677
      %v4736 = vadd.f32 %v4317, %v4682
      %v4737 = vadd.f32 %v4318, %v4687
      %v4738 = vadd.f32 %v4319, %v4692
      %v4739 = vadd.f32 %v4320, %v4697
      %v4740 = vadd.f32 %v4321, %v4702
      %v4741 = vadd.f32 %v4322, %v4707
      %v4742 = vld [vmem:[%s4] sm:$0x1]
      %v4744 = vlaneseq
      %v4745 = vshrl.u32 %v4744, 7
      %v4746 = vsub.s32 0, %v4745
      %v4747 = vrot.slane %v4742, %v4746
      %v4749 = vadd.f32 %v4710, %v4747
      %v4750 = vadd.f32 %v4711, %v4747
      %v4751 = vadd.f32 %v4712, %v4747
      %v4752 = vadd.f32 %v4713, %v4747
      %v4753 = vadd.f32 %v4714, %v4747
      %v4754 = vadd.f32 %v4715, %v4747
      %v4755 = vadd.f32 %v4716, %v4747
      %v4756 = vadd.f32 %v4717, %v4747
      %v4757 = vadd.f32 %v4718, %v4747
      %v4758 = vadd.f32 %v4719, %v4747
      %v4759 = vadd.f32 %v4720, %v4747
      %v4760 = vadd.f32 %v4721, %v4747
      %v4761 = vadd.f32 %v4722, %v4747
      %v4762 = vadd.f32 %v4723, %v4747
      %v4763 = vadd.f32 %v4724, %v4747
      %v4764 = vadd.f32 %v4725, %v4747
      %v4765 = vadd.f32 %v4726, %v4747
      %v4766 = vadd.f32 %v4727, %v4747
      %v4767 = vadd.f32 %v4728, %v4747
      %v4768 = vadd.f32 %v4729, %v4747
      %v4769 = vadd.f32 %v4730, %v4747
      %v4770 = vadd.f32 %v4731, %v4747
      %v4771 = vadd.f32 %v4732, %v4747
      %v4772 = vadd.f32 %v4733, %v4747
      %v4773 = vadd.f32 %v4734, %v4747
      %v4774 = vadd.f32 %v4735, %v4747
      %v4775 = vadd.f32 %v4736, %v4747
      %v4776 = vadd.f32 %v4737, %v4747
      %v4777 = vadd.f32 %v4738, %v4747
      %v4778 = vadd.f32 %v4739, %v4747
      %v4779 = vadd.f32 %v4740, %v4747
      %v4780 = vadd.f32 %v4741, %v4747
      %v4781 = vmax.f32 %v4749, 0.0
      %v4782 = vmax.f32 %v4750, 0.0
      %v4783 = vmax.f32 %v4751, 0.0
      %v4784 = vmax.f32 %v4752, 0.0
      %v4785 = vmax.f32 %v4753, 0.0
      %v4786 = vmax.f32 %v4754, 0.0
      %v4787 = vmax.f32 %v4755, 0.0
      %v4788 = vmax.f32 %v4756, 0.0
      %v4789 = vmax.f32 %v4757, 0.0
      %v4790 = vmax.f32 %v4758, 0.0
      %v4791 = vmax.f32 %v4759, 0.0
      %v4792 = vmax.f32 %v4760, 0.0
      %v4793 = vmax.f32 %v4761, 0.0
      %v4794 = vmax.f32 %v4762, 0.0
      %v4795 = vmax.f32 %v4763, 0.0
      %v4796 = vmax.f32 %v4764, 0.0
      %v4797 = vmax.f32 %v4765, 0.0
      %v4798 = vmax.f32 %v4766, 0.0
      %v4799 = vmax.f32 %v4767, 0.0
      %v4800 = vmax.f32 %v4768, 0.0
      %v4801 = vmax.f32 %v4769, 0.0
      %v4802 = vmax.f32 %v4770, 0.0
      %v4803 = vmax.f32 %v4771, 0.0
      %v4804 = vmax.f32 %v4772, 0.0
      %v4805 = vmax.f32 %v4773, 0.0
      %v4806 = vmax.f32 %v4774, 0.0
      %v4807 = vmax.f32 %v4775, 0.0
      %v4808 = vmax.f32 %v4776, 0.0
      %v4809 = vmax.f32 %v4777, 0.0
      %v4810 = vmax.f32 %v4778, 0.0
      %v4811 = vmax.f32 %v4779, 0.0
      %v4812 = vmax.f32 %v4780, 0.0
      %v4813 = vadd.f32 %v4781, %v282
      %v4814 = vadd.f32 %v4782, %v283
      %v4815 = vadd.f32 %v4783, %v284
      %v4816 = vadd.f32 %v4784, %v285
      %v4817 = vadd.f32 %v4785, %v286
      %v4818 = vadd.f32 %v4786, %v287
      %v4819 = vadd.f32 %v4787, %v288
      %v4820 = vadd.f32 %v4788, %v289
      %v4821 = vadd.f32 %v4789, %v290
      %v4822 = vadd.f32 %v4790, %v291
      %v4823 = vadd.f32 %v4791, %v292
      %v4824 = vadd.f32 %v4792, %v293
      %v4825 = vadd.f32 %v4793, %v294
      %v4826 = vadd.f32 %v4794, %v295
      %v4827 = vadd.f32 %v4795, %v296
      %v4828 = vadd.f32 %v4796, %v297
      %v4829 = vadd.f32 %v4797, %v298
      %v4830 = vadd.f32 %v4798, %v299
      %v4831 = vadd.f32 %v4799, %v300
      %v4832 = vadd.f32 %v4800, %v301
      %v4833 = vadd.f32 %v4801, %v302
      %v4834 = vadd.f32 %v4802, %v303
      %v4835 = vadd.f32 %v4803, %v304
      %v4836 = vadd.f32 %v4804, %v305
      %v4837 = vadd.f32 %v4805, %v306
      %v4838 = vadd.f32 %v4806, %v307
      %v4839 = vadd.f32 %v4807, %v308
      %v4840 = vadd.f32 %v4808, %v309
      %v4841 = vadd.f32 %v4809, %v310
      %v4842 = vadd.f32 %v4810, %v311
      %v4843 = vadd.f32 %v4811, %v312
      %v4844 = vadd.f32 %v4812, %v313
      %4845 = vst.msk [vmem:[%s280] sm:$0xff] %vm323, %v4813
      %4846 = vst.msk [vmem:[%s280 + $0x8] sm:$0xff] %vm323, %v4814
      %4847 = vst.msk [vmem:[%s280 + $0x10] sm:$0xff] %vm323, %v4815
      %4848 = vst.msk [vmem:[%s280 + $0x18] sm:$0xff] %vm323, %v4816
      %4849 = vst.msk [vmem:[%s280 + $0x20] sm:$0xff] %vm323, %v4817
      %4850 = vst.msk [vmem:[%s280 + $0x28] sm:$0xff] %vm323, %v4818
      %4851 = vst.msk [vmem:[%s280 + $0x30] sm:$0xff] %vm323, %v4819
      %4852 = vst.msk [vmem:[%s280 + $0x38] sm:$0xff] %vm323, %v4820
      %4853 = vst.msk [vmem:[%s280 + $0x40] sm:$0xff] %vm323, %v4821
      %4854 = vst.msk [vmem:[%s280 + $0x48] sm:$0xff] %vm323, %v4822
      %4855 = vst.msk [vmem:[%s280 + $0x50] sm:$0xff] %vm323, %v4823
      %4856 = vst.msk [vmem:[%s280 + $0x58] sm:$0xff] %vm323, %v4824
      %4857 = vst.msk [vmem:[%s280 + $0x60] sm:$0xff] %vm323, %v4825
      %4858 = vst.msk [vmem:[%s280 + $0x68] sm:$0xff] %vm323, %v4826
      %4859 = vst.msk [vmem:[%s280 + $0x70] sm:$0xff] %vm323, %v4827
      %4860 = vst.msk [vmem:[%s280 + $0x78] sm:$0xff] %vm323, %v4828
      %4861 = vst.msk [vmem:[%s280 + $0x80] sm:$0xff] %vm323, %v4829
      %4862 = vst.msk [vmem:[%s280 + $0x88] sm:$0xff] %vm323, %v4830
      %4863 = vst.msk [vmem:[%s280 + $0x90] sm:$0xff] %vm323, %v4831
      %4864 = vst.msk [vmem:[%s280 + $0x98] sm:$0xff] %vm323, %v4832
      %4865 = vst.msk [vmem:[%s280 + $0xa0] sm:$0xff] %vm323, %v4833
      %4866 = vst.msk [vmem:[%s280 + $0xa8] sm:$0xff] %vm323, %v4834
      %4867 = vst.msk [vmem:[%s280 + $0xb0] sm:$0xff] %vm323, %v4835
      %4868 = vst.msk [vmem:[%s280 + $0xb8] sm:$0xff] %vm323, %v4836
      %4869 = vst.msk [vmem:[%s280 + $0xc0] sm:$0xff] %vm323, %v4837
      %4870 = vst.msk [vmem:[%s280 + $0xc8] sm:$0xff] %vm323, %v4838
      %4871 = vst.msk [vmem:[%s280 + $0xd0] sm:$0xff] %vm323, %v4839
      %4872 = vst.msk [vmem:[%s280 + $0xd8] sm:$0xff] %vm323, %v4840
      %4873 = vst.msk [vmem:[%s280 + $0xe0] sm:$0xff] %vm323, %v4841
      %4874 = vst.msk [vmem:[%s280 + $0xe8] sm:$0xff] %vm323, %v4842
      %4875 = vst.msk [vmem:[%s280 + $0xf0] sm:$0xff] %vm323, %v4843
      %4876 = vst.msk [vmem:[%s280 + $0xf8] sm:$0xff] %vm323, %v4844
      %s4877 = smul.u32 32, %s18
      %p4878 = scmp.lt.s32.totalorder %s4877, 63
      %s4879 = scalar_select %p4878, %s4877, 63
      %s4880 = smul.addr %s4879, 8
      %s4881 = scalar_lea.vmem %s7, %s4880
      // Predicated region
      $region49: #{bottleneck_csp_forward.4} parent=47 // pred_check
        %p4882 = pneg %p188
      $region50: #{bottleneck_csp_forward.4} parent=47 // pred_check_branch
        %4884 = sbr.rel (%p4882) target = $region52
      $region51: #{bottleneck_csp_forward.4} parent=47 // pred_region
        %s4885 = smul.u32 32, %s18
      $region52: #{bottleneck_csp_forward.4} parent=47 // pred_fallthru
        _
    $region48: #{bottleneck_csp_forward.4} parent=5 // pred_fallthru
      _
    %p4886 = scmp.le.s32.totalorder 2, %s13
    // Predicated region
    $region53: #{bottleneck_csp_forward.4} parent=5 // pred_check
      %p4887 = pneg %p4886
    $region54: #{bottleneck_csp_forward.4} parent=5 // pred_check_branch
      %4889 = sbr.rel (%p4887) target = $region56
    $region55: #{bottleneck_csp_forward.4} parent=5 // pred_region
      %s4890 = ssub.s32 %s13, 2
      // Predicated region
      $region57: #{bottleneck_csp_forward.4} parent=55 // pred_check
        %p4891 = pneg %p194
      $region58: #{bottleneck_csp_forward.4} parent=55 // pred_check_branch
        %4893 = sbr.rel (%p4891) target = $region60
      $region59: #{bottleneck_csp_forward.4} parent=55 // pred_region
        %s4894 = smul.u32 32, %s19
        %p4895 = scmp.lt.s32.totalorder %s4894, 63
        %s4896 = scalar_select %p4895, %s4894, 63
        %s4897 = smul.addr %s4896, 8
        %s4898 = scalar_lea.vmem %s7, %s4897
      $region60: #{bottleneck_csp_forward.4} parent=55 // pred_fallthru
        _
    $region56: #{bottleneck_csp_forward.4} parent=5 // pred_fallthru
      _
  $region6: #{bottleneck_csp_forward.4} parent=0 // loop_footer
    %s17 = sadd.s32 1, %s13
  $region7: #{bottleneck_csp_forward.4} parent=0 // loop_footer_branch
    %12 = sbr.rel target = $region3
  $region8: #{bottleneck_csp_forward.4} parent=0 // loop_exit
    _

</llo_original>
